<compile_context>
chip_gen: v7x
topology: tpu7x:2x2x1
jax: 0.10.0
libtpu: 0.0.40
codegen_flags: <defaults>
</compile_context>

<pallas_src>
import jax
import jax.numpy as jnp
from jax import lax
from jax.experimental import pallas as pl
from jax.experimental.pallas import tpu as pltpu

EMBED_SIZE = 32
HIDDEN_SIZE = 64
SRC_VOCAB_SIZE = 16
TGT_VOCAB_SIZE = 16
SRC_LEN = 10
TGT_LEN = 8

HP = 128          # padded per-gate / hidden / vocab lane width (one vreg lane dim)
B_TILE = 8        # sequences per kernel invocation (sublane batch)
NEG_BIG = -1e30   # poison value for fc_b padding lanes


# ------------------------------ fused kernel ------------------------------- #
def seq2seq_kernel(src_oh_ref, tgt_oh_ref, tfm_ref,
                   enc_tab_ref, enc_whh_ref, enc_b_ref,
                   dec_w_ref, dec_b_ref, fc_w_ref, fc_b_ref,
                   out_ref, xg_ref):
    B = B_TILE
    P = HP
    S = SRC_LEN
    T = TGT_LEN

    lane = lax.broadcasted_iota(jnp.int32, (1, P), 1)

    def nonlin(gates, c):
        # packed gate layout [i|f|o|g]: one sigmoid over the first 3 segments,
        # tanh over the last; padding lanes stay exactly zero for h and c.
        sg = jax.nn.sigmoid(gates[:, :3 * P])
        g = jnp.tanh(gates[:, 3 * P:])
        i = sg[:, 0 * P:1 * P]
        f = sg[:, 1 * P:2 * P]
        o = sg[:, 2 * P:3 * P]
        c_new = f * c + i * g
        h_new = o * jnp.tanh(c_new)
        return h_new, c_new

    # ------------------------------ encoder ------------------------------- #
    # Input projection for ALL steps in one MXU call, kept in VMEM scratch so
    # it never sits in the register file across the unrolled recurrence.
    xg_ref[...] = jnp.dot(src_oh_ref[...], enc_tab_ref[...],
                          preferred_element_type=jnp.float32)

    h = jnp.zeros((B, P), jnp.float32)
    c = jnp.zeros((B, P), jnp.float32)
    for t in range(S):                       # fully unrolled (S static, small)
        gates = (xg_ref[pl.ds(t * B, B), :]
                 + jnp.dot(h, enc_whh_ref[...],
                           preferred_element_type=jnp.float32)
                 + enc_b_ref[...])
        h, c = nonlin(gates, c)

    # ------------------------------ decoder ------------------------------- #
    out_ref[pl.ds(0, B), :] = jnp.zeros((B, P), jnp.float32)   # outputs[0] = 0
    x_oh = tgt_oh_ref[pl.ds(0, B), :]                          # first input token

    for t in range(1, T):                    # fully unrolled (T static, small)
        # fused embedding/input-projection + recurrent matmul: one 256-deep dot
        xh = jnp.concatenate([x_oh, h], axis=1)                # (B, 2P)
        gates = jnp.dot(xh, dec_w_ref[...],
                        preferred_element_type=jnp.float32) + dec_b_ref[...]
        h, c = nonlin(gates, c)

        pred = jnp.dot(h, fc_w_ref[...],
                       preferred_element_type=jnp.float32) + fc_b_ref[...]
        out_ref[pl.ds(t * B, B), :] = pred                     # full-vreg store

        # greedy argmax; padding lanes already poisoned to -1e30 via fc_b,
        # tie-break = first max (matches torch.argmax).
        maxv = jnp.max(pred, axis=1, keepdims=True)
        cand = jnp.where(pred == maxv, lane, P)
        top1 = jnp.min(cand, axis=1, keepdims=True)            # (B,1) int32
        oh_pred = (lane == top1).astype(jnp.float32)
        oh_tgt = tgt_oh_ref[pl.ds(t * B, B), :]
        tfm = tfm_ref[pl.ds(t * B, B), :]
        x_oh = jnp.where(tfm > 0.5, oh_tgt, oh_pred)


# -------------------------------- wrapper ---------------------------------- #
@jax.jit
def seq2seq_forward(params, src, tgt, tf_flags):
    """src: (BT, S) int, tgt: (BT, T) int, tf_flags: (BT, T) {0,1}.
    Returns (BT, T, TGT_VOCAB_SIZE) float32, row 0 of each sequence = 0."""
    S, T, B = SRC_LEN, TGT_LEN, B_TILE
    BT = src.shape[0]
    pad = (-BT) % B
    if pad:
        src = jnp.pad(src, ((0, pad), (0, 0)))
        tgt = jnp.pad(tgt, ((0, pad), (0, 0)))
        tf_flags = jnp.pad(tf_flags, ((0, pad), (0, 0)))
    BTP = BT + pad
    G = BTP // B

    def to_blocks(x, L):
        # (BTP, L) -> flat (G*L*B,), ordered (block, step, seq-in-block)
        return x.reshape(G, B, L).transpose(0, 2, 1).reshape(G * L * B)

    src_oh = jax.nn.one_hot(to_blocks(src.astype(jnp.int32), S), HP,
                            dtype=jnp.float32)                   # (G*S*B, HP)
    tgt_oh = jax.nn.one_hot(to_blocks(tgt.astype(jnp.int32), T), HP,
                            dtype=jnp.float32)                   # (G*T*B, HP)
    tfm = jnp.broadcast_to(
        to_blocks(tf_flags.astype(jnp.int32), T).astype(jnp.float32)[:, None],
        (G * T * B, HP))                                         # (G*T*B, HP)

    out_pad = pl.pallas_call(
        seq2seq_kernel,
        out_shape=jax.ShapeDtypeStruct((G * T * B, HP), jnp.float32),
        grid_spec=pltpu.PrefetchScalarGridSpec(
            num_scalar_prefetch=0,
            grid=(G,),
            in_specs=[
                pl.BlockSpec((S * B, HP), lambda g: (g, 0)),      # src_oh
                pl.BlockSpec((T * B, HP), lambda g: (g, 0)),      # tgt_oh
                pl.BlockSpec((T * B, HP), lambda g: (g, 0)),      # tf mask
                pl.BlockSpec((HP, 4 * HP), lambda g: (0, 0)),     # enc_tab
                pl.BlockSpec((HP, 4 * HP), lambda g: (0, 0)),     # enc_whh
                pl.BlockSpec((1, 4 * HP), lambda g: (0, 0)),      # enc_b
                pl.BlockSpec((2 * HP, 4 * HP), lambda g: (0, 0)),  # dec_w (fused)
                pl.BlockSpec((1, 4 * HP), lambda g: (0, 0)),      # dec_b
                pl.BlockSpec((HP, HP), lambda g: (0, 0)),         # fc_w
                pl.BlockSpec((1, HP), lambda g: (0, 0)),          # fc_b
            ],
            out_specs=pl.BlockSpec((T * B, HP), lambda g: (g, 0)),
            scratch_shapes=[pltpu.VMEM((S * B, 4 * HP), jnp.float32)],
        ),
        compiler_params=pltpu.CompilerParams(
            dimension_semantics=("parallel",)),
    )(src_oh, tgt_oh, tfm,
      params["enc_tab"], params["enc_whh"], params["enc_b"],
      params["dec_w"], params["dec_b"],
      params["fc_w"], params["fc_b"])

    out = out_pad.reshape(G, T, B, HP).transpose(0, 2, 1, 3).reshape(BTP, T, HP)
    return out[:BT, :, :TGT_VOCAB_SIZE]


# ----------------------------- parameter prep ------------------------------ #
def init_raw_params(key):
    """PyTorch-layout parameters (LSTM gate order i,f,g,o)."""
    ks = jax.random.split(key, 12)
    s = 1.0 / (HIDDEN_SIZE ** 0.5)

    def u(k, shape):
        return jax.random.uniform(k, shape, jnp.float32, -s, s)

    return dict(
        enc_emb=jax.random.normal(ks[0], (SRC_VOCAB_SIZE, EMBED_SIZE), jnp.float32),
        enc_wih=u(ks[1], (4 * HIDDEN_SIZE, EMBED_SIZE)),
        enc_whh=u(ks[2], (4 * HIDDEN_SIZE, HIDDEN_SIZE)),
        enc_b=u(ks[3], (4 * HIDDEN_SIZE,)) + u(ks[4], (4 * HIDDEN_SIZE,)),
        dec_emb=jax.random.normal(ks[5], (TGT_VOCAB_SIZE, EMBED_SIZE), jnp.float32),
        dec_wih=u(ks[6], (4 * HIDDEN_SIZE, EMBED_SIZE)),
        dec_whh=u(ks[7], (4 * HIDDEN_SIZE, HIDDEN_SIZE)),
        dec_b=u(ks[8], (4 * HIDDEN_SIZE,)) + u(ks[9], (4 * HIDDEN_SIZE,)),
        fc_w=u(ks[10], (TGT_VOCAB_SIZE, HIDDEN_SIZE)),
        fc_b=u(ks[11], (TGT_VOCAB_SIZE,)),
    )


def pack_params(raw):
    """One-time repack: transpose, reorder gates to [i|f|o|g], lane-pad each
    gate to 128, fuse emb@W_ih, fuse decoder [input-proj; W_hh], poison fc_b
    padding lanes."""
    H = HIDDEN_SIZE
    PERM = (0, 1, 3, 2)   # torch (i,f,g,o) -> packed (i,f,o,g)

    def pad_gate_cols(m):            # (..., 4H) -> (..., 4*HP), reordered, zero-pad
        parts = []
        for gi in PERM:
            seg = m[..., gi * H:(gi + 1) * H]
            pad = jnp.zeros(seg.shape[:-1] + (HP - H,), jnp.float32)
            parts.append(jnp.concatenate([seg, pad], axis=-1))
        return jnp.concatenate(parts, axis=-1)

    def pad_rows(m, rows):           # (r, c) -> (rows, c), zero-padded
        return jnp.zeros((rows, m.shape[1]), jnp.float32).at[:m.shape[0]].set(m)

    enc_wih_p = pad_gate_cols(raw["enc_wih"].T)                       # (E, 4HP)
    enc_tab = pad_rows(raw["enc_emb"], HP) @ enc_wih_p                # (HP, 4HP)
    enc_whh_p = pad_rows(pad_gate_cols(raw["enc_whh"].T), HP)         # (HP, 4HP)
    enc_b_p = pad_gate_cols(raw["enc_b"].reshape(1, -1))              # (1, 4HP)

    dec_wih_p = pad_gate_cols(raw["dec_wih"].T)
    dec_tab = pad_rows(raw["dec_emb"], HP) @ dec_wih_p                # (HP, 4HP)
    dec_whh_p = pad_rows(pad_gate_cols(raw["dec_whh"].T), HP)         # (HP, 4HP)
    dec_w = jnp.concatenate([dec_tab, dec_whh_p], axis=0)             # (2HP, 4HP)
    dec_b_p = pad_gate_cols(raw["dec_b"].reshape(1, -1))

    fc_w_p = jnp.zeros((HP, HP), jnp.float32).at[:H, :TGT_VOCAB_SIZE].set(raw["fc_w"].T)
    fc_b_p = jnp.full((1, HP), NEG_BIG, jnp.float32).at[0, :TGT_VOCAB_SIZE].set(raw["fc_b"])

    return dict(enc_tab=enc_tab, enc_whh=enc_whh_p, enc_b=enc_b_p,
                dec_w=dec_w, dec_b=dec_b_p,
                fc_w=fc_w_p, fc_b=fc_b_p)


# -------------------------- pure-JAX reference ------------------------------ #
def _ref_forward_single(raw, src, tgt, tf_flags):
    H = HIDDEN_SIZE

    def cell(x, h, c, wih, whh, b):
        gates = x @ wih.T + h @ whh.T + b
        i = jax.nn.sigmoid(gates[:, :H])
        f = jax.nn.sigmoid(gates[:, H:2 * H])
        g = jnp.tanh(gates[:, 2 * H:3 * H])
        o = jax.nn.sigmoid(gates[:, 3 * H:])
        c = f * c + i * g
        return o * jnp.tanh(c), c

    h = jnp.zeros((1, H), jnp.float32)
    c = jnp.zeros((1, H), jnp.float32)
    emb = raw["enc_emb"][src]
    for t in range(SRC_LEN):
        h, c = cell(emb[t:t + 1], h, c, raw["enc_wih"], raw["enc_whh"], raw["enc_b"])

    outputs = jnp.zeros((TGT_LEN, TGT_VOCAB_SIZE), jnp.float32)
    inp = tgt[0]
    for t in range(1, TGT_LEN):
        x = raw["dec_emb"][inp][None, :]
        h, c = cell(x, h, c, raw["dec_wih"], raw["dec_whh"], raw["dec_b"])
        pred = h @ raw["fc_w"].T + raw["fc_b"][None, :]
        outputs = outputs.at[t].set(pred[0])
        top1 = jnp.argmax(pred[0]).astype(jnp.int32)
        inp = jnp.where(tf_flags[t] == 1, tgt[t], top1).astype(jnp.int32)
    return outputs


_ref_forward = jax.jit(jax.vmap(_ref_forward_single, in_axes=(None, 0, 0, 0)))


if __name__ == "__main__":
    key = jax.random.PRNGKey(0)
    kp, ks_, kt_, kf_ = jax.random.split(key, 4)
    raw = init_raw_params(kp)
    params = pack_params(raw)

    BT = 16  # 2 batch blocks of 8 -> exercises the parallel grid axis
    src = jax.random.randint(ks_, (BT, SRC_LEN), 0, SRC_VOCAB_SIZE, dtype=jnp.int32)
    tgt = jax.random.randint(kt_, (BT, TGT_LEN), 0, TGT_VOCAB_SIZE, dtype=jnp.int32)
    # TODO(synk): reference uses python random.random() per decode step for
    # teacher forcing; here the 0.5-probability flips are drawn from JAX PRNG.
    tf_flags = jax.random.bernoulli(kf_, 0.5, (BT, TGT_LEN)).astype(jnp.int32)

    out = seq2seq_forward(params, src, tgt, tf_flags)
    out = jax.block_until_ready(out)
    assert out.shape == (BT, TGT_LEN, TGT_VOCAB_SIZE)
    assert bool(jnp.all(out[:, 0, :] == 0.0))

    ref = _ref_forward(raw, src, tgt, tf_flags)
    assert jnp.allclose(out, ref, atol=1e-4, rtol=1e-4), \
        float(jnp.max(jnp.abs(out - ref)))
    print("KERNEL_OK")
</pallas_src>

<mosaic_0001>
module attributes {stable_mosaic.version = 11 : i64} {
  func.func @seq2seq_kernel(%arg0: i32, %arg1: memref<80x128xf32, #tpu.memory_space<vmem>>, %arg2: memref<64x128xf32, #tpu.memory_space<vmem>>, %arg3: memref<64x128xf32, #tpu.memory_space<vmem>>, %arg4: memref<128x512xf32, #tpu.memory_space<vmem>>, %arg5: memref<128x512xf32, #tpu.memory_space<vmem>>, %arg6: memref<1x512xf32, #tpu.memory_space<vmem>>, %arg7: memref<256x512xf32, #tpu.memory_space<vmem>>, %arg8: memref<1x512xf32, #tpu.memory_space<vmem>>, %arg9: memref<128x128xf32, #tpu.memory_space<vmem>>, %arg10: memref<1x128xf32, #tpu.memory_space<vmem>>, %arg11: memref<64x128xf32, #tpu.memory_space<vmem>>, %arg12: memref<80x512xf32, #tpu.memory_space<vmem>>) attributes {dimension_semantics = [#tpu.dimension_semantics<parallel>], iteration_bounds = array<i64: 2>, scalar_prefetch = 0 : i64, scratch_operands = 1 : i64, tpu.core_type = #tpu.core_type<tc>, window_params = [{transform_indices = @transform_0, window_bounds = array<i64: 80, 128>}, {transform_indices = @transform_1, window_bounds = array<i64: 64, 128>}, {transform_indices = @transform_2, window_bounds = array<i64: 64, 128>}, {pipeline_mode = #tpu.pipeline_mode<synchronous>, transform_indices = @transform_3, window_bounds = array<i64: 128, 512>}, {pipeline_mode = #tpu.pipeline_mode<synchronous>, transform_indices = @transform_4, window_bounds = array<i64: 128, 512>}, {pipeline_mode = #tpu.pipeline_mode<synchronous>, transform_indices = @transform_5, window_bounds = array<i64: 1, 512>}, {pipeline_mode = #tpu.pipeline_mode<synchronous>, transform_indices = @transform_6, window_bounds = array<i64: 256, 512>}, {pipeline_mode = #tpu.pipeline_mode<synchronous>, transform_indices = @transform_7, window_bounds = array<i64: 1, 512>}, {pipeline_mode = #tpu.pipeline_mode<synchronous>, transform_indices = @transform_8, window_bounds = array<i64: 128, 128>}, {pipeline_mode = #tpu.pipeline_mode<synchronous>, transform_indices = @transform_9, window_bounds = array<i64: 1, 128>}, {transform_indices = @transform_10, window_bounds = array<i64: 64, 128>}]} {
    %0 = tpu.iota {dimensions = array<i32: 1>} : vector<1x128xi32>
    %c0 = arith.constant 0 : index
    %c0_0 = arith.constant 0 : index
    %1 = vector.load %arg1[%c0, %c0_0] : memref<80x128xf32, #tpu.memory_space<vmem>>, vector<80x128xf32>
    %c0_1 = arith.constant 0 : index
    %c0_2 = arith.constant 0 : index
    %2 = vector.load %arg4[%c0_1, %c0_2] : memref<128x512xf32, #tpu.memory_space<vmem>>, vector<128x512xf32>
    %cst = arith.constant dense<0.000000e+00> : vector<80x512xf32>
    %3 = tpu.matmul %1, %2, %cst {dimension_numbers = #tpu.dot_dimension_numbers<[1], [0], [0], [1], [0, 0, 1, 1], [], []>} : vector<80x128xf32>, vector<128x512xf32>, vector<80x512xf32> -> vector<80x512xf32>
    %c0_3 = arith.constant 0 : index
    %c0_4 = arith.constant 0 : index
    %4 = vector.load %arg12[%c0_3, %c0_4] : memref<80x512xf32, #tpu.memory_space<vmem>>, vector<80x512xf32>
    tpu.vector_store %arg12[%c0_3, %c0_4], %3 {strides = array<i32>} : memref<80x512xf32, #tpu.memory_space<vmem>>, vector<80x512xf32>,
    %cst_5 = arith.constant 0.000000e+00 : f32
    %5 = vector.broadcast %cst_5 : f32 to vector<8x128xf32>
    %cst_6 = arith.constant 0.000000e+00 : f32
    %6 = vector.broadcast %cst_6 : f32 to vector<8x128xf32>
    %c0_7 = arith.constant 0 : index
    %c0_8 = arith.constant 0 : index
    %7 = vector.load %arg12[%c0_7, %c0_8] : memref<80x512xf32, #tpu.memory_space<vmem>>, vector<8x512xf32>
    %c0_9 = arith.constant 0 : index
    %c0_10 = arith.constant 0 : index
    %8 = vector.load %arg5[%c0_9, %c0_10] : memref<128x512xf32, #tpu.memory_space<vmem>>, vector<128x512xf32>
    %cst_11 = arith.constant dense<0.000000e+00> : vector<8x512xf32>
    %9 = tpu.matmul %5, %8, %cst_11 {dimension_numbers = #tpu.dot_dimension_numbers<[1], [0], [0], [1], [0, 0, 1, 1], [], []>} : vector<8x128xf32>, vector<128x512xf32>, vector<8x512xf32> -> vector<8x512xf32>
    %10 = arith.addf %7, %9 : vector<8x512xf32>
    %c0_12 = arith.constant 0 : index
    %c0_13 = arith.constant 0 : index
    %11 = vector.load %arg6[%c0_12, %c0_13] : memref<1x512xf32, #tpu.memory_space<vmem>>, vector<1x512xf32>
    %12 = vector.broadcast %11 : vector<1x512xf32> to vector<8x512xf32>
    %13 = arith.addf %10, %12 : vector<8x512xf32>
    %14 = vector.extract_strided_slice %13 {offsets = [0, 0], sizes = [8, 384], strides = [1, 1]} : vector<8x512xf32> to vector<8x384xf32>
    %15 = arith.negf %14 : vector<8x384xf32>
    %16 = math.exp %15 : vector<8x384xf32>
    %cst_14 = arith.constant 1.000000e+00 : f32
    %17 = vector.broadcast %cst_14 : f32 to vector<8x384xf32>
    %18 = arith.addf %17, %16 : vector<8x384xf32>
    %19 = arith.divf %17, %18 : vector<8x384xf32>
    %20 = vector.extract_strided_slice %13 {offsets = [0, 384], sizes = [8, 128], strides = [1, 1]} : vector<8x512xf32> to vector<8x128xf32>
    %21 = math.tanh %20 : vector<8x128xf32>
    %22 = vector.extract_strided_slice %19 {offsets = [0, 0], sizes = [8, 128], strides = [1, 1]} : vector<8x384xf32> to vector<8x128xf32>
    %23 = vector.extract_strided_slice %19 {offsets = [0, 128], sizes = [8, 128], strides = [1, 1]} : vector<8x384xf32> to vector<8x128xf32>
    %24 = vector.extract_strided_slice %19 {offsets = [0, 256], sizes = [8, 128], strides = [1, 1]} : vector<8x384xf32> to vector<8x128xf32>
    %25 = arith.mulf %23, %6 : vector<8x128xf32>
    %26 = arith.mulf %22, %21 : vector<8x128xf32>
    %27 = arith.addf %25, %26 : vector<8x128xf32>
    %28 = math.tanh %27 : vector<8x128xf32>
    %29 = arith.mulf %24, %28 : vector<8x128xf32>
    %c8 = arith.constant 8 : index
    %c0_15 = arith.constant 0 : index
    %30 = vector.load %arg12[%c8, %c0_15] : memref<80x512xf32, #tpu.memory_space<vmem>>, vector<8x512xf32>
    %c0_16 = arith.constant 0 : index
    %c0_17 = arith.constant 0 : index
    %31 = vector.load %arg5[%c0_16, %c0_17] : memref<128x512xf32, #tpu.memory_space<vmem>>, vector<128x512xf32>
    %cst_18 = arith.constant dense<0.000000e+00> : vector<8x512xf32>
    %32 = tpu.matmul %29, %31, %cst_18 {dimension_numbers = #tpu.dot_dimension_numbers<[1], [0], [0], [1], [0, 0, 1, 1], [], []>} : vector<8x128xf32>, vector<128x512xf32>, vector<8x512xf32> -> vector<8x512xf32>
    %33 = arith.addf %30, %32 : vector<8x512xf32>
    %c0_19 = arith.constant 0 : index
    %c0_20 = arith.constant 0 : index
    %34 = vector.load %arg6[%c0_19, %c0_20] : memref<1x512xf32, #tpu.memory_space<vmem>>, vector<1x512xf32>
    %35 = vector.broadcast %34 : vector<1x512xf32> to vector<8x512xf32>
    %36 = arith.addf %33, %35 : vector<8x512xf32>
    %37 = vector.extract_strided_slice %36 {offsets = [0, 0], sizes = [8, 384], strides = [1, 1]} : vector<8x512xf32> to vector<8x384xf32>
    %38 = arith.negf %37 : vector<8x384xf32>
    %39 = math.exp %38 : vector<8x384xf32>
    %cst_21 = arith.constant 1.000000e+00 : f32
    %40 = vector.broadcast %cst_21 : f32 to vector<8x384xf32>
    %41 = arith.addf %40, %39 : vector<8x384xf32>
    %42 = arith.divf %40, %41 : vector<8x384xf32>
    %43 = vector.extract_strided_slice %36 {offsets = [0, 384], sizes = [8, 128], strides = [1, 1]} : vector<8x512xf32> to vector<8x128xf32>
    %44 = math.tanh %43 : vector<8x128xf32>
    %45 = vector.extract_strided_slice %42 {offsets = [0, 0], sizes = [8, 128], strides = [1, 1]} : vector<8x384xf32> to vector<8x128xf32>
    %46 = vector.extract_strided_slice %42 {offsets = [0, 128], sizes = [8, 128], strides = [1, 1]} : vector<8x384xf32> to vector<8x128xf32>
    %47 = vector.extract_strided_slice %42 {offsets = [0, 256], sizes = [8, 128], strides = [1, 1]} : vector<8x384xf32> to vector<8x128xf32>
    %48 = arith.mulf %46, %27 : vector<8x128xf32>
    %49 = arith.mulf %45, %44 : vector<8x128xf32>
    %50 = arith.addf %48, %49 : vector<8x128xf32>
    %51 = math.tanh %50 : vector<8x128xf32>
    %52 = arith.mulf %47, %51 : vector<8x128xf32>
    %c16 = arith.constant 16 : index
    %c0_22 = arith.constant 0 : index
    %53 = vector.load %arg12[%c16, %c0_22] : memref<80x512xf32, #tpu.memory_space<vmem>>, vector<8x512xf32>
    %c0_23 = arith.constant 0 : index
    %c0_24 = arith.constant 0 : index
    %54 = vector.load %arg5[%c0_23, %c0_24] : memref<128x512xf32, #tpu.memory_space<vmem>>, vector<128x512xf32>
    %cst_25 = arith.constant dense<0.000000e+00> : vector<8x512xf32>
    %55 = tpu.matmul %52, %54, %cst_25 {dimension_numbers = #tpu.dot_dimension_numbers<[1], [0], [0], [1], [0, 0, 1, 1], [], []>} : vector<8x128xf32>, vector<128x512xf32>, vector<8x512xf32> -> vector<8x512xf32>
    %56 = arith.addf %53, %55 : vector<8x512xf32>
    %c0_26 = arith.constant 0 : index
    %c0_27 = arith.constant 0 : index
    %57 = vector.load %arg6[%c0_26, %c0_27] : memref<1x512xf32, #tpu.memory_space<vmem>>, vector<1x512xf32>
    %58 = vector.broadcast %57 : vector<1x512xf32> to vector<8x512xf32>
    %59 = arith.addf %56, %58 : vector<8x512xf32>
    %60 = vector.extract_strided_slice %59 {offsets = [0, 0], sizes = [8, 384], strides = [1, 1]} : vector<8x512xf32> to vector<8x384xf32>
    %61 = arith.negf %60 : vector<8x384xf32>
    %62 = math.exp %61 : vector<8x384xf32>
    %cst_28 = arith.constant 1.000000e+00 : f32
    %63 = vector.broadcast %cst_28 : f32 to vector<8x384xf32>
    %64 = arith.addf %63, %62 : vector<8x384xf32>
    %65 = arith.divf %63, %64 : vector<8x384xf32>
    %66 = vector.extract_strided_slice %59 {offsets = [0, 384], sizes = [8, 128], strides = [1, 1]} : vector<8x512xf32> to vector<8x128xf32>
    %67 = math.tanh %66 : vector<8x128xf32>
    %68 = vector.extract_strided_slice %65 {offsets = [0, 0], sizes = [8, 128], strides = [1, 1]} : vector<8x384xf32> to vector<8x128xf32>
    %69 = vector.extract_strided_slice %65 {offsets = [0, 128], sizes = [8, 128], strides = [1, 1]} : vector<8x384xf32> to vector<8x128xf32>
    %70 = vector.extract_strided_slice %65 {offsets = [0, 256], sizes = [8, 128], strides = [1, 1]} : vector<8x384xf32> to vector<8x128xf32>
    %71 = arith.mulf %69, %50 : vector<8x128xf32>
    %72 = arith.mulf %68, %67 : vector<8x128xf32>
    %73 = arith.addf %71, %72 : vector<8x128xf32>
    %74 = math.tanh %73 : vector<8x128xf32>
    %75 = arith.mulf %70, %74 : vector<8x128xf32>
    %c24 = arith.constant 24 : index
    %c0_29 = arith.constant 0 : index
    %76 = vector.load %arg12[%c24, %c0_29] : memref<80x512xf32, #tpu.memory_space<vmem>>, vector<8x512xf32>
    %c0_30 = arith.constant 0 : index
    %c0_31 = arith.constant 0 : index
    %77 = vector.load %arg5[%c0_30, %c0_31] : memref<128x512xf32, #tpu.memory_space<vmem>>, vector<128x512xf32>
    %cst_32 = arith.constant dense<0.000000e+00> : vector<8x512xf32>
    %78 = tpu.matmul %75, %77, %cst_32 {dimension_numbers = #tpu.dot_dimension_numbers<[1], [0], [0], [1], [0, 0, 1, 1], [], []>} : vector<8x128xf32>, vector<128x512xf32>, vector<8x512xf32> -> vector<8x512xf32>
    %79 = arith.addf %76, %78 : vector<8x512xf32>
    %c0_33 = arith.constant 0 : index
    %c0_34 = arith.constant 0 : index
    %80 = vector.load %arg6[%c0_33, %c0_34] : memref<1x512xf32, #tpu.memory_space<vmem>>, vector<1x512xf32>
    %81 = vector.broadcast %80 : vector<1x512xf32> to vector<8x512xf32>
    %82 = arith.addf %79, %81 : vector<8x512xf32>
    %83 = vector.extract_strided_slice %82 {offsets = [0, 0], sizes = [8, 384], strides = [1, 1]} : vector<8x512xf32> to vector<8x384xf32>
    %84 = arith.negf %83 : vector<8x384xf32>
    %85 = math.exp %84 : vector<8x384xf32>
    %cst_35 = arith.constant 1.000000e+00 : f32
    %86 = vector.broadcast %cst_35 : f32 to vector<8x384xf32>
    %87 = arith.addf %86, %85 : vector<8x384xf32>
    %88 = arith.divf %86, %87 : vector<8x384xf32>
    %89 = vector.extract_strided_slice %82 {offsets = [0, 384], sizes = [8, 128], strides = [1, 1]} : vector<8x512xf32> to vector<8x128xf32>
    %90 = math.tanh %89 : vector<8x128xf32>
    %91 = vector.extract_strided_slice %88 {offsets = [0, 0], sizes = [8, 128], strides = [1, 1]} : vector<8x384xf32> to vector<8x128xf32>
    %92 = vector.extract_strided_slice %88 {offsets = [0, 128], sizes = [8, 128], strides = [1, 1]} : vector<8x384xf32> to vector<8x128xf32>
    %93 = vector.extract_strided_slice %88 {offsets = [0, 256], sizes = [8, 128], strides = [1, 1]} : vector<8x384xf32> to vector<8x128xf32>
    %94 = arith.mulf %92, %73 : vector<8x128xf32>
    %95 = arith.mulf %91, %90 : vector<8x128xf32>
    %96 = arith.addf %94, %95 : vector<8x128xf32>
    %97 = math.tanh %96 : vector<8x128xf32>
    %98 = arith.mulf %93, %97 : vector<8x128xf32>
    %c32 = arith.constant 32 : index
    %c0_36 = arith.constant 0 : index
    %99 = vector.load %arg12[%c32, %c0_36] : memref<80x512xf32, #tpu.memory_space<vmem>>, vector<8x512xf32>
    %c0_37 = arith.constant 0 : index
    %c0_38 = arith.constant 0 : index
    %100 = vector.load %arg5[%c0_37, %c0_38] : memref<128x512xf32, #tpu.memory_space<vmem>>, vector<128x512xf32>
    %cst_39 = arith.constant dense<0.000000e+00> : vector<8x512xf32>
    %101 = tpu.matmul %98, %100, %cst_39 {dimension_numbers = #tpu.dot_dimension_numbers<[1], [0], [0], [1], [0, 0, 1, 1], [], []>} : vector<8x128xf32>, vector<128x512xf32>, vector<8x512xf32> -> vector<8x512xf32>
    %102 = arith.addf %99, %101 : vector<8x512xf32>
    %c0_40 = arith.constant 0 : index
    %c0_41 = arith.constant 0 : index
    %103 = vector.load %arg6[%c0_40, %c0_41] : memref<1x512xf32, #tpu.memory_space<vmem>>, vector<1x512xf32>
    %104 = vector.broadcast %103 : vector<1x512xf32> to vector<8x512xf32>
    %105 = arith.addf %102, %104 : vector<8x512xf32>
    %106 = vector.extract_strided_slice %105 {offsets = [0, 0], sizes = [8, 384], strides = [1, 1]} : vector<8x512xf32> to vector<8x384xf32>
    %107 = arith.negf %106 : vector<8x384xf32>
    %108 = math.exp %107 : vector<8x384xf32>
    %cst_42 = arith.constant 1.000000e+00 : f32
    %109 = vector.broadcast %cst_42 : f32 to vector<8x384xf32>
    %110 = arith.addf %109, %108 : vector<8x384xf32>
    %111 = arith.divf %109, %110 : vector<8x384xf32>
    %112 = vector.extract_strided_slice %105 {offsets = [0, 384], sizes = [8, 128], strides = [1, 1]} : vector<8x512xf32> to vector<8x128xf32>
    %113 = math.tanh %112 : vector<8x128xf32>
    %114 = vector.extract_strided_slice %111 {offsets = [0, 0], sizes = [8, 128], strides = [1, 1]} : vector<8x384xf32> to vector<8x128xf32>
    %115 = vector.extract_strided_slice %111 {offsets = [0, 128], sizes = [8, 128], strides = [1, 1]} : vector<8x384xf32> to vector<8x128xf32>
    %116 = vector.extract_strided_slice %111 {offsets = [0, 256], sizes = [8, 128], strides = [1, 1]} : vector<8x384xf32> to vector<8x128xf32>
    %117 = arith.mulf %115, %96 : vector<8x128xf32>
    %118 = arith.mulf %114, %113 : vector<8x128xf32>
    %119 = arith.addf %117, %118 : vector<8x128xf32>
    %120 = math.tanh %119 : vector<8x128xf32>
    %121 = arith.mulf %116, %120 : vector<8x128xf32>
    %c40 = arith.constant 40 : index
    %c0_43 = arith.constant 0 : index
    %122 = vector.load %arg12[%c40, %c0_43] : memref<80x512xf32, #tpu.memory_space<vmem>>, vector<8x512xf32>
    %c0_44 = arith.constant 0 : index
    %c0_45 = arith.constant 0 : index
    %123 = vector.load %arg5[%c0_44, %c0_45] : memref<128x512xf32, #tpu.memory_space<vmem>>, vector<128x512xf32>
    %cst_46 = arith.constant dense<0.000000e+00> : vector<8x512xf32>
    %124 = tpu.matmul %121, %123, %cst_46 {dimension_numbers = #tpu.dot_dimension_numbers<[1], [0], [0], [1], [0, 0, 1, 1], [], []>} : vector<8x128xf32>, vector<128x512xf32>, vector<8x512xf32> -> vector<8x512xf32>
    %125 = arith.addf %122, %124 : vector<8x512xf32>
    %c0_47 = arith.constant 0 : index
    %c0_48 = arith.constant 0 : index
    %126 = vector.load %arg6[%c0_47, %c0_48] : memref<1x512xf32, #tpu.memory_space<vmem>>, vector<1x512xf32>
    %127 = vector.broadcast %126 : vector<1x512xf32> to vector<8x512xf32>
    %128 = arith.addf %125, %127 : vector<8x512xf32>
    %129 = vector.extract_strided_slice %128 {offsets = [0, 0], sizes = [8, 384], strides = [1, 1]} : vector<8x512xf32> to vector<8x384xf32>
    %130 = arith.negf %129 : vector<8x384xf32>
    %131 = math.exp %130 : vector<8x384xf32>
    %cst_49 = arith.constant 1.000000e+00 : f32
    %132 = vector.broadcast %cst_49 : f32 to vector<8x384xf32>
    %133 = arith.addf %132, %131 : vector<8x384xf32>
    %134 = arith.divf %132, %133 : vector<8x384xf32>
    %135 = vector.extract_strided_slice %128 {offsets = [0, 384], sizes = [8, 128], strides = [1, 1]} : vector<8x512xf32> to vector<8x128xf32>
    %136 = math.tanh %135 : vector<8x128xf32>
    %137 = vector.extract_strided_slice %134 {offsets = [0, 0], sizes = [8, 128], strides = [1, 1]} : vector<8x384xf32> to vector<8x128xf32>
    %138 = vector.extract_strided_slice %134 {offsets = [0, 128], sizes = [8, 128], strides = [1, 1]} : vector<8x384xf32> to vector<8x128xf32>
    %139 = vector.extract_strided_slice %134 {offsets = [0, 256], sizes = [8, 128], strides = [1, 1]} : vector<8x384xf32> to vector<8x128xf32>
    %140 = arith.mulf %138, %119 : vector<8x128xf32>
    %141 = arith.mulf %137, %136 : vector<8x128xf32>
    %142 = arith.addf %140, %141 : vector<8x128xf32>
    %143 = math.tanh %142 : vector<8x128xf32>
    %144 = arith.mulf %139, %143 : vector<8x128xf32>
    %c48 = arith.constant 48 : index
    %c0_50 = arith.constant 0 : index
    %145 = vector.load %arg12[%c48, %c0_50] : memref<80x512xf32, #tpu.memory_space<vmem>>, vector<8x512xf32>
    %c0_51 = arith.constant 0 : index
    %c0_52 = arith.constant 0 : index
    %146 = vector.load %arg5[%c0_51, %c0_52] : memref<128x512xf32, #tpu.memory_space<vmem>>, vector<128x512xf32>
    %cst_53 = arith.constant dense<0.000000e+00> : vector<8x512xf32>
    %147 = tpu.matmul %144, %146, %cst_53 {dimension_numbers = #tpu.dot_dimension_numbers<[1], [0], [0], [1], [0, 0, 1, 1], [], []>} : vector<8x128xf32>, vector<128x512xf32>, vector<8x512xf32> -> vector<8x512xf32>
    %148 = arith.addf %145, %147 : vector<8x512xf32>
    %c0_54 = arith.constant 0 : index
    %c0_55 = arith.constant 0 : index
    %149 = vector.load %arg6[%c0_54, %c0_55] : memref<1x512xf32, #tpu.memory_space<vmem>>, vector<1x512xf32>
    %150 = vector.broadcast %149 : vector<1x512xf32> to vector<8x512xf32>
    %151 = arith.addf %148, %150 : vector<8x512xf32>
    %152 = vector.extract_strided_slice %151 {offsets = [0, 0], sizes = [8, 384], strides = [1, 1]} : vector<8x512xf32> to vector<8x384xf32>
    %153 = arith.negf %152 : vector<8x384xf32>
    %154 = math.exp %153 : vector<8x384xf32>
    %cst_56 = arith.constant 1.000000e+00 : f32
    %155 = vector.broadcast %cst_56 : f32 to vector<8x384xf32>
    %156 = arith.addf %155, %154 : vector<8x384xf32>
    %157 = arith.divf %155, %156 : vector<8x384xf32>
    %158 = vector.extract_strided_slice %151 {offsets = [0, 384], sizes = [8, 128], strides = [1, 1]} : vector<8x512xf32> to vector<8x128xf32>
    %159 = math.tanh %158 : vector<8x128xf32>
    %160 = vector.extract_strided_slice %157 {offsets = [0, 0], sizes = [8, 128], strides = [1, 1]} : vector<8x384xf32> to vector<8x128xf32>
    %161 = vector.extract_strided_slice %157 {offsets = [0, 128], sizes = [8, 128], strides = [1, 1]} : vector<8x384xf32> to vector<8x128xf32>
    %162 = vector.extract_strided_slice %157 {offsets = [0, 256], sizes = [8, 128], strides = [1, 1]} : vector<8x384xf32> to vector<8x128xf32>
    %163 = arith.mulf %161, %142 : vector<8x128xf32>
    %164 = arith.mulf %160, %159 : vector<8x128xf32>
    %165 = arith.addf %163, %164 : vector<8x128xf32>
    %166 = math.tanh %165 : vector<8x128xf32>
    %167 = arith.mulf %162, %166 : vector<8x128xf32>
    %c56 = arith.constant 56 : index
    %c0_57 = arith.constant 0 : index
    %168 = vector.load %arg12[%c56, %c0_57] : memref<80x512xf32, #tpu.memory_space<vmem>>, vector<8x512xf32>
    %c0_58 = arith.constant 0 : index
    %c0_59 = arith.constant 0 : index
    %169 = vector.load %arg5[%c0_58, %c0_59] : memref<128x512xf32, #tpu.memory_space<vmem>>, vector<128x512xf32>
    %cst_60 = arith.constant dense<0.000000e+00> : vector<8x512xf32>
    %170 = tpu.matmul %167, %169, %cst_60 {dimension_numbers = #tpu.dot_dimension_numbers<[1], [0], [0], [1], [0, 0, 1, 1], [], []>} : vector<8x128xf32>, vector<128x512xf32>, vector<8x512xf32> -> vector<8x512xf32>
    %171 = arith.addf %168, %170 : vector<8x512xf32>
    %c0_61 = arith.constant 0 : index
    %c0_62 = arith.constant 0 : index
    %172 = vector.load %arg6[%c0_61, %c0_62] : memref<1x512xf32, #tpu.memory_space<vmem>>, vector<1x512xf32>
    %173 = vector.broadcast %172 : vector<1x512xf32> to vector<8x512xf32>
    %174 = arith.addf %171, %173 : vector<8x512xf32>
    %175 = vector.extract_strided_slice %174 {offsets = [0, 0], sizes = [8, 384], strides = [1, 1]} : vector<8x512xf32> to vector<8x384xf32>
    %176 = arith.negf %175 : vector<8x384xf32>
    %177 = math.exp %176 : vector<8x384xf32>
    %cst_63 = arith.constant 1.000000e+00 : f32
    %178 = vector.broadcast %cst_63 : f32 to vector<8x384xf32>
    %179 = arith.addf %178, %177 : vector<8x384xf32>
    %180 = arith.divf %178, %179 : vector<8x384xf32>
    %181 = vector.extract_strided_slice %174 {offsets = [0, 384], sizes = [8, 128], strides = [1, 1]} : vector<8x512xf32> to vector<8x128xf32>
    %182 = math.tanh %181 : vector<8x128xf32>
    %183 = vector.extract_strided_slice %180 {offsets = [0, 0], sizes = [8, 128], strides = [1, 1]} : vector<8x384xf32> to vector<8x128xf32>
    %184 = vector.extract_strided_slice %180 {offsets = [0, 128], sizes = [8, 128], strides = [1, 1]} : vector<8x384xf32> to vector<8x128xf32>
    %185 = vector.extract_strided_slice %180 {offsets = [0, 256], sizes = [8, 128], strides = [1, 1]} : vector<8x384xf32> to vector<8x128xf32>
    %186 = arith.mulf %184, %165 : vector<8x128xf32>
    %187 = arith.mulf %183, %182 : vector<8x128xf32>
    %188 = arith.addf %186, %187 : vector<8x128xf32>
    %189 = math.tanh %188 : vector<8x128xf32>
    %190 = arith.mulf %185, %189 : vector<8x128xf32>
    %c64 = arith.constant 64 : index
    %c0_64 = arith.constant 0 : index
    %191 = vector.load %arg12[%c64, %c0_64] : memref<80x512xf32, #tpu.memory_space<vmem>>, vector<8x512xf32>
    %c0_65 = arith.constant 0 : index
    %c0_66 = arith.constant 0 : index
    %192 = vector.load %arg5[%c0_65, %c0_66] : memref<128x512xf32, #tpu.memory_space<vmem>>, vector<128x512xf32>
    %cst_67 = arith.constant dense<0.000000e+00> : vector<8x512xf32>
    %193 = tpu.matmul %190, %192, %cst_67 {dimension_numbers = #tpu.dot_dimension_numbers<[1], [0], [0], [1], [0, 0, 1, 1], [], []>} : vector<8x128xf32>, vector<128x512xf32>, vector<8x512xf32> -> vector<8x512xf32>
    %194 = arith.addf %191, %193 : vector<8x512xf32>
    %c0_68 = arith.constant 0 : index
    %c0_69 = arith.constant 0 : index
    %195 = vector.load %arg6[%c0_68, %c0_69] : memref<1x512xf32, #tpu.memory_space<vmem>>, vector<1x512xf32>
    %196 = vector.broadcast %195 : vector<1x512xf32> to vector<8x512xf32>
    %197 = arith.addf %194, %196 : vector<8x512xf32>
    %198 = vector.extract_strided_slice %197 {offsets = [0, 0], sizes = [8, 384], strides = [1, 1]} : vector<8x512xf32> to vector<8x384xf32>
    %199 = arith.negf %198 : vector<8x384xf32>
    %200 = math.exp %199 : vector<8x384xf32>
    %cst_70 = arith.constant 1.000000e+00 : f32
    %201 = vector.broadcast %cst_70 : f32 to vector<8x384xf32>
    %202 = arith.addf %201, %200 : vector<8x384xf32>
    %203 = arith.divf %201, %202 : vector<8x384xf32>
    %204 = vector.extract_strided_slice %197 {offsets = [0, 384], sizes = [8, 128], strides = [1, 1]} : vector<8x512xf32> to vector<8x128xf32>
    %205 = math.tanh %204 : vector<8x128xf32>
    %206 = vector.extract_strided_slice %203 {offsets = [0, 0], sizes = [8, 128], strides = [1, 1]} : vector<8x384xf32> to vector<8x128xf32>
    %207 = vector.extract_strided_slice %203 {offsets = [0, 128], sizes = [8, 128], strides = [1, 1]} : vector<8x384xf32> to vector<8x128xf32>
    %208 = vector.extract_strided_slice %203 {offsets = [0, 256], sizes = [8, 128], strides = [1, 1]} : vector<8x384xf32> to vector<8x128xf32>
    %209 = arith.mulf %207, %188 : vector<8x128xf32>
    %210 = arith.mulf %206, %205 : vector<8x128xf32>
    %211 = arith.addf %209, %210 : vector<8x128xf32>
    %212 = math.tanh %211 : vector<8x128xf32>
    %213 = arith.mulf %208, %212 : vector<8x128xf32>
    %c72 = arith.constant 72 : index
    %c0_71 = arith.constant 0 : index
    %214 = vector.load %arg12[%c72, %c0_71] : memref<80x512xf32, #tpu.memory_space<vmem>>, vector<8x512xf32>
    %c0_72 = arith.constant 0 : index
    %c0_73 = arith.constant 0 : index
    %215 = vector.load %arg5[%c0_72, %c0_73] : memref<128x512xf32, #tpu.memory_space<vmem>>, vector<128x512xf32>
    %cst_74 = arith.constant dense<0.000000e+00> : vector<8x512xf32>
    %216 = tpu.matmul %213, %215, %cst_74 {dimension_numbers = #tpu.dot_dimension_numbers<[1], [0], [0], [1], [0, 0, 1, 1], [], []>} : vector<8x128xf32>, vector<128x512xf32>, vector<8x512xf32> -> vector<8x512xf32>
    %217 = arith.addf %214, %216 : vector<8x512xf32>
    %c0_75 = arith.constant 0 : index
    %c0_76 = arith.constant 0 : index
    %218 = vector.load %arg6[%c0_75, %c0_76] : memref<1x512xf32, #tpu.memory_space<vmem>>, vector<1x512xf32>
    %219 = vector.broadcast %218 : vector<1x512xf32> to vector<8x512xf32>
    %220 = arith.addf %217, %219 : vector<8x512xf32>
    %221 = vector.extract_strided_slice %220 {offsets = [0, 0], sizes = [8, 384], strides = [1, 1]} : vector<8x512xf32> to vector<8x384xf32>
    %222 = arith.negf %221 : vector<8x384xf32>
    %223 = math.exp %222 : vector<8x384xf32>
    %cst_77 = arith.constant 1.000000e+00 : f32
    %224 = vector.broadcast %cst_77 : f32 to vector<8x384xf32>
    %225 = arith.addf %224, %223 : vector<8x384xf32>
    %226 = arith.divf %224, %225 : vector<8x384xf32>
    %227 = vector.extract_strided_slice %220 {offsets = [0, 384], sizes = [8, 128], strides = [1, 1]} : vector<8x512xf32> to vector<8x128xf32>
    %228 = math.tanh %227 : vector<8x128xf32>
    %229 = vector.extract_strided_slice %226 {offsets = [0, 0], sizes = [8, 128], strides = [1, 1]} : vector<8x384xf32> to vector<8x128xf32>
    %230 = vector.extract_strided_slice %226 {offsets = [0, 128], sizes = [8, 128], strides = [1, 1]} : vector<8x384xf32> to vector<8x128xf32>
    %231 = vector.extract_strided_slice %226 {offsets = [0, 256], sizes = [8, 128], strides = [1, 1]} : vector<8x384xf32> to vector<8x128xf32>
    %232 = arith.mulf %230, %211 : vector<8x128xf32>
    %233 = arith.mulf %229, %228 : vector<8x128xf32>
    %234 = arith.addf %232, %233 : vector<8x128xf32>
    %235 = math.tanh %234 : vector<8x128xf32>
    %236 = arith.mulf %231, %235 : vector<8x128xf32>
    %cst_78 = arith.constant 0.000000e+00 : f32
    %237 = vector.broadcast %cst_78 : f32 to vector<8x128xf32>
    %c0_79 = arith.constant 0 : index
    %c0_80 = arith.constant 0 : index
    %238 = vector.load %arg11[%c0_79, %c0_80] : memref<64x128xf32, #tpu.memory_space<vmem>>, vector<8x128xf32>
    tpu.vector_store %arg11[%c0_79, %c0_80], %237 {strides = array<i32>} : memref<64x128xf32, #tpu.memory_space<vmem>>, vector<8x128xf32>,
    %c0_81 = arith.constant 0 : index
    %c0_82 = arith.constant 0 : index
    %239 = vector.load %arg2[%c0_81, %c0_82] : memref<64x128xf32, #tpu.memory_space<vmem>>, vector<8x128xf32>
    %240 = tpu.concatenate %239, %236 in 1 : vector<8x128xf32>, vector<8x128xf32> -> vector<8x256xf32>
    %c0_83 = arith.constant 0 : index
    %c0_84 = arith.constant 0 : index
    %241 = vector.load %arg7[%c0_83, %c0_84] : memref<256x512xf32, #tpu.memory_space<vmem>>, vector<256x512xf32>
    %cst_85 = arith.constant dense<0.000000e+00> : vector<8x512xf32>
    %242 = tpu.matmul %240, %241, %cst_85 {dimension_numbers = #tpu.dot_dimension_numbers<[1], [0], [0], [1], [0, 0, 1, 1], [], []>} : vector<8x256xf32>, vector<256x512xf32>, vector<8x512xf32> -> vector<8x512xf32>
    %c0_86 = arith.constant 0 : index
    %c0_87 = arith.constant 0 : index
    %243 = vector.load %arg8[%c0_86, %c0_87] : memref<1x512xf32, #tpu.memory_space<vmem>>, vector<1x512xf32>
    %244 = vector.broadcast %243 : vector<1x512xf32> to vector<8x512xf32>
    %245 = arith.addf %242, %244 : vector<8x512xf32>
    %246 = vector.extract_strided_slice %245 {offsets = [0, 0], sizes = [8, 384], strides = [1, 1]} : vector<8x512xf32> to vector<8x384xf32>
    %247 = arith.negf %246 : vector<8x384xf32>
    %248 = math.exp %247 : vector<8x384xf32>
    %cst_88 = arith.constant 1.000000e+00 : f32
    %249 = vector.broadcast %cst_88 : f32 to vector<8x384xf32>
    %250 = arith.addf %249, %248 : vector<8x384xf32>
    %251 = arith.divf %249, %250 : vector<8x384xf32>
    %252 = vector.extract_strided_slice %245 {offsets = [0, 384], sizes = [8, 128], strides = [1, 1]} : vector<8x512xf32> to vector<8x128xf32>
    %253 = math.tanh %252 : vector<8x128xf32>
    %254 = vector.extract_strided_slice %251 {offsets = [0, 0], sizes = [8, 128], strides = [1, 1]} : vector<8x384xf32> to vector<8x128xf32>
    %255 = vector.extract_strided_slice %251 {offsets = [0, 128], sizes = [8, 128], strides = [1, 1]} : vector<8x384xf32> to vector<8x128xf32>
    %256 = vector.extract_strided_slice %251 {offsets = [0, 256], sizes = [8, 128], strides = [1, 1]} : vector<8x384xf32> to vector<8x128xf32>
    %257 = arith.mulf %255, %234 : vector<8x128xf32>
    %258 = arith.mulf %254, %253 : vector<8x128xf32>
    %259 = arith.addf %257, %258 : vector<8x128xf32>
    %260 = math.tanh %259 : vector<8x128xf32>
    %261 = arith.mulf %256, %260 : vector<8x128xf32>
    %c0_89 = arith.constant 0 : index
    %c0_90 = arith.constant 0 : index
    %262 = vector.load %arg9[%c0_89, %c0_90] : memref<128x128xf32, #tpu.memory_space<vmem>>, vector<128x128xf32>
    %cst_91 = arith.constant dense<0.000000e+00> : vector<8x128xf32>
    %263 = tpu.matmul %261, %262, %cst_91 {dimension_numbers = #tpu.dot_dimension_numbers<[1], [0], [0], [1], [0, 0, 1, 1], [], []>} : vector<8x128xf32>, vector<128x128xf32>, vector<8x128xf32> -> vector<8x128xf32>
    %c0_92 = arith.constant 0 : index
    %c0_93 = arith.constant 0 : index
    %264 = vector.load %arg10[%c0_92, %c0_93] : memref<1x128xf32, #tpu.memory_space<vmem>>, vector<1x128xf32>
    %265 = vector.broadcast %264 : vector<1x128xf32> to vector<8x128xf32>
    %266 = arith.addf %263, %265 : vector<8x128xf32>
    %c8_94 = arith.constant 8 : index
    %c0_95 = arith.constant 0 : index
    %267 = vector.load %arg11[%c8_94, %c0_95] : memref<64x128xf32, #tpu.memory_space<vmem>>, vector<8x128xf32>
    tpu.vector_store %arg11[%c8_94, %c0_95], %266 {strides = array<i32>} : memref<64x128xf32, #tpu.memory_space<vmem>>, vector<8x128xf32>,
    %cst_96 = arith.constant dense<0xFF800000> : vector<8xf32>
    %268 = vector.multi_reduction <maximumf>, %266, %cst_96 [1] : vector<8x128xf32> to vector<8xf32>
    %269 = vector.shape_cast %268 : vector<8xf32> to vector<8x1xf32>
    %270 = vector.broadcast %269 : vector<8x1xf32> to vector<8x128xf32>
    %271 = arith.cmpf oeq, %266, %270 : vector<8x128xf32>
    %c128_i32 = arith.constant 128 : i32
    %272 = vector.shape_cast %0 : vector<1x128xi32> to vector<1x128xi32>
    %273 = vector.broadcast %272 : vector<1x128xi32> to vector<8x128xi32>
    %274 = vector.broadcast %c128_i32 : i32 to vector<8x128xi32>
    %275 = arith.select %271, %273, %274 : vector<8x128xi1>, vector<8x128xi32>
    %cst_97 = arith.constant dense<2147483647> : vector<8xi32>
    %276 = vector.multi_reduction <minsi>, %275, %cst_97 [1] : vector<8x128xi32> to vector<8xi32>
    %277 = vector.shape_cast %276 : vector<8xi32> to vector<8x1xi32>
    %278 = vector.broadcast %0 : vector<1x128xi32> to vector<8x128xi32>
    %279 = vector.broadcast %277 : vector<8x1xi32> to vector<8x128xi32>
    %280 = arith.cmpi eq, %278, %279 : vector<8x128xi32>
    %281 = arith.extui %280 : vector<8x128xi1> to vector<8x128xi32>
    %282 = arith.sitofp %281 : vector<8x128xi32> to vector<8x128xf32>
    %c8_98 = arith.constant 8 : index
    %c0_99 = arith.constant 0 : index
    %283 = vector.load %arg2[%c8_98, %c0_99] : memref<64x128xf32, #tpu.memory_space<vmem>>, vector<8x128xf32>
    %c8_100 = arith.constant 8 : index
    %c0_101 = arith.constant 0 : index
    %284 = vector.load %arg3[%c8_100, %c0_101] : memref<64x128xf32, #tpu.memory_space<vmem>>, vector<8x128xf32>
    %cst_102 = arith.constant 5.000000e-01 : f32
    %285 = vector.broadcast %cst_102 : f32 to vector<8x128xf32>
    %286 = arith.cmpf ogt, %284, %285 : vector<8x128xf32>
    %287 = arith.select %286, %283, %282 : vector<8x128xi1>, vector<8x128xf32>
    %288 = tpu.concatenate %287, %261 in 1 : vector<8x128xf32>, vector<8x128xf32> -> vector<8x256xf32>
    %c0_103 = arith.constant 0 : index
    %c0_104 = arith.constant 0 : index
    %289 = vector.load %arg7[%c0_103, %c0_104] : memref<256x512xf32, #tpu.memory_space<vmem>>, vector<256x512xf32>
    %cst_105 = arith.constant dense<0.000000e+00> : vector<8x512xf32>
    %290 = tpu.matmul %288, %289, %cst_105 {dimension_numbers = #tpu.dot_dimension_numbers<[1], [0], [0], [1], [0, 0, 1, 1], [], []>} : vector<8x256xf32>, vector<256x512xf32>, vector<8x512xf32> -> vector<8x512xf32>
    %c0_106 = arith.constant 0 : index
    %c0_107 = arith.constant 0 : index
    %291 = vector.load %arg8[%c0_106, %c0_107] : memref<1x512xf32, #tpu.memory_space<vmem>>, vector<1x512xf32>
    %292 = vector.broadcast %291 : vector<1x512xf32> to vector<8x512xf32>
    %293 = arith.addf %290, %292 : vector<8x512xf32>
    %294 = vector.extract_strided_slice %293 {offsets = [0, 0], sizes = [8, 384], strides = [1, 1]} : vector<8x512xf32> to vector<8x384xf32>
    %295 = arith.negf %294 : vector<8x384xf32>
    %296 = math.exp %295 : vector<8x384xf32>
    %cst_108 = arith.constant 1.000000e+00 : f32
    %297 = vector.broadcast %cst_108 : f32 to vector<8x384xf32>
    %298 = arith.addf %297, %296 : vector<8x384xf32>
    %299 = arith.divf %297, %298 : vector<8x384xf32>
    %300 = vector.extract_strided_slice %293 {offsets = [0, 384], sizes = [8, 128], strides = [1, 1]} : vector<8x512xf32> to vector<8x128xf32>
    %301 = math.tanh %300 : vector<8x128xf32>
    %302 = vector.extract_strided_slice %299 {offsets = [0, 0], sizes = [8, 128], strides = [1, 1]} : vector<8x384xf32> to vector<8x128xf32>
    %303 = vector.extract_strided_slice %299 {offsets = [0, 128], sizes = [8, 128], strides = [1, 1]} : vector<8x384xf32> to vector<8x128xf32>
    %304 = vector.extract_strided_slice %299 {offsets = [0, 256], sizes = [8, 128], strides = [1, 1]} : vector<8x384xf32> to vector<8x128xf32>
    %305 = arith.mulf %303, %259 : vector<8x128xf32>
    %306 = arith.mulf %302, %301 : vector<8x128xf32>
    %307 = arith.addf %305, %306 : vector<8x128xf32>
    %308 = math.tanh %307 : vector<8x128xf32>
    %309 = arith.mulf %304, %308 : vector<8x128xf32>
    %c0_109 = arith.constant 0 : index
    %c0_110 = arith.constant 0 : index
    %310 = vector.load %arg9[%c0_109, %c0_110] : memref<128x128xf32, #tpu.memory_space<vmem>>, vector<128x128xf32>
    %cst_111 = arith.constant dense<0.000000e+00> : vector<8x128xf32>
    %311 = tpu.matmul %309, %310, %cst_111 {dimension_numbers = #tpu.dot_dimension_numbers<[1], [0], [0], [1], [0, 0, 1, 1], [], []>} : vector<8x128xf32>, vector<128x128xf32>, vector<8x128xf32> -> vector<8x128xf32>
    %c0_112 = arith.constant 0 : index
    %c0_113 = arith.constant 0 : index
    %312 = vector.load %arg10[%c0_112, %c0_113] : memref<1x128xf32, #tpu.memory_space<vmem>>, vector<1x128xf32>
    %313 = vector.broadcast %312 : vector<1x128xf32> to vector<8x128xf32>
    %314 = arith.addf %311, %313 : vector<8x128xf32>
    %c16_114 = arith.constant 16 : index
    %c0_115 = arith.constant 0 : index
    %315 = vector.load %arg11[%c16_114, %c0_115] : memref<64x128xf32, #tpu.memory_space<vmem>>, vector<8x128xf32>
    tpu.vector_store %arg11[%c16_114, %c0_115], %314 {strides = array<i32>} : memref<64x128xf32, #tpu.memory_space<vmem>>, vector<8x128xf32>,
    %cst_116 = arith.constant dense<0xFF800000> : vector<8xf32>
    %316 = vector.multi_reduction <maximumf>, %314, %cst_116 [1] : vector<8x128xf32> to vector<8xf32>
    %317 = vector.shape_cast %316 : vector<8xf32> to vector<8x1xf32>
    %318 = vector.broadcast %317 : vector<8x1xf32> to vector<8x128xf32>
    %319 = arith.cmpf oeq, %314, %318 : vector<8x128xf32>
    %c128_i32_117 = arith.constant 128 : i32
    %320 = vector.shape_cast %0 : vector<1x128xi32> to vector<1x128xi32>
    %321 = vector.broadcast %320 : vector<1x128xi32> to vector<8x128xi32>
    %322 = vector.broadcast %c128_i32_117 : i32 to vector<8x128xi32>
    %323 = arith.select %319, %321, %322 : vector<8x128xi1>, vector<8x128xi32>
    %cst_118 = arith.constant dense<2147483647> : vector<8xi32>
    %324 = vector.multi_reduction <minsi>, %323, %cst_118 [1] : vector<8x128xi32> to vector<8xi32>
    %325 = vector.shape_cast %324 : vector<8xi32> to vector<8x1xi32>
    %326 = vector.broadcast %0 : vector<1x128xi32> to vector<8x128xi32>
    %327 = vector.broadcast %325 : vector<8x1xi32> to vector<8x128xi32>
    %328 = arith.cmpi eq, %326, %327 : vector<8x128xi32>
    %329 = arith.extui %328 : vector<8x128xi1> to vector<8x128xi32>
    %330 = arith.sitofp %329 : vector<8x128xi32> to vector<8x128xf32>
    %c16_119 = arith.constant 16 : index
    %c0_120 = arith.constant 0 : index
    %331 = vector.load %arg2[%c16_119, %c0_120] : memref<64x128xf32, #tpu.memory_space<vmem>>, vector<8x128xf32>
    %c16_121 = arith.constant 16 : index
    %c0_122 = arith.constant 0 : index
    %332 = vector.load %arg3[%c16_121, %c0_122] : memref<64x128xf32, #tpu.memory_space<vmem>>, vector<8x128xf32>
    %cst_123 = arith.constant 5.000000e-01 : f32
    %333 = vector.broadcast %cst_123 : f32 to vector<8x128xf32>
    %334 = arith.cmpf ogt, %332, %333 : vector<8x128xf32>
    %335 = arith.select %334, %331, %330 : vector<8x128xi1>, vector<8x128xf32>
    %336 = tpu.concatenate %335, %309 in 1 : vector<8x128xf32>, vector<8x128xf32> -> vector<8x256xf32>
    %c0_124 = arith.constant 0 : index
    %c0_125 = arith.constant 0 : index
    %337 = vector.load %arg7[%c0_124, %c0_125] : memref<256x512xf32, #tpu.memory_space<vmem>>, vector<256x512xf32>
    %cst_126 = arith.constant dense<0.000000e+00> : vector<8x512xf32>
    %338 = tpu.matmul %336, %337, %cst_126 {dimension_numbers = #tpu.dot_dimension_numbers<[1], [0], [0], [1], [0, 0, 1, 1], [], []>} : vector<8x256xf32>, vector<256x512xf32>, vector<8x512xf32> -> vector<8x512xf32>
    %c0_127 = arith.constant 0 : index
    %c0_128 = arith.constant 0 : index
    %339 = vector.load %arg8[%c0_127, %c0_128] : memref<1x512xf32, #tpu.memory_space<vmem>>, vector<1x512xf32>
    %340 = vector.broadcast %339 : vector<1x512xf32> to vector<8x512xf32>
    %341 = arith.addf %338, %340 : vector<8x512xf32>
    %342 = vector.extract_strided_slice %341 {offsets = [0, 0], sizes = [8, 384], strides = [1, 1]} : vector<8x512xf32> to vector<8x384xf32>
    %343 = arith.negf %342 : vector<8x384xf32>
    %344 = math.exp %343 : vector<8x384xf32>
    %cst_129 = arith.constant 1.000000e+00 : f32
    %345 = vector.broadcast %cst_129 : f32 to vector<8x384xf32>
    %346 = arith.addf %345, %344 : vector<8x384xf32>
    %347 = arith.divf %345, %346 : vector<8x384xf32>
    %348 = vector.extract_strided_slice %341 {offsets = [0, 384], sizes = [8, 128], strides = [1, 1]} : vector<8x512xf32> to vector<8x128xf32>
    %349 = math.tanh %348 : vector<8x128xf32>
    %350 = vector.extract_strided_slice %347 {offsets = [0, 0], sizes = [8, 128], strides = [1, 1]} : vector<8x384xf32> to vector<8x128xf32>
    %351 = vector.extract_strided_slice %347 {offsets = [0, 128], sizes = [8, 128], strides = [1, 1]} : vector<8x384xf32> to vector<8x128xf32>
    %352 = vector.extract_strided_slice %347 {offsets = [0, 256], sizes = [8, 128], strides = [1, 1]} : vector<8x384xf32> to vector<8x128xf32>
    %353 = arith.mulf %351, %307 : vector<8x128xf32>
    %354 = arith.mulf %350, %349 : vector<8x128xf32>
    %355 = arith.addf %353, %354 : vector<8x128xf32>
    %356 = math.tanh %355 : vector<8x128xf32>
    %357 = arith.mulf %352, %356 : vector<8x128xf32>
    %c0_130 = arith.constant 0 : index
    %c0_131 = arith.constant 0 : index
    %358 = vector.load %arg9[%c0_130, %c0_131] : memref<128x128xf32, #tpu.memory_space<vmem>>, vector<128x128xf32>
    %cst_132 = arith.constant dense<0.000000e+00> : vector<8x128xf32>
    %359 = tpu.matmul %357, %358, %cst_132 {dimension_numbers = #tpu.dot_dimension_numbers<[1], [0], [0], [1], [0, 0, 1, 1], [], []>} : vector<8x128xf32>, vector<128x128xf32>, vector<8x128xf32> -> vector<8x128xf32>
    %c0_133 = arith.constant 0 : index
    %c0_134 = arith.constant 0 : index
    %360 = vector.load %arg10[%c0_133, %c0_134] : memref<1x128xf32, #tpu.memory_space<vmem>>, vector<1x128xf32>
    %361 = vector.broadcast %360 : vector<1x128xf32> to vector<8x128xf32>
    %362 = arith.addf %359, %361 : vector<8x128xf32>
    %c24_135 = arith.constant 24 : index
    %c0_136 = arith.constant 0 : index
    %363 = vector.load %arg11[%c24_135, %c0_136] : memref<64x128xf32, #tpu.memory_space<vmem>>, vector<8x128xf32>
    tpu.vector_store %arg11[%c24_135, %c0_136], %362 {strides = array<i32>} : memref<64x128xf32, #tpu.memory_space<vmem>>, vector<8x128xf32>,
    %cst_137 = arith.constant dense<0xFF800000> : vector<8xf32>
    %364 = vector.multi_reduction <maximumf>, %362, %cst_137 [1] : vector<8x128xf32> to vector<8xf32>
    %365 = vector.shape_cast %364 : vector<8xf32> to vector<8x1xf32>
    %366 = vector.broadcast %365 : vector<8x1xf32> to vector<8x128xf32>
    %367 = arith.cmpf oeq, %362, %366 : vector<8x128xf32>
    %c128_i32_138 = arith.constant 128 : i32
    %368 = vector.shape_cast %0 : vector<1x128xi32> to vector<1x128xi32>
    %369 = vector.broadcast %368 : vector<1x128xi32> to vector<8x128xi32>
    %370 = vector.broadcast %c128_i32_138 : i32 to vector<8x128xi32>
    %371 = arith.select %367, %369, %370 : vector<8x128xi1>, vector<8x128xi32>
    %cst_139 = arith.constant dense<2147483647> : vector<8xi32>
    %372 = vector.multi_reduction <minsi>, %371, %cst_139 [1] : vector<8x128xi32> to vector<8xi32>
    %373 = vector.shape_cast %372 : vector<8xi32> to vector<8x1xi32>
    %374 = vector.broadcast %0 : vector<1x128xi32> to vector<8x128xi32>
    %375 = vector.broadcast %373 : vector<8x1xi32> to vector<8x128xi32>
    %376 = arith.cmpi eq, %374, %375 : vector<8x128xi32>
    %377 = arith.extui %376 : vector<8x128xi1> to vector<8x128xi32>
    %378 = arith.sitofp %377 : vector<8x128xi32> to vector<8x128xf32>
    %c24_140 = arith.constant 24 : index
    %c0_141 = arith.constant 0 : index
    %379 = vector.load %arg2[%c24_140, %c0_141] : memref<64x128xf32, #tpu.memory_space<vmem>>, vector<8x128xf32>
    %c24_142 = arith.constant 24 : index
    %c0_143 = arith.constant 0 : index
    %380 = vector.load %arg3[%c24_142, %c0_143] : memref<64x128xf32, #tpu.memory_space<vmem>>, vector<8x128xf32>
    %cst_144 = arith.constant 5.000000e-01 : f32
    %381 = vector.broadcast %cst_144 : f32 to vector<8x128xf32>
    %382 = arith.cmpf ogt, %380, %381 : vector<8x128xf32>
    %383 = arith.select %382, %379, %378 : vector<8x128xi1>, vector<8x128xf32>
    %384 = tpu.concatenate %383, %357 in 1 : vector<8x128xf32>, vector<8x128xf32> -> vector<8x256xf32>
    %c0_145 = arith.constant 0 : index
    %c0_146 = arith.constant 0 : index
    %385 = vector.load %arg7[%c0_145, %c0_146] : memref<256x512xf32, #tpu.memory_space<vmem>>, vector<256x512xf32>
    %cst_147 = arith.constant dense<0.000000e+00> : vector<8x512xf32>
    %386 = tpu.matmul %384, %385, %cst_147 {dimension_numbers = #tpu.dot_dimension_numbers<[1], [0], [0], [1], [0, 0, 1, 1], [], []>} : vector<8x256xf32>, vector<256x512xf32>, vector<8x512xf32> -> vector<8x512xf32>
    %c0_148 = arith.constant 0 : index
    %c0_149 = arith.constant 0 : index
    %387 = vector.load %arg8[%c0_148, %c0_149] : memref<1x512xf32, #tpu.memory_space<vmem>>, vector<1x512xf32>
    %388 = vector.broadcast %387 : vector<1x512xf32> to vector<8x512xf32>
    %389 = arith.addf %386, %388 : vector<8x512xf32>
    %390 = vector.extract_strided_slice %389 {offsets = [0, 0], sizes = [8, 384], strides = [1, 1]} : vector<8x512xf32> to vector<8x384xf32>
    %391 = arith.negf %390 : vector<8x384xf32>
    %392 = math.exp %391 : vector<8x384xf32>
    %cst_150 = arith.constant 1.000000e+00 : f32
    %393 = vector.broadcast %cst_150 : f32 to vector<8x384xf32>
    %394 = arith.addf %393, %392 : vector<8x384xf32>
    %395 = arith.divf %393, %394 : vector<8x384xf32>
    %396 = vector.extract_strided_slice %389 {offsets = [0, 384], sizes = [8, 128], strides = [1, 1]} : vector<8x512xf32> to vector<8x128xf32>
    %397 = math.tanh %396 : vector<8x128xf32>
    %398 = vector.extract_strided_slice %395 {offsets = [0, 0], sizes = [8, 128], strides = [1, 1]} : vector<8x384xf32> to vector<8x128xf32>
    %399 = vector.extract_strided_slice %395 {offsets = [0, 128], sizes = [8, 128], strides = [1, 1]} : vector<8x384xf32> to vector<8x128xf32>
    %400 = vector.extract_strided_slice %395 {offsets = [0, 256], sizes = [8, 128], strides = [1, 1]} : vector<8x384xf32> to vector<8x128xf32>
    %401 = arith.mulf %399, %355 : vector<8x128xf32>
    %402 = arith.mulf %398, %397 : vector<8x128xf32>
    %403 = arith.addf %401, %402 : vector<8x128xf32>
    %404 = math.tanh %403 : vector<8x128xf32>
    %405 = arith.mulf %400, %404 : vector<8x128xf32>
    %c0_151 = arith.constant 0 : index
    %c0_152 = arith.constant 0 : index
    %406 = vector.load %arg9[%c0_151, %c0_152] : memref<128x128xf32, #tpu.memory_space<vmem>>, vector<128x128xf32>
    %cst_153 = arith.constant dense<0.000000e+00> : vector<8x128xf32>
    %407 = tpu.matmul %405, %406, %cst_153 {dimension_numbers = #tpu.dot_dimension_numbers<[1], [0], [0], [1], [0, 0, 1, 1], [], []>} : vector<8x128xf32>, vector<128x128xf32>, vector<8x128xf32> -> vector<8x128xf32>
    %c0_154 = arith.constant 0 : index
    %c0_155 = arith.constant 0 : index
    %408 = vector.load %arg10[%c0_154, %c0_155] : memref<1x128xf32, #tpu.memory_space<vmem>>, vector<1x128xf32>
    %409 = vector.broadcast %408 : vector<1x128xf32> to vector<8x128xf32>
    %410 = arith.addf %407, %409 : vector<8x128xf32>
    %c32_156 = arith.constant 32 : index
    %c0_157 = arith.constant 0 : index
    %411 = vector.load %arg11[%c32_156, %c0_157] : memref<64x128xf32, #tpu.memory_space<vmem>>, vector<8x128xf32>
    tpu.vector_store %arg11[%c32_156, %c0_157], %410 {strides = array<i32>} : memref<64x128xf32, #tpu.memory_space<vmem>>, vector<8x128xf32>,
    %cst_158 = arith.constant dense<0xFF800000> : vector<8xf32>
    %412 = vector.multi_reduction <maximumf>, %410, %cst_158 [1] : vector<8x128xf32> to vector<8xf32>
    %413 = vector.shape_cast %412 : vector<8xf32> to vector<8x1xf32>
    %414 = vector.broadcast %413 : vector<8x1xf32> to vector<8x128xf32>
    %415 = arith.cmpf oeq, %410, %414 : vector<8x128xf32>
    %c128_i32_159 = arith.constant 128 : i32
    %416 = vector.shape_cast %0 : vector<1x128xi32> to vector<1x128xi32>
    %417 = vector.broadcast %416 : vector<1x128xi32> to vector<8x128xi32>
    %418 = vector.broadcast %c128_i32_159 : i32 to vector<8x128xi32>
    %419 = arith.select %415, %417, %418 : vector<8x128xi1>, vector<8x128xi32>
    %cst_160 = arith.constant dense<2147483647> : vector<8xi32>
    %420 = vector.multi_reduction <minsi>, %419, %cst_160 [1] : vector<8x128xi32> to vector<8xi32>
    %421 = vector.shape_cast %420 : vector<8xi32> to vector<8x1xi32>
    %422 = vector.broadcast %0 : vector<1x128xi32> to vector<8x128xi32>
    %423 = vector.broadcast %421 : vector<8x1xi32> to vector<8x128xi32>
    %424 = arith.cmpi eq, %422, %423 : vector<8x128xi32>
    %425 = arith.extui %424 : vector<8x128xi1> to vector<8x128xi32>
    %426 = arith.sitofp %425 : vector<8x128xi32> to vector<8x128xf32>
    %c32_161 = arith.constant 32 : index
    %c0_162 = arith.constant 0 : index
    %427 = vector.load %arg2[%c32_161, %c0_162] : memref<64x128xf32, #tpu.memory_space<vmem>>, vector<8x128xf32>
    %c32_163 = arith.constant 32 : index
    %c0_164 = arith.constant 0 : index
    %428 = vector.load %arg3[%c32_163, %c0_164] : memref<64x128xf32, #tpu.memory_space<vmem>>, vector<8x128xf32>
    %cst_165 = arith.constant 5.000000e-01 : f32
    %429 = vector.broadcast %cst_165 : f32 to vector<8x128xf32>
    %430 = arith.cmpf ogt, %428, %429 : vector<8x128xf32>
    %431 = arith.select %430, %427, %426 : vector<8x128xi1>, vector<8x128xf32>
    %432 = tpu.concatenate %431, %405 in 1 : vector<8x128xf32>, vector<8x128xf32> -> vector<8x256xf32>
    %c0_166 = arith.constant 0 : index
    %c0_167 = arith.constant 0 : index
    %433 = vector.load %arg7[%c0_166, %c0_167] : memref<256x512xf32, #tpu.memory_space<vmem>>, vector<256x512xf32>
    %cst_168 = arith.constant dense<0.000000e+00> : vector<8x512xf32>
    %434 = tpu.matmul %432, %433, %cst_168 {dimension_numbers = #tpu.dot_dimension_numbers<[1], [0], [0], [1], [0, 0, 1, 1], [], []>} : vector<8x256xf32>, vector<256x512xf32>, vector<8x512xf32> -> vector<8x512xf32>
    %c0_169 = arith.constant 0 : index
    %c0_170 = arith.constant 0 : index
    %435 = vector.load %arg8[%c0_169, %c0_170] : memref<1x512xf32, #tpu.memory_space<vmem>>, vector<1x512xf32>
    %436 = vector.broadcast %435 : vector<1x512xf32> to vector<8x512xf32>
    %437 = arith.addf %434, %436 : vector<8x512xf32>
    %438 = vector.extract_strided_slice %437 {offsets = [0, 0], sizes = [8, 384], strides = [1, 1]} : vector<8x512xf32> to vector<8x384xf32>
    %439 = arith.negf %438 : vector<8x384xf32>
    %440 = math.exp %439 : vector<8x384xf32>
    %cst_171 = arith.constant 1.000000e+00 : f32
    %441 = vector.broadcast %cst_171 : f32 to vector<8x384xf32>
    %442 = arith.addf %441, %440 : vector<8x384xf32>
    %443 = arith.divf %441, %442 : vector<8x384xf32>
    %444 = vector.extract_strided_slice %437 {offsets = [0, 384], sizes = [8, 128], strides = [1, 1]} : vector<8x512xf32> to vector<8x128xf32>
    %445 = math.tanh %444 : vector<8x128xf32>
    %446 = vector.extract_strided_slice %443 {offsets = [0, 0], sizes = [8, 128], strides = [1, 1]} : vector<8x384xf32> to vector<8x128xf32>
    %447 = vector.extract_strided_slice %443 {offsets = [0, 128], sizes = [8, 128], strides = [1, 1]} : vector<8x384xf32> to vector<8x128xf32>
    %448 = vector.extract_strided_slice %443 {offsets = [0, 256], sizes = [8, 128], strides = [1, 1]} : vector<8x384xf32> to vector<8x128xf32>
    %449 = arith.mulf %447, %403 : vector<8x128xf32>
    %450 = arith.mulf %446, %445 : vector<8x128xf32>
    %451 = arith.addf %449, %450 : vector<8x128xf32>
    %452 = math.tanh %451 : vector<8x128xf32>
    %453 = arith.mulf %448, %452 : vector<8x128xf32>
    %c0_172 = arith.constant 0 : index
    %c0_173 = arith.constant 0 : index
    %454 = vector.load %arg9[%c0_172, %c0_173] : memref<128x128xf32, #tpu.memory_space<vmem>>, vector<128x128xf32>
    %cst_174 = arith.constant dense<0.000000e+00> : vector<8x128xf32>
    %455 = tpu.matmul %453, %454, %cst_174 {dimension_numbers = #tpu.dot_dimension_numbers<[1], [0], [0], [1], [0, 0, 1, 1], [], []>} : vector<8x128xf32>, vector<128x128xf32>, vector<8x128xf32> -> vector<8x128xf32>
    %c0_175 = arith.constant 0 : index
    %c0_176 = arith.constant 0 : index
    %456 = vector.load %arg10[%c0_175, %c0_176] : memref<1x128xf32, #tpu.memory_space<vmem>>, vector<1x128xf32>
    %457 = vector.broadcast %456 : vector<1x128xf32> to vector<8x128xf32>
    %458 = arith.addf %455, %457 : vector<8x128xf32>
    %c40_177 = arith.constant 40 : index
    %c0_178 = arith.constant 0 : index
    %459 = vector.load %arg11[%c40_177, %c0_178] : memref<64x128xf32, #tpu.memory_space<vmem>>, vector<8x128xf32>
    tpu.vector_store %arg11[%c40_177, %c0_178], %458 {strides = array<i32>} : memref<64x128xf32, #tpu.memory_space<vmem>>, vector<8x128xf32>,
    %cst_179 = arith.constant dense<0xFF800000> : vector<8xf32>
    %460 = vector.multi_reduction <maximumf>, %458, %cst_179 [1] : vector<8x128xf32> to vector<8xf32>
    %461 = vector.shape_cast %460 : vector<8xf32> to vector<8x1xf32>
    %462 = vector.broadcast %461 : vector<8x1xf32> to vector<8x128xf32>
    %463 = arith.cmpf oeq, %458, %462 : vector<8x128xf32>
    %c128_i32_180 = arith.constant 128 : i32
    %464 = vector.shape_cast %0 : vector<1x128xi32> to vector<1x128xi32>
    %465 = vector.broadcast %464 : vector<1x128xi32> to vector<8x128xi32>
    %466 = vector.broadcast %c128_i32_180 : i32 to vector<8x128xi32>
    %467 = arith.select %463, %465, %466 : vector<8x128xi1>, vector<8x128xi32>
    %cst_181 = arith.constant dense<2147483647> : vector<8xi32>
    %468 = vector.multi_reduction <minsi>, %467, %cst_181 [1] : vector<8x128xi32> to vector<8xi32>
    %469 = vector.shape_cast %468 : vector<8xi32> to vector<8x1xi32>
    %470 = vector.broadcast %0 : vector<1x128xi32> to vector<8x128xi32>
    %471 = vector.broadcast %469 : vector<8x1xi32> to vector<8x128xi32>
    %472 = arith.cmpi eq, %470, %471 : vector<8x128xi32>
    %473 = arith.extui %472 : vector<8x128xi1> to vector<8x128xi32>
    %474 = arith.sitofp %473 : vector<8x128xi32> to vector<8x128xf32>
    %c40_182 = arith.constant 40 : index
    %c0_183 = arith.constant 0 : index
    %475 = vector.load %arg2[%c40_182, %c0_183] : memref<64x128xf32, #tpu.memory_space<vmem>>, vector<8x128xf32>
    %c40_184 = arith.constant 40 : index
    %c0_185 = arith.constant 0 : index
    %476 = vector.load %arg3[%c40_184, %c0_185] : memref<64x128xf32, #tpu.memory_space<vmem>>, vector<8x128xf32>
    %cst_186 = arith.constant 5.000000e-01 : f32
    %477 = vector.broadcast %cst_186 : f32 to vector<8x128xf32>
    %478 = arith.cmpf ogt, %476, %477 : vector<8x128xf32>
    %479 = arith.select %478, %475, %474 : vector<8x128xi1>, vector<8x128xf32>
    %480 = tpu.concatenate %479, %453 in 1 : vector<8x128xf32>, vector<8x128xf32> -> vector<8x256xf32>
    %c0_187 = arith.constant 0 : index
    %c0_188 = arith.constant 0 : index
    %481 = vector.load %arg7[%c0_187, %c0_188] : memref<256x512xf32, #tpu.memory_space<vmem>>, vector<256x512xf32>
    %cst_189 = arith.constant dense<0.000000e+00> : vector<8x512xf32>
    %482 = tpu.matmul %480, %481, %cst_189 {dimension_numbers = #tpu.dot_dimension_numbers<[1], [0], [0], [1], [0, 0, 1, 1], [], []>} : vector<8x256xf32>, vector<256x512xf32>, vector<8x512xf32> -> vector<8x512xf32>
    %c0_190 = arith.constant 0 : index
    %c0_191 = arith.constant 0 : index
    %483 = vector.load %arg8[%c0_190, %c0_191] : memref<1x512xf32, #tpu.memory_space<vmem>>, vector<1x512xf32>
    %484 = vector.broadcast %483 : vector<1x512xf32> to vector<8x512xf32>
    %485 = arith.addf %482, %484 : vector<8x512xf32>
    %486 = vector.extract_strided_slice %485 {offsets = [0, 0], sizes = [8, 384], strides = [1, 1]} : vector<8x512xf32> to vector<8x384xf32>
    %487 = arith.negf %486 : vector<8x384xf32>
    %488 = math.exp %487 : vector<8x384xf32>
    %cst_192 = arith.constant 1.000000e+00 : f32
    %489 = vector.broadcast %cst_192 : f32 to vector<8x384xf32>
    %490 = arith.addf %489, %488 : vector<8x384xf32>
    %491 = arith.divf %489, %490 : vector<8x384xf32>
    %492 = vector.extract_strided_slice %485 {offsets = [0, 384], sizes = [8, 128], strides = [1, 1]} : vector<8x512xf32> to vector<8x128xf32>
    %493 = math.tanh %492 : vector<8x128xf32>
    %494 = vector.extract_strided_slice %491 {offsets = [0, 0], sizes = [8, 128], strides = [1, 1]} : vector<8x384xf32> to vector<8x128xf32>
    %495 = vector.extract_strided_slice %491 {offsets = [0, 128], sizes = [8, 128], strides = [1, 1]} : vector<8x384xf32> to vector<8x128xf32>
    %496 = vector.extract_strided_slice %491 {offsets = [0, 256], sizes = [8, 128], strides = [1, 1]} : vector<8x384xf32> to vector<8x128xf32>
    %497 = arith.mulf %495, %451 : vector<8x128xf32>
    %498 = arith.mulf %494, %493 : vector<8x128xf32>
    %499 = arith.addf %497, %498 : vector<8x128xf32>
    %500 = math.tanh %499 : vector<8x128xf32>
    %501 = arith.mulf %496, %500 : vector<8x128xf32>
    %c0_193 = arith.constant 0 : index
    %c0_194 = arith.constant 0 : index
    %502 = vector.load %arg9[%c0_193, %c0_194] : memref<128x128xf32, #tpu.memory_space<vmem>>, vector<128x128xf32>
    %cst_195 = arith.constant dense<0.000000e+00> : vector<8x128xf32>
    %503 = tpu.matmul %501, %502, %cst_195 {dimension_numbers = #tpu.dot_dimension_numbers<[1], [0], [0], [1], [0, 0, 1, 1], [], []>} : vector<8x128xf32>, vector<128x128xf32>, vector<8x128xf32> -> vector<8x128xf32>
    %c0_196 = arith.constant 0 : index
    %c0_197 = arith.constant 0 : index
    %504 = vector.load %arg10[%c0_196, %c0_197] : memref<1x128xf32, #tpu.memory_space<vmem>>, vector<1x128xf32>
    %505 = vector.broadcast %504 : vector<1x128xf32> to vector<8x128xf32>
    %506 = arith.addf %503, %505 : vector<8x128xf32>
    %c48_198 = arith.constant 48 : index
    %c0_199 = arith.constant 0 : index
    %507 = vector.load %arg11[%c48_198, %c0_199] : memref<64x128xf32, #tpu.memory_space<vmem>>, vector<8x128xf32>
    tpu.vector_store %arg11[%c48_198, %c0_199], %506 {strides = array<i32>} : memref<64x128xf32, #tpu.memory_space<vmem>>, vector<8x128xf32>,
    %cst_200 = arith.constant dense<0xFF800000> : vector<8xf32>
    %508 = vector.multi_reduction <maximumf>, %506, %cst_200 [1] : vector<8x128xf32> to vector<8xf32>
    %509 = vector.shape_cast %508 : vector<8xf32> to vector<8x1xf32>
    %510 = vector.broadcast %509 : vector<8x1xf32> to vector<8x128xf32>
    %511 = arith.cmpf oeq, %506, %510 : vector<8x128xf32>
    %c128_i32_201 = arith.constant 128 : i32
    %512 = vector.shape_cast %0 : vector<1x128xi32> to vector<1x128xi32>
    %513 = vector.broadcast %512 : vector<1x128xi32> to vector<8x128xi32>
    %514 = vector.broadcast %c128_i32_201 : i32 to vector<8x128xi32>
    %515 = arith.select %511, %513, %514 : vector<8x128xi1>, vector<8x128xi32>
    %cst_202 = arith.constant dense<2147483647> : vector<8xi32>
    %516 = vector.multi_reduction <minsi>, %515, %cst_202 [1] : vector<8x128xi32> to vector<8xi32>
    %517 = vector.shape_cast %516 : vector<8xi32> to vector<8x1xi32>
    %518 = vector.broadcast %0 : vector<1x128xi32> to vector<8x128xi32>
    %519 = vector.broadcast %517 : vector<8x1xi32> to vector<8x128xi32>
    %520 = arith.cmpi eq, %518, %519 : vector<8x128xi32>
    %521 = arith.extui %520 : vector<8x128xi1> to vector<8x128xi32>
    %522 = arith.sitofp %521 : vector<8x128xi32> to vector<8x128xf32>
    %c48_203 = arith.constant 48 : index
    %c0_204 = arith.constant 0 : index
    %523 = vector.load %arg2[%c48_203, %c0_204] : memref<64x128xf32, #tpu.memory_space<vmem>>, vector<8x128xf32>
    %c48_205 = arith.constant 48 : index
    %c0_206 = arith.constant 0 : index
    %524 = vector.load %arg3[%c48_205, %c0_206] : memref<64x128xf32, #tpu.memory_space<vmem>>, vector<8x128xf32>
    %cst_207 = arith.constant 5.000000e-01 : f32
    %525 = vector.broadcast %cst_207 : f32 to vector<8x128xf32>
    %526 = arith.cmpf ogt, %524, %525 : vector<8x128xf32>
    %527 = arith.select %526, %523, %522 : vector<8x128xi1>, vector<8x128xf32>
    %528 = tpu.concatenate %527, %501 in 1 : vector<8x128xf32>, vector<8x128xf32> -> vector<8x256xf32>
    %c0_208 = arith.constant 0 : index
    %c0_209 = arith.constant 0 : index
    %529 = vector.load %arg7[%c0_208, %c0_209] : memref<256x512xf32, #tpu.memory_space<vmem>>, vector<256x512xf32>
    %cst_210 = arith.constant dense<0.000000e+00> : vector<8x512xf32>
    %530 = tpu.matmul %528, %529, %cst_210 {dimension_numbers = #tpu.dot_dimension_numbers<[1], [0], [0], [1], [0, 0, 1, 1], [], []>} : vector<8x256xf32>, vector<256x512xf32>, vector<8x512xf32> -> vector<8x512xf32>
    %c0_211 = arith.constant 0 : index
    %c0_212 = arith.constant 0 : index
    %531 = vector.load %arg8[%c0_211, %c0_212] : memref<1x512xf32, #tpu.memory_space<vmem>>, vector<1x512xf32>
    %532 = vector.broadcast %531 : vector<1x512xf32> to vector<8x512xf32>
    %533 = arith.addf %530, %532 : vector<8x512xf32>
    %534 = vector.extract_strided_slice %533 {offsets = [0, 0], sizes = [8, 384], strides = [1, 1]} : vector<8x512xf32> to vector<8x384xf32>
    %535 = arith.negf %534 : vector<8x384xf32>
    %536 = math.exp %535 : vector<8x384xf32>
    %cst_213 = arith.constant 1.000000e+00 : f32
    %537 = vector.broadcast %cst_213 : f32 to vector<8x384xf32>
    %538 = arith.addf %537, %536 : vector<8x384xf32>
    %539 = arith.divf %537, %538 : vector<8x384xf32>
    %540 = vector.extract_strided_slice %533 {offsets = [0, 384], sizes = [8, 128], strides = [1, 1]} : vector<8x512xf32> to vector<8x128xf32>
    %541 = math.tanh %540 : vector<8x128xf32>
    %542 = vector.extract_strided_slice %539 {offsets = [0, 0], sizes = [8, 128], strides = [1, 1]} : vector<8x384xf32> to vector<8x128xf32>
    %543 = vector.extract_strided_slice %539 {offsets = [0, 128], sizes = [8, 128], strides = [1, 1]} : vector<8x384xf32> to vector<8x128xf32>
    %544 = vector.extract_strided_slice %539 {offsets = [0, 256], sizes = [8, 128], strides = [1, 1]} : vector<8x384xf32> to vector<8x128xf32>
    %545 = arith.mulf %543, %499 : vector<8x128xf32>
    %546 = arith.mulf %542, %541 : vector<8x128xf32>
    %547 = arith.addf %545, %546 : vector<8x128xf32>
    %548 = math.tanh %547 : vector<8x128xf32>
    %549 = arith.mulf %544, %548 : vector<8x128xf32>
    %c0_214 = arith.constant 0 : index
    %c0_215 = arith.constant 0 : index
    %550 = vector.load %arg9[%c0_214, %c0_215] : memref<128x128xf32, #tpu.memory_space<vmem>>, vector<128x128xf32>
    %cst_216 = arith.constant dense<0.000000e+00> : vector<8x128xf32>
    %551 = tpu.matmul %549, %550, %cst_216 {dimension_numbers = #tpu.dot_dimension_numbers<[1], [0], [0], [1], [0, 0, 1, 1], [], []>} : vector<8x128xf32>, vector<128x128xf32>, vector<8x128xf32> -> vector<8x128xf32>
    %c0_217 = arith.constant 0 : index
    %c0_218 = arith.constant 0 : index
    %552 = vector.load %arg10[%c0_217, %c0_218] : memref<1x128xf32, #tpu.memory_space<vmem>>, vector<1x128xf32>
    %553 = vector.broadcast %552 : vector<1x128xf32> to vector<8x128xf32>
    %554 = arith.addf %551, %553 : vector<8x128xf32>
    %c56_219 = arith.constant 56 : index
    %c0_220 = arith.constant 0 : index
    %555 = vector.load %arg11[%c56_219, %c0_220] : memref<64x128xf32, #tpu.memory_space<vmem>>, vector<8x128xf32>
    tpu.vector_store %arg11[%c56_219, %c0_220], %554 {strides = array<i32>} : memref<64x128xf32, #tpu.memory_space<vmem>>, vector<8x128xf32>,
    return
  }
  func.func @transform_0(%arg0: i32) -> (i32, i32) {
    %c0_i32 = arith.constant 0 : i32
    %c0_i32_0 = arith.constant 0 : i32
    return %arg0, %c0_i32 : i32, i32
  }
  func.func @transform_1(%arg0: i32) -> (i32, i32) {
    %c0_i32 = arith.constant 0 : i32
    %c0_i32_0 = arith.constant 0 : i32
    return %arg0, %c0_i32 : i32, i32
  }
  func.func @transform_2(%arg0: i32) -> (i32, i32) {
    %c0_i32 = arith.constant 0 : i32
    %c0_i32_0 = arith.constant 0 : i32
    return %arg0, %c0_i32 : i32, i32
  }
  func.func @transform_3(%arg0: i32) -> (i32, i32) {
    %c0_i32 = arith.constant 0 : i32
    %c0_i32_0 = arith.constant 0 : i32
    %c0_i32_1 = arith.constant 0 : i32
    return %c0_i32, %c0_i32_0 : i32, i32
  }
  func.func @transform_4(%arg0: i32) -> (i32, i32) {
    %c0_i32 = arith.constant 0 : i32
    %c0_i32_0 = arith.constant 0 : i32
    %c0_i32_1 = arith.constant 0 : i32
    return %c0_i32, %c0_i32_0 : i32, i32
  }
  func.func @transform_5(%arg0: i32) -> (i32, i32) {
    %c0_i32 = arith.constant 0 : i32
    %c0_i32_0 = arith.constant 0 : i32
    %c0_i32_1 = arith.constant 0 : i32
    return %c0_i32, %c0_i32_0 : i32, i32
  }
  func.func @transform_6(%arg0: i32) -> (i32, i32) {
    %c0_i32 = arith.constant 0 : i32
    %c0_i32_0 = arith.constant 0 : i32
    %c0_i32_1 = arith.constant 0 : i32
    return %c0_i32, %c0_i32_0 : i32, i32
  }
  func.func @transform_7(%arg0: i32) -> (i32, i32) {
    %c0_i32 = arith.constant 0 : i32
    %c0_i32_0 = arith.constant 0 : i32
    %c0_i32_1 = arith.constant 0 : i32
    return %c0_i32, %c0_i32_0 : i32, i32
  }
  func.func @transform_8(%arg0: i32) -> (i32, i32) {
    %c0_i32 = arith.constant 0 : i32
    %c0_i32_0 = arith.constant 0 : i32
    %c0_i32_1 = arith.constant 0 : i32
    return %c0_i32, %c0_i32_0 : i32, i32
  }
  func.func @transform_9(%arg0: i32) -> (i32, i32) {
    %c0_i32 = arith.constant 0 : i32
    %c0_i32_0 = arith.constant 0 : i32
    %c0_i32_1 = arith.constant 0 : i32
    return %c0_i32, %c0_i32_0 : i32, i32
  }
  func.func @transform_10(%arg0: i32) -> (i32, i32) {
    %c0_i32 = arith.constant 0 : i32
    %c0_i32_0 = arith.constant 0 : i32
    return %arg0, %c0_i32 : i32, i32
  }
}

</mosaic_0001>

<llo_original>
// kernel: eq.15
$region0: #{eq.15}
  %s0 = inlined_call_operand.vmem [shape: s32[2,8,8], index: 0, kind: input, shape index: {}]
  %s1 = inlined_call_operand.vmem [shape: s32[128], index: 1, kind: output, shape index: {}]
  $region1: #{eq.15} parent=0
    #allocation0 [shape = 'u8[4096]{0}', space=vmem, size = 0x1000, scoped, tag = 'scoped mem for output reshape']
    %v2 = vld [vmem:[%s0] sm:$0x1]
    %vm3 = vcmask 64512
    %4 = vst.msk [vmem:[#allocation0] sm:$0x1] %vm3, %v2
    %s5 = scalar_lea.vmem %s0, 15
    %v6 = vld [vmem:[%s5] sm:$0x1]
    %7 = vrot.lane.b32.xlu0 %v6, 120
    %v8 = vpop.permute.xlu0 %7
    %vm9 = vcmask 1048512
    %10 = vst.msk [vmem:[#allocation0] sm:$0x1] %vm9, %v8
    %s11 = scalar_lea.vmem %s0, 14
    %v12 = vld [vmem:[%s11] sm:$0x1]
    %13 = vrot.lane.b32.xlu0 %v12, 112
    %v14 = vpop.permute.xlu0 %13
    %vm15 = vcmask 982912
    %16 = vst.msk [vmem:[#allocation0] sm:$0x1] %vm15, %v14
    %s17 = scalar_lea.vmem %s0, 13
    %v18 = vld [vmem:[%s17] sm:$0x1]
    %19 = vrot.lane.b32.xlu0 %v18, 104
    %v20 = vpop.permute.xlu0 %19
    %vm21 = vcmask 917312
    %22 = vst.msk [vmem:[#allocation0] sm:$0x1] %vm21, %v20
    %s23 = scalar_lea.vmem %s0, 12
    %v24 = vld [vmem:[%s23] sm:$0x1]
    %25 = vrot.lane.b32.xlu0 %v24, 96
    %v26 = vpop.permute.xlu0 %25
    %vm27 = vcmask 851712
    %28 = vst.msk [vmem:[#allocation0] sm:$0x1] %vm27, %v26
    %s29 = scalar_lea.vmem %s0, 11
    %v30 = vld [vmem:[%s29] sm:$0x1]
    %31 = vrot.lane.b32.xlu0 %v30, 88
    %v32 = vpop.permute.xlu0 %31
    %vm33 = vcmask 786112
    %34 = vst.msk [vmem:[#allocation0] sm:$0x1] %vm33, %v32
    %s35 = scalar_lea.vmem %s0, 10
    %v36 = vld [vmem:[%s35] sm:$0x1]
    %37 = vrot.lane.b32.xlu0 %v36, 80
    %v38 = vpop.permute.xlu0 %37
    %vm39 = vcmask 720512
    %40 = vst.msk [vmem:[#allocation0] sm:$0x1] %vm39, %v38
    %s41 = scalar_lea.vmem %s0, 9
    %v42 = vld [vmem:[%s41] sm:$0x1]
    %43 = vrot.lane.b32.xlu0 %v42, 72
    %v44 = vpop.permute.xlu0 %43
    %vm45 = vcmask 654912
    %46 = vst.msk [vmem:[#allocation0] sm:$0x1] %vm45, %v44
    %s47 = scalar_lea.vmem %s0, 8
    %v48 = vld [vmem:[%s47] sm:$0x1]
    %49 = vrot.lane.b32.xlu0 %v48, 64
    %v50 = vpop.permute.xlu0 %49
    %vm51 = vcmask 589312
    %52 = vst.msk [vmem:[#allocation0] sm:$0x1] %vm51, %v50
    %s53 = scalar_lea.vmem %s0, 7
    %v54 = vld [vmem:[%s53] sm:$0x1]
    %55 = vrot.lane.b32.xlu0 %v54, 56
    %v56 = vpop.permute.xlu0 %55
    %vm57 = vcmask 523712
    %58 = vst.msk [vmem:[#allocation0] sm:$0x1] %vm57, %v56
    %s59 = scalar_lea.vmem %s0, 6
    %v60 = vld [vmem:[%s59] sm:$0x1]
    %61 = vrot.lane.b32.xlu0 %v60, 48
    %v62 = vpop.permute.xlu0 %61
    %vm63 = vcmask 458112
    %64 = vst.msk [vmem:[#allocation0] sm:$0x1] %vm63, %v62
    %s65 = scalar_lea.vmem %s0, 5
    %v66 = vld [vmem:[%s65] sm:$0x1]
    %67 = vrot.lane.b32.xlu0 %v66, 40
    %v68 = vpop.permute.xlu0 %67
    %vm69 = vcmask 392512
    %70 = vst.msk [vmem:[#allocation0] sm:$0x1] %vm69, %v68
    %s71 = scalar_lea.vmem %s0, 4
    %v72 = vld [vmem:[%s71] sm:$0x1]
    %73 = vrot.lane.b32.xlu0 %v72, 32
    %v74 = vpop.permute.xlu0 %73
    %vm75 = vcmask 326912
    %76 = vst.msk [vmem:[#allocation0] sm:$0x1] %vm75, %v74
    %s77 = scalar_lea.vmem %s0, 3
    %v78 = vld [vmem:[%s77] sm:$0x1]
    %79 = vrot.lane.b32.xlu0 %v78, 24
    %v80 = vpop.permute.xlu0 %79
    %vm81 = vcmask 261312
    %82 = vst.msk [vmem:[#allocation0] sm:$0x1] %vm81, %v80
    %s83 = scalar_lea.vmem %s0, 2
    %v84 = vld [vmem:[%s83] sm:$0x1]
    %85 = vrot.lane.b32.xlu0 %v84, 16
    %v86 = vpop.permute.xlu0 %85
    %vm87 = vcmask 195712
    %88 = vst.msk [vmem:[#allocation0] sm:$0x1] %vm87, %v86
    %s89 = scalar_lea.vmem %s0, 1
    %v90 = vld [vmem:[%s89] sm:$0x1]
    %91 = vrot.lane.b32.xlu0 %v90, 8
    %v92 = vpop.permute.xlu0 %91
    %vm93 = vcmask 130112
    %94 = vst.msk [vmem:[#allocation0] sm:$0x1] %vm93, %v92
    %s96 = sshllo.u32 0, 1
    %v98 = vld [vmem:[#allocation0] sm:%s96]
    %s99 = sshllo.u32 0, 1
    %100 = vst [vmem:[%s1] sm:%s99] %v98

// kernel: eq.1
$region0: #{eq.1}
  %s0 = inlined_call_operand.vmem [shape: s32[2,10,8], index: 0, kind: input, shape index: {}]
  %s1 = inlined_call_operand.vmem [shape: s32[160], index: 1, kind: output, shape index: {}]
  $region1: #{eq.1} parent=0
    #allocation0 [shape = 'u8[4096]{0}', space=vmem, size = 0x1000, scoped, tag = 'scoped mem for output reshape']
    %s2 = smov 3
    %v3 = vld [vmem:[%s0] ss:$22 sm:%s2]
    %vm4 = vcmask 64512
    %5 = vst.msk [vmem:[#allocation0] sm:$0x3] %vm4, %v3
    %s6 = scalar_lea.vmem %s0, 21
    %v7 = vld [vmem:[%s6] sm:$0x1]
    %8 = vrot.lane.b32.xlu0 %v7, 120
    %v9 = vpop.permute.xlu0 %8
    %vm10 = vcmask 1048512
    %11 = vst.msk [vmem:[#allocation0] sm:$0x1] %vm10, %v9
    %s12 = scalar_lea.vmem %s0, 20
    %v13 = vld [vmem:[%s12] sm:$0x1]
    %14 = vrot.lane.b32.xlu0 %v13, 112
    %v15 = vpop.permute.xlu0 %14
    %vm16 = vcmask 982912
    %17 = vst.msk [vmem:[#allocation0] sm:$0x1] %vm16, %v15
    %s18 = scalar_lea.vmem %s0, 19
    %v19 = vld [vmem:[%s18] sm:$0x1]
    %20 = vrot.lane.b32.xlu0 %v19, 104
    %v21 = vpop.permute.xlu0 %20
    %vm22 = vcmask 917312
    %23 = vst.msk [vmem:[#allocation0] sm:$0x1] %vm22, %v21
    %s24 = scalar_lea.vmem %s0, 18
    %v25 = vld [vmem:[%s24] sm:$0x1]
    %26 = vrot.lane.b32.xlu0 %v25, 96
    %v27 = vpop.permute.xlu0 %26
    %vm28 = vcmask 851712
    %29 = vst.msk [vmem:[#allocation0] sm:$0x1] %vm28, %v27
    %s30 = scalar_lea.vmem %s0, 17
    %v31 = vld [vmem:[%s30] sm:$0x1]
    %32 = vrot.lane.b32.xlu0 %v31, 88
    %v33 = vpop.permute.xlu0 %32
    %vm34 = vcmask 786112
    %35 = vst.msk [vmem:[#allocation0] sm:$0x1] %vm34, %v33
    %s36 = scalar_lea.vmem %s0, 16
    %v37 = vld [vmem:[%s36] sm:$0x1]
    %38 = vrot.lane.b32.xlu0 %v37, 80
    %v39 = vpop.permute.xlu0 %38
    %vm40 = vcmask 720512
    %41 = vst.msk [vmem:[#allocation0] sm:$0x1] %vm40, %v39
    %s42 = scalar_lea.vmem %s0, 9
    %v43 = vld [vmem:[%s42] sm:$0x1]
    %44 = vrot.lane.b32.xlu0 %v43, 72
    %v45 = vpop.permute.xlu0 %44
    %vm46 = vcmask 654912
    %47 = vst.msk [vmem:[#allocation0] sm:$0x1] %vm46, %v45
    %s48 = scalar_lea.vmem %s0, 8
    %v49 = vld [vmem:[%s48] sm:$0x1]
    %50 = vrot.lane.b32.xlu0 %v49, 64
    %v51 = vpop.permute.xlu0 %50
    %vm52 = vcmask 589312
    %53 = vst.msk [vmem:[#allocation0] sm:$0x1] %vm52, %v51
    %s54 = scalar_lea.vmem %s0, 7
    %v55 = vld [vmem:[%s54] sm:$0x1]
    %56 = vrot.lane.b32.xlu0 %v55, 56
    %v57 = vpop.permute.xlu0 %56
    %vm58 = vcmask 523712
    %59 = vst.msk [vmem:[#allocation0] sm:$0x1] %vm58, %v57
    %s60 = scalar_lea.vmem %s0, 6
    %v61 = vld [vmem:[%s60] sm:$0x1]
    %62 = vrot.lane.b32.xlu0 %v61, 48
    %v63 = vpop.permute.xlu0 %62
    %vm64 = vcmask 458112
    %65 = vst.msk [vmem:[#allocation0] sm:$0x1] %vm64, %v63
    %s66 = scalar_lea.vmem %s0, 5
    %v67 = vld [vmem:[%s66] sm:$0x1]
    %68 = vrot.lane.b32.xlu0 %v67, 40
    %v69 = vpop.permute.xlu0 %68
    %vm70 = vcmask 392512
    %71 = vst.msk [vmem:[#allocation0] sm:$0x1] %vm70, %v69
    %s72 = scalar_lea.vmem %s0, 4
    %v73 = vld [vmem:[%s72] sm:$0x1]
    %74 = vrot.lane.b32.xlu0 %v73, 32
    %v75 = vpop.permute.xlu0 %74
    %vm76 = vcmask 326912
    %77 = vst.msk [vmem:[#allocation0] sm:$0x1] %vm76, %v75
    %s78 = scalar_lea.vmem %s0, 3
    %s79 = smov 3
    %v80 = vld [vmem:[%s78] ss:$22 sm:%s79]
    %81 = vrot.lane.b32.xlu0 %v80, 24
    %v82 = vpop.permute.xlu0 %81
    %vm83 = vcmask 261312
    %84 = vst.msk [vmem:[#allocation0] sm:$0x3] %vm83, %v82
    %s85 = scalar_lea.vmem %s0, 2
    %s86 = smov 3
    %v87 = vld [vmem:[%s85] ss:$22 sm:%s86]
    %88 = vrot.lane.b32.xlu0 %v87, 16
    %v89 = vpop.permute.xlu0 %88
    %vm90 = vcmask 195712
    %91 = vst.msk [vmem:[#allocation0] sm:$0x3] %vm90, %v89
    %s92 = scalar_lea.vmem %s0, 1
    %s93 = smov 3
    %v94 = vld [vmem:[%s92] ss:$22 sm:%s93]
    %95 = vrot.lane.b32.xlu0 %v94, 8
    %v96 = vpop.permute.xlu0 %95
    %vm97 = vcmask 130112
    %98 = vst.msk [vmem:[#allocation0] sm:$0x3] %vm97, %v96
    %s100 = sshllo.u32 0, 2
    %v102 = vld [vmem:[#allocation0] sm:%s100]
    %s103 = sshllo.u32 0, 2
    %104 = vst [vmem:[%s1] sm:%s103] %v102

// kernel: seq2seq_forward.1
$region0: #{seq2seq_forward.1}
  #allocation0 [shape = 'u32[]', space=smem, size = 0x4, offset = 0x4, fixed_abs, tag = 'smem constant byte address 0x4 - core index']
  #allocation1 [shape = 'u32[144,128]{1,0:T(1,128)}', space=vmem, size = 0x12000, scoped, tag = 'internal scratch']
  #allocation2 [shape = 'f32[80,512]{1,0:T(8,128)}', space=vmem, size = 0x28000, scoped, tag = 'scratch operand']
  %s0 = inlined_call_operand.vmem [shape: f32[160,128], index: 0, kind: input, shape index: {}]
  %s1 = inlined_call_operand.vmem [shape: f32[128,128], index: 1, kind: input, shape index: {}]
  %s2 = inlined_call_operand.vmem [shape: f32[128,128], index: 2, kind: input, shape index: {}]
  %s3 = inlined_call_operand.vmem [shape: f32[128,512], index: 3, kind: input, shape index: {}]
  %s4 = inlined_call_operand.hbm [shape: f32[128,512], index: 4, kind: input, shape index: {}]
  %s5 = inlined_call_operand.vmem [shape: f32[1,512], index: 5, kind: input, shape index: {}]
  %s6 = inlined_call_operand.hbm [shape: f32[256,512], index: 6, kind: input, shape index: {}]
  %s7 = inlined_call_operand.vmem [shape: f32[1,512], index: 7, kind: input, shape index: {}]
  %s8 = inlined_call_operand.vmem [shape: f32[128,128], index: 8, kind: input, shape index: {}]
  %s9 = inlined_call_operand.vmem [shape: f32[1,128], index: 9, kind: input, shape index: {}]
  %s10 = inlined_call_operand.vmem [shape: f32[128,128], index: 10, kind: output, shape index: {}]
  %s11 = sld [smem:[#allocation0]]
  $region81: #{seq2seq_forward.1} parent=0
    _
  %s13 = ssub.s32 1, %s11
  %s14 = scalar_select 0, %s13, %s11
  $region1: #{seq2seq_forward.1} parent=0
    #allocation3 [shape = 'u8[262144]{0}', space=vmem, size = 0x40000, scoped, tag = 'input window, operand 4, single buffered']
    #allocation4 [shape = 's32[2]{0}', space=sflag, size = 0x8, scoped, tag = 'scoped memory for seq2seq_forward.1']
    #allocation5 [shape = 'u8[524288]{0}', space=vmem, size = 0x80000, scoped, tag = 'input window, operand 6, single buffered']
    #allocation6 [shape = 's32[1]{0}', space=sflag, size = 0x4, scoped, tag = 'scoped memory for seq2seq_forward.1']
    %15 = vsyncpa [#allocation4], 0
    %16 = vsyncpa [#allocation6], 0
    loop: start=0, step=1, limit=4
    $region2: #{seq2seq_forward.1} parent=1 // loop_pre_header
      _
    $region3: #{seq2seq_forward.1} parent=1 // loop_header
      %s18 = sphi 0, %s22
      %p19 = scmp.ge.s32.totalorder %s18, 4
      %s28 = sphi 0, %s30
      %s31 = sphi 0, %s28
      %s32 = sphi 0, %s31
      %s48 = sphi 0, %s32
      %s54 = sphi 0, %s56
      %s57 = sphi 0, %s54
      %s58 = sphi 0, %s57
      %s74 = sphi 0, %s58
      %s80 = sphi 0, %s82
      %s83 = sphi 0, %s80
      %s84 = sphi 0, %s83
      %s100 = sphi 0, %s84
      %s104 = sphi 0, %s104
      %s106 = sphi 0, %s104
      %s107 = sphi 0, %s106
      %s121 = sphi 0, %s107
      %s125 = sphi 0, %s125
      %s127 = sphi 0, %s125
      %s128 = sphi 0, %s127
      %s142 = sphi 0, %s128
      %s146 = sphi 0, %s146
      %s148 = sphi 0, %s146
      %s149 = sphi 0, %s148
      %s163 = sphi 0, %s149
      %s167 = sphi 0, %s167
      %s169 = sphi 0, %s167
      %s170 = sphi 0, %s169
      %s184 = sphi 0, %s170
      %s188 = sphi 0, %s188
      %s190 = sphi 0, %s188
      %s191 = sphi 0, %s190
      %s205 = sphi 0, %s191
      %s209 = sphi 0, %s209
      %s211 = sphi 0, %s209
      %s212 = sphi 0, %s211
      %s226 = sphi 0, %s212
      %s230 = sphi 0, %s230
      %s232 = sphi 0, %s230
      %s233 = sphi 0, %s232
      %s247 = sphi 0, %s233
      %s253 = sphi 0, %s255
      %s256 = sphi 0, %s253
      %s257 = sphi 0, %s256
      %s273 = sphi 0, %s257
    $region4: #{seq2seq_forward.1} parent=1 // loop_header_branch
      %21 = sbr.rel (%p19) target = $region8
    $region5: #{seq2seq_forward.1} parent=1 // loop_body
      %s23 = ssub.s32 %s18, 1
      %s24 = ssub.s32 %s18, 2
      %s25 = sadd.s32 %s18, 1
      %s26 = ssub.s32 %s18, %s25
      %p27 = scmp.eq.s32.totalorder %s26, 0
      %s29 = sadd.s32 %s28, 1
      %s30 = scalar_select %p27, %s28, %s29
      %p33 = pneg %p27
      %p34 = scmp.eq.s32.totalorder %s18, 1
      %p35 = por %p33, %p34
      %p36 = scmp.ne.s32.totalorder %s28, %s31
      %p37 = scmp.eq.s32.totalorder %s18, 0
      %p38 = por %p36, %p37
      %p39 = scmp.ne.s32.totalorder %s28, %s31
      %p40 = scmp.eq.s32.totalorder %s23, 1
      %p41 = por %p39, %p40
      %p42 = scmp.ne.s32.totalorder %s31, %s32
      %p43 = scmp.eq.s32.totalorder %s23, 0
      %p44 = por %p42, %p43
      %p45 = scmp.ne.s32.totalorder %s31, %s32
      %p46 = scmp.eq.s32.totalorder %s24, 1
      %p47 = por %p45, %p46
      %p49 = scmp.ne.s32.totalorder %s32, %s48
      %p50 = scmp.eq.s32.totalorder %s24, 0
      %p51 = por %p49, %p50
      %s52 = ssub.s32 %s18, %s25
      %p53 = scmp.eq.s32.totalorder %s52, 0
      %s55 = sadd.s32 %s54, 1
      %s56 = scalar_select %p53, %s54, %s55
      %p59 = pneg %p53
      %p60 = scmp.eq.s32.totalorder %s18, 1
      %p61 = por %p59, %p60
      %p62 = scmp.ne.s32.totalorder %s54, %s57
      %p63 = scmp.eq.s32.totalorder %s18, 0
      %p64 = por %p62, %p63
      %p65 = scmp.ne.s32.totalorder %s54, %s57
      %p66 = scmp.eq.s32.totalorder %s23, 1
      %p67 = por %p65, %p66
      %p68 = scmp.ne.s32.totalorder %s57, %s58
      %p69 = scmp.eq.s32.totalorder %s23, 0
      %p70 = por %p68, %p69
      %p71 = scmp.ne.s32.totalorder %s57, %s58
      %p72 = scmp.eq.s32.totalorder %s24, 1
      %p73 = por %p71, %p72
      %p75 = scmp.ne.s32.totalorder %s58, %s74
      %p76 = scmp.eq.s32.totalorder %s24, 0
      %p77 = por %p75, %p76
      %s78 = ssub.s32 %s18, %s25
      %p79 = scmp.eq.s32.totalorder %s78, 0
      %s81 = sadd.s32 %s80, 1
      %s82 = scalar_select %p79, %s80, %s81
      %p85 = pneg %p79
      %p86 = scmp.eq.s32.totalorder %s18, 1
      %p87 = por %p85, %p86
      %p88 = scmp.ne.s32.totalorder %s80, %s83
      %p89 = scmp.eq.s32.totalorder %s18, 0
      %p90 = por %p88, %p89
      %p91 = scmp.ne.s32.totalorder %s80, %s83
      %p92 = scmp.eq.s32.totalorder %s23, 1
      %p93 = por %p91, %p92
      %p94 = scmp.ne.s32.totalorder %s83, %s84
      %p95 = scmp.eq.s32.totalorder %s23, 0
      %p96 = por %p94, %p95
      %p97 = scmp.ne.s32.totalorder %s83, %s84
      %p98 = scmp.eq.s32.totalorder %s24, 1
      %p99 = por %p97, %p98
      %p101 = scmp.ne.s32.totalorder %s84, %s100
      %p102 = scmp.eq.s32.totalorder %s24, 0
      %p103 = por %p101, %p102
      %s105 = sadd.s32 %s104, 1
      %p108 = scmp.eq.s32.totalorder %s18, 1
      %p109 = scmp.ne.s32.totalorder %s104, %s106
      %p110 = scmp.eq.s32.totalorder %s18, 0
      %p111 = por %p109, %p110
      %p112 = scmp.ne.s32.totalorder %s104, %s106
      %p113 = scmp.eq.s32.totalorder %s23, 1
      %p114 = por %p112, %p113
      %p115 = scmp.ne.s32.totalorder %s106, %s107
      %p116 = scmp.eq.s32.totalorder %s23, 0
      %p117 = por %p115, %p116
      %p118 = scmp.ne.s32.totalorder %s106, %s107
      %p119 = scmp.eq.s32.totalorder %s24, 1
      %p120 = por %p118, %p119
      %p122 = scmp.ne.s32.totalorder %s107, %s121
      %p123 = scmp.eq.s32.totalorder %s24, 0
      %p124 = por %p122, %p123
      %s126 = sadd.s32 %s125, 1
      %p129 = scmp.eq.s32.totalorder %s18, 1
      %p130 = scmp.ne.s32.totalorder %s125, %s127
      %p131 = scmp.eq.s32.totalorder %s18, 0
      %p132 = por %p130, %p131
      %p133 = scmp.ne.s32.totalorder %s125, %s127
      %p134 = scmp.eq.s32.totalorder %s23, 1
      %p135 = por %p133, %p134
      %p136 = scmp.ne.s32.totalorder %s127, %s128
      %p137 = scmp.eq.s32.totalorder %s23, 0
      %p138 = por %p136, %p137
      %p139 = scmp.ne.s32.totalorder %s127, %s128
      %p140 = scmp.eq.s32.totalorder %s24, 1
      %p141 = por %p139, %p140
      %p143 = scmp.ne.s32.totalorder %s128, %s142
      %p144 = scmp.eq.s32.totalorder %s24, 0
      %p145 = por %p143, %p144
      %s147 = sadd.s32 %s146, 1
      %p150 = scmp.eq.s32.totalorder %s18, 1
      %p151 = scmp.ne.s32.totalorder %s146, %s148
      %p152 = scmp.eq.s32.totalorder %s18, 0
      %p153 = por %p151, %p152
      %p154 = scmp.ne.s32.totalorder %s146, %s148
      %p155 = scmp.eq.s32.totalorder %s23, 1
      %p156 = por %p154, %p155
      %p157 = scmp.ne.s32.totalorder %s148, %s149
      %p158 = scmp.eq.s32.totalorder %s23, 0
      %p159 = por %p157, %p158
      %p160 = scmp.ne.s32.totalorder %s148, %s149
      %p161 = scmp.eq.s32.totalorder %s24, 1
      %p162 = por %p160, %p161
      %p164 = scmp.ne.s32.totalorder %s149, %s163
      %p165 = scmp.eq.s32.totalorder %s24, 0
      %p166 = por %p164, %p165
      %s168 = sadd.s32 %s167, 1
      %p171 = scmp.eq.s32.totalorder %s18, 1
      %p172 = scmp.ne.s32.totalorder %s167, %s169
      %p173 = scmp.eq.s32.totalorder %s18, 0
      %p174 = por %p172, %p173
      %p175 = scmp.ne.s32.totalorder %s167, %s169
      %p176 = scmp.eq.s32.totalorder %s23, 1
      %p177 = por %p175, %p176
      %p178 = scmp.ne.s32.totalorder %s169, %s170
      %p179 = scmp.eq.s32.totalorder %s23, 0
      %p180 = por %p178, %p179
      %p181 = scmp.ne.s32.totalorder %s169, %s170
      %p182 = scmp.eq.s32.totalorder %s24, 1
      %p183 = por %p181, %p182
      %p185 = scmp.ne.s32.totalorder %s170, %s184
      %p186 = scmp.eq.s32.totalorder %s24, 0
      %p187 = por %p185, %p186
      %s189 = sadd.s32 %s188, 1
      %p192 = scmp.eq.s32.totalorder %s18, 1
      %p193 = scmp.ne.s32.totalorder %s188, %s190
      %p194 = scmp.eq.s32.totalorder %s18, 0
      %p195 = por %p193, %p194
      %p196 = scmp.ne.s32.totalorder %s188, %s190
      %p197 = scmp.eq.s32.totalorder %s23, 1
      %p198 = por %p196, %p197
      %p199 = scmp.ne.s32.totalorder %s190, %s191
      %p200 = scmp.eq.s32.totalorder %s23, 0
      %p201 = por %p199, %p200
      %p202 = scmp.ne.s32.totalorder %s190, %s191
      %p203 = scmp.eq.s32.totalorder %s24, 1
      %p204 = por %p202, %p203
      %p206 = scmp.ne.s32.totalorder %s191, %s205
      %p207 = scmp.eq.s32.totalorder %s24, 0
      %p208 = por %p206, %p207
      %s210 = sadd.s32 %s209, 1
      %p213 = scmp.eq.s32.totalorder %s18, 1
      %p214 = scmp.ne.s32.totalorder %s209, %s211
      %p215 = scmp.eq.s32.totalorder %s18, 0
      %p216 = por %p214, %p215
      %p217 = scmp.ne.s32.totalorder %s209, %s211
      %p218 = scmp.eq.s32.totalorder %s23, 1
      %p219 = por %p217, %p218
      %p220 = scmp.ne.s32.totalorder %s211, %s212
      %p221 = scmp.eq.s32.totalorder %s23, 0
      %p222 = por %p220, %p221
      %p223 = scmp.ne.s32.totalorder %s211, %s212
      %p224 = scmp.eq.s32.totalorder %s24, 1
      %p225 = por %p223, %p224
      %p227 = scmp.ne.s32.totalorder %s212, %s226
      %p228 = scmp.eq.s32.totalorder %s24, 0
      %p229 = por %p227, %p228
      %s231 = sadd.s32 %s230, 1
      %p234 = scmp.eq.s32.totalorder %s18, 1
      %p235 = scmp.ne.s32.totalorder %s230, %s232
      %p236 = scmp.eq.s32.totalorder %s18, 0
      %p237 = por %p235, %p236
      %p238 = scmp.ne.s32.totalorder %s230, %s232
      %p239 = scmp.eq.s32.totalorder %s23, 1
      %p240 = por %p238, %p239
      %p241 = scmp.ne.s32.totalorder %s232, %s233
      %p242 = scmp.eq.s32.totalorder %s23, 0
      %p243 = por %p241, %p242
      %p244 = scmp.ne.s32.totalorder %s232, %s233
      %p245 = scmp.eq.s32.totalorder %s24, 1
      %p246 = por %p244, %p245
      %p248 = scmp.ne.s32.totalorder %s233, %s247
      %p249 = scmp.eq.s32.totalorder %s24, 0
      %p250 = por %p248, %p249
      %s251 = ssub.s32 %s18, %s25
      %p252 = scmp.eq.s32.totalorder %s251, 0
      %s254 = sadd.s32 %s253, 1
      %s255 = scalar_select %p252, %s253, %s254
      %p258 = pneg %p252
      %p259 = scmp.eq.s32.totalorder %s18, 1
      %p260 = por %p258, %p259
      %p261 = scmp.ne.s32.totalorder %s253, %s256
      %p262 = scmp.eq.s32.totalorder %s18, 0
      %p263 = por %p261, %p262
      %p264 = scmp.ne.s32.totalorder %s253, %s256
      %p265 = scmp.eq.s32.totalorder %s23, 1
      %p266 = por %p264, %p265
      %p267 = scmp.ne.s32.totalorder %s256, %s257
      %p268 = scmp.eq.s32.totalorder %s23, 0
      %p269 = por %p267, %p268
      %p270 = scmp.ne.s32.totalorder %s256, %s257
      %p271 = scmp.eq.s32.totalorder %s24, 1
      %p272 = por %p270, %p271
      %p274 = scmp.ne.s32.totalorder %s257, %s273
      %p275 = scmp.eq.s32.totalorder %s24, 0
      %p276 = por %p274, %p275
      %p277 = scmp.le.s32.totalorder 1, %s18
      %p278 = scmp.lt.s32.totalorder %s18, 3
      %p279 = pnand %p277, %p278
      %p280 = pneg %p279
      // Predicated region
      $region9: #{seq2seq_forward.1} parent=5 // pred_check
        _
      $region10: #{seq2seq_forward.1} parent=5 // pred_check_branch
        %282 = sbr.rel (%p279) target = $region12
      $region11: #{seq2seq_forward.1} parent=5 // pred_region
        %s283 = ssub.s32 %s18, 1
        // Predicated region
        $region13: #{seq2seq_forward.1} parent=11 // pred_check
          %p284 = pneg %p117
        $region14: #{seq2seq_forward.1} parent=11 // pred_check_branch
          %286 = sbr.rel (%p284) target = $region16
        $region15: #{seq2seq_forward.1} parent=11 // pred_region
          _
        $region16: #{seq2seq_forward.1} parent=11 // pred_fallthru
          _
        // Predicated region
        $region17: #{seq2seq_forward.1} parent=11 // pred_check
          %p287 = pneg %p138
        $region18: #{seq2seq_forward.1} parent=11 // pred_check_branch
          %289 = sbr.rel (%p287) target = $region20
        $region19: #{seq2seq_forward.1} parent=11 // pred_region
          %s291 = ssub.s32 8192, 8192
          %292 = vsyncadd [#allocation4], %s291
          %s293 = sshll.u32 [#allocation3], 4
          %s294 = int_to_ptr.vmem [resolvable:$true] %s293
          %299 = dma.hbm_to_vmem [thread:$0]  %s4, 8192, %s294, [#allocation4], 512, 512, 32
        $region20: #{seq2seq_forward.1} parent=11 // pred_fallthru
          _
        // Predicated region
        $region21: #{seq2seq_forward.1} parent=11 // pred_check
          %p300 = pneg %p159
        $region22: #{seq2seq_forward.1} parent=11 // pred_check_branch
          %302 = sbr.rel (%p300) target = $region24
        $region23: #{seq2seq_forward.1} parent=11 // pred_region
          _
        $region24: #{seq2seq_forward.1} parent=11 // pred_fallthru
          _
        // Predicated region
        $region25: #{seq2seq_forward.1} parent=11 // pred_check
          %p303 = pneg %p180
        $region26: #{seq2seq_forward.1} parent=11 // pred_check_branch
          %305 = sbr.rel (%p303) target = $region28
        $region27: #{seq2seq_forward.1} parent=11 // pred_region
          %s307 = ssub.s32 16384, 16384
          %308 = vsyncadd [#allocation6], %s307
          %s309 = sshll.u32 [#allocation5], 4
          %s310 = int_to_ptr.vmem [resolvable:$true] %s309
          %315 = dma.hbm_to_vmem [thread:$0]  %s6, 16384, %s310, [#allocation6], 512, 512, 32
        $region28: #{seq2seq_forward.1} parent=11 // pred_fallthru
          _
        // Predicated region
        $region29: #{seq2seq_forward.1} parent=11 // pred_check
          %p316 = pneg %p201
        $region30: #{seq2seq_forward.1} parent=11 // pred_check_branch
          %318 = sbr.rel (%p316) target = $region32
        $region31: #{seq2seq_forward.1} parent=11 // pred_region
          _
        $region32: #{seq2seq_forward.1} parent=11 // pred_fallthru
          _
        // Predicated region
        $region33: #{seq2seq_forward.1} parent=11 // pred_check
          %p319 = pneg %p222
        $region34: #{seq2seq_forward.1} parent=11 // pred_check_branch
          %321 = sbr.rel (%p319) target = $region36
        $region35: #{seq2seq_forward.1} parent=11 // pred_region
          _
        $region36: #{seq2seq_forward.1} parent=11 // pred_fallthru
          _
        // Predicated region
        $region37: #{seq2seq_forward.1} parent=11 // pred_check
          %p322 = pneg %p243
        $region38: #{seq2seq_forward.1} parent=11 // pred_check_branch
          %324 = sbr.rel (%p322) target = $region40
        $region39: #{seq2seq_forward.1} parent=11 // pred_region
          _
        $region40: #{seq2seq_forward.1} parent=11 // pred_fallthru
          _
      $region12: #{seq2seq_forward.1} parent=5 // pred_fallthru
        _
      %p325 = scmp.lt.s32.totalorder %s18, 2
      // Predicated region
      $region41: #{seq2seq_forward.1} parent=5 // pred_check
        %p326 = pneg %p325
      $region42: #{seq2seq_forward.1} parent=5 // pred_check_branch
        %328 = sbr.rel (%p326) target = $region44
      $region43: #{seq2seq_forward.1} parent=5 // pred_region
        // Predicated region
        $region45: #{seq2seq_forward.1} parent=43 // pred_check
          %p329 = pneg %p38
        $region46: #{seq2seq_forward.1} parent=43 // pred_check_branch
          %331 = sbr.rel (%p329) target = $region48
        $region47: #{seq2seq_forward.1} parent=43 // pred_region
          %s332 = smul.u32 10, %s18
          %p333 = scmp.lt.s32.totalorder %s332, 19
          %s334 = scalar_select %p333, %s332, 19
          %s335 = smul.addr %s334, 8
          %s336 = scalar_lea.vmem %s0, %s335
          %s337 = smul.u32 10, %s18
        $region48: #{seq2seq_forward.1} parent=43 // pred_fallthru
          _
        // Predicated region
        $region49: #{seq2seq_forward.1} parent=43 // pred_check
          %p338 = pneg %p64
        $region50: #{seq2seq_forward.1} parent=43 // pred_check_branch
          %340 = sbr.rel (%p338) target = $region52
        $region51: #{seq2seq_forward.1} parent=43 // pred_region
          %s341 = smul.u32 8, %s18
          %p342 = scmp.lt.s32.totalorder %s341, 15
          %s343 = scalar_select %p342, %s341, 15
          %s344 = smul.addr %s343, 8
          %s345 = scalar_lea.vmem %s1, %s344
          %s346 = smul.u32 8, %s18
        $region52: #{seq2seq_forward.1} parent=43 // pred_fallthru
          _
        // Predicated region
        $region53: #{seq2seq_forward.1} parent=43 // pred_check
          %p347 = pneg %p90
        $region54: #{seq2seq_forward.1} parent=43 // pred_check_branch
          %349 = sbr.rel (%p347) target = $region56
        $region55: #{seq2seq_forward.1} parent=43 // pred_region
          %s350 = smul.u32 8, %s18
          %p351 = scmp.lt.s32.totalorder %s350, 15
          %s352 = scalar_select %p351, %s350, 15
          %s353 = smul.addr %s352, 8
          %s354 = scalar_lea.vmem %s2, %s353
          %s355 = smul.u32 8, %s18
        $region56: #{seq2seq_forward.1} parent=43 // pred_fallthru
          _
      $region44: #{seq2seq_forward.1} parent=5 // pred_fallthru
        _
      %p356 = scmp.le.s32.totalorder 1, %s18
      %p357 = scmp.lt.s32.totalorder %s18, 3
      %p358 = pnand %p356, %p357
      %p359 = pneg %p358
      // Predicated region
      $region57: #{seq2seq_forward.1} parent=5 // pred_check
        _
      $region58: #{seq2seq_forward.1} parent=5 // pred_check_branch
        %361 = sbr.rel (%p358) target = $region60
      $region59: #{seq2seq_forward.1} parent=5 // pred_region
        %s362 = ssub.s32 %s18, 1
        // Predicated region
        $region61: #{seq2seq_forward.1} parent=59 // pred_check
          %p363 = pneg %p138
        $region62: #{seq2seq_forward.1} parent=59 // pred_check_branch
          %365 = sbr.rel (%p363) target = $region64
        $region63: #{seq2seq_forward.1} parent=59 // pred_region
          %366 = dma.done [#allocation4], 8192
        $region64: #{seq2seq_forward.1} parent=59 // pred_fallthru
          _
        // Predicated region
        $region65: #{seq2seq_forward.1} parent=59 // pred_check
          %p367 = pneg %p180
        $region66: #{seq2seq_forward.1} parent=59 // pred_check_branch
          %369 = sbr.rel (%p367) target = $region68
        $region67: #{seq2seq_forward.1} parent=59 // pred_region
          %370 = dma.done [#allocation6], 16384
        $region68: #{seq2seq_forward.1} parent=59 // pred_fallthru
          _
        %s371 = smul.u32 10, %s23
        %p372 = scmp.lt.s32.totalorder %s371, 19
        %s373 = scalar_select %p372, %s371, 19
        %s374 = smul.addr %s373, 8
        %s375 = scalar_lea.vmem %s0, %s374
        %p376 = pneg %p44
        %p377 = pneg %p41
        %s378 = smul.u32 8, %s23
        %p379 = scmp.lt.s32.totalorder %s378, 15
        %s380 = scalar_select %p379, %s378, 15
        %s381 = smul.addr %s380, 8
        %s382 = scalar_lea.vmem %s1, %s381
        %p383 = pneg %p70
        %p384 = pneg %p67
        %s385 = smul.u32 8, %s23
        %p386 = scmp.lt.s32.totalorder %s385, 15
        %s387 = scalar_select %p386, %s385, 15
        %s388 = smul.addr %s387, 8
        %s389 = scalar_lea.vmem %s2, %s388
        %p390 = pneg %p96
        %p391 = pneg %p93
        %p392 = pneg %p117
        %p393 = pneg %p114
        %p394 = pneg %p138
        %p395 = pneg %p135
        %p396 = pneg %p159
        %p397 = pneg %p156
        %p398 = pneg %p180
        %p399 = pneg %p177
        %p400 = pneg %p201
        %p401 = pneg %p198
        %p402 = pneg %p222
        %p403 = pneg %p219
        %p404 = pneg %p243
        %p405 = pneg %p240
        %p406 = pneg %p269
        %p407 = pneg %p266
        %s408 = smul.u32 8, %s23
        %p409 = scmp.lt.s32.totalorder %s408, 15
        %s410 = scalar_select %p409, %s408, 15
        %s411 = smul.addr %s410, 8
        %s412 = scalar_lea.vmem %s10, %s411
        %s413 = smul.u32 10, %s23
        %p414 = scmp.lt.s32.totalorder %s413, 19
        %s415 = scalar_select %p414, %s413, 19
        %s416 = smul.addr %s415, 8
        %s417 = scalar_lea.vmem %s0, %s416
        %s418 = smul.u32 10, %s23
        %s419 = smul.u32 8, %s23
        %p420 = scmp.lt.s32.totalorder %s419, 15
        %s421 = scalar_select %p420, %s419, 15
        %s422 = smul.addr %s421, 8
        %s423 = scalar_lea.vmem %s1, %s422
        %s424 = smul.u32 8, %s23
        %s425 = smul.u32 8, %s23
        %p426 = scmp.lt.s32.totalorder %s425, 15
        %s427 = scalar_select %p426, %s425, 15
        %s428 = smul.addr %s427, 8
        %s429 = scalar_lea.vmem %s2, %s428
        %s430 = smul.u32 8, %s23
        %s431 = smul.u32 8, %s23
        %p432 = scmp.lt.s32.totalorder %s431, 15
        %s433 = scalar_select %p432, %s431, 15
        %s434 = smul.addr %s433, 8
        %s435 = scalar_lea.vmem %s10, %s434
        %s436 = smul.u32 8, %s23
        %v437 = vlaneseq
        %v438 = vand.u32 %v437, 127
        %v439 = vld [vmem:[%s417] sm:$0xff]
        %v440 = vld [vmem:[%s417 + $0x8] sm:$0xff]
        %v441 = vld [vmem:[%s417 + $0x10] sm:$0xff]
        %v442 = vld [vmem:[%s417 + $0x18] sm:$0xff]
        %v443 = vld [vmem:[%s417 + $0x20] sm:$0xff]
        %v444 = vld [vmem:[%s417 + $0x28] sm:$0xff]
        %v445 = vld [vmem:[%s417 + $0x30] sm:$0xff]
        %v446 = vld [vmem:[%s417 + $0x38] sm:$0xff]
        %v447 = vld [vmem:[%s417 + $0x40] sm:$0xff]
        %v448 = vld [vmem:[%s417 + $0x48] sm:$0xff]
        %v449 = vld [vmem:[%s3] sm:$0xff]
        %v450 = vld [vmem:[%s3 + $0x8] sm:$0xff]
        %v451 = vld [vmem:[%s3 + $0x10] sm:$0xff]
        %v452 = vld [vmem:[%s3 + $0x18] sm:$0xff]
        %v453 = vld [vmem:[%s3 + $0x20] sm:$0xff]
        %v454 = vld [vmem:[%s3 + $0x28] sm:$0xff]
        %v455 = vld [vmem:[%s3 + $0x30] sm:$0xff]
        %v456 = vld [vmem:[%s3 + $0x38] sm:$0xff]
        %v457 = vld [vmem:[%s3 + $0x40] sm:$0xff]
        %v458 = vld [vmem:[%s3 + $0x48] sm:$0xff]
        %v459 = vld [vmem:[%s3 + $0x50] sm:$0xff]
        %v460 = vld [vmem:[%s3 + $0x58] sm:$0xff]
        %v461 = vld [vmem:[%s3 + $0x60] sm:$0xff]
        %v462 = vld [vmem:[%s3 + $0x68] sm:$0xff]
        %v463 = vld [vmem:[%s3 + $0x70] sm:$0xff]
        %v464 = vld [vmem:[%s3 + $0x78] sm:$0xff]
        %v465 = vld [vmem:[%s3 + $0x80] sm:$0xff]
        %v466 = vld [vmem:[%s3 + $0x88] sm:$0xff]
        %v467 = vld [vmem:[%s3 + $0x90] sm:$0xff]
        %v468 = vld [vmem:[%s3 + $0x98] sm:$0xff]
        %v469 = vld [vmem:[%s3 + $0xa0] sm:$0xff]
        %v470 = vld [vmem:[%s3 + $0xa8] sm:$0xff]
        %v471 = vld [vmem:[%s3 + $0xb0] sm:$0xff]
        %v472 = vld [vmem:[%s3 + $0xb8] sm:$0xff]
        %v473 = vld [vmem:[%s3 + $0xc0] sm:$0xff]
        %v474 = vld [vmem:[%s3 + $0xc8] sm:$0xff]
        %v475 = vld [vmem:[%s3 + $0xd0] sm:$0xff]
        %v476 = vld [vmem:[%s3 + $0xd8] sm:$0xff]
        %v477 = vld [vmem:[%s3 + $0xe0] sm:$0xff]
        %v478 = vld [vmem:[%s3 + $0xe8] sm:$0xff]
        %v479 = vld [vmem:[%s3 + $0xf0] sm:$0xff]
        %v480 = vld [vmem:[%s3 + $0xf8] sm:$0xff]
        %v481 = vld [vmem:[%s3 + $0x100] sm:$0xff]
        %v482 = vld [vmem:[%s3 + $0x108] sm:$0xff]
        %v483 = vld [vmem:[%s3 + $0x110] sm:$0xff]
        %v484 = vld [vmem:[%s3 + $0x118] sm:$0xff]
        %v485 = vld [vmem:[%s3 + $0x120] sm:$0xff]
        %v486 = vld [vmem:[%s3 + $0x128] sm:$0xff]
        %v487 = vld [vmem:[%s3 + $0x130] sm:$0xff]
        %v488 = vld [vmem:[%s3 + $0x138] sm:$0xff]
        %v489 = vld [vmem:[%s3 + $0x140] sm:$0xff]
        %v490 = vld [vmem:[%s3 + $0x148] sm:$0xff]
        %v491 = vld [vmem:[%s3 + $0x150] sm:$0xff]
        %v492 = vld [vmem:[%s3 + $0x158] sm:$0xff]
        %v493 = vld [vmem:[%s3 + $0x160] sm:$0xff]
        %v494 = vld [vmem:[%s3 + $0x168] sm:$0xff]
        %v495 = vld [vmem:[%s3 + $0x170] sm:$0xff]
        %v496 = vld [vmem:[%s3 + $0x178] sm:$0xff]
        %v497 = vld [vmem:[%s3 + $0x180] sm:$0xff]
        %v498 = vld [vmem:[%s3 + $0x188] sm:$0xff]
        %v499 = vld [vmem:[%s3 + $0x190] sm:$0xff]
        %v500 = vld [vmem:[%s3 + $0x198] sm:$0xff]
        %v501 = vld [vmem:[%s3 + $0x1a0] sm:$0xff]
        %v502 = vld [vmem:[%s3 + $0x1a8] sm:$0xff]
        %v503 = vld [vmem:[%s3 + $0x1b0] sm:$0xff]
        %v504 = vld [vmem:[%s3 + $0x1b8] sm:$0xff]
        %v505 = vld [vmem:[%s3 + $0x1c0] sm:$0xff]
        %v506 = vld [vmem:[%s3 + $0x1c8] sm:$0xff]
        %v507 = vld [vmem:[%s3 + $0x1d0] sm:$0xff]
        %v508 = vld [vmem:[%s3 + $0x1d8] sm:$0xff]
        %v509 = vld [vmem:[%s3 + $0x1e0] sm:$0xff]
        %v510 = vld [vmem:[%s3 + $0x1e8] sm:$0xff]
        %v511 = vld [vmem:[%s3 + $0x1f0] sm:$0xff]
        %v512 = vld [vmem:[%s3 + $0x1f8] sm:$0xff]
        %513 = vmatprep.subr.mxu0 %v450
        %514 = vmatpush1.msra.mxu0 %v449
        %515 = vmatprep.subr.mxu0 %v454
        %516 = vmatpush1.msra.mxu0 %v453
        %517 = vmatprep.subr.mxu0 %v458
        %518 = vmatpush1.msra.mxu0 %v457
        %519 = vmatprep.subr.mxu0 %v462
        %520 = vmatpush1.msra.mxu0 %v461
        %521 = vmatprep.subr.mxu0 %v466
        %522 = vmatpush1.msra.mxu0 %v465
        %523 = vmatprep.subr.mxu0 %v470
        %524 = vmatpush1.msra.mxu0 %v469
        %525 = vmatprep.subr.mxu0 %v474
        %526 = vmatpush1.msra.mxu0 %v473
        %527 = vmatprep.subr.mxu0 %v478
        %528 = vmatpush1.msra.mxu0 %v477
        %529 = vmatprep.subr.mxu0 %v482
        %530 = vmatpush1.msra.mxu0 %v481
        %531 = vmatprep.subr.mxu0 %v486
        %532 = vmatpush1.msra.mxu0 %v485
        %533 = vmatprep.subr.mxu0 %v490
        %534 = vmatpush1.msra.mxu0 %v489
        %535 = vmatprep.subr.mxu0 %v494
        %536 = vmatpush1.msra.mxu0 %v493
        %537 = vmatprep.subr.mxu0 %v498
        %538 = vmatpush1.msra.mxu0 %v497
        %539 = vmatprep.subr.mxu0 %v502
        %540 = vmatpush1.msra.mxu0 %v501
        %541 = vmatprep.subr.mxu0 %v506
        %542 = vmatpush1.msra.mxu0 %v505
        %543 = vmatprep.subr.mxu0 %v510
        %544 = vmatpush1.msra.mxu0 %v509
        %545 = vmatprep.subr.mxu0 0.0
        %546 = vmatpush1.msra.mxu0 0.0
        %547 = vmatprep.subr.mxu0 0.0
        %548 = vmatpush1.msra.mxu0 0.0
        %549 = vmatprep.subr.mxu0 0.0
        %550 = vmatpush1.msra.mxu0 0.0
        %551 = vmatprep.subr.mxu0 0.0
        %552 = vmatpush1.msra.mxu0 0.0
        %553 = vmatprep.subr.mxu0 0.0
        %554 = vmatpush1.msra.mxu0 0.0
        %555 = vmatprep.subr.mxu0 0.0
        %556 = vmatpush1.msra.mxu0 0.0
        %557 = vmatprep.subr.mxu0 0.0
        %558 = vmatpush1.msra.mxu0 0.0
        %559 = vmatprep.subr.mxu0 0.0
        %560 = vmatpush1.msra.mxu0 0.0
        %561 = vmatprep.subr.mxu0 0.0
        %562 = vmatpush1.msra.mxu0 0.0
        %563 = vmatprep.subr.mxu0 0.0
        %564 = vmatpush1.msra.mxu0 0.0
        %565 = vmatprep.subr.mxu0 0.0
        %566 = vmatpush1.msra.mxu0 0.0
        %567 = vmatprep.subr.mxu0 0.0
        %568 = vmatpush1.msra.mxu0 0.0
        %569 = vmatprep.subr.mxu0 0.0
        %570 = vmatpush1.msra.mxu0 0.0
        %571 = vmatprep.subr.mxu0 0.0
        %572 = vmatpush1.msra.mxu0 0.0
        %573 = vmatprep.subr.mxu0 0.0
        %574 = vmatpush1.msra.mxu0 0.0
        %575 = vmatprep.subr.mxu0 0.0
        %576 = vmatpush1.msra.mxu0 0.0
        %577 = vmatprep.mubr.f32.mxu0 0.0
        %578 = vmatmul.mubr.f32.gmra.mrb[0].mxu0 %v439
        %v579 = vpop.f32.mrb[0].mxu0
        %v580 = vadd.f32 0.0, %v579
        %v581 = vpop.f32.mrb[0].mxu0
        %v582 = vadd.f32 0.0, %v581
        %583 = vmatprep.mubr.f32.mxu0 0.0
        %584 = vmatmul.mubr.f32.gmra.mrb[0].mxu0 %v440
        %v585 = vpop.f32.mrb[0].mxu0
        %v586 = vadd.f32 0.0, %v585
        %v587 = vpop.f32.mrb[0].mxu0
        %v588 = vadd.f32 0.0, %v587
        %589 = vmatprep.mubr.f32.mxu0 0.0
        %590 = vmatmul.mubr.f32.gmra.mrb[0].mxu0 %v441
        %v591 = vpop.f32.mrb[0].mxu0
        %v592 = vadd.f32 0.0, %v591
        %v593 = vpop.f32.mrb[0].mxu0
        %v594 = vadd.f32 0.0, %v593
        %595 = vmatprep.mubr.f32.mxu0 0.0
        %596 = vmatmul.mubr.f32.gmra.mrb[0].mxu0 %v442
        %v597 = vpop.f32.mrb[0].mxu0
        %v598 = vadd.f32 0.0, %v597
        %v599 = vpop.f32.mrb[0].mxu0
        %v600 = vadd.f32 0.0, %v599
        %601 = vmatprep.mubr.f32.mxu0 0.0
        %602 = vmatmul.mubr.f32.gmra.mrb[0].mxu0 %v443
        %v603 = vpop.f32.mrb[0].mxu0
        %v604 = vadd.f32 0.0, %v603
        %v605 = vpop.f32.mrb[0].mxu0
        %v606 = vadd.f32 0.0, %v605
        %607 = vmatprep.mubr.f32.mxu0 0.0
        %608 = vmatmul.mubr.f32.gmra.mrb[0].mxu0 %v444
        %v609 = vpop.f32.mrb[0].mxu0
        %v610 = vadd.f32 0.0, %v609
        %v611 = vpop.f32.mrb[0].mxu0
        %v612 = vadd.f32 0.0, %v611
        %613 = vmatprep.mubr.f32.mxu0 0.0
        %614 = vmatmul.mubr.f32.gmra.mrb[0].mxu0 %v445
        %v615 = vpop.f32.mrb[0].mxu0
        %v616 = vadd.f32 0.0, %v615
        %v617 = vpop.f32.mrb[0].mxu0
        %v618 = vadd.f32 0.0, %v617
        %619 = vmatprep.mubr.f32.mxu0 0.0
        %620 = vmatmul.mubr.f32.gmra.mrb[0].mxu0 %v446
        %v621 = vpop.f32.mrb[0].mxu0
        %v622 = vadd.f32 0.0, %v621
        %v623 = vpop.f32.mrb[0].mxu0
        %v624 = vadd.f32 0.0, %v623
        %625 = vmatprep.mubr.f32.mxu0 0.0
        %626 = vmatmul.mubr.f32.gmra.mrb[0].mxu0 %v447
        %v627 = vpop.f32.mrb[0].mxu0
        %v628 = vadd.f32 0.0, %v627
        %v629 = vpop.f32.mrb[0].mxu0
        %v630 = vadd.f32 0.0, %v629
        %631 = vmatprep.mubr.f32.mxu0 0.0
        %632 = vmatmul.mubr.f32.gmra.mrb[0].mxu0 %v448
        %v633 = vpop.f32.mrb[0].mxu0
        %v634 = vadd.f32 0.0, %v633
        %v635 = vpop.f32.mrb[0].mxu0
        %v636 = vadd.f32 0.0, %v635
        %637 = vdwg.mxu0
        %638 = vmatprep.subr.mxu0 %v452
        %639 = vmatpush1.msra.mxu0 %v451
        %640 = vmatprep.subr.mxu0 %v456
        %641 = vmatpush1.msra.mxu0 %v455
        %642 = vmatprep.subr.mxu0 %v460
        %643 = vmatpush1.msra.mxu0 %v459
        %644 = vmatprep.subr.mxu0 %v464
        %645 = vmatpush1.msra.mxu0 %v463
        %646 = vmatprep.subr.mxu0 %v468
        %647 = vmatpush1.msra.mxu0 %v467
        %648 = vmatprep.subr.mxu0 %v472
        %649 = vmatpush1.msra.mxu0 %v471
        %650 = vmatprep.subr.mxu0 %v476
        %651 = vmatpush1.msra.mxu0 %v475
        %652 = vmatprep.subr.mxu0 %v480
        %653 = vmatpush1.msra.mxu0 %v479
        %654 = vmatprep.subr.mxu0 %v484
        %655 = vmatpush1.msra.mxu0 %v483
        %656 = vmatprep.subr.mxu0 %v488
        %657 = vmatpush1.msra.mxu0 %v487
        %658 = vmatprep.subr.mxu0 %v492
        %659 = vmatpush1.msra.mxu0 %v491
        %660 = vmatprep.subr.mxu0 %v496
        %661 = vmatpush1.msra.mxu0 %v495
        %662 = vmatprep.subr.mxu0 %v500
        %663 = vmatpush1.msra.mxu0 %v499
        %664 = vmatprep.subr.mxu0 %v504
        %665 = vmatpush1.msra.mxu0 %v503
        %666 = vmatprep.subr.mxu0 %v508
        %667 = vmatpush1.msra.mxu0 %v507
        %668 = vmatprep.subr.mxu0 %v512
        %669 = vmatpush1.msra.mxu0 %v511
        %670 = vmatprep.subr.mxu0 0.0
        %671 = vmatpush1.msra.mxu0 0.0
        %672 = vmatprep.subr.mxu0 0.0
        %673 = vmatpush1.msra.mxu0 0.0
        %674 = vmatprep.subr.mxu0 0.0
        %675 = vmatpush1.msra.mxu0 0.0
        %676 = vmatprep.subr.mxu0 0.0
        %677 = vmatpush1.msra.mxu0 0.0
        %678 = vmatprep.subr.mxu0 0.0
        %679 = vmatpush1.msra.mxu0 0.0
        %680 = vmatprep.subr.mxu0 0.0
        %681 = vmatpush1.msra.mxu0 0.0
        %682 = vmatprep.subr.mxu0 0.0
        %683 = vmatpush1.msra.mxu0 0.0
        %684 = vmatprep.subr.mxu0 0.0
        %685 = vmatpush1.msra.mxu0 0.0
        %686 = vmatprep.subr.mxu0 0.0
        %687 = vmatpush1.msra.mxu0 0.0
        %688 = vmatprep.subr.mxu0 0.0
        %689 = vmatpush1.msra.mxu0 0.0
        %690 = vmatprep.subr.mxu0 0.0
        %691 = vmatpush1.msra.mxu0 0.0
        %692 = vmatprep.subr.mxu0 0.0
        %693 = vmatpush1.msra.mxu0 0.0
        %694 = vmatprep.subr.mxu0 0.0
        %695 = vmatpush1.msra.mxu0 0.0
        %696 = vmatprep.subr.mxu0 0.0
        %697 = vmatpush1.msra.mxu0 0.0
        %698 = vmatprep.subr.mxu0 0.0
        %699 = vmatpush1.msra.mxu0 0.0
        %700 = vmatprep.subr.mxu0 0.0
        %701 = vmatpush1.msra.mxu0 0.0
        %702 = vmatprep.mubr.f32.mxu0 0.0
        %703 = vmatmul.mubr.f32.gmra.mrb[0].mxu0 %v439
        %v704 = vpop.f32.mrb[0].mxu0
        %v705 = vadd.f32 0.0, %v704
        %v706 = vpop.f32.mrb[0].mxu0
        %v707 = vadd.f32 0.0, %v706
        %708 = vmatprep.mubr.f32.mxu0 0.0
        %709 = vmatmul.mubr.f32.gmra.mrb[0].mxu0 %v440
        %v710 = vpop.f32.mrb[0].mxu0
        %v711 = vadd.f32 0.0, %v710
        %v712 = vpop.f32.mrb[0].mxu0
        %v713 = vadd.f32 0.0, %v712
        %714 = vmatprep.mubr.f32.mxu0 0.0
        %715 = vmatmul.mubr.f32.gmra.mrb[0].mxu0 %v441
        %v716 = vpop.f32.mrb[0].mxu0
        %v717 = vadd.f32 0.0, %v716
        %v718 = vpop.f32.mrb[0].mxu0
        %v719 = vadd.f32 0.0, %v718
        %720 = vmatprep.mubr.f32.mxu0 0.0
        %721 = vmatmul.mubr.f32.gmra.mrb[0].mxu0 %v442
        %v722 = vpop.f32.mrb[0].mxu0
        %v723 = vadd.f32 0.0, %v722
        %v724 = vpop.f32.mrb[0].mxu0
        %v725 = vadd.f32 0.0, %v724
        %726 = vmatprep.mubr.f32.mxu0 0.0
        %727 = vmatmul.mubr.f32.gmra.mrb[0].mxu0 %v443
        %v728 = vpop.f32.mrb[0].mxu0
        %v729 = vadd.f32 0.0, %v728
        %v730 = vpop.f32.mrb[0].mxu0
        %v731 = vadd.f32 0.0, %v730
        %732 = vmatprep.mubr.f32.mxu0 0.0
        %733 = vmatmul.mubr.f32.gmra.mrb[0].mxu0 %v444
        %v734 = vpop.f32.mrb[0].mxu0
        %v735 = vadd.f32 0.0, %v734
        %v736 = vpop.f32.mrb[0].mxu0
        %v737 = vadd.f32 0.0, %v736
        %738 = vmatprep.mubr.f32.mxu0 0.0
        %739 = vmatmul.mubr.f32.gmra.mrb[0].mxu0 %v445
        %v740 = vpop.f32.mrb[0].mxu0
        %v741 = vadd.f32 0.0, %v740
        %v742 = vpop.f32.mrb[0].mxu0
        %v743 = vadd.f32 0.0, %v742
        %744 = vmatprep.mubr.f32.mxu0 0.0
        %745 = vmatmul.mubr.f32.gmra.mrb[0].mxu0 %v446
        %v746 = vpop.f32.mrb[0].mxu0
        %v747 = vadd.f32 0.0, %v746
        %v748 = vpop.f32.mrb[0].mxu0
        %v749 = vadd.f32 0.0, %v748
        %750 = vmatprep.mubr.f32.mxu0 0.0
        %751 = vmatmul.mubr.f32.gmra.mrb[0].mxu0 %v447
        %v752 = vpop.f32.mrb[0].mxu0
        %v753 = vadd.f32 0.0, %v752
        %v754 = vpop.f32.mrb[0].mxu0
        %v755 = vadd.f32 0.0, %v754
        %756 = vmatprep.mubr.f32.mxu0 0.0
        %757 = vmatmul.mubr.f32.gmra.mrb[0].mxu0 %v448
        %v758 = vpop.f32.mrb[0].mxu0
        %v759 = vadd.f32 0.0, %v758
        %v760 = vpop.f32.mrb[0].mxu0
        %v761 = vadd.f32 0.0, %v760
        %762 = vdwg.mxu0
        %763 = vst [vmem:[#allocation2] sm:$0xff] %v580
        %764 = vst [vmem:[#allocation2 + $0x8] sm:$0xff] %v582
        %765 = vst [vmem:[#allocation2 + $0x10] sm:$0xff] %v705
        %766 = vst [vmem:[#allocation2 + $0x18] sm:$0xff] %v707
        %767 = vst [vmem:[#allocation2 + $0x20] sm:$0xff] %v586
        %768 = vst [vmem:[#allocation2 + $0x28] sm:$0xff] %v588
        %769 = vst [vmem:[#allocation2 + $0x30] sm:$0xff] %v711
        %770 = vst [vmem:[#allocation2 + $0x38] sm:$0xff] %v713
        %771 = vst [vmem:[#allocation2 + $0x40] sm:$0xff] %v592
        %772 = vst [vmem:[#allocation2 + $0x48] sm:$0xff] %v594
        %773 = vst [vmem:[#allocation2 + $0x50] sm:$0xff] %v717
        %774 = vst [vmem:[#allocation2 + $0x58] sm:$0xff] %v719
        %775 = vst [vmem:[#allocation2 + $0x60] sm:$0xff] %v598
        %776 = vst [vmem:[#allocation2 + $0x68] sm:$0xff] %v600
        %777 = vst [vmem:[#allocation2 + $0x70] sm:$0xff] %v723
        %778 = vst [vmem:[#allocation2 + $0x78] sm:$0xff] %v725
        %779 = vst [vmem:[#allocation2 + $0x80] sm:$0xff] %v604
        %780 = vst [vmem:[#allocation2 + $0x88] sm:$0xff] %v606
        %781 = vst [vmem:[#allocation2 + $0x90] sm:$0xff] %v729
        %782 = vst [vmem:[#allocation2 + $0x98] sm:$0xff] %v731
        %783 = vst [vmem:[#allocation2 + $0xa0] sm:$0xff] %v610
        %784 = vst [vmem:[#allocation2 + $0xa8] sm:$0xff] %v612
        %785 = vst [vmem:[#allocation2 + $0xb0] sm:$0xff] %v735
        %786 = vst [vmem:[#allocation2 + $0xb8] sm:$0xff] %v737
        %787 = vst [vmem:[#allocation2 + $0xc0] sm:$0xff] %v616
        %788 = vst [vmem:[#allocation2 + $0xc8] sm:$0xff] %v618
        %789 = vst [vmem:[#allocation2 + $0xd0] sm:$0xff] %v741
        %790 = vst [vmem:[#allocation2 + $0xd8] sm:$0xff] %v743
        %791 = vst [vmem:[#allocation2 + $0xe0] sm:$0xff] %v622
        %792 = vst [vmem:[#allocation2 + $0xe8] sm:$0xff] %v624
        %793 = vst [vmem:[#allocation2 + $0xf0] sm:$0xff] %v747
        %794 = vst [vmem:[#allocation2 + $0xf8] sm:$0xff] %v749
        %795 = vst [vmem:[#allocation2 + $0x100] sm:$0xff] %v628
        %796 = vst [vmem:[#allocation2 + $0x108] sm:$0xff] %v630
        %797 = vst [vmem:[#allocation2 + $0x110] sm:$0xff] %v753
        %798 = vst [vmem:[#allocation2 + $0x118] sm:$0xff] %v755
        %799 = vst [vmem:[#allocation2 + $0x120] sm:$0xff] %v634
        %800 = vst [vmem:[#allocation2 + $0x128] sm:$0xff] %v636
        %801 = vst [vmem:[#allocation2 + $0x130] sm:$0xff] %v759
        %802 = vst [vmem:[#allocation2 + $0x138] sm:$0xff] %v761
        %v803 = vld [vmem:[#allocation2] sm:$0xff]
        %v804 = vld [vmem:[#allocation2 + $0x8] sm:$0xff]
        %v805 = vld [vmem:[#allocation2 + $0x10] sm:$0xff]
        %v806 = vld [vmem:[#allocation2 + $0x18] sm:$0xff]
        %v807 = vld [vmem:[#allocation3] sm:$0xff]
        %v808 = vld [vmem:[#allocation3 + $0x8] sm:$0xff]
        %v809 = vld [vmem:[#allocation3 + $0x10] sm:$0xff]
        %v810 = vld [vmem:[#allocation3 + $0x18] sm:$0xff]
        %v811 = vld [vmem:[#allocation3 + $0x20] sm:$0xff]
        %v812 = vld [vmem:[#allocation3 + $0x28] sm:$0xff]
        %v813 = vld [vmem:[#allocation3 + $0x30] sm:$0xff]
        %v814 = vld [vmem:[#allocation3 + $0x38] sm:$0xff]
        %v815 = vld [vmem:[#allocation3 + $0x40] sm:$0xff]
        %v816 = vld [vmem:[#allocation3 + $0x48] sm:$0xff]
        %v817 = vld [vmem:[#allocation3 + $0x50] sm:$0xff]
        %v818 = vld [vmem:[#allocation3 + $0x58] sm:$0xff]
        %v819 = vld [vmem:[#allocation3 + $0x60] sm:$0xff]
        %v820 = vld [vmem:[#allocation3 + $0x68] sm:$0xff]
        %v821 = vld [vmem:[#allocation3 + $0x70] sm:$0xff]
        %v822 = vld [vmem:[#allocation3 + $0x78] sm:$0xff]
        %v823 = vld [vmem:[#allocation3 + $0x80] sm:$0xff]
        %v824 = vld [vmem:[#allocation3 + $0x88] sm:$0xff]
        %v825 = vld [vmem:[#allocation3 + $0x90] sm:$0xff]
        %v826 = vld [vmem:[#allocation3 + $0x98] sm:$0xff]
        %v827 = vld [vmem:[#allocation3 + $0xa0] sm:$0xff]
        %v828 = vld [vmem:[#allocation3 + $0xa8] sm:$0xff]
        %v829 = vld [vmem:[#allocation3 + $0xb0] sm:$0xff]
        %v830 = vld [vmem:[#allocation3 + $0xb8] sm:$0xff]
        %v831 = vld [vmem:[#allocation3 + $0xc0] sm:$0xff]
        %v832 = vld [vmem:[#allocation3 + $0xc8] sm:$0xff]
        %v833 = vld [vmem:[#allocation3 + $0xd0] sm:$0xff]
        %v834 = vld [vmem:[#allocation3 + $0xd8] sm:$0xff]
        %v835 = vld [vmem:[#allocation3 + $0xe0] sm:$0xff]
        %v836 = vld [vmem:[#allocation3 + $0xe8] sm:$0xff]
        %v837 = vld [vmem:[#allocation3 + $0xf0] sm:$0xff]
        %v838 = vld [vmem:[#allocation3 + $0xf8] sm:$0xff]
        %v839 = vld [vmem:[#allocation3 + $0x100] sm:$0xff]
        %v840 = vld [vmem:[#allocation3 + $0x108] sm:$0xff]
        %v841 = vld [vmem:[#allocation3 + $0x110] sm:$0xff]
        %v842 = vld [vmem:[#allocation3 + $0x118] sm:$0xff]
        %v843 = vld [vmem:[#allocation3 + $0x120] sm:$0xff]
        %v844 = vld [vmem:[#allocation3 + $0x128] sm:$0xff]
        %v845 = vld [vmem:[#allocation3 + $0x130] sm:$0xff]
        %v846 = vld [vmem:[#allocation3 + $0x138] sm:$0xff]
        %v847 = vld [vmem:[#allocation3 + $0x140] sm:$0xff]
        %v848 = vld [vmem:[#allocation3 + $0x148] sm:$0xff]
        %v849 = vld [vmem:[#allocation3 + $0x150] sm:$0xff]
        %v850 = vld [vmem:[#allocation3 + $0x158] sm:$0xff]
        %v851 = vld [vmem:[#allocation3 + $0x160] sm:$0xff]
        %v852 = vld [vmem:[#allocation3 + $0x168] sm:$0xff]
        %v853 = vld [vmem:[#allocation3 + $0x170] sm:$0xff]
        %v854 = vld [vmem:[#allocation3 + $0x178] sm:$0xff]
        %v855 = vld [vmem:[#allocation3 + $0x180] sm:$0xff]
        %v856 = vld [vmem:[#allocation3 + $0x188] sm:$0xff]
        %v857 = vld [vmem:[#allocation3 + $0x190] sm:$0xff]
        %v858 = vld [vmem:[#allocation3 + $0x198] sm:$0xff]
        %v859 = vld [vmem:[#allocation3 + $0x1a0] sm:$0xff]
        %v860 = vld [vmem:[#allocation3 + $0x1a8] sm:$0xff]
        %v861 = vld [vmem:[#allocation3 + $0x1b0] sm:$0xff]
        %v862 = vld [vmem:[#allocation3 + $0x1b8] sm:$0xff]
        %v863 = vld [vmem:[#allocation3 + $0x1c0] sm:$0xff]
        %v864 = vld [vmem:[#allocation3 + $0x1c8] sm:$0xff]
        %v865 = vld [vmem:[#allocation3 + $0x1d0] sm:$0xff]
        %v866 = vld [vmem:[#allocation3 + $0x1d8] sm:$0xff]
        %v867 = vld [vmem:[#allocation3 + $0x1e0] sm:$0xff]
        %v868 = vld [vmem:[#allocation3 + $0x1e8] sm:$0xff]
        %v869 = vld [vmem:[#allocation3 + $0x1f0] sm:$0xff]
        %v870 = vld [vmem:[#allocation3 + $0x1f8] sm:$0xff]
        %871 = vmatprep.subr.mxu0 %v808
        %872 = vmatpush1.msra.mxu0 %v807
        %873 = vmatprep.subr.mxu0 %v812
        %874 = vmatpush1.msra.mxu0 %v811
        %875 = vmatprep.subr.mxu0 %v816
        %876 = vmatpush1.msra.mxu0 %v815
        %877 = vmatprep.subr.mxu0 %v820
        %878 = vmatpush1.msra.mxu0 %v819
        %879 = vmatprep.subr.mxu0 %v824
        %880 = vmatpush1.msra.mxu0 %v823
        %881 = vmatprep.subr.mxu0 %v828
        %882 = vmatpush1.msra.mxu0 %v827
        %883 = vmatprep.subr.mxu0 %v832
        %884 = vmatpush1.msra.mxu0 %v831
        %885 = vmatprep.subr.mxu0 %v836
        %886 = vmatpush1.msra.mxu0 %v835
        %887 = vmatprep.subr.mxu0 %v840
        %888 = vmatpush1.msra.mxu0 %v839
        %889 = vmatprep.subr.mxu0 %v844
        %890 = vmatpush1.msra.mxu0 %v843
        %891 = vmatprep.subr.mxu0 %v848
        %892 = vmatpush1.msra.mxu0 %v847
        %893 = vmatprep.subr.mxu0 %v852
        %894 = vmatpush1.msra.mxu0 %v851
        %895 = vmatprep.subr.mxu0 %v856
        %896 = vmatpush1.msra.mxu0 %v855
        %897 = vmatprep.subr.mxu0 %v860
        %898 = vmatpush1.msra.mxu0 %v859
        %899 = vmatprep.subr.mxu0 %v864
        %900 = vmatpush1.msra.mxu0 %v863
        %901 = vmatprep.subr.mxu0 %v868
        %902 = vmatpush1.msra.mxu0 %v867
        %903 = vmatprep.subr.mxu0 0.0
        %904 = vmatpush1.msra.mxu0 0.0
        %905 = vmatprep.subr.mxu0 0.0
        %906 = vmatpush1.msra.mxu0 0.0
        %907 = vmatprep.subr.mxu0 0.0
        %908 = vmatpush1.msra.mxu0 0.0
        %909 = vmatprep.subr.mxu0 0.0
        %910 = vmatpush1.msra.mxu0 0.0
        %911 = vmatprep.subr.mxu0 0.0
        %912 = vmatpush1.msra.mxu0 0.0
        %913 = vmatprep.subr.mxu0 0.0
        %914 = vmatpush1.msra.mxu0 0.0
        %915 = vmatprep.subr.mxu0 0.0
        %916 = vmatpush1.msra.mxu0 0.0
        %917 = vmatprep.subr.mxu0 0.0
        %918 = vmatpush1.msra.mxu0 0.0
        %919 = vmatprep.subr.mxu0 0.0
        %920 = vmatpush1.msra.mxu0 0.0
        %921 = vmatprep.subr.mxu0 0.0
        %922 = vmatpush1.msra.mxu0 0.0
        %923 = vmatprep.subr.mxu0 0.0
        %924 = vmatpush1.msra.mxu0 0.0
        %925 = vmatprep.subr.mxu0 0.0
        %926 = vmatpush1.msra.mxu0 0.0
        %927 = vmatprep.subr.mxu0 0.0
        %928 = vmatpush1.msra.mxu0 0.0
        %929 = vmatprep.subr.mxu0 0.0
        %930 = vmatpush1.msra.mxu0 0.0
        %931 = vmatprep.subr.mxu0 0.0
        %932 = vmatpush1.msra.mxu0 0.0
        %933 = vmatprep.subr.mxu0 0.0
        %934 = vmatpush1.msra.mxu0 0.0
        %935 = vmatprep.mubr.f32.mxu0 0.0
        %936 = vmatmul.mubr.f32.gmra.mrb[0].mxu0 0.0
        %v937 = vpop.f32.mrb[0].mxu0
        %v938 = vadd.f32 0.0, %v937
        %v939 = vpop.f32.mrb[0].mxu0
        %v940 = vadd.f32 0.0, %v939
        %941 = vdwg.mxu0
        %942 = vmatprep.subr.mxu0 %v810
        %943 = vmatpush1.msra.mxu0 %v809
        %944 = vmatprep.subr.mxu0 %v814
        %945 = vmatpush1.msra.mxu0 %v813
        %946 = vmatprep.subr.mxu0 %v818
        %947 = vmatpush1.msra.mxu0 %v817
        %948 = vmatprep.subr.mxu0 %v822
        %949 = vmatpush1.msra.mxu0 %v821
        %950 = vmatprep.subr.mxu0 %v826
        %951 = vmatpush1.msra.mxu0 %v825
        %952 = vmatprep.subr.mxu0 %v830
        %953 = vmatpush1.msra.mxu0 %v829
        %954 = vmatprep.subr.mxu0 %v834
        %955 = vmatpush1.msra.mxu0 %v833
        %956 = vmatprep.subr.mxu0 %v838
        %957 = vmatpush1.msra.mxu0 %v837
        %958 = vmatprep.subr.mxu0 %v842
        %959 = vmatpush1.msra.mxu0 %v841
        %960 = vmatprep.subr.mxu0 %v846
        %961 = vmatpush1.msra.mxu0 %v845
        %962 = vmatprep.subr.mxu0 %v850
        %963 = vmatpush1.msra.mxu0 %v849
        %964 = vmatprep.subr.mxu0 %v854
        %965 = vmatpush1.msra.mxu0 %v853
        %966 = vmatprep.subr.mxu0 %v858
        %967 = vmatpush1.msra.mxu0 %v857
        %968 = vmatprep.subr.mxu0 %v862
        %969 = vmatpush1.msra.mxu0 %v861
        %970 = vmatprep.subr.mxu0 %v866
        %971 = vmatpush1.msra.mxu0 %v865
        %972 = vmatprep.subr.mxu0 %v870
        %973 = vmatpush1.msra.mxu0 %v869
        %974 = vmatprep.subr.mxu0 0.0
        %975 = vmatpush1.msra.mxu0 0.0
        %976 = vmatprep.subr.mxu0 0.0
        %977 = vmatpush1.msra.mxu0 0.0
        %978 = vmatprep.subr.mxu0 0.0
        %979 = vmatpush1.msra.mxu0 0.0
        %980 = vmatprep.subr.mxu0 0.0
        %981 = vmatpush1.msra.mxu0 0.0
        %982 = vmatprep.subr.mxu0 0.0
        %983 = vmatpush1.msra.mxu0 0.0
        %984 = vmatprep.subr.mxu0 0.0
        %985 = vmatpush1.msra.mxu0 0.0
        %986 = vmatprep.subr.mxu0 0.0
        %987 = vmatpush1.msra.mxu0 0.0
        %988 = vmatprep.subr.mxu0 0.0
        %989 = vmatpush1.msra.mxu0 0.0
        %990 = vmatprep.subr.mxu0 0.0
        %991 = vmatpush1.msra.mxu0 0.0
        %992 = vmatprep.subr.mxu0 0.0
        %993 = vmatpush1.msra.mxu0 0.0
        %994 = vmatprep.subr.mxu0 0.0
        %995 = vmatpush1.msra.mxu0 0.0
        %996 = vmatprep.subr.mxu0 0.0
        %997 = vmatpush1.msra.mxu0 0.0
        %998 = vmatprep.subr.mxu0 0.0
        %999 = vmatpush1.msra.mxu0 0.0
        %1000 = vmatprep.subr.mxu0 0.0
        %1001 = vmatpush1.msra.mxu0 0.0
        %1002 = vmatprep.subr.mxu0 0.0
        %1003 = vmatpush1.msra.mxu0 0.0
        %1004 = vmatprep.subr.mxu0 0.0
        %1005 = vmatpush1.msra.mxu0 0.0
        %1006 = vmatprep.mubr.f32.mxu0 0.0
        %1007 = vmatmul.mubr.f32.gmra.mrb[0].mxu0 0.0
        %v1008 = vpop.f32.mrb[0].mxu0
        %v1009 = vadd.f32 0.0, %v1008
        %v1010 = vpop.f32.mrb[0].mxu0
        %v1011 = vadd.f32 0.0, %v1010
        %1012 = vdwg.mxu0
        %v1013 = vadd.f32 %v803, %v938
        %v1014 = vadd.f32 %v804, %v940
        %v1015 = vadd.f32 %v805, %v1009
        %v1016 = vadd.f32 %v806, %v1011
        %v1017 = vld [vmem:[%s5] sm:$0xf]
        %v1019 = vlaneseq
        %v1020 = vshrl.u32 %v1019, 7
        %v1021 = vsub.s32 0, %v1020
        %v1022 = vrot.slane %v1017, %v1021
        %v1023 = vlaneseq
        %v1024 = vshrl.u32 %v1023, 7
        %v1025 = vsub.s32 1, %v1024
        %v1026 = vrot.slane %v1017, %v1025
        %v1027 = vlaneseq
        %v1028 = vshrl.u32 %v1027, 7
        %v1029 = vsub.s32 2, %v1028
        %v1030 = vrot.slane %v1017, %v1029
        %v1031 = vlaneseq
        %v1032 = vshrl.u32 %v1031, 7
        %v1033 = vsub.s32 3, %v1032
        %v1034 = vrot.slane %v1017, %v1033
        %v1039 = vadd.f32 %v1013, %v1022
        %v1040 = vadd.f32 %v1014, %v1026
        %v1041 = vadd.f32 %v1015, %v1030
        %v1042 = vadd.f32 %v1016, %v1034
        %v1043 = vxor.u32 %v1039, 2147483648
        %v1044 = vxor.u32 %v1040, 2147483648
        %v1045 = vxor.u32 %v1041, 2147483648
        %v1046 = vmul.f32 %v1043, 1.442695
        %v1047 = vpow.pop %v1046
        %v1048 = vmul.f32 %v1044, 1.442695
        %v1049 = vpow.pop %v1048
        %v1050 = vmul.f32 %v1045, 1.442695
        %v1051 = vpow.pop %v1050
        %v1052 = vadd.f32 %v1047, 1.0
        %v1053 = vadd.f32 %v1049, 1.0
        %v1054 = vadd.f32 %v1051, 1.0
        %v1055 = vrcp.pop %v1052
        %v1056 = vmul.f32 1.0, %v1055
        %v1057 = vrcp.pop %v1053
        %v1058 = vmul.f32 1.0, %v1057
        %v1059 = vrcp.pop %v1054
        %v1060 = vmul.f32 1.0, %v1059
        %v1061 = vtanh.pop %v1042
        %v1062 = vmul.f32 %v1058, 0.0
        %v1063 = vmul.f32 %v1056, %v1061
        %v1064 = vadd.f32 %v1062, %v1063
        %v1065 = vtanh.pop %v1064
        %v1066 = vmul.f32 %v1060, %v1065
        %v1067 = vld [vmem:[#allocation2 + $0x20] sm:$0xff]
        %v1068 = vld [vmem:[#allocation2 + $0x28] sm:$0xff]
        %v1069 = vld [vmem:[#allocation2 + $0x30] sm:$0xff]
        %v1070 = vld [vmem:[#allocation2 + $0x38] sm:$0xff]
        %1071 = vmatprep.subr.mxu0 %v808
        %1072 = vmatpush1.msra.mxu0 %v807
        %1073 = vmatprep.subr.mxu0 %v812
        %1074 = vmatpush1.msra.mxu0 %v811
        %1075 = vmatprep.subr.mxu0 %v816
        %1076 = vmatpush1.msra.mxu0 %v815
        %1077 = vmatprep.subr.mxu0 %v820
        %1078 = vmatpush1.msra.mxu0 %v819
        %1079 = vmatprep.subr.mxu0 %v824
        %1080 = vmatpush1.msra.mxu0 %v823
        %1081 = vmatprep.subr.mxu0 %v828
        %1082 = vmatpush1.msra.mxu0 %v827
        %1083 = vmatprep.subr.mxu0 %v832
        %1084 = vmatpush1.msra.mxu0 %v831
        %1085 = vmatprep.subr.mxu0 %v836
        %1086 = vmatpush1.msra.mxu0 %v835
        %1087 = vmatprep.subr.mxu0 %v840
        %1088 = vmatpush1.msra.mxu0 %v839
        %1089 = vmatprep.subr.mxu0 %v844
        %1090 = vmatpush1.msra.mxu0 %v843
        %1091 = vmatprep.subr.mxu0 %v848
        %1092 = vmatpush1.msra.mxu0 %v847
        %1093 = vmatprep.subr.mxu0 %v852
        %1094 = vmatpush1.msra.mxu0 %v851
        %1095 = vmatprep.subr.mxu0 %v856
        %1096 = vmatpush1.msra.mxu0 %v855
        %1097 = vmatprep.subr.mxu0 %v860
        %1098 = vmatpush1.msra.mxu0 %v859
        %1099 = vmatprep.subr.mxu0 %v864
        %1100 = vmatpush1.msra.mxu0 %v863
        %1101 = vmatprep.subr.mxu0 %v868
        %1102 = vmatpush1.msra.mxu0 %v867
        %1103 = vmatprep.subr.mxu0 0.0
        %1104 = vmatpush1.msra.mxu0 0.0
        %1105 = vmatprep.subr.mxu0 0.0
        %1106 = vmatpush1.msra.mxu0 0.0
        %1107 = vmatprep.subr.mxu0 0.0
        %1108 = vmatpush1.msra.mxu0 0.0
        %1109 = vmatprep.subr.mxu0 0.0
        %1110 = vmatpush1.msra.mxu0 0.0
        %1111 = vmatprep.subr.mxu0 0.0
        %1112 = vmatpush1.msra.mxu0 0.0
        %1113 = vmatprep.subr.mxu0 0.0
        %1114 = vmatpush1.msra.mxu0 0.0
        %1115 = vmatprep.subr.mxu0 0.0
        %1116 = vmatpush1.msra.mxu0 0.0
        %1117 = vmatprep.subr.mxu0 0.0
        %1118 = vmatpush1.msra.mxu0 0.0
        %1119 = vmatprep.subr.mxu0 0.0
        %1120 = vmatpush1.msra.mxu0 0.0
        %1121 = vmatprep.subr.mxu0 0.0
        %1122 = vmatpush1.msra.mxu0 0.0
        %1123 = vmatprep.subr.mxu0 0.0
        %1124 = vmatpush1.msra.mxu0 0.0
        %1125 = vmatprep.subr.mxu0 0.0
        %1126 = vmatpush1.msra.mxu0 0.0
        %1127 = vmatprep.subr.mxu0 0.0
        %1128 = vmatpush1.msra.mxu0 0.0
        %1129 = vmatprep.subr.mxu0 0.0
        %1130 = vmatpush1.msra.mxu0 0.0
        %1131 = vmatprep.subr.mxu0 0.0
        %1132 = vmatpush1.msra.mxu0 0.0
        %1133 = vmatprep.subr.mxu0 0.0
        %1134 = vmatpush1.msra.mxu0 0.0
        %1135 = vmatprep.mubr.f32.mxu0 0.0
        %1136 = vmatmul.mubr.f32.gmra.mrb[0].mxu0 %v1066
        %v1137 = vpop.f32.mrb[0].mxu0
        %v1138 = vadd.f32 0.0, %v1137
        %v1139 = vpop.f32.mrb[0].mxu0
        %v1140 = vadd.f32 0.0, %v1139
        %1141 = vdwg.mxu0
        %1142 = vmatprep.subr.mxu0 %v810
        %1143 = vmatpush1.msra.mxu0 %v809
        %1144 = vmatprep.subr.mxu0 %v814
        %1145 = vmatpush1.msra.mxu0 %v813
        %1146 = vmatprep.subr.mxu0 %v818
        %1147 = vmatpush1.msra.mxu0 %v817
        %1148 = vmatprep.subr.mxu0 %v822
        %1149 = vmatpush1.msra.mxu0 %v821
        %1150 = vmatprep.subr.mxu0 %v826
        %1151 = vmatpush1.msra.mxu0 %v825
        %1152 = vmatprep.subr.mxu0 %v830
        %1153 = vmatpush1.msra.mxu0 %v829
        %1154 = vmatprep.subr.mxu0 %v834
        %1155 = vmatpush1.msra.mxu0 %v833
        %1156 = vmatprep.subr.mxu0 %v838
        %1157 = vmatpush1.msra.mxu0 %v837
        %1158 = vmatprep.subr.mxu0 %v842
        %1159 = vmatpush1.msra.mxu0 %v841
        %1160 = vmatprep.subr.mxu0 %v846
        %1161 = vmatpush1.msra.mxu0 %v845
        %1162 = vmatprep.subr.mxu0 %v850
        %1163 = vmatpush1.msra.mxu0 %v849
        %1164 = vmatprep.subr.mxu0 %v854
        %1165 = vmatpush1.msra.mxu0 %v853
        %1166 = vmatprep.subr.mxu0 %v858
        %1167 = vmatpush1.msra.mxu0 %v857
        %1168 = vmatprep.subr.mxu0 %v862
        %1169 = vmatpush1.msra.mxu0 %v861
        %1170 = vmatprep.subr.mxu0 %v866
        %1171 = vmatpush1.msra.mxu0 %v865
        %1172 = vmatprep.subr.mxu0 %v870
        %1173 = vmatpush1.msra.mxu0 %v869
        %1174 = vmatprep.subr.mxu0 0.0
        %1175 = vmatpush1.msra.mxu0 0.0
        %1176 = vmatprep.subr.mxu0 0.0
        %1177 = vmatpush1.msra.mxu0 0.0
        %1178 = vmatprep.subr.mxu0 0.0
        %1179 = vmatpush1.msra.mxu0 0.0
        %1180 = vmatprep.subr.mxu0 0.0
        %1181 = vmatpush1.msra.mxu0 0.0
        %1182 = vmatprep.subr.mxu0 0.0
        %1183 = vmatpush1.msra.mxu0 0.0
        %1184 = vmatprep.subr.mxu0 0.0
        %1185 = vmatpush1.msra.mxu0 0.0
        %1186 = vmatprep.subr.mxu0 0.0
        %1187 = vmatpush1.msra.mxu0 0.0
        %1188 = vmatprep.subr.mxu0 0.0
        %1189 = vmatpush1.msra.mxu0 0.0
        %1190 = vmatprep.subr.mxu0 0.0
        %1191 = vmatpush1.msra.mxu0 0.0
        %1192 = vmatprep.subr.mxu0 0.0
        %1193 = vmatpush1.msra.mxu0 0.0
        %1194 = vmatprep.subr.mxu0 0.0
        %1195 = vmatpush1.msra.mxu0 0.0
        %1196 = vmatprep.subr.mxu0 0.0
        %1197 = vmatpush1.msra.mxu0 0.0
        %1198 = vmatprep.subr.mxu0 0.0
        %1199 = vmatpush1.msra.mxu0 0.0
        %1200 = vmatprep.subr.mxu0 0.0
        %1201 = vmatpush1.msra.mxu0 0.0
        %1202 = vmatprep.subr.mxu0 0.0
        %1203 = vmatpush1.msra.mxu0 0.0
        %1204 = vmatprep.subr.mxu0 0.0
        %1205 = vmatpush1.msra.mxu0 0.0
        %1206 = vmatprep.mubr.f32.mxu0 0.0
        %1207 = vmatmul.mubr.f32.gmra.mrb[0].mxu0 %v1066
        %v1208 = vpop.f32.mrb[0].mxu0
        %v1209 = vadd.f32 0.0, %v1208
        %v1210 = vpop.f32.mrb[0].mxu0
        %v1211 = vadd.f32 0.0, %v1210
        %1212 = vdwg.mxu0
        %v1213 = vadd.f32 %v1067, %v1138
        %v1214 = vadd.f32 %v1068, %v1140
        %v1215 = vadd.f32 %v1069, %v1209
        %v1216 = vadd.f32 %v1070, %v1211
        %v1217 = vadd.f32 %v1213, %v1022
        %v1218 = vadd.f32 %v1214, %v1026
        %v1219 = vadd.f32 %v1215, %v1030
        %v1220 = vadd.f32 %v1216, %v1034
        %v1221 = vxor.u32 %v1217, 2147483648
        %v1222 = vxor.u32 %v1218, 2147483648
        %v1223 = vxor.u32 %v1219, 2147483648
        %v1224 = vmul.f32 %v1221, 1.442695
        %v1225 = vpow.pop %v1224
        %v1226 = vmul.f32 %v1222, 1.442695
        %v1227 = vpow.pop %v1226
        %v1228 = vmul.f32 %v1223, 1.442695
        %v1229 = vpow.pop %v1228
        %v1230 = vadd.f32 %v1225, 1.0
        %v1231 = vadd.f32 %v1227, 1.0
        %v1232 = vadd.f32 %v1229, 1.0
        %v1233 = vrcp.pop %v1230
        %v1234 = vmul.f32 1.0, %v1233
        %v1235 = vrcp.pop %v1231
        %v1236 = vmul.f32 1.0, %v1235
        %v1237 = vrcp.pop %v1232
        %v1238 = vmul.f32 1.0, %v1237
        %v1239 = vtanh.pop %v1220
        %v1240 = vmul.f32 %v1236, %v1064
        %v1241 = vmul.f32 %v1234, %v1239
        %v1242 = vadd.f32 %v1240, %v1241
        %v1243 = vtanh.pop %v1242
        %v1244 = vmul.f32 %v1238, %v1243
        %v1245 = vld [vmem:[#allocation2 + $0x40] sm:$0xff]
        %v1246 = vld [vmem:[#allocation2 + $0x48] sm:$0xff]
        %v1247 = vld [vmem:[#allocation2 + $0x50] sm:$0xff]
        %v1248 = vld [vmem:[#allocation2 + $0x58] sm:$0xff]
        %1249 = vmatprep.subr.mxu0 %v808
        %1250 = vmatpush1.msra.mxu0 %v807
        %1251 = vmatprep.subr.mxu0 %v812
        %1252 = vmatpush1.msra.mxu0 %v811
        %1253 = vmatprep.subr.mxu0 %v816
        %1254 = vmatpush1.msra.mxu0 %v815
        %1255 = vmatprep.subr.mxu0 %v820
        %1256 = vmatpush1.msra.mxu0 %v819
        %1257 = vmatprep.subr.mxu0 %v824
        %1258 = vmatpush1.msra.mxu0 %v823
        %1259 = vmatprep.subr.mxu0 %v828
        %1260 = vmatpush1.msra.mxu0 %v827
        %1261 = vmatprep.subr.mxu0 %v832
        %1262 = vmatpush1.msra.mxu0 %v831
        %1263 = vmatprep.subr.mxu0 %v836
        %1264 = vmatpush1.msra.mxu0 %v835
        %1265 = vmatprep.subr.mxu0 %v840
        %1266 = vmatpush1.msra.mxu0 %v839
        %1267 = vmatprep.subr.mxu0 %v844
        %1268 = vmatpush1.msra.mxu0 %v843
        %1269 = vmatprep.subr.mxu0 %v848
        %1270 = vmatpush1.msra.mxu0 %v847
        %1271 = vmatprep.subr.mxu0 %v852
        %1272 = vmatpush1.msra.mxu0 %v851
        %1273 = vmatprep.subr.mxu0 %v856
        %1274 = vmatpush1.msra.mxu0 %v855
        %1275 = vmatprep.subr.mxu0 %v860
        %1276 = vmatpush1.msra.mxu0 %v859
        %1277 = vmatprep.subr.mxu0 %v864
        %1278 = vmatpush1.msra.mxu0 %v863
        %1279 = vmatprep.subr.mxu0 %v868
        %1280 = vmatpush1.msra.mxu0 %v867
        %1281 = vmatprep.subr.mxu0 0.0
        %1282 = vmatpush1.msra.mxu0 0.0
        %1283 = vmatprep.subr.mxu0 0.0
        %1284 = vmatpush1.msra.mxu0 0.0
        %1285 = vmatprep.subr.mxu0 0.0
        %1286 = vmatpush1.msra.mxu0 0.0
        %1287 = vmatprep.subr.mxu0 0.0
        %1288 = vmatpush1.msra.mxu0 0.0
        %1289 = vmatprep.subr.mxu0 0.0
        %1290 = vmatpush1.msra.mxu0 0.0
        %1291 = vmatprep.subr.mxu0 0.0
        %1292 = vmatpush1.msra.mxu0 0.0
        %1293 = vmatprep.subr.mxu0 0.0
        %1294 = vmatpush1.msra.mxu0 0.0
        %1295 = vmatprep.subr.mxu0 0.0
        %1296 = vmatpush1.msra.mxu0 0.0
        %1297 = vmatprep.subr.mxu0 0.0
        %1298 = vmatpush1.msra.mxu0 0.0
        %1299 = vmatprep.subr.mxu0 0.0
        %1300 = vmatpush1.msra.mxu0 0.0
        %1301 = vmatprep.subr.mxu0 0.0
        %1302 = vmatpush1.msra.mxu0 0.0
        %1303 = vmatprep.subr.mxu0 0.0
        %1304 = vmatpush1.msra.mxu0 0.0
        %1305 = vmatprep.subr.mxu0 0.0
        %1306 = vmatpush1.msra.mxu0 0.0
        %1307 = vmatprep.subr.mxu0 0.0
        %1308 = vmatpush1.msra.mxu0 0.0
        %1309 = vmatprep.subr.mxu0 0.0
        %1310 = vmatpush1.msra.mxu0 0.0
        %1311 = vmatprep.subr.mxu0 0.0
        %1312 = vmatpush1.msra.mxu0 0.0
        %1313 = vmatprep.mubr.f32.mxu0 0.0
        %1314 = vmatmul.mubr.f32.gmra.mrb[0].mxu0 %v1244
        %v1315 = vpop.f32.mrb[0].mxu0
        %v1316 = vadd.f32 0.0, %v1315
        %v1317 = vpop.f32.mrb[0].mxu0
        %v1318 = vadd.f32 0.0, %v1317
        %1319 = vdwg.mxu0
        %1320 = vmatprep.subr.mxu0 %v810
        %1321 = vmatpush1.msra.mxu0 %v809
        %1322 = vmatprep.subr.mxu0 %v814
        %1323 = vmatpush1.msra.mxu0 %v813
        %1324 = vmatprep.subr.mxu0 %v818
        %1325 = vmatpush1.msra.mxu0 %v817
        %1326 = vmatprep.subr.mxu0 %v822
        %1327 = vmatpush1.msra.mxu0 %v821
        %1328 = vmatprep.subr.mxu0 %v826
        %1329 = vmatpush1.msra.mxu0 %v825
        %1330 = vmatprep.subr.mxu0 %v830
        %1331 = vmatpush1.msra.mxu0 %v829
        %1332 = vmatprep.subr.mxu0 %v834
        %1333 = vmatpush1.msra.mxu0 %v833
        %1334 = vmatprep.subr.mxu0 %v838
        %1335 = vmatpush1.msra.mxu0 %v837
        %1336 = vmatprep.subr.mxu0 %v842
        %1337 = vmatpush1.msra.mxu0 %v841
        %1338 = vmatprep.subr.mxu0 %v846
        %1339 = vmatpush1.msra.mxu0 %v845
        %1340 = vmatprep.subr.mxu0 %v850
        %1341 = vmatpush1.msra.mxu0 %v849
        %1342 = vmatprep.subr.mxu0 %v854
        %1343 = vmatpush1.msra.mxu0 %v853
        %1344 = vmatprep.subr.mxu0 %v858
        %1345 = vmatpush1.msra.mxu0 %v857
        %1346 = vmatprep.subr.mxu0 %v862
        %1347 = vmatpush1.msra.mxu0 %v861
        %1348 = vmatprep.subr.mxu0 %v866
        %1349 = vmatpush1.msra.mxu0 %v865
        %1350 = vmatprep.subr.mxu0 %v870
        %1351 = vmatpush1.msra.mxu0 %v869
        %1352 = vmatprep.subr.mxu0 0.0
        %1353 = vmatpush1.msra.mxu0 0.0
        %1354 = vmatprep.subr.mxu0 0.0
        %1355 = vmatpush1.msra.mxu0 0.0
        %1356 = vmatprep.subr.mxu0 0.0
        %1357 = vmatpush1.msra.mxu0 0.0
        %1358 = vmatprep.subr.mxu0 0.0
        %1359 = vmatpush1.msra.mxu0 0.0
        %1360 = vmatprep.subr.mxu0 0.0
        %1361 = vmatpush1.msra.mxu0 0.0
        %1362 = vmatprep.subr.mxu0 0.0
        %1363 = vmatpush1.msra.mxu0 0.0
        %1364 = vmatprep.subr.mxu0 0.0
        %1365 = vmatpush1.msra.mxu0 0.0
        %1366 = vmatprep.subr.mxu0 0.0
        %1367 = vmatpush1.msra.mxu0 0.0
        %1368 = vmatprep.subr.mxu0 0.0
        %1369 = vmatpush1.msra.mxu0 0.0
        %1370 = vmatprep.subr.mxu0 0.0
        %1371 = vmatpush1.msra.mxu0 0.0
        %1372 = vmatprep.subr.mxu0 0.0
        %1373 = vmatpush1.msra.mxu0 0.0
        %1374 = vmatprep.subr.mxu0 0.0
        %1375 = vmatpush1.msra.mxu0 0.0
        %1376 = vmatprep.subr.mxu0 0.0
        %1377 = vmatpush1.msra.mxu0 0.0
        %1378 = vmatprep.subr.mxu0 0.0
        %1379 = vmatpush1.msra.mxu0 0.0
        %1380 = vmatprep.subr.mxu0 0.0
        %1381 = vmatpush1.msra.mxu0 0.0
        %1382 = vmatprep.subr.mxu0 0.0
        %1383 = vmatpush1.msra.mxu0 0.0
        %1384 = vmatprep.mubr.f32.mxu0 0.0
        %1385 = vmatmul.mubr.f32.gmra.mrb[0].mxu0 %v1244
        %v1386 = vpop.f32.mrb[0].mxu0
        %v1387 = vadd.f32 0.0, %v1386
        %v1388 = vpop.f32.mrb[0].mxu0
        %v1389 = vadd.f32 0.0, %v1388
        %1390 = vdwg.mxu0
        %v1391 = vadd.f32 %v1245, %v1316
        %v1392 = vadd.f32 %v1246, %v1318
        %v1393 = vadd.f32 %v1247, %v1387
        %v1394 = vadd.f32 %v1248, %v1389
        %v1395 = vadd.f32 %v1391, %v1022
        %v1396 = vadd.f32 %v1392, %v1026
        %v1397 = vadd.f32 %v1393, %v1030
        %v1398 = vadd.f32 %v1394, %v1034
        %v1399 = vxor.u32 %v1395, 2147483648
        %v1400 = vxor.u32 %v1396, 2147483648
        %v1401 = vxor.u32 %v1397, 2147483648
        %v1402 = vmul.f32 %v1399, 1.442695
        %v1403 = vpow.pop %v1402
        %v1404 = vmul.f32 %v1400, 1.442695
        %v1405 = vpow.pop %v1404
        %v1406 = vmul.f32 %v1401, 1.442695
        %v1407 = vpow.pop %v1406
        %v1408 = vadd.f32 %v1403, 1.0
        %v1409 = vadd.f32 %v1405, 1.0
        %v1410 = vadd.f32 %v1407, 1.0
        %v1411 = vrcp.pop %v1408
        %v1412 = vmul.f32 1.0, %v1411
        %v1413 = vrcp.pop %v1409
        %v1414 = vmul.f32 1.0, %v1413
        %v1415 = vrcp.pop %v1410
        %v1416 = vmul.f32 1.0, %v1415
        %v1417 = vtanh.pop %v1398
        %v1418 = vmul.f32 %v1414, %v1242
        %v1419 = vmul.f32 %v1412, %v1417
        %v1420 = vadd.f32 %v1418, %v1419
        %v1421 = vtanh.pop %v1420
        %v1422 = vmul.f32 %v1416, %v1421
        %v1423 = vld [vmem:[#allocation2 + $0x60] sm:$0xff]
        %v1424 = vld [vmem:[#allocation2 + $0x68] sm:$0xff]
        %v1425 = vld [vmem:[#allocation2 + $0x70] sm:$0xff]
        %v1426 = vld [vmem:[#allocation2 + $0x78] sm:$0xff]
        %1427 = vmatprep.subr.mxu0 %v808
        %1428 = vmatpush1.msra.mxu0 %v807
        %1429 = vmatprep.subr.mxu0 %v812
        %1430 = vmatpush1.msra.mxu0 %v811
        %1431 = vmatprep.subr.mxu0 %v816
        %1432 = vmatpush1.msra.mxu0 %v815
        %1433 = vmatprep.subr.mxu0 %v820
        %1434 = vmatpush1.msra.mxu0 %v819
        %1435 = vmatprep.subr.mxu0 %v824
        %1436 = vmatpush1.msra.mxu0 %v823
        %1437 = vmatprep.subr.mxu0 %v828
        %1438 = vmatpush1.msra.mxu0 %v827
        %1439 = vmatprep.subr.mxu0 %v832
        %1440 = vmatpush1.msra.mxu0 %v831
        %1441 = vmatprep.subr.mxu0 %v836
        %1442 = vmatpush1.msra.mxu0 %v835
        %1443 = vmatprep.subr.mxu0 %v840
        %1444 = vmatpush1.msra.mxu0 %v839
        %1445 = vmatprep.subr.mxu0 %v844
        %1446 = vmatpush1.msra.mxu0 %v843
        %1447 = vmatprep.subr.mxu0 %v848
        %1448 = vmatpush1.msra.mxu0 %v847
        %1449 = vmatprep.subr.mxu0 %v852
        %1450 = vmatpush1.msra.mxu0 %v851
        %1451 = vmatprep.subr.mxu0 %v856
        %1452 = vmatpush1.msra.mxu0 %v855
        %1453 = vmatprep.subr.mxu0 %v860
        %1454 = vmatpush1.msra.mxu0 %v859
        %1455 = vmatprep.subr.mxu0 %v864
        %1456 = vmatpush1.msra.mxu0 %v863
        %1457 = vmatprep.subr.mxu0 %v868
        %1458 = vmatpush1.msra.mxu0 %v867
        %1459 = vmatprep.subr.mxu0 0.0
        %1460 = vmatpush1.msra.mxu0 0.0
        %1461 = vmatprep.subr.mxu0 0.0
        %1462 = vmatpush1.msra.mxu0 0.0
        %1463 = vmatprep.subr.mxu0 0.0
        %1464 = vmatpush1.msra.mxu0 0.0
        %1465 = vmatprep.subr.mxu0 0.0
        %1466 = vmatpush1.msra.mxu0 0.0
        %1467 = vmatprep.subr.mxu0 0.0
        %1468 = vmatpush1.msra.mxu0 0.0
        %1469 = vmatprep.subr.mxu0 0.0
        %1470 = vmatpush1.msra.mxu0 0.0
        %1471 = vmatprep.subr.mxu0 0.0
        %1472 = vmatpush1.msra.mxu0 0.0
        %1473 = vmatprep.subr.mxu0 0.0
        %1474 = vmatpush1.msra.mxu0 0.0
        %1475 = vmatprep.subr.mxu0 0.0
        %1476 = vmatpush1.msra.mxu0 0.0
        %1477 = vmatprep.subr.mxu0 0.0
        %1478 = vmatpush1.msra.mxu0 0.0
        %1479 = vmatprep.subr.mxu0 0.0
        %1480 = vmatpush1.msra.mxu0 0.0
        %1481 = vmatprep.subr.mxu0 0.0
        %1482 = vmatpush1.msra.mxu0 0.0
        %1483 = vmatprep.subr.mxu0 0.0
        %1484 = vmatpush1.msra.mxu0 0.0
        %1485 = vmatprep.subr.mxu0 0.0
        %1486 = vmatpush1.msra.mxu0 0.0
        %1487 = vmatprep.subr.mxu0 0.0
        %1488 = vmatpush1.msra.mxu0 0.0
        %1489 = vmatprep.subr.mxu0 0.0
        %1490 = vmatpush1.msra.mxu0 0.0
        %1491 = vmatprep.mubr.f32.mxu0 0.0
        %1492 = vmatmul.mubr.f32.gmra.mrb[0].mxu0 %v1422
        %v1493 = vpop.f32.mrb[0].mxu0
        %v1494 = vadd.f32 0.0, %v1493
        %v1495 = vpop.f32.mrb[0].mxu0
        %v1496 = vadd.f32 0.0, %v1495
        %1497 = vdwg.mxu0
        %1498 = vmatprep.subr.mxu0 %v810
        %1499 = vmatpush1.msra.mxu0 %v809
        %1500 = vmatprep.subr.mxu0 %v814
        %1501 = vmatpush1.msra.mxu0 %v813
        %1502 = vmatprep.subr.mxu0 %v818
        %1503 = vmatpush1.msra.mxu0 %v817
        %1504 = vmatprep.subr.mxu0 %v822
        %1505 = vmatpush1.msra.mxu0 %v821
        %1506 = vmatprep.subr.mxu0 %v826
        %1507 = vmatpush1.msra.mxu0 %v825
        %1508 = vmatprep.subr.mxu0 %v830
        %1509 = vmatpush1.msra.mxu0 %v829
        %1510 = vmatprep.subr.mxu0 %v834
        %1511 = vmatpush1.msra.mxu0 %v833
        %1512 = vmatprep.subr.mxu0 %v838
        %1513 = vmatpush1.msra.mxu0 %v837
        %1514 = vmatprep.subr.mxu0 %v842
        %1515 = vmatpush1.msra.mxu0 %v841
        %1516 = vmatprep.subr.mxu0 %v846
        %1517 = vmatpush1.msra.mxu0 %v845
        %1518 = vmatprep.subr.mxu0 %v850
        %1519 = vmatpush1.msra.mxu0 %v849
        %1520 = vmatprep.subr.mxu0 %v854
        %1521 = vmatpush1.msra.mxu0 %v853
        %1522 = vmatprep.subr.mxu0 %v858
        %1523 = vmatpush1.msra.mxu0 %v857
        %1524 = vmatprep.subr.mxu0 %v862
        %1525 = vmatpush1.msra.mxu0 %v861
        %1526 = vmatprep.subr.mxu0 %v866
        %1527 = vmatpush1.msra.mxu0 %v865
        %1528 = vmatprep.subr.mxu0 %v870
        %1529 = vmatpush1.msra.mxu0 %v869
        %1530 = vmatprep.subr.mxu0 0.0
        %1531 = vmatpush1.msra.mxu0 0.0
        %1532 = vmatprep.subr.mxu0 0.0
        %1533 = vmatpush1.msra.mxu0 0.0
        %1534 = vmatprep.subr.mxu0 0.0
        %1535 = vmatpush1.msra.mxu0 0.0
        %1536 = vmatprep.subr.mxu0 0.0
        %1537 = vmatpush1.msra.mxu0 0.0
        %1538 = vmatprep.subr.mxu0 0.0
        %1539 = vmatpush1.msra.mxu0 0.0
        %1540 = vmatprep.subr.mxu0 0.0
        %1541 = vmatpush1.msra.mxu0 0.0
        %1542 = vmatprep.subr.mxu0 0.0
        %1543 = vmatpush1.msra.mxu0 0.0
        %1544 = vmatprep.subr.mxu0 0.0
        %1545 = vmatpush1.msra.mxu0 0.0
        %1546 = vmatprep.subr.mxu0 0.0
        %1547 = vmatpush1.msra.mxu0 0.0
        %1548 = vmatprep.subr.mxu0 0.0
        %1549 = vmatpush1.msra.mxu0 0.0
        %1550 = vmatprep.subr.mxu0 0.0
        %1551 = vmatpush1.msra.mxu0 0.0
        %1552 = vmatprep.subr.mxu0 0.0
        %1553 = vmatpush1.msra.mxu0 0.0
        %1554 = vmatprep.subr.mxu0 0.0
        %1555 = vmatpush1.msra.mxu0 0.0
        %1556 = vmatprep.subr.mxu0 0.0
        %1557 = vmatpush1.msra.mxu0 0.0
        %1558 = vmatprep.subr.mxu0 0.0
        %1559 = vmatpush1.msra.mxu0 0.0
        %1560 = vmatprep.subr.mxu0 0.0
        %1561 = vmatpush1.msra.mxu0 0.0
        %1562 = vmatprep.mubr.f32.mxu0 0.0
        %1563 = vmatmul.mubr.f32.gmra.mrb[0].mxu0 %v1422
        %v1564 = vpop.f32.mrb[0].mxu0
        %v1565 = vadd.f32 0.0, %v1564
        %v1566 = vpop.f32.mrb[0].mxu0
        %v1567 = vadd.f32 0.0, %v1566
        %1568 = vdwg.mxu0
        %v1569 = vadd.f32 %v1423, %v1494
        %v1570 = vadd.f32 %v1424, %v1496
        %v1571 = vadd.f32 %v1425, %v1565
        %v1572 = vadd.f32 %v1426, %v1567
        %v1573 = vadd.f32 %v1569, %v1022
        %v1574 = vadd.f32 %v1570, %v1026
        %v1575 = vadd.f32 %v1571, %v1030
        %v1576 = vadd.f32 %v1572, %v1034
        %v1577 = vxor.u32 %v1573, 2147483648
        %v1578 = vxor.u32 %v1574, 2147483648
        %v1579 = vxor.u32 %v1575, 2147483648
        %v1580 = vmul.f32 %v1577, 1.442695
        %v1581 = vpow.pop %v1580
        %v1582 = vmul.f32 %v1578, 1.442695
        %v1583 = vpow.pop %v1582
        %v1584 = vmul.f32 %v1579, 1.442695
        %v1585 = vpow.pop %v1584
        %v1586 = vadd.f32 %v1581, 1.0
        %v1587 = vadd.f32 %v1583, 1.0
        %v1588 = vadd.f32 %v1585, 1.0
        %v1589 = vrcp.pop %v1586
        %v1590 = vmul.f32 1.0, %v1589
        %v1591 = vrcp.pop %v1587
        %v1592 = vmul.f32 1.0, %v1591
        %v1593 = vrcp.pop %v1588
        %v1594 = vmul.f32 1.0, %v1593
        %v1595 = vtanh.pop %v1576
        %v1596 = vmul.f32 %v1592, %v1420
        %v1597 = vmul.f32 %v1590, %v1595
        %v1598 = vadd.f32 %v1596, %v1597
        %v1599 = vtanh.pop %v1598
        %v1600 = vmul.f32 %v1594, %v1599
        %v1601 = vld [vmem:[#allocation2 + $0x80] sm:$0xff]
        %v1602 = vld [vmem:[#allocation2 + $0x88] sm:$0xff]
        %v1603 = vld [vmem:[#allocation2 + $0x90] sm:$0xff]
        %v1604 = vld [vmem:[#allocation2 + $0x98] sm:$0xff]
        %1605 = vmatprep.subr.mxu0 %v808
        %1606 = vmatpush1.msra.mxu0 %v807
        %1607 = vmatprep.subr.mxu0 %v812
        %1608 = vmatpush1.msra.mxu0 %v811
        %1609 = vmatprep.subr.mxu0 %v816
        %1610 = vmatpush1.msra.mxu0 %v815
        %1611 = vmatprep.subr.mxu0 %v820
        %1612 = vmatpush1.msra.mxu0 %v819
        %1613 = vmatprep.subr.mxu0 %v824
        %1614 = vmatpush1.msra.mxu0 %v823
        %1615 = vmatprep.subr.mxu0 %v828
        %1616 = vmatpush1.msra.mxu0 %v827
        %1617 = vmatprep.subr.mxu0 %v832
        %1618 = vmatpush1.msra.mxu0 %v831
        %1619 = vmatprep.subr.mxu0 %v836
        %1620 = vmatpush1.msra.mxu0 %v835
        %1621 = vmatprep.subr.mxu0 %v840
        %1622 = vmatpush1.msra.mxu0 %v839
        %1623 = vmatprep.subr.mxu0 %v844
        %1624 = vmatpush1.msra.mxu0 %v843
        %1625 = vmatprep.subr.mxu0 %v848
        %1626 = vmatpush1.msra.mxu0 %v847
        %1627 = vmatprep.subr.mxu0 %v852
        %1628 = vmatpush1.msra.mxu0 %v851
        %1629 = vmatprep.subr.mxu0 %v856
        %1630 = vmatpush1.msra.mxu0 %v855
        %1631 = vmatprep.subr.mxu0 %v860
        %1632 = vmatpush1.msra.mxu0 %v859
        %1633 = vmatprep.subr.mxu0 %v864
        %1634 = vmatpush1.msra.mxu0 %v863
        %1635 = vmatprep.subr.mxu0 %v868
        %1636 = vmatpush1.msra.mxu0 %v867
        %1637 = vmatprep.subr.mxu0 0.0
        %1638 = vmatpush1.msra.mxu0 0.0
        %1639 = vmatprep.subr.mxu0 0.0
        %1640 = vmatpush1.msra.mxu0 0.0
        %1641 = vmatprep.subr.mxu0 0.0
        %1642 = vmatpush1.msra.mxu0 0.0
        %1643 = vmatprep.subr.mxu0 0.0
        %1644 = vmatpush1.msra.mxu0 0.0
        %1645 = vmatprep.subr.mxu0 0.0
        %1646 = vmatpush1.msra.mxu0 0.0
        %1647 = vmatprep.subr.mxu0 0.0
        %1648 = vmatpush1.msra.mxu0 0.0
        %1649 = vmatprep.subr.mxu0 0.0
        %1650 = vmatpush1.msra.mxu0 0.0
        %1651 = vmatprep.subr.mxu0 0.0
        %1652 = vmatpush1.msra.mxu0 0.0
        %1653 = vmatprep.subr.mxu0 0.0
        %1654 = vmatpush1.msra.mxu0 0.0
        %1655 = vmatprep.subr.mxu0 0.0
        %1656 = vmatpush1.msra.mxu0 0.0
        %1657 = vmatprep.subr.mxu0 0.0
        %1658 = vmatpush1.msra.mxu0 0.0
        %1659 = vmatprep.subr.mxu0 0.0
        %1660 = vmatpush1.msra.mxu0 0.0
        %1661 = vmatprep.subr.mxu0 0.0
        %1662 = vmatpush1.msra.mxu0 0.0
        %1663 = vmatprep.subr.mxu0 0.0
        %1664 = vmatpush1.msra.mxu0 0.0
        %1665 = vmatprep.subr.mxu0 0.0
        %1666 = vmatpush1.msra.mxu0 0.0
        %1667 = vmatprep.subr.mxu0 0.0
        %1668 = vmatpush1.msra.mxu0 0.0
        %1669 = vmatprep.mubr.f32.mxu0 0.0
        %1670 = vmatmul.mubr.f32.gmra.mrb[0].mxu0 %v1600
        %v1671 = vpop.f32.mrb[0].mxu0
        %v1672 = vadd.f32 0.0, %v1671
        %v1673 = vpop.f32.mrb[0].mxu0
        %v1674 = vadd.f32 0.0, %v1673
        %1675 = vdwg.mxu0
        %1676 = vmatprep.subr.mxu0 %v810
        %1677 = vmatpush1.msra.mxu0 %v809
        %1678 = vmatprep.subr.mxu0 %v814
        %1679 = vmatpush1.msra.mxu0 %v813
        %1680 = vmatprep.subr.mxu0 %v818
        %1681 = vmatpush1.msra.mxu0 %v817
        %1682 = vmatprep.subr.mxu0 %v822
        %1683 = vmatpush1.msra.mxu0 %v821
        %1684 = vmatprep.subr.mxu0 %v826
        %1685 = vmatpush1.msra.mxu0 %v825
        %1686 = vmatprep.subr.mxu0 %v830
        %1687 = vmatpush1.msra.mxu0 %v829
        %1688 = vmatprep.subr.mxu0 %v834
        %1689 = vmatpush1.msra.mxu0 %v833
        %1690 = vmatprep.subr.mxu0 %v838
        %1691 = vmatpush1.msra.mxu0 %v837
        %1692 = vmatprep.subr.mxu0 %v842
        %1693 = vmatpush1.msra.mxu0 %v841
        %1694 = vmatprep.subr.mxu0 %v846
        %1695 = vmatpush1.msra.mxu0 %v845
        %1696 = vmatprep.subr.mxu0 %v850
        %1697 = vmatpush1.msra.mxu0 %v849
        %1698 = vmatprep.subr.mxu0 %v854
        %1699 = vmatpush1.msra.mxu0 %v853
        %1700 = vmatprep.subr.mxu0 %v858
        %1701 = vmatpush1.msra.mxu0 %v857
        %1702 = vmatprep.subr.mxu0 %v862
        %1703 = vmatpush1.msra.mxu0 %v861
        %1704 = vmatprep.subr.mxu0 %v866
        %1705 = vmatpush1.msra.mxu0 %v865
        %1706 = vmatprep.subr.mxu0 %v870
        %1707 = vmatpush1.msra.mxu0 %v869
        %1708 = vmatprep.subr.mxu0 0.0
        %1709 = vmatpush1.msra.mxu0 0.0
        %1710 = vmatprep.subr.mxu0 0.0
        %1711 = vmatpush1.msra.mxu0 0.0
        %1712 = vmatprep.subr.mxu0 0.0
        %1713 = vmatpush1.msra.mxu0 0.0
        %1714 = vmatprep.subr.mxu0 0.0
        %1715 = vmatpush1.msra.mxu0 0.0
        %1716 = vmatprep.subr.mxu0 0.0
        %1717 = vmatpush1.msra.mxu0 0.0
        %1718 = vmatprep.subr.mxu0 0.0
        %1719 = vmatpush1.msra.mxu0 0.0
        %1720 = vmatprep.subr.mxu0 0.0
        %1721 = vmatpush1.msra.mxu0 0.0
        %1722 = vmatprep.subr.mxu0 0.0
        %1723 = vmatpush1.msra.mxu0 0.0
        %1724 = vmatprep.subr.mxu0 0.0
        %1725 = vmatpush1.msra.mxu0 0.0
        %1726 = vmatprep.subr.mxu0 0.0
        %1727 = vmatpush1.msra.mxu0 0.0
        %1728 = vmatprep.subr.mxu0 0.0
        %1729 = vmatpush1.msra.mxu0 0.0
        %1730 = vmatprep.subr.mxu0 0.0
        %1731 = vmatpush1.msra.mxu0 0.0
        %1732 = vmatprep.subr.mxu0 0.0
        %1733 = vmatpush1.msra.mxu0 0.0
        %1734 = vmatprep.subr.mxu0 0.0
        %1735 = vmatpush1.msra.mxu0 0.0
        %1736 = vmatprep.subr.mxu0 0.0
        %1737 = vmatpush1.msra.mxu0 0.0
        %1738 = vmatprep.subr.mxu0 0.0
        %1739 = vmatpush1.msra.mxu0 0.0
        %1740 = vmatprep.mubr.f32.mxu0 0.0
        %1741 = vmatmul.mubr.f32.gmra.mrb[0].mxu0 %v1600
        %v1742 = vpop.f32.mrb[0].mxu0
        %v1743 = vadd.f32 0.0, %v1742
        %v1744 = vpop.f32.mrb[0].mxu0
        %v1745 = vadd.f32 0.0, %v1744
        %1746 = vdwg.mxu0
        %v1747 = vadd.f32 %v1601, %v1672
        %v1748 = vadd.f32 %v1602, %v1674
        %v1749 = vadd.f32 %v1603, %v1743
        %v1750 = vadd.f32 %v1604, %v1745
        %v1751 = vadd.f32 %v1747, %v1022
        %v1752 = vadd.f32 %v1748, %v1026
        %v1753 = vadd.f32 %v1749, %v1030
        %v1754 = vadd.f32 %v1750, %v1034
        %v1755 = vxor.u32 %v1751, 2147483648
        %v1756 = vxor.u32 %v1752, 2147483648
        %v1757 = vxor.u32 %v1753, 2147483648
        %v1758 = vmul.f32 %v1755, 1.442695
        %v1759 = vpow.pop %v1758
        %v1760 = vmul.f32 %v1756, 1.442695
        %v1761 = vpow.pop %v1760
        %v1762 = vmul.f32 %v1757, 1.442695
        %v1763 = vpow.pop %v1762
        %v1764 = vadd.f32 %v1759, 1.0
        %v1765 = vadd.f32 %v1761, 1.0
        %v1766 = vadd.f32 %v1763, 1.0
        %v1767 = vrcp.pop %v1764
        %v1768 = vmul.f32 1.0, %v1767
        %v1769 = vrcp.pop %v1765
        %v1770 = vmul.f32 1.0, %v1769
        %v1771 = vrcp.pop %v1766
        %v1772 = vmul.f32 1.0, %v1771
        %v1773 = vtanh.pop %v1754
        %v1774 = vmul.f32 %v1770, %v1598
        %v1775 = vmul.f32 %v1768, %v1773
        %v1776 = vadd.f32 %v1774, %v1775
        %v1777 = vtanh.pop %v1776
        %v1778 = vmul.f32 %v1772, %v1777
        %v1779 = vld [vmem:[#allocation2 + $0xa0] sm:$0xff]
        %v1780 = vld [vmem:[#allocation2 + $0xa8] sm:$0xff]
        %v1781 = vld [vmem:[#allocation2 + $0xb0] sm:$0xff]
        %v1782 = vld [vmem:[#allocation2 + $0xb8] sm:$0xff]
        %1783 = vmatprep.subr.mxu0 %v808
        %1784 = vmatpush1.msra.mxu0 %v807
        %1785 = vmatprep.subr.mxu0 %v812
        %1786 = vmatpush1.msra.mxu0 %v811
        %1787 = vmatprep.subr.mxu0 %v816
        %1788 = vmatpush1.msra.mxu0 %v815
        %1789 = vmatprep.subr.mxu0 %v820
        %1790 = vmatpush1.msra.mxu0 %v819
        %1791 = vmatprep.subr.mxu0 %v824
        %1792 = vmatpush1.msra.mxu0 %v823
        %1793 = vmatprep.subr.mxu0 %v828
        %1794 = vmatpush1.msra.mxu0 %v827
        %1795 = vmatprep.subr.mxu0 %v832
        %1796 = vmatpush1.msra.mxu0 %v831
        %1797 = vmatprep.subr.mxu0 %v836
        %1798 = vmatpush1.msra.mxu0 %v835
        %1799 = vmatprep.subr.mxu0 %v840
        %1800 = vmatpush1.msra.mxu0 %v839
        %1801 = vmatprep.subr.mxu0 %v844
        %1802 = vmatpush1.msra.mxu0 %v843
        %1803 = vmatprep.subr.mxu0 %v848
        %1804 = vmatpush1.msra.mxu0 %v847
        %1805 = vmatprep.subr.mxu0 %v852
        %1806 = vmatpush1.msra.mxu0 %v851
        %1807 = vmatprep.subr.mxu0 %v856
        %1808 = vmatpush1.msra.mxu0 %v855
        %1809 = vmatprep.subr.mxu0 %v860
        %1810 = vmatpush1.msra.mxu0 %v859
        %1811 = vmatprep.subr.mxu0 %v864
        %1812 = vmatpush1.msra.mxu0 %v863
        %1813 = vmatprep.subr.mxu0 %v868
        %1814 = vmatpush1.msra.mxu0 %v867
        %1815 = vmatprep.subr.mxu0 0.0
        %1816 = vmatpush1.msra.mxu0 0.0
        %1817 = vmatprep.subr.mxu0 0.0
        %1818 = vmatpush1.msra.mxu0 0.0
        %1819 = vmatprep.subr.mxu0 0.0
        %1820 = vmatpush1.msra.mxu0 0.0
        %1821 = vmatprep.subr.mxu0 0.0
        %1822 = vmatpush1.msra.mxu0 0.0
        %1823 = vmatprep.subr.mxu0 0.0
        %1824 = vmatpush1.msra.mxu0 0.0
        %1825 = vmatprep.subr.mxu0 0.0
        %1826 = vmatpush1.msra.mxu0 0.0
        %1827 = vmatprep.subr.mxu0 0.0
        %1828 = vmatpush1.msra.mxu0 0.0
        %1829 = vmatprep.subr.mxu0 0.0
        %1830 = vmatpush1.msra.mxu0 0.0
        %1831 = vmatprep.subr.mxu0 0.0
        %1832 = vmatpush1.msra.mxu0 0.0
        %1833 = vmatprep.subr.mxu0 0.0
        %1834 = vmatpush1.msra.mxu0 0.0
        %1835 = vmatprep.subr.mxu0 0.0
        %1836 = vmatpush1.msra.mxu0 0.0
        %1837 = vmatprep.subr.mxu0 0.0
        %1838 = vmatpush1.msra.mxu0 0.0
        %1839 = vmatprep.subr.mxu0 0.0
        %1840 = vmatpush1.msra.mxu0 0.0
        %1841 = vmatprep.subr.mxu0 0.0
        %1842 = vmatpush1.msra.mxu0 0.0
        %1843 = vmatprep.subr.mxu0 0.0
        %1844 = vmatpush1.msra.mxu0 0.0
        %1845 = vmatprep.subr.mxu0 0.0
        %1846 = vmatpush1.msra.mxu0 0.0
        %1847 = vmatprep.mubr.f32.mxu0 0.0
        %1848 = vmatmul.mubr.f32.gmra.mrb[0].mxu0 %v1778
        %v1849 = vpop.f32.mrb[0].mxu0
        %v1850 = vadd.f32 0.0, %v1849
        %v1851 = vpop.f32.mrb[0].mxu0
        %v1852 = vadd.f32 0.0, %v1851
        %1853 = vdwg.mxu0
        %1854 = vmatprep.subr.mxu0 %v810
        %1855 = vmatpush1.msra.mxu0 %v809
        %1856 = vmatprep.subr.mxu0 %v814
        %1857 = vmatpush1.msra.mxu0 %v813
        %1858 = vmatprep.subr.mxu0 %v818
        %1859 = vmatpush1.msra.mxu0 %v817
        %1860 = vmatprep.subr.mxu0 %v822
        %1861 = vmatpush1.msra.mxu0 %v821
        %1862 = vmatprep.subr.mxu0 %v826
        %1863 = vmatpush1.msra.mxu0 %v825
        %1864 = vmatprep.subr.mxu0 %v830
        %1865 = vmatpush1.msra.mxu0 %v829
        %1866 = vmatprep.subr.mxu0 %v834
        %1867 = vmatpush1.msra.mxu0 %v833
        %1868 = vmatprep.subr.mxu0 %v838
        %1869 = vmatpush1.msra.mxu0 %v837
        %1870 = vmatprep.subr.mxu0 %v842
        %1871 = vmatpush1.msra.mxu0 %v841
        %1872 = vmatprep.subr.mxu0 %v846
        %1873 = vmatpush1.msra.mxu0 %v845
        %1874 = vmatprep.subr.mxu0 %v850
        %1875 = vmatpush1.msra.mxu0 %v849
        %1876 = vmatprep.subr.mxu0 %v854
        %1877 = vmatpush1.msra.mxu0 %v853
        %1878 = vmatprep.subr.mxu0 %v858
        %1879 = vmatpush1.msra.mxu0 %v857
        %1880 = vmatprep.subr.mxu0 %v862
        %1881 = vmatpush1.msra.mxu0 %v861
        %1882 = vmatprep.subr.mxu0 %v866
        %1883 = vmatpush1.msra.mxu0 %v865
        %1884 = vmatprep.subr.mxu0 %v870
        %1885 = vmatpush1.msra.mxu0 %v869
        %1886 = vmatprep.subr.mxu0 0.0
        %1887 = vmatpush1.msra.mxu0 0.0
        %1888 = vmatprep.subr.mxu0 0.0
        %1889 = vmatpush1.msra.mxu0 0.0
        %1890 = vmatprep.subr.mxu0 0.0
        %1891 = vmatpush1.msra.mxu0 0.0
        %1892 = vmatprep.subr.mxu0 0.0
        %1893 = vmatpush1.msra.mxu0 0.0
        %1894 = vmatprep.subr.mxu0 0.0
        %1895 = vmatpush1.msra.mxu0 0.0
        %1896 = vmatprep.subr.mxu0 0.0
        %1897 = vmatpush1.msra.mxu0 0.0
        %1898 = vmatprep.subr.mxu0 0.0
        %1899 = vmatpush1.msra.mxu0 0.0
        %1900 = vmatprep.subr.mxu0 0.0
        %1901 = vmatpush1.msra.mxu0 0.0
        %1902 = vmatprep.subr.mxu0 0.0
        %1903 = vmatpush1.msra.mxu0 0.0
        %1904 = vmatprep.subr.mxu0 0.0
        %1905 = vmatpush1.msra.mxu0 0.0
        %1906 = vmatprep.subr.mxu0 0.0
        %1907 = vmatpush1.msra.mxu0 0.0
        %1908 = vmatprep.subr.mxu0 0.0
        %1909 = vmatpush1.msra.mxu0 0.0
        %1910 = vmatprep.subr.mxu0 0.0
        %1911 = vmatpush1.msra.mxu0 0.0
        %1912 = vmatprep.subr.mxu0 0.0
        %1913 = vmatpush1.msra.mxu0 0.0
        %1914 = vmatprep.subr.mxu0 0.0
        %1915 = vmatpush1.msra.mxu0 0.0
        %1916 = vmatprep.subr.mxu0 0.0
        %1917 = vmatpush1.msra.mxu0 0.0
        %1918 = vmatprep.mubr.f32.mxu0 0.0
        %1919 = vmatmul.mubr.f32.gmra.mrb[0].mxu0 %v1778
        %v1920 = vpop.f32.mrb[0].mxu0
        %v1921 = vadd.f32 0.0, %v1920
        %v1922 = vpop.f32.mrb[0].mxu0
        %v1923 = vadd.f32 0.0, %v1922
        %1924 = vdwg.mxu0
        %v1925 = vadd.f32 %v1779, %v1850
        %v1926 = vadd.f32 %v1780, %v1852
        %v1927 = vadd.f32 %v1781, %v1921
        %v1928 = vadd.f32 %v1782, %v1923
        %v1929 = vadd.f32 %v1925, %v1022
        %v1930 = vadd.f32 %v1926, %v1026
        %v1931 = vadd.f32 %v1927, %v1030
        %v1932 = vadd.f32 %v1928, %v1034
        %v1933 = vxor.u32 %v1929, 2147483648
        %v1934 = vxor.u32 %v1930, 2147483648
        %v1935 = vxor.u32 %v1931, 2147483648
        %v1936 = vmul.f32 %v1933, 1.442695
        %v1937 = vpow.pop %v1936
        %v1938 = vmul.f32 %v1934, 1.442695
        %v1939 = vpow.pop %v1938
        %v1940 = vmul.f32 %v1935, 1.442695
        %v1941 = vpow.pop %v1940
        %v1942 = vadd.f32 %v1937, 1.0
        %v1943 = vadd.f32 %v1939, 1.0
        %v1944 = vadd.f32 %v1941, 1.0
        %v1945 = vrcp.pop %v1942
        %v1946 = vmul.f32 1.0, %v1945
        %v1947 = vrcp.pop %v1943
        %v1948 = vmul.f32 1.0, %v1947
        %v1949 = vrcp.pop %v1944
        %v1950 = vmul.f32 1.0, %v1949
        %v1951 = vtanh.pop %v1932
        %v1952 = vmul.f32 %v1948, %v1776
        %v1953 = vmul.f32 %v1946, %v1951
        %v1954 = vadd.f32 %v1952, %v1953
        %v1955 = vtanh.pop %v1954
        %v1956 = vmul.f32 %v1950, %v1955
        %v1957 = vld [vmem:[#allocation2 + $0xc0] sm:$0xff]
        %v1958 = vld [vmem:[#allocation2 + $0xc8] sm:$0xff]
        %v1959 = vld [vmem:[#allocation2 + $0xd0] sm:$0xff]
        %v1960 = vld [vmem:[#allocation2 + $0xd8] sm:$0xff]
        %1961 = vmatprep.subr.mxu0 %v808
        %1962 = vmatpush1.msra.mxu0 %v807
        %1963 = vmatprep.subr.mxu0 %v812
        %1964 = vmatpush1.msra.mxu0 %v811
        %1965 = vmatprep.subr.mxu0 %v816
        %1966 = vmatpush1.msra.mxu0 %v815
        %1967 = vmatprep.subr.mxu0 %v820
        %1968 = vmatpush1.msra.mxu0 %v819
        %1969 = vmatprep.subr.mxu0 %v824
        %1970 = vmatpush1.msra.mxu0 %v823
        %1971 = vmatprep.subr.mxu0 %v828
        %1972 = vmatpush1.msra.mxu0 %v827
        %1973 = vmatprep.subr.mxu0 %v832
        %1974 = vmatpush1.msra.mxu0 %v831
        %1975 = vmatprep.subr.mxu0 %v836
        %1976 = vmatpush1.msra.mxu0 %v835
        %1977 = vmatprep.subr.mxu0 %v840
        %1978 = vmatpush1.msra.mxu0 %v839
        %1979 = vmatprep.subr.mxu0 %v844
        %1980 = vmatpush1.msra.mxu0 %v843
        %1981 = vmatprep.subr.mxu0 %v848
        %1982 = vmatpush1.msra.mxu0 %v847
        %1983 = vmatprep.subr.mxu0 %v852
        %1984 = vmatpush1.msra.mxu0 %v851
        %1985 = vmatprep.subr.mxu0 %v856
        %1986 = vmatpush1.msra.mxu0 %v855
        %1987 = vmatprep.subr.mxu0 %v860
        %1988 = vmatpush1.msra.mxu0 %v859
        %1989 = vmatprep.subr.mxu0 %v864
        %1990 = vmatpush1.msra.mxu0 %v863
        %1991 = vmatprep.subr.mxu0 %v868
        %1992 = vmatpush1.msra.mxu0 %v867
        %1993 = vmatprep.subr.mxu0 0.0
        %1994 = vmatpush1.msra.mxu0 0.0
        %1995 = vmatprep.subr.mxu0 0.0
        %1996 = vmatpush1.msra.mxu0 0.0
        %1997 = vmatprep.subr.mxu0 0.0
        %1998 = vmatpush1.msra.mxu0 0.0
        %1999 = vmatprep.subr.mxu0 0.0
        %2000 = vmatpush1.msra.mxu0 0.0
        %2001 = vmatprep.subr.mxu0 0.0
        %2002 = vmatpush1.msra.mxu0 0.0
        %2003 = vmatprep.subr.mxu0 0.0
        %2004 = vmatpush1.msra.mxu0 0.0
        %2005 = vmatprep.subr.mxu0 0.0
        %2006 = vmatpush1.msra.mxu0 0.0
        %2007 = vmatprep.subr.mxu0 0.0
        %2008 = vmatpush1.msra.mxu0 0.0
        %2009 = vmatprep.subr.mxu0 0.0
        %2010 = vmatpush1.msra.mxu0 0.0
        %2011 = vmatprep.subr.mxu0 0.0
        %2012 = vmatpush1.msra.mxu0 0.0
        %2013 = vmatprep.subr.mxu0 0.0
        %2014 = vmatpush1.msra.mxu0 0.0
        %2015 = vmatprep.subr.mxu0 0.0
        %2016 = vmatpush1.msra.mxu0 0.0
        %2017 = vmatprep.subr.mxu0 0.0
        %2018 = vmatpush1.msra.mxu0 0.0
        %2019 = vmatprep.subr.mxu0 0.0
        %2020 = vmatpush1.msra.mxu0 0.0
        %2021 = vmatprep.subr.mxu0 0.0
        %2022 = vmatpush1.msra.mxu0 0.0
        %2023 = vmatprep.subr.mxu0 0.0
        %2024 = vmatpush1.msra.mxu0 0.0
        %2025 = vmatprep.mubr.f32.mxu0 0.0
        %2026 = vmatmul.mubr.f32.gmra.mrb[0].mxu0 %v1956
        %v2027 = vpop.f32.mrb[0].mxu0
        %v2028 = vadd.f32 0.0, %v2027
        %v2029 = vpop.f32.mrb[0].mxu0
        %v2030 = vadd.f32 0.0, %v2029
        %2031 = vdwg.mxu0
        %2032 = vmatprep.subr.mxu0 %v810
        %2033 = vmatpush1.msra.mxu0 %v809
        %2034 = vmatprep.subr.mxu0 %v814
        %2035 = vmatpush1.msra.mxu0 %v813
        %2036 = vmatprep.subr.mxu0 %v818
        %2037 = vmatpush1.msra.mxu0 %v817
        %2038 = vmatprep.subr.mxu0 %v822
        %2039 = vmatpush1.msra.mxu0 %v821
        %2040 = vmatprep.subr.mxu0 %v826
        %2041 = vmatpush1.msra.mxu0 %v825
        %2042 = vmatprep.subr.mxu0 %v830
        %2043 = vmatpush1.msra.mxu0 %v829
        %2044 = vmatprep.subr.mxu0 %v834
        %2045 = vmatpush1.msra.mxu0 %v833
        %2046 = vmatprep.subr.mxu0 %v838
        %2047 = vmatpush1.msra.mxu0 %v837
        %2048 = vmatprep.subr.mxu0 %v842
        %2049 = vmatpush1.msra.mxu0 %v841
        %2050 = vmatprep.subr.mxu0 %v846
        %2051 = vmatpush1.msra.mxu0 %v845
        %2052 = vmatprep.subr.mxu0 %v850
        %2053 = vmatpush1.msra.mxu0 %v849
        %2054 = vmatprep.subr.mxu0 %v854
        %2055 = vmatpush1.msra.mxu0 %v853
        %2056 = vmatprep.subr.mxu0 %v858
        %2057 = vmatpush1.msra.mxu0 %v857
        %2058 = vmatprep.subr.mxu0 %v862
        %2059 = vmatpush1.msra.mxu0 %v861
        %2060 = vmatprep.subr.mxu0 %v866
        %2061 = vmatpush1.msra.mxu0 %v865
        %2062 = vmatprep.subr.mxu0 %v870
        %2063 = vmatpush1.msra.mxu0 %v869
        %2064 = vmatprep.subr.mxu0 0.0
        %2065 = vmatpush1.msra.mxu0 0.0
        %2066 = vmatprep.subr.mxu0 0.0
        %2067 = vmatpush1.msra.mxu0 0.0
        %2068 = vmatprep.subr.mxu0 0.0
        %2069 = vmatpush1.msra.mxu0 0.0
        %2070 = vmatprep.subr.mxu0 0.0
        %2071 = vmatpush1.msra.mxu0 0.0
        %2072 = vmatprep.subr.mxu0 0.0
        %2073 = vmatpush1.msra.mxu0 0.0
        %2074 = vmatprep.subr.mxu0 0.0
        %2075 = vmatpush1.msra.mxu0 0.0
        %2076 = vmatprep.subr.mxu0 0.0
        %2077 = vmatpush1.msra.mxu0 0.0
        %2078 = vmatprep.subr.mxu0 0.0
        %2079 = vmatpush1.msra.mxu0 0.0
        %2080 = vmatprep.subr.mxu0 0.0
        %2081 = vmatpush1.msra.mxu0 0.0
        %2082 = vmatprep.subr.mxu0 0.0
        %2083 = vmatpush1.msra.mxu0 0.0
        %2084 = vmatprep.subr.mxu0 0.0
        %2085 = vmatpush1.msra.mxu0 0.0
        %2086 = vmatprep.subr.mxu0 0.0
        %2087 = vmatpush1.msra.mxu0 0.0
        %2088 = vmatprep.subr.mxu0 0.0
        %2089 = vmatpush1.msra.mxu0 0.0
        %2090 = vmatprep.subr.mxu0 0.0
        %2091 = vmatpush1.msra.mxu0 0.0
        %2092 = vmatprep.subr.mxu0 0.0
        %2093 = vmatpush1.msra.mxu0 0.0
        %2094 = vmatprep.subr.mxu0 0.0
        %2095 = vmatpush1.msra.mxu0 0.0
        %2096 = vmatprep.mubr.f32.mxu0 0.0
        %2097 = vmatmul.mubr.f32.gmra.mrb[0].mxu0 %v1956
        %v2098 = vpop.f32.mrb[0].mxu0
        %v2099 = vadd.f32 0.0, %v2098
        %v2100 = vpop.f32.mrb[0].mxu0
        %v2101 = vadd.f32 0.0, %v2100
        %2102 = vdwg.mxu0
        %v2103 = vadd.f32 %v1957, %v2028
        %v2104 = vadd.f32 %v1958, %v2030
        %v2105 = vadd.f32 %v1959, %v2099
        %v2106 = vadd.f32 %v1960, %v2101
        %v2107 = vadd.f32 %v2103, %v1022
        %v2108 = vadd.f32 %v2104, %v1026
        %v2109 = vadd.f32 %v2105, %v1030
        %v2110 = vadd.f32 %v2106, %v1034
        %v2111 = vxor.u32 %v2107, 2147483648
        %v2112 = vxor.u32 %v2108, 2147483648
        %v2113 = vxor.u32 %v2109, 2147483648
        %v2114 = vmul.f32 %v2111, 1.442695
        %v2115 = vpow.pop %v2114
        %v2116 = vmul.f32 %v2112, 1.442695
        %v2117 = vpow.pop %v2116
        %v2118 = vmul.f32 %v2113, 1.442695
        %v2119 = vpow.pop %v2118
        %v2120 = vadd.f32 %v2115, 1.0
        %v2121 = vadd.f32 %v2117, 1.0
        %v2122 = vadd.f32 %v2119, 1.0
        %v2123 = vrcp.pop %v2120
        %v2124 = vmul.f32 1.0, %v2123
        %v2125 = vrcp.pop %v2121
        %v2126 = vmul.f32 1.0, %v2125
        %v2127 = vrcp.pop %v2122
        %v2128 = vmul.f32 1.0, %v2127
        %v2129 = vtanh.pop %v2110
        %v2130 = vmul.f32 %v2126, %v1954
        %v2131 = vmul.f32 %v2124, %v2129
        %v2132 = vadd.f32 %v2130, %v2131
        %v2133 = vtanh.pop %v2132
        %v2134 = vmul.f32 %v2128, %v2133
        %v2135 = vld [vmem:[#allocation2 + $0xe0] sm:$0xff]
        %v2136 = vld [vmem:[#allocation2 + $0xe8] sm:$0xff]
        %v2137 = vld [vmem:[#allocation2 + $0xf0] sm:$0xff]
        %v2138 = vld [vmem:[#allocation2 + $0xf8] sm:$0xff]
        %2139 = vmatprep.subr.mxu0 %v808
        %2140 = vmatpush1.msra.mxu0 %v807
        %2141 = vmatprep.subr.mxu0 %v812
        %2142 = vmatpush1.msra.mxu0 %v811
        %2143 = vmatprep.subr.mxu0 %v816
        %2144 = vmatpush1.msra.mxu0 %v815
        %2145 = vmatprep.subr.mxu0 %v820
        %2146 = vmatpush1.msra.mxu0 %v819
        %2147 = vmatprep.subr.mxu0 %v824
        %2148 = vmatpush1.msra.mxu0 %v823
        %2149 = vmatprep.subr.mxu0 %v828
        %2150 = vmatpush1.msra.mxu0 %v827
        %2151 = vmatprep.subr.mxu0 %v832
        %2152 = vmatpush1.msra.mxu0 %v831
        %2153 = vmatprep.subr.mxu0 %v836
        %2154 = vmatpush1.msra.mxu0 %v835
        %2155 = vmatprep.subr.mxu0 %v840
        %2156 = vmatpush1.msra.mxu0 %v839
        %2157 = vmatprep.subr.mxu0 %v844
        %2158 = vmatpush1.msra.mxu0 %v843
        %2159 = vmatprep.subr.mxu0 %v848
        %2160 = vmatpush1.msra.mxu0 %v847
        %2161 = vmatprep.subr.mxu0 %v852
        %2162 = vmatpush1.msra.mxu0 %v851
        %2163 = vmatprep.subr.mxu0 %v856
        %2164 = vmatpush1.msra.mxu0 %v855
        %2165 = vmatprep.subr.mxu0 %v860
        %2166 = vmatpush1.msra.mxu0 %v859
        %2167 = vmatprep.subr.mxu0 %v864
        %2168 = vmatpush1.msra.mxu0 %v863
        %2169 = vmatprep.subr.mxu0 %v868
        %2170 = vmatpush1.msra.mxu0 %v867
        %2171 = vmatprep.subr.mxu0 0.0
        %2172 = vmatpush1.msra.mxu0 0.0
        %2173 = vmatprep.subr.mxu0 0.0
        %2174 = vmatpush1.msra.mxu0 0.0
        %2175 = vmatprep.subr.mxu0 0.0
        %2176 = vmatpush1.msra.mxu0 0.0
        %2177 = vmatprep.subr.mxu0 0.0
        %2178 = vmatpush1.msra.mxu0 0.0
        %2179 = vmatprep.subr.mxu0 0.0
        %2180 = vmatpush1.msra.mxu0 0.0
        %2181 = vmatprep.subr.mxu0 0.0
        %2182 = vmatpush1.msra.mxu0 0.0
        %2183 = vmatprep.subr.mxu0 0.0
        %2184 = vmatpush1.msra.mxu0 0.0
        %2185 = vmatprep.subr.mxu0 0.0
        %2186 = vmatpush1.msra.mxu0 0.0
        %2187 = vmatprep.subr.mxu0 0.0
        %2188 = vmatpush1.msra.mxu0 0.0
        %2189 = vmatprep.subr.mxu0 0.0
        %2190 = vmatpush1.msra.mxu0 0.0
        %2191 = vmatprep.subr.mxu0 0.0
        %2192 = vmatpush1.msra.mxu0 0.0
        %2193 = vmatprep.subr.mxu0 0.0
        %2194 = vmatpush1.msra.mxu0 0.0
        %2195 = vmatprep.subr.mxu0 0.0
        %2196 = vmatpush1.msra.mxu0 0.0
        %2197 = vmatprep.subr.mxu0 0.0
        %2198 = vmatpush1.msra.mxu0 0.0
        %2199 = vmatprep.subr.mxu0 0.0
        %2200 = vmatpush1.msra.mxu0 0.0
        %2201 = vmatprep.subr.mxu0 0.0
        %2202 = vmatpush1.msra.mxu0 0.0
        %2203 = vmatprep.mubr.f32.mxu0 0.0
        %2204 = vmatmul.mubr.f32.gmra.mrb[0].mxu0 %v2134
        %v2205 = vpop.f32.mrb[0].mxu0
        %v2206 = vadd.f32 0.0, %v2205
        %v2207 = vpop.f32.mrb[0].mxu0
        %v2208 = vadd.f32 0.0, %v2207
        %2209 = vdwg.mxu0
        %2210 = vmatprep.subr.mxu0 %v810
        %2211 = vmatpush1.msra.mxu0 %v809
        %2212 = vmatprep.subr.mxu0 %v814
        %2213 = vmatpush1.msra.mxu0 %v813
        %2214 = vmatprep.subr.mxu0 %v818
        %2215 = vmatpush1.msra.mxu0 %v817
        %2216 = vmatprep.subr.mxu0 %v822
        %2217 = vmatpush1.msra.mxu0 %v821
        %2218 = vmatprep.subr.mxu0 %v826
        %2219 = vmatpush1.msra.mxu0 %v825
        %2220 = vmatprep.subr.mxu0 %v830
        %2221 = vmatpush1.msra.mxu0 %v829
        %2222 = vmatprep.subr.mxu0 %v834
        %2223 = vmatpush1.msra.mxu0 %v833
        %2224 = vmatprep.subr.mxu0 %v838
        %2225 = vmatpush1.msra.mxu0 %v837
        %2226 = vmatprep.subr.mxu0 %v842
        %2227 = vmatpush1.msra.mxu0 %v841
        %2228 = vmatprep.subr.mxu0 %v846
        %2229 = vmatpush1.msra.mxu0 %v845
        %2230 = vmatprep.subr.mxu0 %v850
        %2231 = vmatpush1.msra.mxu0 %v849
        %2232 = vmatprep.subr.mxu0 %v854
        %2233 = vmatpush1.msra.mxu0 %v853
        %2234 = vmatprep.subr.mxu0 %v858
        %2235 = vmatpush1.msra.mxu0 %v857
        %2236 = vmatprep.subr.mxu0 %v862
        %2237 = vmatpush1.msra.mxu0 %v861
        %2238 = vmatprep.subr.mxu0 %v866
        %2239 = vmatpush1.msra.mxu0 %v865
        %2240 = vmatprep.subr.mxu0 %v870
        %2241 = vmatpush1.msra.mxu0 %v869
        %2242 = vmatprep.subr.mxu0 0.0
        %2243 = vmatpush1.msra.mxu0 0.0
        %2244 = vmatprep.subr.mxu0 0.0
        %2245 = vmatpush1.msra.mxu0 0.0
        %2246 = vmatprep.subr.mxu0 0.0
        %2247 = vmatpush1.msra.mxu0 0.0
        %2248 = vmatprep.subr.mxu0 0.0
        %2249 = vmatpush1.msra.mxu0 0.0
        %2250 = vmatprep.subr.mxu0 0.0
        %2251 = vmatpush1.msra.mxu0 0.0
        %2252 = vmatprep.subr.mxu0 0.0
        %2253 = vmatpush1.msra.mxu0 0.0
        %2254 = vmatprep.subr.mxu0 0.0
        %2255 = vmatpush1.msra.mxu0 0.0
        %2256 = vmatprep.subr.mxu0 0.0
        %2257 = vmatpush1.msra.mxu0 0.0
        %2258 = vmatprep.subr.mxu0 0.0
        %2259 = vmatpush1.msra.mxu0 0.0
        %2260 = vmatprep.subr.mxu0 0.0
        %2261 = vmatpush1.msra.mxu0 0.0
        %2262 = vmatprep.subr.mxu0 0.0
        %2263 = vmatpush1.msra.mxu0 0.0
        %2264 = vmatprep.subr.mxu0 0.0
        %2265 = vmatpush1.msra.mxu0 0.0
        %2266 = vmatprep.subr.mxu0 0.0
        %2267 = vmatpush1.msra.mxu0 0.0
        %2268 = vmatprep.subr.mxu0 0.0
        %2269 = vmatpush1.msra.mxu0 0.0
        %2270 = vmatprep.subr.mxu0 0.0
        %2271 = vmatpush1.msra.mxu0 0.0
        %2272 = vmatprep.subr.mxu0 0.0
        %2273 = vmatpush1.msra.mxu0 0.0
        %2274 = vmatprep.mubr.f32.mxu0 0.0
        %2275 = vmatmul.mubr.f32.gmra.mrb[0].mxu0 %v2134
        %v2276 = vpop.f32.mrb[0].mxu0
        %v2277 = vadd.f32 0.0, %v2276
        %v2278 = vpop.f32.mrb[0].mxu0
        %v2279 = vadd.f32 0.0, %v2278
        %2280 = vdwg.mxu0
        %v2281 = vadd.f32 %v2135, %v2206
        %v2282 = vadd.f32 %v2136, %v2208
        %v2283 = vadd.f32 %v2137, %v2277
        %v2284 = vadd.f32 %v2138, %v2279
        %v2285 = vadd.f32 %v2281, %v1022
        %v2286 = vadd.f32 %v2282, %v1026
        %v2287 = vadd.f32 %v2283, %v1030
        %v2288 = vadd.f32 %v2284, %v1034
        %v2289 = vxor.u32 %v2285, 2147483648
        %v2290 = vxor.u32 %v2286, 2147483648
        %v2291 = vxor.u32 %v2287, 2147483648
        %v2292 = vmul.f32 %v2289, 1.442695
        %v2293 = vpow.pop %v2292
        %v2294 = vmul.f32 %v2290, 1.442695
        %v2295 = vpow.pop %v2294
        %v2296 = vmul.f32 %v2291, 1.442695
        %v2297 = vpow.pop %v2296
        %v2298 = vadd.f32 %v2293, 1.0
        %v2299 = vadd.f32 %v2295, 1.0
        %v2300 = vadd.f32 %v2297, 1.0
        %v2301 = vrcp.pop %v2298
        %v2302 = vmul.f32 1.0, %v2301
        %v2303 = vrcp.pop %v2299
        %v2304 = vmul.f32 1.0, %v2303
        %v2305 = vrcp.pop %v2300
        %v2306 = vmul.f32 1.0, %v2305
        %v2307 = vtanh.pop %v2288
        %v2308 = vmul.f32 %v2304, %v2132
        %v2309 = vmul.f32 %v2302, %v2307
        %v2310 = vadd.f32 %v2308, %v2309
        %v2311 = vtanh.pop %v2310
        %v2312 = vmul.f32 %v2306, %v2311
        %v2313 = vld [vmem:[#allocation2 + $0x100] sm:$0xff]
        %v2314 = vld [vmem:[#allocation2 + $0x108] sm:$0xff]
        %v2315 = vld [vmem:[#allocation2 + $0x110] sm:$0xff]
        %v2316 = vld [vmem:[#allocation2 + $0x118] sm:$0xff]
        %2317 = vmatprep.subr.mxu0 %v808
        %2318 = vmatpush1.msra.mxu0 %v807
        %2319 = vmatprep.subr.mxu0 %v812
        %2320 = vmatpush1.msra.mxu0 %v811
        %2321 = vmatprep.subr.mxu0 %v816
        %2322 = vmatpush1.msra.mxu0 %v815
        %2323 = vmatprep.subr.mxu0 %v820
        %2324 = vmatpush1.msra.mxu0 %v819
        %2325 = vmatprep.subr.mxu0 %v824
        %2326 = vmatpush1.msra.mxu0 %v823
        %2327 = vmatprep.subr.mxu0 %v828
        %2328 = vmatpush1.msra.mxu0 %v827
        %2329 = vmatprep.subr.mxu0 %v832
        %2330 = vmatpush1.msra.mxu0 %v831
        %2331 = vmatprep.subr.mxu0 %v836
        %2332 = vmatpush1.msra.mxu0 %v835
        %2333 = vmatprep.subr.mxu0 %v840
        %2334 = vmatpush1.msra.mxu0 %v839
        %2335 = vmatprep.subr.mxu0 %v844
        %2336 = vmatpush1.msra.mxu0 %v843
        %2337 = vmatprep.subr.mxu0 %v848
        %2338 = vmatpush1.msra.mxu0 %v847
        %2339 = vmatprep.subr.mxu0 %v852
        %2340 = vmatpush1.msra.mxu0 %v851
        %2341 = vmatprep.subr.mxu0 %v856
        %2342 = vmatpush1.msra.mxu0 %v855
        %2343 = vmatprep.subr.mxu0 %v860
        %2344 = vmatpush1.msra.mxu0 %v859
        %2345 = vmatprep.subr.mxu0 %v864
        %2346 = vmatpush1.msra.mxu0 %v863
        %2347 = vmatprep.subr.mxu0 %v868
        %2348 = vmatpush1.msra.mxu0 %v867
        %2349 = vmatprep.subr.mxu0 0.0
        %2350 = vmatpush1.msra.mxu0 0.0
        %2351 = vmatprep.subr.mxu0 0.0
        %2352 = vmatpush1.msra.mxu0 0.0
        %2353 = vmatprep.subr.mxu0 0.0
        %2354 = vmatpush1.msra.mxu0 0.0
        %2355 = vmatprep.subr.mxu0 0.0
        %2356 = vmatpush1.msra.mxu0 0.0
        %2357 = vmatprep.subr.mxu0 0.0
        %2358 = vmatpush1.msra.mxu0 0.0
        %2359 = vmatprep.subr.mxu0 0.0
        %2360 = vmatpush1.msra.mxu0 0.0
        %2361 = vmatprep.subr.mxu0 0.0
        %2362 = vmatpush1.msra.mxu0 0.0
        %2363 = vmatprep.subr.mxu0 0.0
        %2364 = vmatpush1.msra.mxu0 0.0
        %2365 = vmatprep.subr.mxu0 0.0
        %2366 = vmatpush1.msra.mxu0 0.0
        %2367 = vmatprep.subr.mxu0 0.0
        %2368 = vmatpush1.msra.mxu0 0.0
        %2369 = vmatprep.subr.mxu0 0.0
        %2370 = vmatpush1.msra.mxu0 0.0
        %2371 = vmatprep.subr.mxu0 0.0
        %2372 = vmatpush1.msra.mxu0 0.0
        %2373 = vmatprep.subr.mxu0 0.0
        %2374 = vmatpush1.msra.mxu0 0.0
        %2375 = vmatprep.subr.mxu0 0.0
        %2376 = vmatpush1.msra.mxu0 0.0
        %2377 = vmatprep.subr.mxu0 0.0
        %2378 = vmatpush1.msra.mxu0 0.0
        %2379 = vmatprep.subr.mxu0 0.0
        %2380 = vmatpush1.msra.mxu0 0.0
        %2381 = vmatprep.mubr.f32.mxu0 0.0
        %2382 = vmatmul.mubr.f32.gmra.mrb[0].mxu0 %v2312
        %v2383 = vpop.f32.mrb[0].mxu0
        %v2384 = vadd.f32 0.0, %v2383
        %v2385 = vpop.f32.mrb[0].mxu0
        %v2386 = vadd.f32 0.0, %v2385
        %2387 = vdwg.mxu0
        %2388 = vmatprep.subr.mxu0 %v810
        %2389 = vmatpush1.msra.mxu0 %v809
        %2390 = vmatprep.subr.mxu0 %v814
        %2391 = vmatpush1.msra.mxu0 %v813
        %2392 = vmatprep.subr.mxu0 %v818
        %2393 = vmatpush1.msra.mxu0 %v817
        %2394 = vmatprep.subr.mxu0 %v822
        %2395 = vmatpush1.msra.mxu0 %v821
        %2396 = vmatprep.subr.mxu0 %v826
        %2397 = vmatpush1.msra.mxu0 %v825
        %2398 = vmatprep.subr.mxu0 %v830
        %2399 = vmatpush1.msra.mxu0 %v829
        %2400 = vmatprep.subr.mxu0 %v834
        %2401 = vmatpush1.msra.mxu0 %v833
        %2402 = vmatprep.subr.mxu0 %v838
        %2403 = vmatpush1.msra.mxu0 %v837
        %2404 = vmatprep.subr.mxu0 %v842
        %2405 = vmatpush1.msra.mxu0 %v841
        %2406 = vmatprep.subr.mxu0 %v846
        %2407 = vmatpush1.msra.mxu0 %v845
        %2408 = vmatprep.subr.mxu0 %v850
        %2409 = vmatpush1.msra.mxu0 %v849
        %2410 = vmatprep.subr.mxu0 %v854
        %2411 = vmatpush1.msra.mxu0 %v853
        %2412 = vmatprep.subr.mxu0 %v858
        %2413 = vmatpush1.msra.mxu0 %v857
        %2414 = vmatprep.subr.mxu0 %v862
        %2415 = vmatpush1.msra.mxu0 %v861
        %2416 = vmatprep.subr.mxu0 %v866
        %2417 = vmatpush1.msra.mxu0 %v865
        %2418 = vmatprep.subr.mxu0 %v870
        %2419 = vmatpush1.msra.mxu0 %v869
        %2420 = vmatprep.subr.mxu0 0.0
        %2421 = vmatpush1.msra.mxu0 0.0
        %2422 = vmatprep.subr.mxu0 0.0
        %2423 = vmatpush1.msra.mxu0 0.0
        %2424 = vmatprep.subr.mxu0 0.0
        %2425 = vmatpush1.msra.mxu0 0.0
        %2426 = vmatprep.subr.mxu0 0.0
        %2427 = vmatpush1.msra.mxu0 0.0
        %2428 = vmatprep.subr.mxu0 0.0
        %2429 = vmatpush1.msra.mxu0 0.0
        %2430 = vmatprep.subr.mxu0 0.0
        %2431 = vmatpush1.msra.mxu0 0.0
        %2432 = vmatprep.subr.mxu0 0.0
        %2433 = vmatpush1.msra.mxu0 0.0
        %2434 = vmatprep.subr.mxu0 0.0
        %2435 = vmatpush1.msra.mxu0 0.0
        %2436 = vmatprep.subr.mxu0 0.0
        %2437 = vmatpush1.msra.mxu0 0.0
        %2438 = vmatprep.subr.mxu0 0.0
        %2439 = vmatpush1.msra.mxu0 0.0
        %2440 = vmatprep.subr.mxu0 0.0
        %2441 = vmatpush1.msra.mxu0 0.0
        %2442 = vmatprep.subr.mxu0 0.0
        %2443 = vmatpush1.msra.mxu0 0.0
        %2444 = vmatprep.subr.mxu0 0.0
        %2445 = vmatpush1.msra.mxu0 0.0
        %2446 = vmatprep.subr.mxu0 0.0
        %2447 = vmatpush1.msra.mxu0 0.0
        %2448 = vmatprep.subr.mxu0 0.0
        %2449 = vmatpush1.msra.mxu0 0.0
        %2450 = vmatprep.subr.mxu0 0.0
        %2451 = vmatpush1.msra.mxu0 0.0
        %2452 = vmatprep.mubr.f32.mxu0 0.0
        %2453 = vmatmul.mubr.f32.gmra.mrb[0].mxu0 %v2312
        %v2454 = vpop.f32.mrb[0].mxu0
        %v2455 = vadd.f32 0.0, %v2454
        %v2456 = vpop.f32.mrb[0].mxu0
        %v2457 = vadd.f32 0.0, %v2456
        %2458 = vdwg.mxu0
        %v2459 = vadd.f32 %v2313, %v2384
        %v2460 = vadd.f32 %v2314, %v2386
        %v2461 = vadd.f32 %v2315, %v2455
        %v2462 = vadd.f32 %v2316, %v2457
        %v2463 = vadd.f32 %v2459, %v1022
        %v2464 = vadd.f32 %v2460, %v1026
        %v2465 = vadd.f32 %v2461, %v1030
        %v2466 = vadd.f32 %v2462, %v1034
        %v2467 = vxor.u32 %v2463, 2147483648
        %v2468 = vxor.u32 %v2464, 2147483648
        %v2469 = vxor.u32 %v2465, 2147483648
        %v2470 = vmul.f32 %v2467, 1.442695
        %v2471 = vpow.pop %v2470
        %v2472 = vmul.f32 %v2468, 1.442695
        %v2473 = vpow.pop %v2472
        %v2474 = vmul.f32 %v2469, 1.442695
        %v2475 = vpow.pop %v2474
        %v2476 = vadd.f32 %v2471, 1.0
        %v2477 = vadd.f32 %v2473, 1.0
        %v2478 = vadd.f32 %v2475, 1.0
        %v2479 = vrcp.pop %v2476
        %v2480 = vmul.f32 1.0, %v2479
        %v2481 = vrcp.pop %v2477
        %v2482 = vmul.f32 1.0, %v2481
        %v2483 = vrcp.pop %v2478
        %v2484 = vmul.f32 1.0, %v2483
        %v2485 = vtanh.pop %v2466
        %v2486 = vmul.f32 %v2482, %v2310
        %v2487 = vmul.f32 %v2480, %v2485
        %v2488 = vadd.f32 %v2486, %v2487
        %v2489 = vtanh.pop %v2488
        %v2490 = vmul.f32 %v2484, %v2489
        %v2491 = vld [vmem:[#allocation2 + $0x120] sm:$0xff]
        %v2492 = vld [vmem:[#allocation2 + $0x128] sm:$0xff]
        %v2493 = vld [vmem:[#allocation2 + $0x130] sm:$0xff]
        %v2494 = vld [vmem:[#allocation2 + $0x138] sm:$0xff]
        %2495 = vmatprep.subr.mxu0 %v808
        %2496 = vmatpush1.msra.mxu0 %v807
        %2497 = vmatprep.subr.mxu0 %v812
        %2498 = vmatpush1.msra.mxu0 %v811
        %2499 = vmatprep.subr.mxu0 %v816
        %2500 = vmatpush1.msra.mxu0 %v815
        %2501 = vmatprep.subr.mxu0 %v820
        %2502 = vmatpush1.msra.mxu0 %v819
        %2503 = vmatprep.subr.mxu0 %v824
        %2504 = vmatpush1.msra.mxu0 %v823
        %2505 = vmatprep.subr.mxu0 %v828
        %2506 = vmatpush1.msra.mxu0 %v827
        %2507 = vmatprep.subr.mxu0 %v832
        %2508 = vmatpush1.msra.mxu0 %v831
        %2509 = vmatprep.subr.mxu0 %v836
        %2510 = vmatpush1.msra.mxu0 %v835
        %2511 = vmatprep.subr.mxu0 %v840
        %2512 = vmatpush1.msra.mxu0 %v839
        %2513 = vmatprep.subr.mxu0 %v844
        %2514 = vmatpush1.msra.mxu0 %v843
        %2515 = vmatprep.subr.mxu0 %v848
        %2516 = vmatpush1.msra.mxu0 %v847
        %2517 = vmatprep.subr.mxu0 %v852
        %2518 = vmatpush1.msra.mxu0 %v851
        %2519 = vmatprep.subr.mxu0 %v856
        %2520 = vmatpush1.msra.mxu0 %v855
        %2521 = vmatprep.subr.mxu0 %v860
        %2522 = vmatpush1.msra.mxu0 %v859
        %2523 = vmatprep.subr.mxu0 %v864
        %2524 = vmatpush1.msra.mxu0 %v863
        %2525 = vmatprep.subr.mxu0 %v868
        %2526 = vmatpush1.msra.mxu0 %v867
        %2527 = vmatprep.subr.mxu0 0.0
        %2528 = vmatpush1.msra.mxu0 0.0
        %2529 = vmatprep.subr.mxu0 0.0
        %2530 = vmatpush1.msra.mxu0 0.0
        %2531 = vmatprep.subr.mxu0 0.0
        %2532 = vmatpush1.msra.mxu0 0.0
        %2533 = vmatprep.subr.mxu0 0.0
        %2534 = vmatpush1.msra.mxu0 0.0
        %2535 = vmatprep.subr.mxu0 0.0
        %2536 = vmatpush1.msra.mxu0 0.0
        %2537 = vmatprep.subr.mxu0 0.0
        %2538 = vmatpush1.msra.mxu0 0.0
        %2539 = vmatprep.subr.mxu0 0.0
        %2540 = vmatpush1.msra.mxu0 0.0
        %2541 = vmatprep.subr.mxu0 0.0
        %2542 = vmatpush1.msra.mxu0 0.0
        %2543 = vmatprep.subr.mxu0 0.0
        %2544 = vmatpush1.msra.mxu0 0.0
        %2545 = vmatprep.subr.mxu0 0.0
        %2546 = vmatpush1.msra.mxu0 0.0
        %2547 = vmatprep.subr.mxu0 0.0
        %2548 = vmatpush1.msra.mxu0 0.0
        %2549 = vmatprep.subr.mxu0 0.0
        %2550 = vmatpush1.msra.mxu0 0.0
        %2551 = vmatprep.subr.mxu0 0.0
        %2552 = vmatpush1.msra.mxu0 0.0
        %2553 = vmatprep.subr.mxu0 0.0
        %2554 = vmatpush1.msra.mxu0 0.0
        %2555 = vmatprep.subr.mxu0 0.0
        %2556 = vmatpush1.msra.mxu0 0.0
        %2557 = vmatprep.subr.mxu0 0.0
        %2558 = vmatpush1.msra.mxu0 0.0
        %2559 = vmatprep.mubr.f32.mxu0 0.0
        %2560 = vmatmul.mubr.f32.gmra.mrb[0].mxu0 %v2490
        %v2561 = vpop.f32.mrb[0].mxu0
        %v2562 = vadd.f32 0.0, %v2561
        %v2563 = vpop.f32.mrb[0].mxu0
        %v2564 = vadd.f32 0.0, %v2563
        %2565 = vdwg.mxu0
        %2566 = vmatprep.subr.mxu0 %v810
        %2567 = vmatpush1.msra.mxu0 %v809
        %2568 = vmatprep.subr.mxu0 %v814
        %2569 = vmatpush1.msra.mxu0 %v813
        %2570 = vmatprep.subr.mxu0 %v818
        %2571 = vmatpush1.msra.mxu0 %v817
        %2572 = vmatprep.subr.mxu0 %v822
        %2573 = vmatpush1.msra.mxu0 %v821
        %2574 = vmatprep.subr.mxu0 %v826
        %2575 = vmatpush1.msra.mxu0 %v825
        %2576 = vmatprep.subr.mxu0 %v830
        %2577 = vmatpush1.msra.mxu0 %v829
        %2578 = vmatprep.subr.mxu0 %v834
        %2579 = vmatpush1.msra.mxu0 %v833
        %2580 = vmatprep.subr.mxu0 %v838
        %2581 = vmatpush1.msra.mxu0 %v837
        %2582 = vmatprep.subr.mxu0 %v842
        %2583 = vmatpush1.msra.mxu0 %v841
        %2584 = vmatprep.subr.mxu0 %v846
        %2585 = vmatpush1.msra.mxu0 %v845
        %2586 = vmatprep.subr.mxu0 %v850
        %2587 = vmatpush1.msra.mxu0 %v849
        %2588 = vmatprep.subr.mxu0 %v854
        %2589 = vmatpush1.msra.mxu0 %v853
        %2590 = vmatprep.subr.mxu0 %v858
        %2591 = vmatpush1.msra.mxu0 %v857
        %2592 = vmatprep.subr.mxu0 %v862
        %2593 = vmatpush1.msra.mxu0 %v861
        %2594 = vmatprep.subr.mxu0 %v866
        %2595 = vmatpush1.msra.mxu0 %v865
        %2596 = vmatprep.subr.mxu0 %v870
        %2597 = vmatpush1.msra.mxu0 %v869
        %2598 = vmatprep.subr.mxu0 0.0
        %2599 = vmatpush1.msra.mxu0 0.0
        %2600 = vmatprep.subr.mxu0 0.0
        %2601 = vmatpush1.msra.mxu0 0.0
        %2602 = vmatprep.subr.mxu0 0.0
        %2603 = vmatpush1.msra.mxu0 0.0
        %2604 = vmatprep.subr.mxu0 0.0
        %2605 = vmatpush1.msra.mxu0 0.0
        %2606 = vmatprep.subr.mxu0 0.0
        %2607 = vmatpush1.msra.mxu0 0.0
        %2608 = vmatprep.subr.mxu0 0.0
        %2609 = vmatpush1.msra.mxu0 0.0
        %2610 = vmatprep.subr.mxu0 0.0
        %2611 = vmatpush1.msra.mxu0 0.0
        %2612 = vmatprep.subr.mxu0 0.0
        %2613 = vmatpush1.msra.mxu0 0.0
        %2614 = vmatprep.subr.mxu0 0.0
        %2615 = vmatpush1.msra.mxu0 0.0
        %2616 = vmatprep.subr.mxu0 0.0
        %2617 = vmatpush1.msra.mxu0 0.0
        %2618 = vmatprep.subr.mxu0 0.0
        %2619 = vmatpush1.msra.mxu0 0.0
        %2620 = vmatprep.subr.mxu0 0.0
        %2621 = vmatpush1.msra.mxu0 0.0
        %2622 = vmatprep.subr.mxu0 0.0
        %2623 = vmatpush1.msra.mxu0 0.0
        %2624 = vmatprep.subr.mxu0 0.0
        %2625 = vmatpush1.msra.mxu0 0.0
        %2626 = vmatprep.subr.mxu0 0.0
        %2627 = vmatpush1.msra.mxu0 0.0
        %2628 = vmatprep.subr.mxu0 0.0
        %2629 = vmatpush1.msra.mxu0 0.0
        %2630 = vmatprep.mubr.f32.mxu0 0.0
        %2631 = vmatmul.mubr.f32.gmra.mrb[0].mxu0 %v2490
        %v2632 = vpop.f32.mrb[0].mxu0
        %v2633 = vadd.f32 0.0, %v2632
        %v2634 = vpop.f32.mrb[0].mxu0
        %v2635 = vadd.f32 0.0, %v2634
        %2636 = vdwg.mxu0
        %v2637 = vadd.f32 %v2491, %v2562
        %v2638 = vadd.f32 %v2492, %v2564
        %v2639 = vadd.f32 %v2493, %v2633
        %v2640 = vadd.f32 %v2494, %v2635
        %v2641 = vadd.f32 %v2637, %v1022
        %v2642 = vadd.f32 %v2638, %v1026
        %v2643 = vadd.f32 %v2639, %v1030
        %v2644 = vadd.f32 %v2640, %v1034
        %v2645 = vxor.u32 %v2641, 2147483648
        %v2646 = vxor.u32 %v2642, 2147483648
        %v2647 = vxor.u32 %v2643, 2147483648
        %v2648 = vmul.f32 %v2645, 1.442695
        %v2649 = vpow.pop %v2648
        %v2650 = vmul.f32 %v2646, 1.442695
        %v2651 = vpow.pop %v2650
        %v2652 = vmul.f32 %v2647, 1.442695
        %v2653 = vpow.pop %v2652
        %v2654 = vadd.f32 %v2649, 1.0
        %v2655 = vadd.f32 %v2651, 1.0
        %v2656 = vadd.f32 %v2653, 1.0
        %v2657 = vrcp.pop %v2654
        %v2658 = vmul.f32 1.0, %v2657
        %v2659 = vrcp.pop %v2655
        %v2660 = vmul.f32 1.0, %v2659
        %v2661 = vrcp.pop %v2656
        %v2662 = vmul.f32 1.0, %v2661
        %v2663 = vtanh.pop %v2644
        %v2664 = vmul.f32 %v2660, %v2488
        %v2665 = vmul.f32 %v2658, %v2663
        %v2666 = vadd.f32 %v2664, %v2665
        %v2667 = vtanh.pop %v2666
        %v2668 = vmul.f32 %v2662, %v2667
        %2669 = vst [vmem:[%s435] sm:$0xff] 0.0
        %v2670 = vld [vmem:[%s423] sm:$0xff]
        %v2671 = vld [vmem:[#allocation5] sm:$0xff]
        %v2672 = vld [vmem:[#allocation5 + $0x8] sm:$0xff]
        %v2673 = vld [vmem:[#allocation5 + $0x10] sm:$0xff]
        %v2674 = vld [vmem:[#allocation5 + $0x18] sm:$0xff]
        %v2675 = vld [vmem:[#allocation5 + $0x20] sm:$0xff]
        %v2676 = vld [vmem:[#allocation5 + $0x28] sm:$0xff]
        %v2677 = vld [vmem:[#allocation5 + $0x30] sm:$0xff]
        %v2678 = vld [vmem:[#allocation5 + $0x38] sm:$0xff]
        %v2679 = vld [vmem:[#allocation5 + $0x40] sm:$0xff]
        %v2680 = vld [vmem:[#allocation5 + $0x48] sm:$0xff]
        %v2681 = vld [vmem:[#allocation5 + $0x50] sm:$0xff]
        %v2682 = vld [vmem:[#allocation5 + $0x58] sm:$0xff]
        %v2683 = vld [vmem:[#allocation5 + $0x60] sm:$0xff]
        %v2684 = vld [vmem:[#allocation5 + $0x68] sm:$0xff]
        %v2685 = vld [vmem:[#allocation5 + $0x70] sm:$0xff]
        %v2686 = vld [vmem:[#allocation5 + $0x78] sm:$0xff]
        %v2687 = vld [vmem:[#allocation5 + $0x80] sm:$0xff]
        %v2688 = vld [vmem:[#allocation5 + $0x88] sm:$0xff]
        %v2689 = vld [vmem:[#allocation5 + $0x90] sm:$0xff]
        %v2690 = vld [vmem:[#allocation5 + $0x98] sm:$0xff]
        %v2691 = vld [vmem:[#allocation5 + $0xa0] sm:$0xff]
        %v2692 = vld [vmem:[#allocation5 + $0xa8] sm:$0xff]
        %v2693 = vld [vmem:[#allocation5 + $0xb0] sm:$0xff]
        %v2694 = vld [vmem:[#allocation5 + $0xb8] sm:$0xff]
        %v2695 = vld [vmem:[#allocation5 + $0xc0] sm:$0xff]
        %v2696 = vld [vmem:[#allocation5 + $0xc8] sm:$0xff]
        %v2697 = vld [vmem:[#allocation5 + $0xd0] sm:$0xff]
        %v2698 = vld [vmem:[#allocation5 + $0xd8] sm:$0xff]
        %v2699 = vld [vmem:[#allocation5 + $0xe0] sm:$0xff]
        %v2700 = vld [vmem:[#allocation5 + $0xe8] sm:$0xff]
        %v2701 = vld [vmem:[#allocation5 + $0xf0] sm:$0xff]
        %v2702 = vld [vmem:[#allocation5 + $0xf8] sm:$0xff]
        %v2703 = vld [vmem:[#allocation5 + $0x100] sm:$0xff]
        %v2704 = vld [vmem:[#allocation5 + $0x108] sm:$0xff]
        %v2705 = vld [vmem:[#allocation5 + $0x110] sm:$0xff]
        %v2706 = vld [vmem:[#allocation5 + $0x118] sm:$0xff]
        %v2707 = vld [vmem:[#allocation5 + $0x120] sm:$0xff]
        %v2708 = vld [vmem:[#allocation5 + $0x128] sm:$0xff]
        %v2709 = vld [vmem:[#allocation5 + $0x130] sm:$0xff]
        %v2710 = vld [vmem:[#allocation5 + $0x138] sm:$0xff]
        %v2711 = vld [vmem:[#allocation5 + $0x140] sm:$0xff]
        %v2712 = vld [vmem:[#allocation5 + $0x148] sm:$0xff]
        %v2713 = vld [vmem:[#allocation5 + $0x150] sm:$0xff]
        %v2714 = vld [vmem:[#allocation5 + $0x158] sm:$0xff]
        %v2715 = vld [vmem:[#allocation5 + $0x160] sm:$0xff]
        %v2716 = vld [vmem:[#allocation5 + $0x168] sm:$0xff]
        %v2717 = vld [vmem:[#allocation5 + $0x170] sm:$0xff]
        %v2718 = vld [vmem:[#allocation5 + $0x178] sm:$0xff]
        %v2719 = vld [vmem:[#allocation5 + $0x180] sm:$0xff]
        %v2720 = vld [vmem:[#allocation5 + $0x188] sm:$0xff]
        %v2721 = vld [vmem:[#allocation5 + $0x190] sm:$0xff]
        %v2722 = vld [vmem:[#allocation5 + $0x198] sm:$0xff]
        %v2723 = vld [vmem:[#allocation5 + $0x1a0] sm:$0xff]
        %v2724 = vld [vmem:[#allocation5 + $0x1a8] sm:$0xff]
        %v2725 = vld [vmem:[#allocation5 + $0x1b0] sm:$0xff]
        %v2726 = vld [vmem:[#allocation5 + $0x1b8] sm:$0xff]
        %v2727 = vld [vmem:[#allocation5 + $0x1c0] sm:$0xff]
        %v2728 = vld [vmem:[#allocation5 + $0x1c8] sm:$0xff]
        %v2729 = vld [vmem:[#allocation5 + $0x1d0] sm:$0xff]
        %v2730 = vld [vmem:[#allocation5 + $0x1d8] sm:$0xff]
        %v2731 = vld [vmem:[#allocation5 + $0x1e0] sm:$0xff]
        %v2732 = vld [vmem:[#allocation5 + $0x1e8] sm:$0xff]
        %v2733 = vld [vmem:[#allocation5 + $0x1f0] sm:$0xff]
        %v2734 = vld [vmem:[#allocation5 + $0x1f8] sm:$0xff]
        %v2735 = vld [vmem:[#allocation5 + $0x200] sm:$0xff]
        %v2736 = vld [vmem:[#allocation5 + $0x208] sm:$0xff]
        %v2737 = vld [vmem:[#allocation5 + $0x210] sm:$0xff]
        %v2738 = vld [vmem:[#allocation5 + $0x218] sm:$0xff]
        %v2739 = vld [vmem:[#allocation5 + $0x220] sm:$0xff]
        %v2740 = vld [vmem:[#allocation5 + $0x228] sm:$0xff]
        %v2741 = vld [vmem:[#allocation5 + $0x230] sm:$0xff]
        %v2742 = vld [vmem:[#allocation5 + $0x238] sm:$0xff]
        %v2743 = vld [vmem:[#allocation5 + $0x240] sm:$0xff]
        %v2744 = vld [vmem:[#allocation5 + $0x248] sm:$0xff]
        %v2745 = vld [vmem:[#allocation5 + $0x250] sm:$0xff]
        %v2746 = vld [vmem:[#allocation5 + $0x258] sm:$0xff]
        %v2747 = vld [vmem:[#allocation5 + $0x260] sm:$0xff]
        %v2748 = vld [vmem:[#allocation5 + $0x268] sm:$0xff]
        %v2749 = vld [vmem:[#allocation5 + $0x270] sm:$0xff]
        %v2750 = vld [vmem:[#allocation5 + $0x278] sm:$0xff]
        %v2751 = vld [vmem:[#allocation5 + $0x280] sm:$0xff]
        %v2752 = vld [vmem:[#allocation5 + $0x288] sm:$0xff]
        %v2753 = vld [vmem:[#allocation5 + $0x290] sm:$0xff]
        %v2754 = vld [vmem:[#allocation5 + $0x298] sm:$0xff]
        %v2755 = vld [vmem:[#allocation5 + $0x2a0] sm:$0xff]
        %v2756 = vld [vmem:[#allocation5 + $0x2a8] sm:$0xff]
        %v2757 = vld [vmem:[#allocation5 + $0x2b0] sm:$0xff]
        %v2758 = vld [vmem:[#allocation5 + $0x2b8] sm:$0xff]
        %v2759 = vld [vmem:[#allocation5 + $0x2c0] sm:$0xff]
        %v2760 = vld [vmem:[#allocation5 + $0x2c8] sm:$0xff]
        %v2761 = vld [vmem:[#allocation5 + $0x2d0] sm:$0xff]
        %v2762 = vld [vmem:[#allocation5 + $0x2d8] sm:$0xff]
        %v2763 = vld [vmem:[#allocation5 + $0x2e0] sm:$0xff]
        %v2764 = vld [vmem:[#allocation5 + $0x2e8] sm:$0xff]
        %v2765 = vld [vmem:[#allocation5 + $0x2f0] sm:$0xff]
        %v2766 = vld [vmem:[#allocation5 + $0x2f8] sm:$0xff]
        %v2767 = vld [vmem:[#allocation5 + $0x300] sm:$0xff]
        %v2768 = vld [vmem:[#allocation5 + $0x308] sm:$0xff]
        %v2769 = vld [vmem:[#allocation5 + $0x310] sm:$0xff]
        %v2770 = vld [vmem:[#allocation5 + $0x318] sm:$0xff]
        %v2771 = vld [vmem:[#allocation5 + $0x320] sm:$0xff]
        %v2772 = vld [vmem:[#allocation5 + $0x328] sm:$0xff]
        %v2773 = vld [vmem:[#allocation5 + $0x330] sm:$0xff]
        %v2774 = vld [vmem:[#allocation5 + $0x338] sm:$0xff]
        %v2775 = vld [vmem:[#allocation5 + $0x340] sm:$0xff]
        %v2776 = vld [vmem:[#allocation5 + $0x348] sm:$0xff]
        %v2777 = vld [vmem:[#allocation5 + $0x350] sm:$0xff]
        %v2778 = vld [vmem:[#allocation5 + $0x358] sm:$0xff]
        %v2779 = vld [vmem:[#allocation5 + $0x360] sm:$0xff]
        %v2780 = vld [vmem:[#allocation5 + $0x368] sm:$0xff]
        %v2781 = vld [vmem:[#allocation5 + $0x370] sm:$0xff]
        %v2782 = vld [vmem:[#allocation5 + $0x378] sm:$0xff]
        %v2783 = vld [vmem:[#allocation5 + $0x380] sm:$0xff]
        %v2784 = vld [vmem:[#allocation5 + $0x388] sm:$0xff]
        %v2785 = vld [vmem:[#allocation5 + $0x390] sm:$0xff]
        %v2786 = vld [vmem:[#allocation5 + $0x398] sm:$0xff]
        %v2787 = vld [vmem:[#allocation5 + $0x3a0] sm:$0xff]
        %v2788 = vld [vmem:[#allocation5 + $0x3a8] sm:$0xff]
        %v2789 = vld [vmem:[#allocation5 + $0x3b0] sm:$0xff]
        %v2790 = vld [vmem:[#allocation5 + $0x3b8] sm:$0xff]
        %v2791 = vld [vmem:[#allocation5 + $0x3c0] sm:$0xff]
        %v2792 = vld [vmem:[#allocation5 + $0x3c8] sm:$0xff]
        %v2793 = vld [vmem:[#allocation5 + $0x3d0] sm:$0xff]
        %v2794 = vld [vmem:[#allocation5 + $0x3d8] sm:$0xff]
        %v2795 = vld [vmem:[#allocation5 + $0x3e0] sm:$0xff]
        %v2796 = vld [vmem:[#allocation5 + $0x3e8] sm:$0xff]
        %v2797 = vld [vmem:[#allocation5 + $0x3f0] sm:$0xff]
        %v2798 = vld [vmem:[#allocation5 + $0x3f8] sm:$0xff]
        %v2799 = vld [vmem:[%s7] sm:$0xf]
        %v2801 = vlaneseq
        %v2802 = vshrl.u32 %v2801, 7
        %v2803 = vsub.s32 0, %v2802
        %v2804 = vrot.slane %v2799, %v2803
        %v2805 = vlaneseq
        %v2806 = vshrl.u32 %v2805, 7
        %v2807 = vsub.s32 1, %v2806
        %v2808 = vrot.slane %v2799, %v2807
        %v2809 = vlaneseq
        %v2810 = vshrl.u32 %v2809, 7
        %v2811 = vsub.s32 2, %v2810
        %v2812 = vrot.slane %v2799, %v2811
        %v2813 = vlaneseq
        %v2814 = vshrl.u32 %v2813, 7
        %v2815 = vsub.s32 3, %v2814
        %v2816 = vrot.slane %v2799, %v2815
        %2821 = vmatprep.subr.mxu0 %v2672
        %2822 = vmatpush1.msra.mxu0 %v2671
        %2823 = vmatprep.subr.mxu0 %v2676
        %2824 = vmatpush1.msra.mxu0 %v2675
        %2825 = vmatprep.subr.mxu0 %v2680
        %2826 = vmatpush1.msra.mxu0 %v2679
        %2827 = vmatprep.subr.mxu0 %v2684
        %2828 = vmatpush1.msra.mxu0 %v2683
        %2829 = vmatprep.subr.mxu0 %v2688
        %2830 = vmatpush1.msra.mxu0 %v2687
        %2831 = vmatprep.subr.mxu0 %v2692
        %2832 = vmatpush1.msra.mxu0 %v2691
        %2833 = vmatprep.subr.mxu0 %v2696
        %2834 = vmatpush1.msra.mxu0 %v2695
        %2835 = vmatprep.subr.mxu0 %v2700
        %2836 = vmatpush1.msra.mxu0 %v2699
        %2837 = vmatprep.subr.mxu0 %v2704
        %2838 = vmatpush1.msra.mxu0 %v2703
        %2839 = vmatprep.subr.mxu0 %v2708
        %2840 = vmatpush1.msra.mxu0 %v2707
        %2841 = vmatprep.subr.mxu0 %v2712
        %2842 = vmatpush1.msra.mxu0 %v2711
        %2843 = vmatprep.subr.mxu0 %v2716
        %2844 = vmatpush1.msra.mxu0 %v2715
        %2845 = vmatprep.subr.mxu0 %v2720
        %2846 = vmatpush1.msra.mxu0 %v2719
        %2847 = vmatprep.subr.mxu0 %v2724
        %2848 = vmatpush1.msra.mxu0 %v2723
        %2849 = vmatprep.subr.mxu0 %v2728
        %2850 = vmatpush1.msra.mxu0 %v2727
        %2851 = vmatprep.subr.mxu0 %v2732
        %2852 = vmatpush1.msra.mxu0 %v2731
        %2853 = vmatprep.subr.mxu0 %v2736
        %2854 = vmatpush1.msra.mxu0 %v2735
        %2855 = vmatprep.subr.mxu0 %v2740
        %2856 = vmatpush1.msra.mxu0 %v2739
        %2857 = vmatprep.subr.mxu0 %v2744
        %2858 = vmatpush1.msra.mxu0 %v2743
        %2859 = vmatprep.subr.mxu0 %v2748
        %2860 = vmatpush1.msra.mxu0 %v2747
        %2861 = vmatprep.subr.mxu0 %v2752
        %2862 = vmatpush1.msra.mxu0 %v2751
        %2863 = vmatprep.subr.mxu0 %v2756
        %2864 = vmatpush1.msra.mxu0 %v2755
        %2865 = vmatprep.subr.mxu0 %v2760
        %2866 = vmatpush1.msra.mxu0 %v2759
        %2867 = vmatprep.subr.mxu0 %v2764
        %2868 = vmatpush1.msra.mxu0 %v2763
        %2869 = vmatprep.subr.mxu0 %v2768
        %2870 = vmatpush1.msra.mxu0 %v2767
        %2871 = vmatprep.subr.mxu0 %v2772
        %2872 = vmatpush1.msra.mxu0 %v2771
        %2873 = vmatprep.subr.mxu0 %v2776
        %2874 = vmatpush1.msra.mxu0 %v2775
        %2875 = vmatprep.subr.mxu0 %v2780
        %2876 = vmatpush1.msra.mxu0 %v2779
        %2877 = vmatprep.subr.mxu0 %v2784
        %2878 = vmatpush1.msra.mxu0 %v2783
        %2879 = vmatprep.subr.mxu0 %v2788
        %2880 = vmatpush1.msra.mxu0 %v2787
        %2881 = vmatprep.subr.mxu0 %v2792
        %2882 = vmatpush1.msra.mxu0 %v2791
        %2883 = vmatprep.subr.mxu0 %v2796
        %2884 = vmatpush1.msra.mxu0 %v2795
        %2885 = vmatprep.mubr.f32.mxu0 %v2668
        %2886 = vmatmul.mubr.f32.gmra.mrb[0].mxu0 %v2670
        %v2887 = vpop.f32.mrb[0].mxu0
        %v2888 = vadd.f32 %v2804, %v2887
        %v2889 = vpop.f32.mrb[0].mxu0
        %v2890 = vadd.f32 %v2808, %v2889
        %2891 = vdwg.mxu0
        %2892 = vmatprep.subr.mxu0 %v2674
        %2893 = vmatpush1.msra.mxu0 %v2673
        %2894 = vmatprep.subr.mxu0 %v2678
        %2895 = vmatpush1.msra.mxu0 %v2677
        %2896 = vmatprep.subr.mxu0 %v2682
        %2897 = vmatpush1.msra.mxu0 %v2681
        %2898 = vmatprep.subr.mxu0 %v2686
        %2899 = vmatpush1.msra.mxu0 %v2685
        %2900 = vmatprep.subr.mxu0 %v2690
        %2901 = vmatpush1.msra.mxu0 %v2689
        %2902 = vmatprep.subr.mxu0 %v2694
        %2903 = vmatpush1.msra.mxu0 %v2693
        %2904 = vmatprep.subr.mxu0 %v2698
        %2905 = vmatpush1.msra.mxu0 %v2697
        %2906 = vmatprep.subr.mxu0 %v2702
        %2907 = vmatpush1.msra.mxu0 %v2701
        %2908 = vmatprep.subr.mxu0 %v2706
        %2909 = vmatpush1.msra.mxu0 %v2705
        %2910 = vmatprep.subr.mxu0 %v2710
        %2911 = vmatpush1.msra.mxu0 %v2709
        %2912 = vmatprep.subr.mxu0 %v2714
        %2913 = vmatpush1.msra.mxu0 %v2713
        %2914 = vmatprep.subr.mxu0 %v2718
        %2915 = vmatpush1.msra.mxu0 %v2717
        %2916 = vmatprep.subr.mxu0 %v2722
        %2917 = vmatpush1.msra.mxu0 %v2721
        %2918 = vmatprep.subr.mxu0 %v2726
        %2919 = vmatpush1.msra.mxu0 %v2725
        %2920 = vmatprep.subr.mxu0 %v2730
        %2921 = vmatpush1.msra.mxu0 %v2729
        %2922 = vmatprep.subr.mxu0 %v2734
        %2923 = vmatpush1.msra.mxu0 %v2733
        %2924 = vmatprep.subr.mxu0 %v2738
        %2925 = vmatpush1.msra.mxu0 %v2737
        %2926 = vmatprep.subr.mxu0 %v2742
        %2927 = vmatpush1.msra.mxu0 %v2741
        %2928 = vmatprep.subr.mxu0 %v2746
        %2929 = vmatpush1.msra.mxu0 %v2745
        %2930 = vmatprep.subr.mxu0 %v2750
        %2931 = vmatpush1.msra.mxu0 %v2749
        %2932 = vmatprep.subr.mxu0 %v2754
        %2933 = vmatpush1.msra.mxu0 %v2753
        %2934 = vmatprep.subr.mxu0 %v2758
        %2935 = vmatpush1.msra.mxu0 %v2757
        %2936 = vmatprep.subr.mxu0 %v2762
        %2937 = vmatpush1.msra.mxu0 %v2761
        %2938 = vmatprep.subr.mxu0 %v2766
        %2939 = vmatpush1.msra.mxu0 %v2765
        %2940 = vmatprep.subr.mxu0 %v2770
        %2941 = vmatpush1.msra.mxu0 %v2769
        %2942 = vmatprep.subr.mxu0 %v2774
        %2943 = vmatpush1.msra.mxu0 %v2773
        %2944 = vmatprep.subr.mxu0 %v2778
        %2945 = vmatpush1.msra.mxu0 %v2777
        %2946 = vmatprep.subr.mxu0 %v2782
        %2947 = vmatpush1.msra.mxu0 %v2781
        %2948 = vmatprep.subr.mxu0 %v2786
        %2949 = vmatpush1.msra.mxu0 %v2785
        %2950 = vmatprep.subr.mxu0 %v2790
        %2951 = vmatpush1.msra.mxu0 %v2789
        %2952 = vmatprep.subr.mxu0 %v2794
        %2953 = vmatpush1.msra.mxu0 %v2793
        %2954 = vmatprep.subr.mxu0 %v2798
        %2955 = vmatpush1.msra.mxu0 %v2797
        %2956 = vmatprep.mubr.f32.mxu0 %v2668
        %2957 = vmatmul.mubr.f32.gmra.mrb[0].mxu0 %v2670
        %v2958 = vpop.f32.mrb[0].mxu0
        %v2959 = vadd.f32 %v2812, %v2958
        %v2960 = vpop.f32.mrb[0].mxu0
        %v2961 = vadd.f32 %v2816, %v2960
        %2962 = vdwg.mxu0
        %v2963 = vxor.u32 %v2888, 2147483648
        %v2964 = vxor.u32 %v2890, 2147483648
        %v2965 = vxor.u32 %v2959, 2147483648
        %v2966 = vmul.f32 %v2963, 1.442695
        %v2967 = vpow.pop %v2966
        %v2968 = vmul.f32 %v2964, 1.442695
        %v2969 = vpow.pop %v2968
        %v2970 = vmul.f32 %v2965, 1.442695
        %v2971 = vpow.pop %v2970
        %v2972 = vadd.f32 %v2967, 1.0
        %v2973 = vadd.f32 %v2969, 1.0
        %v2974 = vadd.f32 %v2971, 1.0
        %v2975 = vrcp.pop %v2972
        %v2976 = vmul.f32 1.0, %v2975
        %v2977 = vrcp.pop %v2973
        %v2978 = vmul.f32 1.0, %v2977
        %v2979 = vrcp.pop %v2974
        %v2980 = vmul.f32 1.0, %v2979
        %v2981 = vtanh.pop %v2961
        %v2982 = vmul.f32 %v2978, %v2666
        %v2983 = vmul.f32 %v2976, %v2981
        %v2984 = vadd.f32 %v2982, %v2983
        %v2985 = vtanh.pop %v2984
        %v2986 = vmul.f32 %v2980, %v2985
        %v2987 = vld [vmem:[%s8] sm:$0xff]
        %v2988 = vld [vmem:[%s8 + $0x8] sm:$0xff]
        %v2989 = vld [vmem:[%s8 + $0x10] sm:$0xff]
        %v2990 = vld [vmem:[%s8 + $0x18] sm:$0xff]
        %v2991 = vld [vmem:[%s8 + $0x20] sm:$0xff]
        %v2992 = vld [vmem:[%s8 + $0x28] sm:$0xff]
        %v2993 = vld [vmem:[%s8 + $0x30] sm:$0xff]
        %v2994 = vld [vmem:[%s8 + $0x38] sm:$0xff]
        %v2995 = vld [vmem:[%s8 + $0x40] sm:$0xff]
        %v2996 = vld [vmem:[%s8 + $0x48] sm:$0xff]
        %v2997 = vld [vmem:[%s8 + $0x50] sm:$0xff]
        %v2998 = vld [vmem:[%s8 + $0x58] sm:$0xff]
        %v2999 = vld [vmem:[%s8 + $0x60] sm:$0xff]
        %v3000 = vld [vmem:[%s8 + $0x68] sm:$0xff]
        %v3001 = vld [vmem:[%s8 + $0x70] sm:$0xff]
        %v3002 = vld [vmem:[%s8 + $0x78] sm:$0xff]
        %v3003 = vld [vmem:[%s9] sm:$0x1]
        %v3005 = vlaneseq
        %v3006 = vshrl.u32 %v3005, 7
        %v3007 = vsub.s32 0, %v3006
        %v3008 = vrot.slane %v3003, %v3007
        %3010 = vmatprep.subr.mxu0 0.0
        %3011 = vmatpush1.msra.mxu0 %v2987
        %3012 = vmatprep.subr.mxu0 0.0
        %3013 = vmatpush1.msra.mxu0 %v2988
        %3014 = vmatprep.subr.mxu0 0.0
        %3015 = vmatpush1.msra.mxu0 %v2989
        %3016 = vmatprep.subr.mxu0 0.0
        %3017 = vmatpush1.msra.mxu0 %v2990
        %3018 = vmatprep.subr.mxu0 0.0
        %3019 = vmatpush1.msra.mxu0 %v2991
        %3020 = vmatprep.subr.mxu0 0.0
        %3021 = vmatpush1.msra.mxu0 %v2992
        %3022 = vmatprep.subr.mxu0 0.0
        %3023 = vmatpush1.msra.mxu0 %v2993
        %3024 = vmatprep.subr.mxu0 0.0
        %3025 = vmatpush1.msra.mxu0 %v2994
        %3026 = vmatprep.subr.mxu0 0.0
        %3027 = vmatpush1.msra.mxu0 %v2995
        %3028 = vmatprep.subr.mxu0 0.0
        %3029 = vmatpush1.msra.mxu0 %v2996
        %3030 = vmatprep.subr.mxu0 0.0
        %3031 = vmatpush1.msra.mxu0 %v2997
        %3032 = vmatprep.subr.mxu0 0.0
        %3033 = vmatpush1.msra.mxu0 %v2998
        %3034 = vmatprep.subr.mxu0 0.0
        %3035 = vmatpush1.msra.mxu0 %v2999
        %3036 = vmatprep.subr.mxu0 0.0
        %3037 = vmatpush1.msra.mxu0 %v3000
        %3038 = vmatprep.subr.mxu0 0.0
        %3039 = vmatpush1.msra.mxu0 %v3001
        %3040 = vmatprep.subr.mxu0 0.0
        %3041 = vmatpush1.msra.mxu0 %v3002
        %3042 = vmatprep.subr.mxu0 0.0
        %3043 = vmatpush1.msra.mxu0 0.0
        %3044 = vmatprep.subr.mxu0 0.0
        %3045 = vmatpush1.msra.mxu0 0.0
        %3046 = vmatprep.subr.mxu0 0.0
        %3047 = vmatpush1.msra.mxu0 0.0
        %3048 = vmatprep.subr.mxu0 0.0
        %3049 = vmatpush1.msra.mxu0 0.0
        %3050 = vmatprep.subr.mxu0 0.0
        %3051 = vmatpush1.msra.mxu0 0.0
        %3052 = vmatprep.subr.mxu0 0.0
        %3053 = vmatpush1.msra.mxu0 0.0
        %3054 = vmatprep.subr.mxu0 0.0
        %3055 = vmatpush1.msra.mxu0 0.0
        %3056 = vmatprep.subr.mxu0 0.0
        %3057 = vmatpush1.msra.mxu0 0.0
        %3058 = vmatprep.subr.mxu0 0.0
        %3059 = vmatpush1.msra.mxu0 0.0
        %3060 = vmatprep.subr.mxu0 0.0
        %3061 = vmatpush1.msra.mxu0 0.0
        %3062 = vmatprep.subr.mxu0 0.0
        %3063 = vmatpush1.msra.mxu0 0.0
        %3064 = vmatprep.subr.mxu0 0.0
        %3065 = vmatpush1.msra.mxu0 0.0
        %3066 = vmatprep.subr.mxu0 0.0
        %3067 = vmatpush1.msra.mxu0 0.0
        %3068 = vmatprep.subr.mxu0 0.0
        %3069 = vmatpush1.msra.mxu0 0.0
        %3070 = vmatprep.subr.mxu0 0.0
        %3071 = vmatpush1.msra.mxu0 0.0
        %3072 = vmatprep.subr.mxu0 0.0
        %3073 = vmatpush1.msra.mxu0 0.0
        %3074 = vmatprep.mubr.f32.mxu0 0.0
        %3075 = vmatmul.mubr.f32.gmra.mrb[0].mxu0 %v2986
        %v3076 = vpop.f32.mrb[0].mxu0
        %v3077 = vadd.f32 %v3008, %v3076
        %v3078 = vpop.f32.mrb[0].mxu0
        %3079 = vdwg.mxu0
        %3080 = vst [vmem:[%s435 + $0x8] sm:$0xff] %v3077
        %3081 = vmax.xlane.f32.xlu0 %v3077
        %v3082 = vpop.xlane.xlu0 %3081
        %vm3083 = vcmp.eq.f32.partialorder %v3077, %v3082
        %v3084 = vsel %vm3083, %v438, 128
        %v3085 = vand.u32 %v3084, 65535
        %v3086 = vshra.s32 %v3084, 16
        %v3087 = vcvt.s32.f32 %v3085
        %v3088 = vcvt.s32.f32 %v3086
        %3089 = vmin.xlane.f32.xlu0 %v3088
        %v3090 = vpop.xlane.xlu0 %3089
        %vm3091 = vcmp.eq.f32.partialorder %v3088, %v3090
        %v3092 = vsel %vm3091, %v3087, inf
        %3093 = vmin.xlane.f32.xlu0 %v3092
        %v3094 = vpop.xlane.xlu0 %3093
        %v3095 = vcvt.f32.s32 %v3094
        %v3096 = vcvt.f32.s32 %v3090
        %v3097 = vshll.u32 %v3096, 16
        %v3098 = vadd.s32 %v3097, %v3095
        %vm3099 = vcmp.eq.s32.totalorder %v438, %v3098
        %v3100 = vsel %vm3099, 1, 0
        %v3101 = vcvt.s32.f32 %v3100
        %v3102 = vld [vmem:[%s423 + $0x8] sm:$0xff]
        %v3103 = vld [vmem:[%s429 + $0x8] sm:$0xff]
        %vm3104 = vcmp.gt.f32.partialorder %v3103, 0.5
        %v3105 = vsel %vm3104, %v3102, %v3101
        %v3106 = vld [vmem:[#allocation5] sm:$0xff]
        %v3107 = vld [vmem:[#allocation5 + $0x8] sm:$0xff]
        %v3108 = vld [vmem:[#allocation5 + $0x10] sm:$0xff]
        %v3109 = vld [vmem:[#allocation5 + $0x18] sm:$0xff]
        %v3110 = vld [vmem:[#allocation5 + $0x20] sm:$0xff]
        %v3111 = vld [vmem:[#allocation5 + $0x28] sm:$0xff]
        %v3112 = vld [vmem:[#allocation5 + $0x30] sm:$0xff]
        %v3113 = vld [vmem:[#allocation5 + $0x38] sm:$0xff]
        %v3114 = vld [vmem:[#allocation5 + $0x40] sm:$0xff]
        %v3115 = vld [vmem:[#allocation5 + $0x48] sm:$0xff]
        %v3116 = vld [vmem:[#allocation5 + $0x50] sm:$0xff]
        %v3117 = vld [vmem:[#allocation5 + $0x58] sm:$0xff]
        %v3118 = vld [vmem:[#allocation5 + $0x60] sm:$0xff]
        %v3119 = vld [vmem:[#allocation5 + $0x68] sm:$0xff]
        %v3120 = vld [vmem:[#allocation5 + $0x70] sm:$0xff]
        %v3121 = vld [vmem:[#allocation5 + $0x78] sm:$0xff]
        %v3122 = vld [vmem:[#allocation5 + $0x80] sm:$0xff]
        %v3123 = vld [vmem:[#allocation5 + $0x88] sm:$0xff]
        %v3124 = vld [vmem:[#allocation5 + $0x90] sm:$0xff]
        %v3125 = vld [vmem:[#allocation5 + $0x98] sm:$0xff]
        %v3126 = vld [vmem:[#allocation5 + $0xa0] sm:$0xff]
        %v3127 = vld [vmem:[#allocation5 + $0xa8] sm:$0xff]
        %v3128 = vld [vmem:[#allocation5 + $0xb0] sm:$0xff]
        %v3129 = vld [vmem:[#allocation5 + $0xb8] sm:$0xff]
        %v3130 = vld [vmem:[#allocation5 + $0xc0] sm:$0xff]
        %v3131 = vld [vmem:[#allocation5 + $0xc8] sm:$0xff]
        %v3132 = vld [vmem:[#allocation5 + $0xd0] sm:$0xff]
        %v3133 = vld [vmem:[#allocation5 + $0xd8] sm:$0xff]
        %v3134 = vld [vmem:[#allocation5 + $0xe0] sm:$0xff]
        %v3135 = vld [vmem:[#allocation5 + $0xe8] sm:$0xff]
        %v3136 = vld [vmem:[#allocation5 + $0xf0] sm:$0xff]
        %v3137 = vld [vmem:[#allocation5 + $0xf8] sm:$0xff]
        %v3138 = vld [vmem:[#allocation5 + $0x100] sm:$0xff]
        %v3139 = vld [vmem:[#allocation5 + $0x108] sm:$0xff]
        %v3140 = vld [vmem:[#allocation5 + $0x110] sm:$0xff]
        %v3141 = vld [vmem:[#allocation5 + $0x118] sm:$0xff]
        %v3142 = vld [vmem:[#allocation5 + $0x120] sm:$0xff]
        %v3143 = vld [vmem:[#allocation5 + $0x128] sm:$0xff]
        %v3144 = vld [vmem:[#allocation5 + $0x130] sm:$0xff]
        %v3145 = vld [vmem:[#allocation5 + $0x138] sm:$0xff]
        %v3146 = vld [vmem:[#allocation5 + $0x140] sm:$0xff]
        %v3147 = vld [vmem:[#allocation5 + $0x148] sm:$0xff]
        %v3148 = vld [vmem:[#allocation5 + $0x150] sm:$0xff]
        %v3149 = vld [vmem:[#allocation5 + $0x158] sm:$0xff]
        %v3150 = vld [vmem:[#allocation5 + $0x160] sm:$0xff]
        %v3151 = vld [vmem:[#allocation5 + $0x168] sm:$0xff]
        %v3152 = vld [vmem:[#allocation5 + $0x170] sm:$0xff]
        %v3153 = vld [vmem:[#allocation5 + $0x178] sm:$0xff]
        %v3154 = vld [vmem:[#allocation5 + $0x180] sm:$0xff]
        %v3155 = vld [vmem:[#allocation5 + $0x188] sm:$0xff]
        %v3156 = vld [vmem:[#allocation5 + $0x190] sm:$0xff]
        %v3157 = vld [vmem:[#allocation5 + $0x198] sm:$0xff]
        %v3158 = vld [vmem:[#allocation5 + $0x1a0] sm:$0xff]
        %v3159 = vld [vmem:[#allocation5 + $0x1a8] sm:$0xff]
        %v3160 = vld [vmem:[#allocation5 + $0x1b0] sm:$0xff]
        %v3161 = vld [vmem:[#allocation5 + $0x1b8] sm:$0xff]
        %v3162 = vld [vmem:[#allocation5 + $0x1c0] sm:$0xff]
        %v3163 = vld [vmem:[#allocation5 + $0x1c8] sm:$0xff]
        %v3164 = vld [vmem:[#allocation5 + $0x1d0] sm:$0xff]
        %v3165 = vld [vmem:[#allocation5 + $0x1d8] sm:$0xff]
        %v3166 = vld [vmem:[#allocation5 + $0x1e0] sm:$0xff]
        %v3167 = vld [vmem:[#allocation5 + $0x1e8] sm:$0xff]
        %v3168 = vld [vmem:[#allocation5 + $0x1f0] sm:$0xff]
        %v3169 = vld [vmem:[#allocation5 + $0x1f8] sm:$0xff]
        %v3170 = vld [vmem:[#allocation5 + $0x200] sm:$0xff]
        %v3171 = vld [vmem:[#allocation5 + $0x208] sm:$0xff]
        %v3172 = vld [vmem:[#allocation5 + $0x210] sm:$0xff]
        %v3173 = vld [vmem:[#allocation5 + $0x218] sm:$0xff]
        %v3174 = vld [vmem:[#allocation5 + $0x220] sm:$0xff]
        %v3175 = vld [vmem:[#allocation5 + $0x228] sm:$0xff]
        %v3176 = vld [vmem:[#allocation5 + $0x230] sm:$0xff]
        %v3177 = vld [vmem:[#allocation5 + $0x238] sm:$0xff]
        %v3178 = vld [vmem:[#allocation5 + $0x240] sm:$0xff]
        %v3179 = vld [vmem:[#allocation5 + $0x248] sm:$0xff]
        %v3180 = vld [vmem:[#allocation5 + $0x250] sm:$0xff]
        %v3181 = vld [vmem:[#allocation5 + $0x258] sm:$0xff]
        %v3182 = vld [vmem:[#allocation5 + $0x260] sm:$0xff]
        %v3183 = vld [vmem:[#allocation5 + $0x268] sm:$0xff]
        %v3184 = vld [vmem:[#allocation5 + $0x270] sm:$0xff]
        %v3185 = vld [vmem:[#allocation5 + $0x278] sm:$0xff]
        %v3186 = vld [vmem:[#allocation5 + $0x280] sm:$0xff]
        %v3187 = vld [vmem:[#allocation5 + $0x288] sm:$0xff]
        %v3188 = vld [vmem:[#allocation5 + $0x290] sm:$0xff]
        %v3189 = vld [vmem:[#allocation5 + $0x298] sm:$0xff]
        %v3190 = vld [vmem:[#allocation5 + $0x2a0] sm:$0xff]
        %v3191 = vld [vmem:[#allocation5 + $0x2a8] sm:$0xff]
        %v3192 = vld [vmem:[#allocation5 + $0x2b0] sm:$0xff]
        %v3193 = vld [vmem:[#allocation5 + $0x2b8] sm:$0xff]
        %v3194 = vld [vmem:[#allocation5 + $0x2c0] sm:$0xff]
        %v3195 = vld [vmem:[#allocation5 + $0x2c8] sm:$0xff]
        %v3196 = vld [vmem:[#allocation5 + $0x2d0] sm:$0xff]
        %v3197 = vld [vmem:[#allocation5 + $0x2d8] sm:$0xff]
        %v3198 = vld [vmem:[#allocation5 + $0x2e0] sm:$0xff]
        %v3199 = vld [vmem:[#allocation5 + $0x2e8] sm:$0xff]
        %v3200 = vld [vmem:[#allocation5 + $0x2f0] sm:$0xff]
        %v3201 = vld [vmem:[#allocation5 + $0x2f8] sm:$0xff]
        %v3202 = vld [vmem:[#allocation5 + $0x300] sm:$0xff]
        %v3203 = vld [vmem:[#allocation5 + $0x308] sm:$0xff]
        %v3204 = vld [vmem:[#allocation5 + $0x310] sm:$0xff]
        %v3205 = vld [vmem:[#allocation5 + $0x318] sm:$0xff]
        %v3206 = vld [vmem:[#allocation5 + $0x320] sm:$0xff]
        %v3207 = vld [vmem:[#allocation5 + $0x328] sm:$0xff]
        %v3208 = vld [vmem:[#allocation5 + $0x330] sm:$0xff]
        %v3209 = vld [vmem:[#allocation5 + $0x338] sm:$0xff]
        %v3210 = vld [vmem:[#allocation5 + $0x340] sm:$0xff]
        %v3211 = vld [vmem:[#allocation5 + $0x348] sm:$0xff]
        %v3212 = vld [vmem:[#allocation5 + $0x350] sm:$0xff]
        %v3213 = vld [vmem:[#allocation5 + $0x358] sm:$0xff]
        %v3214 = vld [vmem:[#allocation5 + $0x360] sm:$0xff]
        %v3215 = vld [vmem:[#allocation5 + $0x368] sm:$0xff]
        %v3216 = vld [vmem:[#allocation5 + $0x370] sm:$0xff]
        %v3217 = vld [vmem:[#allocation5 + $0x378] sm:$0xff]
        %v3218 = vld [vmem:[#allocation5 + $0x380] sm:$0xff]
        %v3219 = vld [vmem:[#allocation5 + $0x388] sm:$0xff]
        %v3220 = vld [vmem:[#allocation5 + $0x390] sm:$0xff]
        %v3221 = vld [vmem:[#allocation5 + $0x398] sm:$0xff]
        %v3222 = vld [vmem:[#allocation5 + $0x3a0] sm:$0xff]
        %v3223 = vld [vmem:[#allocation5 + $0x3a8] sm:$0xff]
        %v3224 = vld [vmem:[#allocation5 + $0x3b0] sm:$0xff]
        %v3225 = vld [vmem:[#allocation5 + $0x3b8] sm:$0xff]
        %v3226 = vld [vmem:[#allocation5 + $0x3c0] sm:$0xff]
        %v3227 = vld [vmem:[#allocation5 + $0x3c8] sm:$0xff]
        %v3228 = vld [vmem:[#allocation5 + $0x3d0] sm:$0xff]
        %v3229 = vld [vmem:[#allocation5 + $0x3d8] sm:$0xff]
        %v3230 = vld [vmem:[#allocation5 + $0x3e0] sm:$0xff]
        %v3231 = vld [vmem:[#allocation5 + $0x3e8] sm:$0xff]
        %v3232 = vld [vmem:[#allocation5 + $0x3f0] sm:$0xff]
        %v3233 = vld [vmem:[#allocation5 + $0x3f8] sm:$0xff]
        %v3234 = vld [vmem:[%s7] sm:$0xf]
        %v3236 = vlaneseq
        %v3237 = vshrl.u32 %v3236, 7
        %v3238 = vsub.s32 0, %v3237
        %v3239 = vrot.slane %v3234, %v3238
        %v3240 = vlaneseq
        %v3241 = vshrl.u32 %v3240, 7
        %v3242 = vsub.s32 1, %v3241
        %v3243 = vrot.slane %v3234, %v3242
        %v3244 = vlaneseq
        %v3245 = vshrl.u32 %v3244, 7
        %v3246 = vsub.s32 2, %v3245
        %v3247 = vrot.slane %v3234, %v3246
        %v3248 = vlaneseq
        %v3249 = vshrl.u32 %v3248, 7
        %v3250 = vsub.s32 3, %v3249
        %v3251 = vrot.slane %v3234, %v3250
        %3256 = vmatprep.subr.mxu0 %v3107
        %3257 = vmatpush1.msra.mxu0 %v3106
        %3258 = vmatprep.subr.mxu0 %v3111
        %3259 = vmatpush1.msra.mxu0 %v3110
        %3260 = vmatprep.subr.mxu0 %v3115
        %3261 = vmatpush1.msra.mxu0 %v3114
        %3262 = vmatprep.subr.mxu0 %v3119
        %3263 = vmatpush1.msra.mxu0 %v3118
        %3264 = vmatprep.subr.mxu0 %v3123
        %3265 = vmatpush1.msra.mxu0 %v3122
        %3266 = vmatprep.subr.mxu0 %v3127
        %3267 = vmatpush1.msra.mxu0 %v3126
        %3268 = vmatprep.subr.mxu0 %v3131
        %3269 = vmatpush1.msra.mxu0 %v3130
        %3270 = vmatprep.subr.mxu0 %v3135
        %3271 = vmatpush1.msra.mxu0 %v3134
        %3272 = vmatprep.subr.mxu0 %v3139
        %3273 = vmatpush1.msra.mxu0 %v3138
        %3274 = vmatprep.subr.mxu0 %v3143
        %3275 = vmatpush1.msra.mxu0 %v3142
        %3276 = vmatprep.subr.mxu0 %v3147
        %3277 = vmatpush1.msra.mxu0 %v3146
        %3278 = vmatprep.subr.mxu0 %v3151
        %3279 = vmatpush1.msra.mxu0 %v3150
        %3280 = vmatprep.subr.mxu0 %v3155
        %3281 = vmatpush1.msra.mxu0 %v3154
        %3282 = vmatprep.subr.mxu0 %v3159
        %3283 = vmatpush1.msra.mxu0 %v3158
        %3284 = vmatprep.subr.mxu0 %v3163
        %3285 = vmatpush1.msra.mxu0 %v3162
        %3286 = vmatprep.subr.mxu0 %v3167
        %3287 = vmatpush1.msra.mxu0 %v3166
        %3288 = vmatprep.subr.mxu0 %v3171
        %3289 = vmatpush1.msra.mxu0 %v3170
        %3290 = vmatprep.subr.mxu0 %v3175
        %3291 = vmatpush1.msra.mxu0 %v3174
        %3292 = vmatprep.subr.mxu0 %v3179
        %3293 = vmatpush1.msra.mxu0 %v3178
        %3294 = vmatprep.subr.mxu0 %v3183
        %3295 = vmatpush1.msra.mxu0 %v3182
        %3296 = vmatprep.subr.mxu0 %v3187
        %3297 = vmatpush1.msra.mxu0 %v3186
        %3298 = vmatprep.subr.mxu0 %v3191
        %3299 = vmatpush1.msra.mxu0 %v3190
        %3300 = vmatprep.subr.mxu0 %v3195
        %3301 = vmatpush1.msra.mxu0 %v3194
        %3302 = vmatprep.subr.mxu0 %v3199
        %3303 = vmatpush1.msra.mxu0 %v3198
        %3304 = vmatprep.subr.mxu0 %v3203
        %3305 = vmatpush1.msra.mxu0 %v3202
        %3306 = vmatprep.subr.mxu0 %v3207
        %3307 = vmatpush1.msra.mxu0 %v3206
        %3308 = vmatprep.subr.mxu0 %v3211
        %3309 = vmatpush1.msra.mxu0 %v3210
        %3310 = vmatprep.subr.mxu0 %v3215
        %3311 = vmatpush1.msra.mxu0 %v3214
        %3312 = vmatprep.subr.mxu0 %v3219
        %3313 = vmatpush1.msra.mxu0 %v3218
        %3314 = vmatprep.subr.mxu0 %v3223
        %3315 = vmatpush1.msra.mxu0 %v3222
        %3316 = vmatprep.subr.mxu0 %v3227
        %3317 = vmatpush1.msra.mxu0 %v3226
        %3318 = vmatprep.subr.mxu0 %v3231
        %3319 = vmatpush1.msra.mxu0 %v3230
        %3320 = vmatprep.mubr.f32.mxu0 %v2986
        %3321 = vmatmul.mubr.f32.gmra.mrb[0].mxu0 %v3105
        %v3322 = vpop.f32.mrb[0].mxu0
        %v3323 = vadd.f32 %v3239, %v3322
        %v3324 = vpop.f32.mrb[0].mxu0
        %v3325 = vadd.f32 %v3243, %v3324
        %3326 = vdwg.mxu0
        %3327 = vmatprep.subr.mxu0 %v3109
        %3328 = vmatpush1.msra.mxu0 %v3108
        %3329 = vmatprep.subr.mxu0 %v3113
        %3330 = vmatpush1.msra.mxu0 %v3112
        %3331 = vmatprep.subr.mxu0 %v3117
        %3332 = vmatpush1.msra.mxu0 %v3116
        %3333 = vmatprep.subr.mxu0 %v3121
        %3334 = vmatpush1.msra.mxu0 %v3120
        %3335 = vmatprep.subr.mxu0 %v3125
        %3336 = vmatpush1.msra.mxu0 %v3124
        %3337 = vmatprep.subr.mxu0 %v3129
        %3338 = vmatpush1.msra.mxu0 %v3128
        %3339 = vmatprep.subr.mxu0 %v3133
        %3340 = vmatpush1.msra.mxu0 %v3132
        %3341 = vmatprep.subr.mxu0 %v3137
        %3342 = vmatpush1.msra.mxu0 %v3136
        %3343 = vmatprep.subr.mxu0 %v3141
        %3344 = vmatpush1.msra.mxu0 %v3140
        %3345 = vmatprep.subr.mxu0 %v3145
        %3346 = vmatpush1.msra.mxu0 %v3144
        %3347 = vmatprep.subr.mxu0 %v3149
        %3348 = vmatpush1.msra.mxu0 %v3148
        %3349 = vmatprep.subr.mxu0 %v3153
        %3350 = vmatpush1.msra.mxu0 %v3152
        %3351 = vmatprep.subr.mxu0 %v3157
        %3352 = vmatpush1.msra.mxu0 %v3156
        %3353 = vmatprep.subr.mxu0 %v3161
        %3354 = vmatpush1.msra.mxu0 %v3160
        %3355 = vmatprep.subr.mxu0 %v3165
        %3356 = vmatpush1.msra.mxu0 %v3164
        %3357 = vmatprep.subr.mxu0 %v3169
        %3358 = vmatpush1.msra.mxu0 %v3168
        %3359 = vmatprep.subr.mxu0 %v3173
        %3360 = vmatpush1.msra.mxu0 %v3172
        %3361 = vmatprep.subr.mxu0 %v3177
        %3362 = vmatpush1.msra.mxu0 %v3176
        %3363 = vmatprep.subr.mxu0 %v3181
        %3364 = vmatpush1.msra.mxu0 %v3180
        %3365 = vmatprep.subr.mxu0 %v3185
        %3366 = vmatpush1.msra.mxu0 %v3184
        %3367 = vmatprep.subr.mxu0 %v3189
        %3368 = vmatpush1.msra.mxu0 %v3188
        %3369 = vmatprep.subr.mxu0 %v3193
        %3370 = vmatpush1.msra.mxu0 %v3192
        %3371 = vmatprep.subr.mxu0 %v3197
        %3372 = vmatpush1.msra.mxu0 %v3196
        %3373 = vmatprep.subr.mxu0 %v3201
        %3374 = vmatpush1.msra.mxu0 %v3200
        %3375 = vmatprep.subr.mxu0 %v3205
        %3376 = vmatpush1.msra.mxu0 %v3204
        %3377 = vmatprep.subr.mxu0 %v3209
        %3378 = vmatpush1.msra.mxu0 %v3208
        %3379 = vmatprep.subr.mxu0 %v3213
        %3380 = vmatpush1.msra.mxu0 %v3212
        %3381 = vmatprep.subr.mxu0 %v3217
        %3382 = vmatpush1.msra.mxu0 %v3216
        %3383 = vmatprep.subr.mxu0 %v3221
        %3384 = vmatpush1.msra.mxu0 %v3220
        %3385 = vmatprep.subr.mxu0 %v3225
        %3386 = vmatpush1.msra.mxu0 %v3224
        %3387 = vmatprep.subr.mxu0 %v3229
        %3388 = vmatpush1.msra.mxu0 %v3228
        %3389 = vmatprep.subr.mxu0 %v3233
        %3390 = vmatpush1.msra.mxu0 %v3232
        %3391 = vmatprep.mubr.f32.mxu0 %v2986
        %3392 = vmatmul.mubr.f32.gmra.mrb[0].mxu0 %v3105
        %v3393 = vpop.f32.mrb[0].mxu0
        %v3394 = vadd.f32 %v3247, %v3393
        %v3395 = vpop.f32.mrb[0].mxu0
        %v3396 = vadd.f32 %v3251, %v3395
        %3397 = vdwg.mxu0
        %v3398 = vxor.u32 %v3323, 2147483648
        %v3399 = vxor.u32 %v3325, 2147483648
        %v3400 = vxor.u32 %v3394, 2147483648
        %v3401 = vmul.f32 %v3398, 1.442695
        %v3402 = vpow.pop %v3401
        %v3403 = vmul.f32 %v3399, 1.442695
        %v3404 = vpow.pop %v3403
        %v3405 = vmul.f32 %v3400, 1.442695
        %v3406 = vpow.pop %v3405
        %v3407 = vadd.f32 %v3402, 1.0
        %v3408 = vadd.f32 %v3404, 1.0
        %v3409 = vadd.f32 %v3406, 1.0
        %v3410 = vrcp.pop %v3407
        %v3411 = vmul.f32 1.0, %v3410
        %v3412 = vrcp.pop %v3408
        %v3413 = vmul.f32 1.0, %v3412
        %v3414 = vrcp.pop %v3409
        %v3415 = vmul.f32 1.0, %v3414
        %v3416 = vtanh.pop %v3396
        %v3417 = vmul.f32 %v3413, %v2984
        %v3418 = vmul.f32 %v3411, %v3416
        %v3419 = vadd.f32 %v3417, %v3418
        %v3420 = vtanh.pop %v3419
        %v3421 = vmul.f32 %v3415, %v3420
        %v3422 = vld [vmem:[%s8] sm:$0xff]
        %v3423 = vld [vmem:[%s8 + $0x8] sm:$0xff]
        %v3424 = vld [vmem:[%s8 + $0x10] sm:$0xff]
        %v3425 = vld [vmem:[%s8 + $0x18] sm:$0xff]
        %v3426 = vld [vmem:[%s8 + $0x20] sm:$0xff]
        %v3427 = vld [vmem:[%s8 + $0x28] sm:$0xff]
        %v3428 = vld [vmem:[%s8 + $0x30] sm:$0xff]
        %v3429 = vld [vmem:[%s8 + $0x38] sm:$0xff]
        %v3430 = vld [vmem:[%s8 + $0x40] sm:$0xff]
        %v3431 = vld [vmem:[%s8 + $0x48] sm:$0xff]
        %v3432 = vld [vmem:[%s8 + $0x50] sm:$0xff]
        %v3433 = vld [vmem:[%s8 + $0x58] sm:$0xff]
        %v3434 = vld [vmem:[%s8 + $0x60] sm:$0xff]
        %v3435 = vld [vmem:[%s8 + $0x68] sm:$0xff]
        %v3436 = vld [vmem:[%s8 + $0x70] sm:$0xff]
        %v3437 = vld [vmem:[%s8 + $0x78] sm:$0xff]
        %v3438 = vld [vmem:[%s9] sm:$0x1]
        %v3440 = vlaneseq
        %v3441 = vshrl.u32 %v3440, 7
        %v3442 = vsub.s32 0, %v3441
        %v3443 = vrot.slane %v3438, %v3442
        %3445 = vmatprep.subr.mxu0 0.0
        %3446 = vmatpush1.msra.mxu0 %v3422
        %3447 = vmatprep.subr.mxu0 0.0
        %3448 = vmatpush1.msra.mxu0 %v3423
        %3449 = vmatprep.subr.mxu0 0.0
        %3450 = vmatpush1.msra.mxu0 %v3424
        %3451 = vmatprep.subr.mxu0 0.0
        %3452 = vmatpush1.msra.mxu0 %v3425
        %3453 = vmatprep.subr.mxu0 0.0
        %3454 = vmatpush1.msra.mxu0 %v3426
        %3455 = vmatprep.subr.mxu0 0.0
        %3456 = vmatpush1.msra.mxu0 %v3427
        %3457 = vmatprep.subr.mxu0 0.0
        %3458 = vmatpush1.msra.mxu0 %v3428
        %3459 = vmatprep.subr.mxu0 0.0
        %3460 = vmatpush1.msra.mxu0 %v3429
        %3461 = vmatprep.subr.mxu0 0.0
        %3462 = vmatpush1.msra.mxu0 %v3430
        %3463 = vmatprep.subr.mxu0 0.0
        %3464 = vmatpush1.msra.mxu0 %v3431
        %3465 = vmatprep.subr.mxu0 0.0
        %3466 = vmatpush1.msra.mxu0 %v3432
        %3467 = vmatprep.subr.mxu0 0.0
        %3468 = vmatpush1.msra.mxu0 %v3433
        %3469 = vmatprep.subr.mxu0 0.0
        %3470 = vmatpush1.msra.mxu0 %v3434
        %3471 = vmatprep.subr.mxu0 0.0
        %3472 = vmatpush1.msra.mxu0 %v3435
        %3473 = vmatprep.subr.mxu0 0.0
        %3474 = vmatpush1.msra.mxu0 %v3436
        %3475 = vmatprep.subr.mxu0 0.0
        %3476 = vmatpush1.msra.mxu0 %v3437
        %3477 = vmatprep.subr.mxu0 0.0
        %3478 = vmatpush1.msra.mxu0 0.0
        %3479 = vmatprep.subr.mxu0 0.0
        %3480 = vmatpush1.msra.mxu0 0.0
        %3481 = vmatprep.subr.mxu0 0.0
        %3482 = vmatpush1.msra.mxu0 0.0
        %3483 = vmatprep.subr.mxu0 0.0
        %3484 = vmatpush1.msra.mxu0 0.0
        %3485 = vmatprep.subr.mxu0 0.0
        %3486 = vmatpush1.msra.mxu0 0.0
        %3487 = vmatprep.subr.mxu0 0.0
        %3488 = vmatpush1.msra.mxu0 0.0
        %3489 = vmatprep.subr.mxu0 0.0
        %3490 = vmatpush1.msra.mxu0 0.0
        %3491 = vmatprep.subr.mxu0 0.0
        %3492 = vmatpush1.msra.mxu0 0.0
        %3493 = vmatprep.subr.mxu0 0.0
        %3494 = vmatpush1.msra.mxu0 0.0
        %3495 = vmatprep.subr.mxu0 0.0
        %3496 = vmatpush1.msra.mxu0 0.0
        %3497 = vmatprep.subr.mxu0 0.0
        %3498 = vmatpush1.msra.mxu0 0.0
        %3499 = vmatprep.subr.mxu0 0.0
        %3500 = vmatpush1.msra.mxu0 0.0
        %3501 = vmatprep.subr.mxu0 0.0
        %3502 = vmatpush1.msra.mxu0 0.0
        %3503 = vmatprep.subr.mxu0 0.0
        %3504 = vmatpush1.msra.mxu0 0.0
        %3505 = vmatprep.subr.mxu0 0.0
        %3506 = vmatpush1.msra.mxu0 0.0
        %3507 = vmatprep.subr.mxu0 0.0
        %3508 = vmatpush1.msra.mxu0 0.0
        %3509 = vmatprep.mubr.f32.mxu0 0.0
        %3510 = vmatmul.mubr.f32.gmra.mrb[0].mxu0 %v3421
        %v3511 = vpop.f32.mrb[0].mxu0
        %v3512 = vadd.f32 %v3443, %v3511
        %v3513 = vpop.f32.mrb[0].mxu0
        %3514 = vdwg.mxu0
        %3515 = vst [vmem:[%s435 + $0x10] sm:$0xff] %v3512
        %3516 = vmax.xlane.f32.xlu0 %v3512
        %v3517 = vpop.xlane.xlu0 %3516
        %vm3518 = vcmp.eq.f32.partialorder %v3512, %v3517
        %v3519 = vsel %vm3518, %v438, 128
        %v3520 = vand.u32 %v3519, 65535
        %v3521 = vshra.s32 %v3519, 16
        %v3522 = vcvt.s32.f32 %v3520
        %v3523 = vcvt.s32.f32 %v3521
        %3524 = vmin.xlane.f32.xlu0 %v3523
        %v3525 = vpop.xlane.xlu0 %3524
        %vm3526 = vcmp.eq.f32.partialorder %v3523, %v3525
        %v3527 = vsel %vm3526, %v3522, inf
        %3528 = vmin.xlane.f32.xlu0 %v3527
        %v3529 = vpop.xlane.xlu0 %3528
        %v3530 = vcvt.f32.s32 %v3529
        %v3531 = vcvt.f32.s32 %v3525
        %v3532 = vshll.u32 %v3531, 16
        %v3533 = vadd.s32 %v3532, %v3530
        %vm3534 = vcmp.eq.s32.totalorder %v438, %v3533
        %v3535 = vsel %vm3534, 1, 0
        %v3536 = vcvt.s32.f32 %v3535
        %v3537 = vld [vmem:[%s423 + $0x10] sm:$0xff]
        %v3538 = vld [vmem:[%s429 + $0x10] sm:$0xff]
        %vm3539 = vcmp.gt.f32.partialorder %v3538, 0.5
        %v3540 = vsel %vm3539, %v3537, %v3536
        %v3541 = vld [vmem:[#allocation5] sm:$0xff]
        %v3542 = vld [vmem:[#allocation5 + $0x8] sm:$0xff]
        %v3543 = vld [vmem:[#allocation5 + $0x10] sm:$0xff]
        %v3544 = vld [vmem:[#allocation5 + $0x18] sm:$0xff]
        %v3545 = vld [vmem:[#allocation5 + $0x20] sm:$0xff]
        %v3546 = vld [vmem:[#allocation5 + $0x28] sm:$0xff]
        %v3547 = vld [vmem:[#allocation5 + $0x30] sm:$0xff]
        %v3548 = vld [vmem:[#allocation5 + $0x38] sm:$0xff]
        %v3549 = vld [vmem:[#allocation5 + $0x40] sm:$0xff]
        %v3550 = vld [vmem:[#allocation5 + $0x48] sm:$0xff]
        %v3551 = vld [vmem:[#allocation5 + $0x50] sm:$0xff]
        %v3552 = vld [vmem:[#allocation5 + $0x58] sm:$0xff]
        %v3553 = vld [vmem:[#allocation5 + $0x60] sm:$0xff]
        %v3554 = vld [vmem:[#allocation5 + $0x68] sm:$0xff]
        %v3555 = vld [vmem:[#allocation5 + $0x70] sm:$0xff]
        %v3556 = vld [vmem:[#allocation5 + $0x78] sm:$0xff]
        %v3557 = vld [vmem:[#allocation5 + $0x80] sm:$0xff]
        %v3558 = vld [vmem:[#allocation5 + $0x88] sm:$0xff]
        %v3559 = vld [vmem:[#allocation5 + $0x90] sm:$0xff]
        %v3560 = vld [vmem:[#allocation5 + $0x98] sm:$0xff]
        %v3561 = vld [vmem:[#allocation5 + $0xa0] sm:$0xff]
        %v3562 = vld [vmem:[#allocation5 + $0xa8] sm:$0xff]
        %v3563 = vld [vmem:[#allocation5 + $0xb0] sm:$0xff]
        %v3564 = vld [vmem:[#allocation5 + $0xb8] sm:$0xff]
        %v3565 = vld [vmem:[#allocation5 + $0xc0] sm:$0xff]
        %v3566 = vld [vmem:[#allocation5 + $0xc8] sm:$0xff]
        %v3567 = vld [vmem:[#allocation5 + $0xd0] sm:$0xff]
        %v3568 = vld [vmem:[#allocation5 + $0xd8] sm:$0xff]
        %v3569 = vld [vmem:[#allocation5 + $0xe0] sm:$0xff]
        %v3570 = vld [vmem:[#allocation5 + $0xe8] sm:$0xff]
        %v3571 = vld [vmem:[#allocation5 + $0xf0] sm:$0xff]
        %v3572 = vld [vmem:[#allocation5 + $0xf8] sm:$0xff]
        %v3573 = vld [vmem:[#allocation5 + $0x100] sm:$0xff]
        %v3574 = vld [vmem:[#allocation5 + $0x108] sm:$0xff]
        %v3575 = vld [vmem:[#allocation5 + $0x110] sm:$0xff]
        %v3576 = vld [vmem:[#allocation5 + $0x118] sm:$0xff]
        %v3577 = vld [vmem:[#allocation5 + $0x120] sm:$0xff]
        %v3578 = vld [vmem:[#allocation5 + $0x128] sm:$0xff]
        %v3579 = vld [vmem:[#allocation5 + $0x130] sm:$0xff]
        %v3580 = vld [vmem:[#allocation5 + $0x138] sm:$0xff]
        %v3581 = vld [vmem:[#allocation5 + $0x140] sm:$0xff]
        %v3582 = vld [vmem:[#allocation5 + $0x148] sm:$0xff]
        %v3583 = vld [vmem:[#allocation5 + $0x150] sm:$0xff]
        %v3584 = vld [vmem:[#allocation5 + $0x158] sm:$0xff]
        %v3585 = vld [vmem:[#allocation5 + $0x160] sm:$0xff]
        %v3586 = vld [vmem:[#allocation5 + $0x168] sm:$0xff]
        %v3587 = vld [vmem:[#allocation5 + $0x170] sm:$0xff]
        %v3588 = vld [vmem:[#allocation5 + $0x178] sm:$0xff]
        %v3589 = vld [vmem:[#allocation5 + $0x180] sm:$0xff]
        %v3590 = vld [vmem:[#allocation5 + $0x188] sm:$0xff]
        %v3591 = vld [vmem:[#allocation5 + $0x190] sm:$0xff]
        %v3592 = vld [vmem:[#allocation5 + $0x198] sm:$0xff]
        %v3593 = vld [vmem:[#allocation5 + $0x1a0] sm:$0xff]
        %v3594 = vld [vmem:[#allocation5 + $0x1a8] sm:$0xff]
        %v3595 = vld [vmem:[#allocation5 + $0x1b0] sm:$0xff]
        %v3596 = vld [vmem:[#allocation5 + $0x1b8] sm:$0xff]
        %v3597 = vld [vmem:[#allocation5 + $0x1c0] sm:$0xff]
        %v3598 = vld [vmem:[#allocation5 + $0x1c8] sm:$0xff]
        %v3599 = vld [vmem:[#allocation5 + $0x1d0] sm:$0xff]
        %v3600 = vld [vmem:[#allocation5 + $0x1d8] sm:$0xff]
        %v3601 = vld [vmem:[#allocation5 + $0x1e0] sm:$0xff]
        %v3602 = vld [vmem:[#allocation5 + $0x1e8] sm:$0xff]
        %v3603 = vld [vmem:[#allocation5 + $0x1f0] sm:$0xff]
        %v3604 = vld [vmem:[#allocation5 + $0x1f8] sm:$0xff]
        %v3605 = vld [vmem:[#allocation5 + $0x200] sm:$0xff]
        %v3606 = vld [vmem:[#allocation5 + $0x208] sm:$0xff]
        %v3607 = vld [vmem:[#allocation5 + $0x210] sm:$0xff]
        %v3608 = vld [vmem:[#allocation5 + $0x218] sm:$0xff]
        %v3609 = vld [vmem:[#allocation5 + $0x220] sm:$0xff]
        %v3610 = vld [vmem:[#allocation5 + $0x228] sm:$0xff]
        %v3611 = vld [vmem:[#allocation5 + $0x230] sm:$0xff]
        %v3612 = vld [vmem:[#allocation5 + $0x238] sm:$0xff]
        %v3613 = vld [vmem:[#allocation5 + $0x240] sm:$0xff]
        %v3614 = vld [vmem:[#allocation5 + $0x248] sm:$0xff]
        %v3615 = vld [vmem:[#allocation5 + $0x250] sm:$0xff]
        %v3616 = vld [vmem:[#allocation5 + $0x258] sm:$0xff]
        %v3617 = vld [vmem:[#allocation5 + $0x260] sm:$0xff]
        %v3618 = vld [vmem:[#allocation5 + $0x268] sm:$0xff]
        %v3619 = vld [vmem:[#allocation5 + $0x270] sm:$0xff]
        %v3620 = vld [vmem:[#allocation5 + $0x278] sm:$0xff]
        %v3621 = vld [vmem:[#allocation5 + $0x280] sm:$0xff]
        %v3622 = vld [vmem:[#allocation5 + $0x288] sm:$0xff]
        %v3623 = vld [vmem:[#allocation5 + $0x290] sm:$0xff]
        %v3624 = vld [vmem:[#allocation5 + $0x298] sm:$0xff]
        %v3625 = vld [vmem:[#allocation5 + $0x2a0] sm:$0xff]
        %v3626 = vld [vmem:[#allocation5 + $0x2a8] sm:$0xff]
        %v3627 = vld [vmem:[#allocation5 + $0x2b0] sm:$0xff]
        %v3628 = vld [vmem:[#allocation5 + $0x2b8] sm:$0xff]
        %v3629 = vld [vmem:[#allocation5 + $0x2c0] sm:$0xff]
        %v3630 = vld [vmem:[#allocation5 + $0x2c8] sm:$0xff]
        %v3631 = vld [vmem:[#allocation5 + $0x2d0] sm:$0xff]
        %v3632 = vld [vmem:[#allocation5 + $0x2d8] sm:$0xff]
        %v3633 = vld [vmem:[#allocation5 + $0x2e0] sm:$0xff]
        %v3634 = vld [vmem:[#allocation5 + $0x2e8] sm:$0xff]
        %v3635 = vld [vmem:[#allocation5 + $0x2f0] sm:$0xff]
        %v3636 = vld [vmem:[#allocation5 + $0x2f8] sm:$0xff]
        %v3637 = vld [vmem:[#allocation5 + $0x300] sm:$0xff]
        %v3638 = vld [vmem:[#allocation5 + $0x308] sm:$0xff]
        %v3639 = vld [vmem:[#allocation5 + $0x310] sm:$0xff]
        %v3640 = vld [vmem:[#allocation5 + $0x318] sm:$0xff]
        %v3641 = vld [vmem:[#allocation5 + $0x320] sm:$0xff]
        %v3642 = vld [vmem:[#allocation5 + $0x328] sm:$0xff]
        %v3643 = vld [vmem:[#allocation5 + $0x330] sm:$0xff]
        %v3644 = vld [vmem:[#allocation5 + $0x338] sm:$0xff]
        %v3645 = vld [vmem:[#allocation5 + $0x340] sm:$0xff]
        %v3646 = vld [vmem:[#allocation5 + $0x348] sm:$0xff]
        %v3647 = vld [vmem:[#allocation5 + $0x350] sm:$0xff]
        %v3648 = vld [vmem:[#allocation5 + $0x358] sm:$0xff]
        %v3649 = vld [vmem:[#allocation5 + $0x360] sm:$0xff]
        %v3650 = vld [vmem:[#allocation5 + $0x368] sm:$0xff]
        %v3651 = vld [vmem:[#allocation5 + $0x370] sm:$0xff]
        %v3652 = vld [vmem:[#allocation5 + $0x378] sm:$0xff]
        %v3653 = vld [vmem:[#allocation5 + $0x380] sm:$0xff]
        %v3654 = vld [vmem:[#allocation5 + $0x388] sm:$0xff]
        %v3655 = vld [vmem:[#allocation5 + $0x390] sm:$0xff]
        %v3656 = vld [vmem:[#allocation5 + $0x398] sm:$0xff]
        %v3657 = vld [vmem:[#allocation5 + $0x3a0] sm:$0xff]
        %v3658 = vld [vmem:[#allocation5 + $0x3a8] sm:$0xff]
        %v3659 = vld [vmem:[#allocation5 + $0x3b0] sm:$0xff]
        %v3660 = vld [vmem:[#allocation5 + $0x3b8] sm:$0xff]
        %v3661 = vld [vmem:[#allocation5 + $0x3c0] sm:$0xff]
        %v3662 = vld [vmem:[#allocation5 + $0x3c8] sm:$0xff]
        %v3663 = vld [vmem:[#allocation5 + $0x3d0] sm:$0xff]
        %v3664 = vld [vmem:[#allocation5 + $0x3d8] sm:$0xff]
        %v3665 = vld [vmem:[#allocation5 + $0x3e0] sm:$0xff]
        %v3666 = vld [vmem:[#allocation5 + $0x3e8] sm:$0xff]
        %v3667 = vld [vmem:[#allocation5 + $0x3f0] sm:$0xff]
        %v3668 = vld [vmem:[#allocation5 + $0x3f8] sm:$0xff]
        %v3669 = vld [vmem:[%s7] sm:$0xf]
        %v3671 = vlaneseq
        %v3672 = vshrl.u32 %v3671, 7
        %v3673 = vsub.s32 0, %v3672
        %v3674 = vrot.slane %v3669, %v3673
        %v3675 = vlaneseq
        %v3676 = vshrl.u32 %v3675, 7
        %v3677 = vsub.s32 1, %v3676
        %v3678 = vrot.slane %v3669, %v3677
        %v3679 = vlaneseq
        %v3680 = vshrl.u32 %v3679, 7
        %v3681 = vsub.s32 2, %v3680
        %v3682 = vrot.slane %v3669, %v3681
        %v3683 = vlaneseq
        %v3684 = vshrl.u32 %v3683, 7
        %v3685 = vsub.s32 3, %v3684
        %v3686 = vrot.slane %v3669, %v3685
        %3691 = vmatprep.subr.mxu0 %v3542
        %3692 = vmatpush1.msra.mxu0 %v3541
        %3693 = vmatprep.subr.mxu0 %v3546
        %3694 = vmatpush1.msra.mxu0 %v3545
        %3695 = vmatprep.subr.mxu0 %v3550
        %3696 = vmatpush1.msra.mxu0 %v3549
        %3697 = vmatprep.subr.mxu0 %v3554
        %3698 = vmatpush1.msra.mxu0 %v3553
        %3699 = vmatprep.subr.mxu0 %v3558
        %3700 = vmatpush1.msra.mxu0 %v3557
        %3701 = vmatprep.subr.mxu0 %v3562
        %3702 = vmatpush1.msra.mxu0 %v3561
        %3703 = vmatprep.subr.mxu0 %v3566
        %3704 = vmatpush1.msra.mxu0 %v3565
        %3705 = vmatprep.subr.mxu0 %v3570
        %3706 = vmatpush1.msra.mxu0 %v3569
        %3707 = vmatprep.subr.mxu0 %v3574
        %3708 = vmatpush1.msra.mxu0 %v3573
        %3709 = vmatprep.subr.mxu0 %v3578
        %3710 = vmatpush1.msra.mxu0 %v3577
        %3711 = vmatprep.subr.mxu0 %v3582
        %3712 = vmatpush1.msra.mxu0 %v3581
        %3713 = vmatprep.subr.mxu0 %v3586
        %3714 = vmatpush1.msra.mxu0 %v3585
        %3715 = vmatprep.subr.mxu0 %v3590
        %3716 = vmatpush1.msra.mxu0 %v3589
        %3717 = vmatprep.subr.mxu0 %v3594
        %3718 = vmatpush1.msra.mxu0 %v3593
        %3719 = vmatprep.subr.mxu0 %v3598
        %3720 = vmatpush1.msra.mxu0 %v3597
        %3721 = vmatprep.subr.mxu0 %v3602
        %3722 = vmatpush1.msra.mxu0 %v3601
        %3723 = vmatprep.subr.mxu0 %v3606
        %3724 = vmatpush1.msra.mxu0 %v3605
        %3725 = vmatprep.subr.mxu0 %v3610
        %3726 = vmatpush1.msra.mxu0 %v3609
        %3727 = vmatprep.subr.mxu0 %v3614
        %3728 = vmatpush1.msra.mxu0 %v3613
        %3729 = vmatprep.subr.mxu0 %v3618
        %3730 = vmatpush1.msra.mxu0 %v3617
        %3731 = vmatprep.subr.mxu0 %v3622
        %3732 = vmatpush1.msra.mxu0 %v3621
        %3733 = vmatprep.subr.mxu0 %v3626
        %3734 = vmatpush1.msra.mxu0 %v3625
        %3735 = vmatprep.subr.mxu0 %v3630
        %3736 = vmatpush1.msra.mxu0 %v3629
        %3737 = vmatprep.subr.mxu0 %v3634
        %3738 = vmatpush1.msra.mxu0 %v3633
        %3739 = vmatprep.subr.mxu0 %v3638
        %3740 = vmatpush1.msra.mxu0 %v3637
        %3741 = vmatprep.subr.mxu0 %v3642
        %3742 = vmatpush1.msra.mxu0 %v3641
        %3743 = vmatprep.subr.mxu0 %v3646
        %3744 = vmatpush1.msra.mxu0 %v3645
        %3745 = vmatprep.subr.mxu0 %v3650
        %3746 = vmatpush1.msra.mxu0 %v3649
        %3747 = vmatprep.subr.mxu0 %v3654
        %3748 = vmatpush1.msra.mxu0 %v3653
        %3749 = vmatprep.subr.mxu0 %v3658
        %3750 = vmatpush1.msra.mxu0 %v3657
        %3751 = vmatprep.subr.mxu0 %v3662
        %3752 = vmatpush1.msra.mxu0 %v3661
        %3753 = vmatprep.subr.mxu0 %v3666
        %3754 = vmatpush1.msra.mxu0 %v3665
        %3755 = vmatprep.mubr.f32.mxu0 %v3421
        %3756 = vmatmul.mubr.f32.gmra.mrb[0].mxu0 %v3540
        %v3757 = vpop.f32.mrb[0].mxu0
        %v3758 = vadd.f32 %v3674, %v3757
        %v3759 = vpop.f32.mrb[0].mxu0
        %v3760 = vadd.f32 %v3678, %v3759
        %3761 = vdwg.mxu0
        %3762 = vmatprep.subr.mxu0 %v3544
        %3763 = vmatpush1.msra.mxu0 %v3543
        %3764 = vmatprep.subr.mxu0 %v3548
        %3765 = vmatpush1.msra.mxu0 %v3547
        %3766 = vmatprep.subr.mxu0 %v3552
        %3767 = vmatpush1.msra.mxu0 %v3551
        %3768 = vmatprep.subr.mxu0 %v3556
        %3769 = vmatpush1.msra.mxu0 %v3555
        %3770 = vmatprep.subr.mxu0 %v3560
        %3771 = vmatpush1.msra.mxu0 %v3559
        %3772 = vmatprep.subr.mxu0 %v3564
        %3773 = vmatpush1.msra.mxu0 %v3563
        %3774 = vmatprep.subr.mxu0 %v3568
        %3775 = vmatpush1.msra.mxu0 %v3567
        %3776 = vmatprep.subr.mxu0 %v3572
        %3777 = vmatpush1.msra.mxu0 %v3571
        %3778 = vmatprep.subr.mxu0 %v3576
        %3779 = vmatpush1.msra.mxu0 %v3575
        %3780 = vmatprep.subr.mxu0 %v3580
        %3781 = vmatpush1.msra.mxu0 %v3579
        %3782 = vmatprep.subr.mxu0 %v3584
        %3783 = vmatpush1.msra.mxu0 %v3583
        %3784 = vmatprep.subr.mxu0 %v3588
        %3785 = vmatpush1.msra.mxu0 %v3587
        %3786 = vmatprep.subr.mxu0 %v3592
        %3787 = vmatpush1.msra.mxu0 %v3591
        %3788 = vmatprep.subr.mxu0 %v3596
        %3789 = vmatpush1.msra.mxu0 %v3595
        %3790 = vmatprep.subr.mxu0 %v3600
        %3791 = vmatpush1.msra.mxu0 %v3599
        %3792 = vmatprep.subr.mxu0 %v3604
        %3793 = vmatpush1.msra.mxu0 %v3603
        %3794 = vmatprep.subr.mxu0 %v3608
        %3795 = vmatpush1.msra.mxu0 %v3607
        %3796 = vmatprep.subr.mxu0 %v3612
        %3797 = vmatpush1.msra.mxu0 %v3611
        %3798 = vmatprep.subr.mxu0 %v3616
        %3799 = vmatpush1.msra.mxu0 %v3615
        %3800 = vmatprep.subr.mxu0 %v3620
        %3801 = vmatpush1.msra.mxu0 %v3619
        %3802 = vmatprep.subr.mxu0 %v3624
        %3803 = vmatpush1.msra.mxu0 %v3623
        %3804 = vmatprep.subr.mxu0 %v3628
        %3805 = vmatpush1.msra.mxu0 %v3627
        %3806 = vmatprep.subr.mxu0 %v3632
        %3807 = vmatpush1.msra.mxu0 %v3631
        %3808 = vmatprep.subr.mxu0 %v3636
        %3809 = vmatpush1.msra.mxu0 %v3635
        %3810 = vmatprep.subr.mxu0 %v3640
        %3811 = vmatpush1.msra.mxu0 %v3639
        %3812 = vmatprep.subr.mxu0 %v3644
        %3813 = vmatpush1.msra.mxu0 %v3643
        %3814 = vmatprep.subr.mxu0 %v3648
        %3815 = vmatpush1.msra.mxu0 %v3647
        %3816 = vmatprep.subr.mxu0 %v3652
        %3817 = vmatpush1.msra.mxu0 %v3651
        %3818 = vmatprep.subr.mxu0 %v3656
        %3819 = vmatpush1.msra.mxu0 %v3655
        %3820 = vmatprep.subr.mxu0 %v3660
        %3821 = vmatpush1.msra.mxu0 %v3659
        %3822 = vmatprep.subr.mxu0 %v3664
        %3823 = vmatpush1.msra.mxu0 %v3663
        %3824 = vmatprep.subr.mxu0 %v3668
        %3825 = vmatpush1.msra.mxu0 %v3667
        %3826 = vmatprep.mubr.f32.mxu0 %v3421
        %3827 = vmatmul.mubr.f32.gmra.mrb[0].mxu0 %v3540
        %v3828 = vpop.f32.mrb[0].mxu0
        %v3829 = vadd.f32 %v3682, %v3828
        %v3830 = vpop.f32.mrb[0].mxu0
        %v3831 = vadd.f32 %v3686, %v3830
        %3832 = vdwg.mxu0
        %v3833 = vxor.u32 %v3758, 2147483648
        %v3834 = vxor.u32 %v3760, 2147483648
        %v3835 = vxor.u32 %v3829, 2147483648
        %v3836 = vmul.f32 %v3833, 1.442695
        %v3837 = vpow.pop %v3836
        %v3838 = vmul.f32 %v3834, 1.442695
        %v3839 = vpow.pop %v3838
        %v3840 = vmul.f32 %v3835, 1.442695
        %v3841 = vpow.pop %v3840
        %v3842 = vadd.f32 %v3837, 1.0
        %v3843 = vadd.f32 %v3839, 1.0
        %v3844 = vadd.f32 %v3841, 1.0
        %v3845 = vrcp.pop %v3842
        %v3846 = vmul.f32 1.0, %v3845
        %v3847 = vrcp.pop %v3843
        %v3848 = vmul.f32 1.0, %v3847
        %v3849 = vrcp.pop %v3844
        %v3850 = vmul.f32 1.0, %v3849
        %v3851 = vtanh.pop %v3831
        %v3852 = vmul.f32 %v3848, %v3419
        %v3853 = vmul.f32 %v3846, %v3851
        %v3854 = vadd.f32 %v3852, %v3853
        %v3855 = vtanh.pop %v3854
        %v3856 = vmul.f32 %v3850, %v3855
        %v3857 = vld [vmem:[%s8] sm:$0xff]
        %v3858 = vld [vmem:[%s8 + $0x8] sm:$0xff]
        %v3859 = vld [vmem:[%s8 + $0x10] sm:$0xff]
        %v3860 = vld [vmem:[%s8 + $0x18] sm:$0xff]
        %v3861 = vld [vmem:[%s8 + $0x20] sm:$0xff]
        %v3862 = vld [vmem:[%s8 + $0x28] sm:$0xff]
        %v3863 = vld [vmem:[%s8 + $0x30] sm:$0xff]
        %v3864 = vld [vmem:[%s8 + $0x38] sm:$0xff]
        %v3865 = vld [vmem:[%s8 + $0x40] sm:$0xff]
        %v3866 = vld [vmem:[%s8 + $0x48] sm:$0xff]
        %v3867 = vld [vmem:[%s8 + $0x50] sm:$0xff]
        %v3868 = vld [vmem:[%s8 + $0x58] sm:$0xff]
        %v3869 = vld [vmem:[%s8 + $0x60] sm:$0xff]
        %v3870 = vld [vmem:[%s8 + $0x68] sm:$0xff]
        %v3871 = vld [vmem:[%s8 + $0x70] sm:$0xff]
        %v3872 = vld [vmem:[%s8 + $0x78] sm:$0xff]
        %v3873 = vld [vmem:[%s9] sm:$0x1]
        %v3875 = vlaneseq
        %v3876 = vshrl.u32 %v3875, 7
        %v3877 = vsub.s32 0, %v3876
        %v3878 = vrot.slane %v3873, %v3877
        %3880 = vmatprep.subr.mxu0 0.0
        %3881 = vmatpush1.msra.mxu0 %v3857
        %3882 = vmatprep.subr.mxu0 0.0
        %3883 = vmatpush1.msra.mxu0 %v3858
        %3884 = vmatprep.subr.mxu0 0.0
        %3885 = vmatpush1.msra.mxu0 %v3859
        %3886 = vmatprep.subr.mxu0 0.0
        %3887 = vmatpush1.msra.mxu0 %v3860
        %3888 = vmatprep.subr.mxu0 0.0
        %3889 = vmatpush1.msra.mxu0 %v3861
        %3890 = vmatprep.subr.mxu0 0.0
        %3891 = vmatpush1.msra.mxu0 %v3862
        %3892 = vmatprep.subr.mxu0 0.0
        %3893 = vmatpush1.msra.mxu0 %v3863
        %3894 = vmatprep.subr.mxu0 0.0
        %3895 = vmatpush1.msra.mxu0 %v3864
        %3896 = vmatprep.subr.mxu0 0.0
        %3897 = vmatpush1.msra.mxu0 %v3865
        %3898 = vmatprep.subr.mxu0 0.0
        %3899 = vmatpush1.msra.mxu0 %v3866
        %3900 = vmatprep.subr.mxu0 0.0
        %3901 = vmatpush1.msra.mxu0 %v3867
        %3902 = vmatprep.subr.mxu0 0.0
        %3903 = vmatpush1.msra.mxu0 %v3868
        %3904 = vmatprep.subr.mxu0 0.0
        %3905 = vmatpush1.msra.mxu0 %v3869
        %3906 = vmatprep.subr.mxu0 0.0
        %3907 = vmatpush1.msra.mxu0 %v3870
        %3908 = vmatprep.subr.mxu0 0.0
        %3909 = vmatpush1.msra.mxu0 %v3871
        %3910 = vmatprep.subr.mxu0 0.0
        %3911 = vmatpush1.msra.mxu0 %v3872
        %3912 = vmatprep.subr.mxu0 0.0
        %3913 = vmatpush1.msra.mxu0 0.0
        %3914 = vmatprep.subr.mxu0 0.0
        %3915 = vmatpush1.msra.mxu0 0.0
        %3916 = vmatprep.subr.mxu0 0.0
        %3917 = vmatpush1.msra.mxu0 0.0
        %3918 = vmatprep.subr.mxu0 0.0
        %3919 = vmatpush1.msra.mxu0 0.0
        %3920 = vmatprep.subr.mxu0 0.0
        %3921 = vmatpush1.msra.mxu0 0.0
        %3922 = vmatprep.subr.mxu0 0.0
        %3923 = vmatpush1.msra.mxu0 0.0
        %3924 = vmatprep.subr.mxu0 0.0
        %3925 = vmatpush1.msra.mxu0 0.0
        %3926 = vmatprep.subr.mxu0 0.0
        %3927 = vmatpush1.msra.mxu0 0.0
        %3928 = vmatprep.subr.mxu0 0.0
        %3929 = vmatpush1.msra.mxu0 0.0
        %3930 = vmatprep.subr.mxu0 0.0
        %3931 = vmatpush1.msra.mxu0 0.0
        %3932 = vmatprep.subr.mxu0 0.0
        %3933 = vmatpush1.msra.mxu0 0.0
        %3934 = vmatprep.subr.mxu0 0.0
        %3935 = vmatpush1.msra.mxu0 0.0
        %3936 = vmatprep.subr.mxu0 0.0
        %3937 = vmatpush1.msra.mxu0 0.0
        %3938 = vmatprep.subr.mxu0 0.0
        %3939 = vmatpush1.msra.mxu0 0.0
        %3940 = vmatprep.subr.mxu0 0.0
        %3941 = vmatpush1.msra.mxu0 0.0
        %3942 = vmatprep.subr.mxu0 0.0
        %3943 = vmatpush1.msra.mxu0 0.0
        %3944 = vmatprep.mubr.f32.mxu0 0.0
        %3945 = vmatmul.mubr.f32.gmra.mrb[0].mxu0 %v3856
        %v3946 = vpop.f32.mrb[0].mxu0
        %v3947 = vadd.f32 %v3878, %v3946
        %v3948 = vpop.f32.mrb[0].mxu0
        %3949 = vdwg.mxu0
        %3950 = vst [vmem:[%s435 + $0x18] sm:$0xff] %v3947
        %3951 = vmax.xlane.f32.xlu0 %v3947
        %v3952 = vpop.xlane.xlu0 %3951
        %vm3953 = vcmp.eq.f32.partialorder %v3947, %v3952
        %v3954 = vsel %vm3953, %v438, 128
        %v3955 = vand.u32 %v3954, 65535
        %v3956 = vshra.s32 %v3954, 16
        %v3957 = vcvt.s32.f32 %v3955
        %v3958 = vcvt.s32.f32 %v3956
        %3959 = vmin.xlane.f32.xlu0 %v3958
        %v3960 = vpop.xlane.xlu0 %3959
        %vm3961 = vcmp.eq.f32.partialorder %v3958, %v3960
        %v3962 = vsel %vm3961, %v3957, inf
        %3963 = vmin.xlane.f32.xlu0 %v3962
        %v3964 = vpop.xlane.xlu0 %3963
        %v3965 = vcvt.f32.s32 %v3964
        %v3966 = vcvt.f32.s32 %v3960
        %v3967 = vshll.u32 %v3966, 16
        %v3968 = vadd.s32 %v3967, %v3965
        %vm3969 = vcmp.eq.s32.totalorder %v438, %v3968
        %v3970 = vsel %vm3969, 1, 0
        %v3971 = vcvt.s32.f32 %v3970
        %v3972 = vld [vmem:[%s423 + $0x18] sm:$0xff]
        %v3973 = vld [vmem:[%s429 + $0x18] sm:$0xff]
        %vm3974 = vcmp.gt.f32.partialorder %v3973, 0.5
        %v3975 = vsel %vm3974, %v3972, %v3971
        %v3976 = vld [vmem:[#allocation5] sm:$0xff]
        %v3977 = vld [vmem:[#allocation5 + $0x8] sm:$0xff]
        %v3978 = vld [vmem:[#allocation5 + $0x10] sm:$0xff]
        %v3979 = vld [vmem:[#allocation5 + $0x18] sm:$0xff]
        %v3980 = vld [vmem:[#allocation5 + $0x20] sm:$0xff]
        %v3981 = vld [vmem:[#allocation5 + $0x28] sm:$0xff]
        %v3982 = vld [vmem:[#allocation5 + $0x30] sm:$0xff]
        %v3983 = vld [vmem:[#allocation5 + $0x38] sm:$0xff]
        %v3984 = vld [vmem:[#allocation5 + $0x40] sm:$0xff]
        %v3985 = vld [vmem:[#allocation5 + $0x48] sm:$0xff]
        %v3986 = vld [vmem:[#allocation5 + $0x50] sm:$0xff]
        %v3987 = vld [vmem:[#allocation5 + $0x58] sm:$0xff]
        %v3988 = vld [vmem:[#allocation5 + $0x60] sm:$0xff]
        %v3989 = vld [vmem:[#allocation5 + $0x68] sm:$0xff]
        %v3990 = vld [vmem:[#allocation5 + $0x70] sm:$0xff]
        %v3991 = vld [vmem:[#allocation5 + $0x78] sm:$0xff]
        %v3992 = vld [vmem:[#allocation5 + $0x80] sm:$0xff]
        %v3993 = vld [vmem:[#allocation5 + $0x88] sm:$0xff]
        %v3994 = vld [vmem:[#allocation5 + $0x90] sm:$0xff]
        %v3995 = vld [vmem:[#allocation5 + $0x98] sm:$0xff]
        %v3996 = vld [vmem:[#allocation5 + $0xa0] sm:$0xff]
        %v3997 = vld [vmem:[#allocation5 + $0xa8] sm:$0xff]
        %v3998 = vld [vmem:[#allocation5 + $0xb0] sm:$0xff]
        %v3999 = vld [vmem:[#allocation5 + $0xb8] sm:$0xff]
        %v4000 = vld [vmem:[#allocation5 + $0xc0] sm:$0xff]
        %v4001 = vld [vmem:[#allocation5 + $0xc8] sm:$0xff]
        %v4002 = vld [vmem:[#allocation5 + $0xd0] sm:$0xff]
        %v4003 = vld [vmem:[#allocation5 + $0xd8] sm:$0xff]
        %v4004 = vld [vmem:[#allocation5 + $0xe0] sm:$0xff]
        %v4005 = vld [vmem:[#allocation5 + $0xe8] sm:$0xff]
        %v4006 = vld [vmem:[#allocation5 + $0xf0] sm:$0xff]
        %v4007 = vld [vmem:[#allocation5 + $0xf8] sm:$0xff]
        %v4008 = vld [vmem:[#allocation5 + $0x100] sm:$0xff]
        %v4009 = vld [vmem:[#allocation5 + $0x108] sm:$0xff]
        %v4010 = vld [vmem:[#allocation5 + $0x110] sm:$0xff]
        %v4011 = vld [vmem:[#allocation5 + $0x118] sm:$0xff]
        %v4012 = vld [vmem:[#allocation5 + $0x120] sm:$0xff]
        %v4013 = vld [vmem:[#allocation5 + $0x128] sm:$0xff]
        %v4014 = vld [vmem:[#allocation5 + $0x130] sm:$0xff]
        %v4015 = vld [vmem:[#allocation5 + $0x138] sm:$0xff]
        %v4016 = vld [vmem:[#allocation5 + $0x140] sm:$0xff]
        %v4017 = vld [vmem:[#allocation5 + $0x148] sm:$0xff]
        %v4018 = vld [vmem:[#allocation5 + $0x150] sm:$0xff]
        %v4019 = vld [vmem:[#allocation5 + $0x158] sm:$0xff]
        %v4020 = vld [vmem:[#allocation5 + $0x160] sm:$0xff]
        %v4021 = vld [vmem:[#allocation5 + $0x168] sm:$0xff]
        %v4022 = vld [vmem:[#allocation5 + $0x170] sm:$0xff]
        %v4023 = vld [vmem:[#allocation5 + $0x178] sm:$0xff]
        %v4024 = vld [vmem:[#allocation5 + $0x180] sm:$0xff]
        %v4025 = vld [vmem:[#allocation5 + $0x188] sm:$0xff]
        %v4026 = vld [vmem:[#allocation5 + $0x190] sm:$0xff]
        %v4027 = vld [vmem:[#allocation5 + $0x198] sm:$0xff]
        %v4028 = vld [vmem:[#allocation5 + $0x1a0] sm:$0xff]
        %v4029 = vld [vmem:[#allocation5 + $0x1a8] sm:$0xff]
        %v4030 = vld [vmem:[#allocation5 + $0x1b0] sm:$0xff]
        %v4031 = vld [vmem:[#allocation5 + $0x1b8] sm:$0xff]
        %v4032 = vld [vmem:[#allocation5 + $0x1c0] sm:$0xff]
        %v4033 = vld [vmem:[#allocation5 + $0x1c8] sm:$0xff]
        %v4034 = vld [vmem:[#allocation5 + $0x1d0] sm:$0xff]
        %v4035 = vld [vmem:[#allocation5 + $0x1d8] sm:$0xff]
        %v4036 = vld [vmem:[#allocation5 + $0x1e0] sm:$0xff]
        %v4037 = vld [vmem:[#allocation5 + $0x1e8] sm:$0xff]
        %v4038 = vld [vmem:[#allocation5 + $0x1f0] sm:$0xff]
        %v4039 = vld [vmem:[#allocation5 + $0x1f8] sm:$0xff]
        %v4040 = vld [vmem:[#allocation5 + $0x200] sm:$0xff]
        %v4041 = vld [vmem:[#allocation5 + $0x208] sm:$0xff]
        %v4042 = vld [vmem:[#allocation5 + $0x210] sm:$0xff]
        %v4043 = vld [vmem:[#allocation5 + $0x218] sm:$0xff]
        %v4044 = vld [vmem:[#allocation5 + $0x220] sm:$0xff]
        %v4045 = vld [vmem:[#allocation5 + $0x228] sm:$0xff]
        %v4046 = vld [vmem:[#allocation5 + $0x230] sm:$0xff]
        %v4047 = vld [vmem:[#allocation5 + $0x238] sm:$0xff]
        %v4048 = vld [vmem:[#allocation5 + $0x240] sm:$0xff]
        %v4049 = vld [vmem:[#allocation5 + $0x248] sm:$0xff]
        %v4050 = vld [vmem:[#allocation5 + $0x250] sm:$0xff]
        %v4051 = vld [vmem:[#allocation5 + $0x258] sm:$0xff]
        %v4052 = vld [vmem:[#allocation5 + $0x260] sm:$0xff]
        %v4053 = vld [vmem:[#allocation5 + $0x268] sm:$0xff]
        %v4054 = vld [vmem:[#allocation5 + $0x270] sm:$0xff]
        %v4055 = vld [vmem:[#allocation5 + $0x278] sm:$0xff]
        %v4056 = vld [vmem:[#allocation5 + $0x280] sm:$0xff]
        %v4057 = vld [vmem:[#allocation5 + $0x288] sm:$0xff]
        %v4058 = vld [vmem:[#allocation5 + $0x290] sm:$0xff]
        %v4059 = vld [vmem:[#allocation5 + $0x298] sm:$0xff]
        %v4060 = vld [vmem:[#allocation5 + $0x2a0] sm:$0xff]
        %v4061 = vld [vmem:[#allocation5 + $0x2a8] sm:$0xff]
        %v4062 = vld [vmem:[#allocation5 + $0x2b0] sm:$0xff]
        %v4063 = vld [vmem:[#allocation5 + $0x2b8] sm:$0xff]
        %v4064 = vld [vmem:[#allocation5 + $0x2c0] sm:$0xff]
        %v4065 = vld [vmem:[#allocation5 + $0x2c8] sm:$0xff]
        %v4066 = vld [vmem:[#allocation5 + $0x2d0] sm:$0xff]
        %v4067 = vld [vmem:[#allocation5 + $0x2d8] sm:$0xff]
        %v4068 = vld [vmem:[#allocation5 + $0x2e0] sm:$0xff]
        %v4069 = vld [vmem:[#allocation5 + $0x2e8] sm:$0xff]
        %v4070 = vld [vmem:[#allocation5 + $0x2f0] sm:$0xff]
        %v4071 = vld [vmem:[#allocation5 + $0x2f8] sm:$0xff]
        %v4072 = vld [vmem:[#allocation5 + $0x300] sm:$0xff]
        %v4073 = vld [vmem:[#allocation5 + $0x308] sm:$0xff]
        %v4074 = vld [vmem:[#allocation5 + $0x310] sm:$0xff]
        %v4075 = vld [vmem:[#allocation5 + $0x318] sm:$0xff]
        %v4076 = vld [vmem:[#allocation5 + $0x320] sm:$0xff]
        %v4077 = vld [vmem:[#allocation5 + $0x328] sm:$0xff]
        %v4078 = vld [vmem:[#allocation5 + $0x330] sm:$0xff]
        %v4079 = vld [vmem:[#allocation5 + $0x338] sm:$0xff]
        %v4080 = vld [vmem:[#allocation5 + $0x340] sm:$0xff]
        %v4081 = vld [vmem:[#allocation5 + $0x348] sm:$0xff]
        %v4082 = vld [vmem:[#allocation5 + $0x350] sm:$0xff]
        %v4083 = vld [vmem:[#allocation5 + $0x358] sm:$0xff]
        %v4084 = vld [vmem:[#allocation5 + $0x360] sm:$0xff]
        %v4085 = vld [vmem:[#allocation5 + $0x368] sm:$0xff]
        %v4086 = vld [vmem:[#allocation5 + $0x370] sm:$0xff]
        %v4087 = vld [vmem:[#allocation5 + $0x378] sm:$0xff]
        %v4088 = vld [vmem:[#allocation5 + $0x380] sm:$0xff]
        %v4089 = vld [vmem:[#allocation5 + $0x388] sm:$0xff]
        %v4090 = vld [vmem:[#allocation5 + $0x390] sm:$0xff]
        %v4091 = vld [vmem:[#allocation5 + $0x398] sm:$0xff]
        %v4092 = vld [vmem:[#allocation5 + $0x3a0] sm:$0xff]
        %v4093 = vld [vmem:[#allocation5 + $0x3a8] sm:$0xff]
        %v4094 = vld [vmem:[#allocation5 + $0x3b0] sm:$0xff]
        %v4095 = vld [vmem:[#allocation5 + $0x3b8] sm:$0xff]
        %v4096 = vld [vmem:[#allocation5 + $0x3c0] sm:$0xff]
        %v4097 = vld [vmem:[#allocation5 + $0x3c8] sm:$0xff]
        %v4098 = vld [vmem:[#allocation5 + $0x3d0] sm:$0xff]
        %v4099 = vld [vmem:[#allocation5 + $0x3d8] sm:$0xff]
        %v4100 = vld [vmem:[#allocation5 + $0x3e0] sm:$0xff]
        %v4101 = vld [vmem:[#allocation5 + $0x3e8] sm:$0xff]
        %v4102 = vld [vmem:[#allocation5 + $0x3f0] sm:$0xff]
        %v4103 = vld [vmem:[#allocation5 + $0x3f8] sm:$0xff]
        %v4104 = vld [vmem:[%s7] sm:$0xf]
        %v4106 = vlaneseq
        %v4107 = vshrl.u32 %v4106, 7
        %v4108 = vsub.s32 0, %v4107
        %v4109 = vrot.slane %v4104, %v4108
        %v4110 = vlaneseq
        %v4111 = vshrl.u32 %v4110, 7
        %v4112 = vsub.s32 1, %v4111
        %v4113 = vrot.slane %v4104, %v4112
        %v4114 = vlaneseq
        %v4115 = vshrl.u32 %v4114, 7
        %v4116 = vsub.s32 2, %v4115
        %v4117 = vrot.slane %v4104, %v4116
        %v4118 = vlaneseq
        %v4119 = vshrl.u32 %v4118, 7
        %v4120 = vsub.s32 3, %v4119
        %v4121 = vrot.slane %v4104, %v4120
        %4126 = vmatprep.subr.mxu0 %v3977
        %4127 = vmatpush1.msra.mxu0 %v3976
        %4128 = vmatprep.subr.mxu0 %v3981
        %4129 = vmatpush1.msra.mxu0 %v3980
        %4130 = vmatprep.subr.mxu0 %v3985
        %4131 = vmatpush1.msra.mxu0 %v3984
        %4132 = vmatprep.subr.mxu0 %v3989
        %4133 = vmatpush1.msra.mxu0 %v3988
        %4134 = vmatprep.subr.mxu0 %v3993
        %4135 = vmatpush1.msra.mxu0 %v3992
        %4136 = vmatprep.subr.mxu0 %v3997
        %4137 = vmatpush1.msra.mxu0 %v3996
        %4138 = vmatprep.subr.mxu0 %v4001
        %4139 = vmatpush1.msra.mxu0 %v4000
        %4140 = vmatprep.subr.mxu0 %v4005
        %4141 = vmatpush1.msra.mxu0 %v4004
        %4142 = vmatprep.subr.mxu0 %v4009
        %4143 = vmatpush1.msra.mxu0 %v4008
        %4144 = vmatprep.subr.mxu0 %v4013
        %4145 = vmatpush1.msra.mxu0 %v4012
        %4146 = vmatprep.subr.mxu0 %v4017
        %4147 = vmatpush1.msra.mxu0 %v4016
        %4148 = vmatprep.subr.mxu0 %v4021
        %4149 = vmatpush1.msra.mxu0 %v4020
        %4150 = vmatprep.subr.mxu0 %v4025
        %4151 = vmatpush1.msra.mxu0 %v4024
        %4152 = vmatprep.subr.mxu0 %v4029
        %4153 = vmatpush1.msra.mxu0 %v4028
        %4154 = vmatprep.subr.mxu0 %v4033
        %4155 = vmatpush1.msra.mxu0 %v4032
        %4156 = vmatprep.subr.mxu0 %v4037
        %4157 = vmatpush1.msra.mxu0 %v4036
        %4158 = vmatprep.subr.mxu0 %v4041
        %4159 = vmatpush1.msra.mxu0 %v4040
        %4160 = vmatprep.subr.mxu0 %v4045
        %4161 = vmatpush1.msra.mxu0 %v4044
        %4162 = vmatprep.subr.mxu0 %v4049
        %4163 = vmatpush1.msra.mxu0 %v4048
        %4164 = vmatprep.subr.mxu0 %v4053
        %4165 = vmatpush1.msra.mxu0 %v4052
        %4166 = vmatprep.subr.mxu0 %v4057
        %4167 = vmatpush1.msra.mxu0 %v4056
        %4168 = vmatprep.subr.mxu0 %v4061
        %4169 = vmatpush1.msra.mxu0 %v4060
        %4170 = vmatprep.subr.mxu0 %v4065
        %4171 = vmatpush1.msra.mxu0 %v4064
        %4172 = vmatprep.subr.mxu0 %v4069
        %4173 = vmatpush1.msra.mxu0 %v4068
        %4174 = vmatprep.subr.mxu0 %v4073
        %4175 = vmatpush1.msra.mxu0 %v4072
        %4176 = vmatprep.subr.mxu0 %v4077
        %4177 = vmatpush1.msra.mxu0 %v4076
        %4178 = vmatprep.subr.mxu0 %v4081
        %4179 = vmatpush1.msra.mxu0 %v4080
        %4180 = vmatprep.subr.mxu0 %v4085
        %4181 = vmatpush1.msra.mxu0 %v4084
        %4182 = vmatprep.subr.mxu0 %v4089
        %4183 = vmatpush1.msra.mxu0 %v4088
        %4184 = vmatprep.subr.mxu0 %v4093
        %4185 = vmatpush1.msra.mxu0 %v4092
        %4186 = vmatprep.subr.mxu0 %v4097
        %4187 = vmatpush1.msra.mxu0 %v4096
        %4188 = vmatprep.subr.mxu0 %v4101
        %4189 = vmatpush1.msra.mxu0 %v4100
        %4190 = vmatprep.mubr.f32.mxu0 %v3856
        %4191 = vmatmul.mubr.f32.gmra.mrb[0].mxu0 %v3975
        %v4192 = vpop.f32.mrb[0].mxu0
        %v4193 = vadd.f32 %v4109, %v4192
        %v4194 = vpop.f32.mrb[0].mxu0
        %v4195 = vadd.f32 %v4113, %v4194
        %4196 = vdwg.mxu0
        %4197 = vmatprep.subr.mxu0 %v3979
        %4198 = vmatpush1.msra.mxu0 %v3978
        %4199 = vmatprep.subr.mxu0 %v3983
        %4200 = vmatpush1.msra.mxu0 %v3982
        %4201 = vmatprep.subr.mxu0 %v3987
        %4202 = vmatpush1.msra.mxu0 %v3986
        %4203 = vmatprep.subr.mxu0 %v3991
        %4204 = vmatpush1.msra.mxu0 %v3990
        %4205 = vmatprep.subr.mxu0 %v3995
        %4206 = vmatpush1.msra.mxu0 %v3994
        %4207 = vmatprep.subr.mxu0 %v3999
        %4208 = vmatpush1.msra.mxu0 %v3998
        %4209 = vmatprep.subr.mxu0 %v4003
        %4210 = vmatpush1.msra.mxu0 %v4002
        %4211 = vmatprep.subr.mxu0 %v4007
        %4212 = vmatpush1.msra.mxu0 %v4006
        %4213 = vmatprep.subr.mxu0 %v4011
        %4214 = vmatpush1.msra.mxu0 %v4010
        %4215 = vmatprep.subr.mxu0 %v4015
        %4216 = vmatpush1.msra.mxu0 %v4014
        %4217 = vmatprep.subr.mxu0 %v4019
        %4218 = vmatpush1.msra.mxu0 %v4018
        %4219 = vmatprep.subr.mxu0 %v4023
        %4220 = vmatpush1.msra.mxu0 %v4022
        %4221 = vmatprep.subr.mxu0 %v4027
        %4222 = vmatpush1.msra.mxu0 %v4026
        %4223 = vmatprep.subr.mxu0 %v4031
        %4224 = vmatpush1.msra.mxu0 %v4030
        %4225 = vmatprep.subr.mxu0 %v4035
        %4226 = vmatpush1.msra.mxu0 %v4034
        %4227 = vmatprep.subr.mxu0 %v4039
        %4228 = vmatpush1.msra.mxu0 %v4038
        %4229 = vmatprep.subr.mxu0 %v4043
        %4230 = vmatpush1.msra.mxu0 %v4042
        %4231 = vmatprep.subr.mxu0 %v4047
        %4232 = vmatpush1.msra.mxu0 %v4046
        %4233 = vmatprep.subr.mxu0 %v4051
        %4234 = vmatpush1.msra.mxu0 %v4050
        %4235 = vmatprep.subr.mxu0 %v4055
        %4236 = vmatpush1.msra.mxu0 %v4054
        %4237 = vmatprep.subr.mxu0 %v4059
        %4238 = vmatpush1.msra.mxu0 %v4058
        %4239 = vmatprep.subr.mxu0 %v4063
        %4240 = vmatpush1.msra.mxu0 %v4062
        %4241 = vmatprep.subr.mxu0 %v4067
        %4242 = vmatpush1.msra.mxu0 %v4066
        %4243 = vmatprep.subr.mxu0 %v4071
        %4244 = vmatpush1.msra.mxu0 %v4070
        %4245 = vmatprep.subr.mxu0 %v4075
        %4246 = vmatpush1.msra.mxu0 %v4074
        %4247 = vmatprep.subr.mxu0 %v4079
        %4248 = vmatpush1.msra.mxu0 %v4078
        %4249 = vmatprep.subr.mxu0 %v4083
        %4250 = vmatpush1.msra.mxu0 %v4082
        %4251 = vmatprep.subr.mxu0 %v4087
        %4252 = vmatpush1.msra.mxu0 %v4086
        %4253 = vmatprep.subr.mxu0 %v4091
        %4254 = vmatpush1.msra.mxu0 %v4090
        %4255 = vmatprep.subr.mxu0 %v4095
        %4256 = vmatpush1.msra.mxu0 %v4094
        %4257 = vmatprep.subr.mxu0 %v4099
        %4258 = vmatpush1.msra.mxu0 %v4098
        %4259 = vmatprep.subr.mxu0 %v4103
        %4260 = vmatpush1.msra.mxu0 %v4102
        %4261 = vmatprep.mubr.f32.mxu0 %v3856
        %4262 = vmatmul.mubr.f32.gmra.mrb[0].mxu0 %v3975
        %v4263 = vpop.f32.mrb[0].mxu0
        %v4264 = vadd.f32 %v4117, %v4263
        %v4265 = vpop.f32.mrb[0].mxu0
        %v4266 = vadd.f32 %v4121, %v4265
        %4267 = vdwg.mxu0
        %v4268 = vxor.u32 %v4193, 2147483648
        %v4269 = vxor.u32 %v4195, 2147483648
        %v4270 = vxor.u32 %v4264, 2147483648
        %v4271 = vmul.f32 %v4268, 1.442695
        %v4272 = vpow.pop %v4271
        %v4273 = vmul.f32 %v4269, 1.442695
        %v4274 = vpow.pop %v4273
        %v4275 = vmul.f32 %v4270, 1.442695
        %v4276 = vpow.pop %v4275
        %v4277 = vadd.f32 %v4272, 1.0
        %v4278 = vadd.f32 %v4274, 1.0
        %v4279 = vadd.f32 %v4276, 1.0
        %v4280 = vrcp.pop %v4277
        %v4281 = vmul.f32 1.0, %v4280
        %v4282 = vrcp.pop %v4278
        %v4283 = vmul.f32 1.0, %v4282
        %v4284 = vrcp.pop %v4279
        %v4285 = vmul.f32 1.0, %v4284
        %v4286 = vtanh.pop %v4266
        %v4287 = vmul.f32 %v4283, %v3854
        %v4288 = vmul.f32 %v4281, %v4286
        %v4289 = vadd.f32 %v4287, %v4288
        %v4290 = vtanh.pop %v4289
        %v4291 = vmul.f32 %v4285, %v4290
        %v4292 = vld [vmem:[%s8] sm:$0xff]
        %v4293 = vld [vmem:[%s8 + $0x8] sm:$0xff]
        %v4294 = vld [vmem:[%s8 + $0x10] sm:$0xff]
        %v4295 = vld [vmem:[%s8 + $0x18] sm:$0xff]
        %v4296 = vld [vmem:[%s8 + $0x20] sm:$0xff]
        %v4297 = vld [vmem:[%s8 + $0x28] sm:$0xff]
        %v4298 = vld [vmem:[%s8 + $0x30] sm:$0xff]
        %v4299 = vld [vmem:[%s8 + $0x38] sm:$0xff]
        %v4300 = vld [vmem:[%s8 + $0x40] sm:$0xff]
        %v4301 = vld [vmem:[%s8 + $0x48] sm:$0xff]
        %v4302 = vld [vmem:[%s8 + $0x50] sm:$0xff]
        %v4303 = vld [vmem:[%s8 + $0x58] sm:$0xff]
        %v4304 = vld [vmem:[%s8 + $0x60] sm:$0xff]
        %v4305 = vld [vmem:[%s8 + $0x68] sm:$0xff]
        %v4306 = vld [vmem:[%s8 + $0x70] sm:$0xff]
        %v4307 = vld [vmem:[%s8 + $0x78] sm:$0xff]
        %v4308 = vld [vmem:[%s9] sm:$0x1]
        %v4310 = vlaneseq
        %v4311 = vshrl.u32 %v4310, 7
        %v4312 = vsub.s32 0, %v4311
        %v4313 = vrot.slane %v4308, %v4312
        %4315 = vmatprep.subr.mxu0 0.0
        %4316 = vmatpush1.msra.mxu0 %v4292
        %4317 = vmatprep.subr.mxu0 0.0
        %4318 = vmatpush1.msra.mxu0 %v4293
        %4319 = vmatprep.subr.mxu0 0.0
        %4320 = vmatpush1.msra.mxu0 %v4294
        %4321 = vmatprep.subr.mxu0 0.0
        %4322 = vmatpush1.msra.mxu0 %v4295
        %4323 = vmatprep.subr.mxu0 0.0
        %4324 = vmatpush1.msra.mxu0 %v4296
        %4325 = vmatprep.subr.mxu0 0.0
        %4326 = vmatpush1.msra.mxu0 %v4297
        %4327 = vmatprep.subr.mxu0 0.0
        %4328 = vmatpush1.msra.mxu0 %v4298
        %4329 = vmatprep.subr.mxu0 0.0
        %4330 = vmatpush1.msra.mxu0 %v4299
        %4331 = vmatprep.subr.mxu0 0.0
        %4332 = vmatpush1.msra.mxu0 %v4300
        %4333 = vmatprep.subr.mxu0 0.0
        %4334 = vmatpush1.msra.mxu0 %v4301
        %4335 = vmatprep.subr.mxu0 0.0
        %4336 = vmatpush1.msra.mxu0 %v4302
        %4337 = vmatprep.subr.mxu0 0.0
        %4338 = vmatpush1.msra.mxu0 %v4303
        %4339 = vmatprep.subr.mxu0 0.0
        %4340 = vmatpush1.msra.mxu0 %v4304
        %4341 = vmatprep.subr.mxu0 0.0
        %4342 = vmatpush1.msra.mxu0 %v4305
        %4343 = vmatprep.subr.mxu0 0.0
        %4344 = vmatpush1.msra.mxu0 %v4306
        %4345 = vmatprep.subr.mxu0 0.0
        %4346 = vmatpush1.msra.mxu0 %v4307
        %4347 = vmatprep.subr.mxu0 0.0
        %4348 = vmatpush1.msra.mxu0 0.0
        %4349 = vmatprep.subr.mxu0 0.0
        %4350 = vmatpush1.msra.mxu0 0.0
        %4351 = vmatprep.subr.mxu0 0.0
        %4352 = vmatpush1.msra.mxu0 0.0
        %4353 = vmatprep.subr.mxu0 0.0
        %4354 = vmatpush1.msra.mxu0 0.0
        %4355 = vmatprep.subr.mxu0 0.0
        %4356 = vmatpush1.msra.mxu0 0.0
        %4357 = vmatprep.subr.mxu0 0.0
        %4358 = vmatpush1.msra.mxu0 0.0
        %4359 = vmatprep.subr.mxu0 0.0
        %4360 = vmatpush1.msra.mxu0 0.0
        %4361 = vmatprep.subr.mxu0 0.0
        %4362 = vmatpush1.msra.mxu0 0.0
        %4363 = vmatprep.subr.mxu0 0.0
        %4364 = vmatpush1.msra.mxu0 0.0
        %4365 = vmatprep.subr.mxu0 0.0
        %4366 = vmatpush1.msra.mxu0 0.0
        %4367 = vmatprep.subr.mxu0 0.0
        %4368 = vmatpush1.msra.mxu0 0.0
        %4369 = vmatprep.subr.mxu0 0.0
        %4370 = vmatpush1.msra.mxu0 0.0
        %4371 = vmatprep.subr.mxu0 0.0
        %4372 = vmatpush1.msra.mxu0 0.0
        %4373 = vmatprep.subr.mxu0 0.0
        %4374 = vmatpush1.msra.mxu0 0.0
        %4375 = vmatprep.subr.mxu0 0.0
        %4376 = vmatpush1.msra.mxu0 0.0
        %4377 = vmatprep.subr.mxu0 0.0
        %4378 = vmatpush1.msra.mxu0 0.0
        %4379 = vmatprep.mubr.f32.mxu0 0.0
        %4380 = vmatmul.mubr.f32.gmra.mrb[0].mxu0 %v4291
        %v4381 = vpop.f32.mrb[0].mxu0
        %v4382 = vadd.f32 %v4313, %v4381
        %v4383 = vpop.f32.mrb[0].mxu0
        %4384 = vdwg.mxu0
        %4385 = vst [vmem:[%s435 + $0x20] sm:$0xff] %v4382
        %4386 = vmax.xlane.f32.xlu0 %v4382
        %v4387 = vpop.xlane.xlu0 %4386
        %vm4388 = vcmp.eq.f32.partialorder %v4382, %v4387
        %v4389 = vsel %vm4388, %v438, 128
        %v4390 = vand.u32 %v4389, 65535
        %v4391 = vshra.s32 %v4389, 16
        %v4392 = vcvt.s32.f32 %v4390
        %v4393 = vcvt.s32.f32 %v4391
        %4394 = vmin.xlane.f32.xlu0 %v4393
        %v4395 = vpop.xlane.xlu0 %4394
        %vm4396 = vcmp.eq.f32.partialorder %v4393, %v4395
        %v4397 = vsel %vm4396, %v4392, inf
        %4398 = vmin.xlane.f32.xlu0 %v4397
        %v4399 = vpop.xlane.xlu0 %4398
        %v4400 = vcvt.f32.s32 %v4399
        %v4401 = vcvt.f32.s32 %v4395
        %v4402 = vshll.u32 %v4401, 16
        %v4403 = vadd.s32 %v4402, %v4400
        %vm4404 = vcmp.eq.s32.totalorder %v438, %v4403
        %v4405 = vsel %vm4404, 1, 0
        %v4406 = vcvt.s32.f32 %v4405
        %v4407 = vld [vmem:[%s423 + $0x20] sm:$0xff]
        %v4408 = vld [vmem:[%s429 + $0x20] sm:$0xff]
        %vm4409 = vcmp.gt.f32.partialorder %v4408, 0.5
        %v4410 = vsel %vm4409, %v4407, %v4406
        %v4411 = vld [vmem:[#allocation5] sm:$0xff]
        %v4412 = vld [vmem:[#allocation5 + $0x8] sm:$0xff]
        %v4413 = vld [vmem:[#allocation5 + $0x10] sm:$0xff]
        %v4414 = vld [vmem:[#allocation5 + $0x18] sm:$0xff]
        %v4415 = vld [vmem:[#allocation5 + $0x20] sm:$0xff]
        %v4416 = vld [vmem:[#allocation5 + $0x28] sm:$0xff]
        %v4417 = vld [vmem:[#allocation5 + $0x30] sm:$0xff]
        %v4418 = vld [vmem:[#allocation5 + $0x38] sm:$0xff]
        %v4419 = vld [vmem:[#allocation5 + $0x40] sm:$0xff]
        %v4420 = vld [vmem:[#allocation5 + $0x48] sm:$0xff]
        %v4421 = vld [vmem:[#allocation5 + $0x50] sm:$0xff]
        %v4422 = vld [vmem:[#allocation5 + $0x58] sm:$0xff]
        %v4423 = vld [vmem:[#allocation5 + $0x60] sm:$0xff]
        %v4424 = vld [vmem:[#allocation5 + $0x68] sm:$0xff]
        %v4425 = vld [vmem:[#allocation5 + $0x70] sm:$0xff]
        %v4426 = vld [vmem:[#allocation5 + $0x78] sm:$0xff]
        %v4427 = vld [vmem:[#allocation5 + $0x80] sm:$0xff]
        %v4428 = vld [vmem:[#allocation5 + $0x88] sm:$0xff]
        %v4429 = vld [vmem:[#allocation5 + $0x90] sm:$0xff]
        %v4430 = vld [vmem:[#allocation5 + $0x98] sm:$0xff]
        %v4431 = vld [vmem:[#allocation5 + $0xa0] sm:$0xff]
        %v4432 = vld [vmem:[#allocation5 + $0xa8] sm:$0xff]
        %v4433 = vld [vmem:[#allocation5 + $0xb0] sm:$0xff]
        %v4434 = vld [vmem:[#allocation5 + $0xb8] sm:$0xff]
        %v4435 = vld [vmem:[#allocation5 + $0xc0] sm:$0xff]
        %v4436 = vld [vmem:[#allocation5 + $0xc8] sm:$0xff]
        %v4437 = vld [vmem:[#allocation5 + $0xd0] sm:$0xff]
        %v4438 = vld [vmem:[#allocation5 + $0xd8] sm:$0xff]
        %v4439 = vld [vmem:[#allocation5 + $0xe0] sm:$0xff]
        %v4440 = vld [vmem:[#allocation5 + $0xe8] sm:$0xff]
        %v4441 = vld [vmem:[#allocation5 + $0xf0] sm:$0xff]
        %v4442 = vld [vmem:[#allocation5 + $0xf8] sm:$0xff]
        %v4443 = vld [vmem:[#allocation5 + $0x100] sm:$0xff]
        %v4444 = vld [vmem:[#allocation5 + $0x108] sm:$0xff]
        %v4445 = vld [vmem:[#allocation5 + $0x110] sm:$0xff]
        %v4446 = vld [vmem:[#allocation5 + $0x118] sm:$0xff]
        %v4447 = vld [vmem:[#allocation5 + $0x120] sm:$0xff]
        %v4448 = vld [vmem:[#allocation5 + $0x128] sm:$0xff]
        %v4449 = vld [vmem:[#allocation5 + $0x130] sm:$0xff]
        %v4450 = vld [vmem:[#allocation5 + $0x138] sm:$0xff]
        %v4451 = vld [vmem:[#allocation5 + $0x140] sm:$0xff]
        %v4452 = vld [vmem:[#allocation5 + $0x148] sm:$0xff]
        %v4453 = vld [vmem:[#allocation5 + $0x150] sm:$0xff]
        %v4454 = vld [vmem:[#allocation5 + $0x158] sm:$0xff]
        %v4455 = vld [vmem:[#allocation5 + $0x160] sm:$0xff]
        %v4456 = vld [vmem:[#allocation5 + $0x168] sm:$0xff]
        %v4457 = vld [vmem:[#allocation5 + $0x170] sm:$0xff]
        %v4458 = vld [vmem:[#allocation5 + $0x178] sm:$0xff]
        %v4459 = vld [vmem:[#allocation5 + $0x180] sm:$0xff]
        %v4460 = vld [vmem:[#allocation5 + $0x188] sm:$0xff]
        %v4461 = vld [vmem:[#allocation5 + $0x190] sm:$0xff]
        %v4462 = vld [vmem:[#allocation5 + $0x198] sm:$0xff]
        %v4463 = vld [vmem:[#allocation5 + $0x1a0] sm:$0xff]
        %v4464 = vld [vmem:[#allocation5 + $0x1a8] sm:$0xff]
        %v4465 = vld [vmem:[#allocation5 + $0x1b0] sm:$0xff]
        %v4466 = vld [vmem:[#allocation5 + $0x1b8] sm:$0xff]
        %v4467 = vld [vmem:[#allocation5 + $0x1c0] sm:$0xff]
        %v4468 = vld [vmem:[#allocation5 + $0x1c8] sm:$0xff]
        %v4469 = vld [vmem:[#allocation5 + $0x1d0] sm:$0xff]
        %v4470 = vld [vmem:[#allocation5 + $0x1d8] sm:$0xff]
        %v4471 = vld [vmem:[#allocation5 + $0x1e0] sm:$0xff]
        %v4472 = vld [vmem:[#allocation5 + $0x1e8] sm:$0xff]
        %v4473 = vld [vmem:[#allocation5 + $0x1f0] sm:$0xff]
        %v4474 = vld [vmem:[#allocation5 + $0x1f8] sm:$0xff]
        %v4475 = vld [vmem:[#allocation5 + $0x200] sm:$0xff]
        %v4476 = vld [vmem:[#allocation5 + $0x208] sm:$0xff]
        %v4477 = vld [vmem:[#allocation5 + $0x210] sm:$0xff]
        %v4478 = vld [vmem:[#allocation5 + $0x218] sm:$0xff]
        %v4479 = vld [vmem:[#allocation5 + $0x220] sm:$0xff]
        %v4480 = vld [vmem:[#allocation5 + $0x228] sm:$0xff]
        %v4481 = vld [vmem:[#allocation5 + $0x230] sm:$0xff]
        %v4482 = vld [vmem:[#allocation5 + $0x238] sm:$0xff]
        %v4483 = vld [vmem:[#allocation5 + $0x240] sm:$0xff]
        %v4484 = vld [vmem:[#allocation5 + $0x248] sm:$0xff]
        %v4485 = vld [vmem:[#allocation5 + $0x250] sm:$0xff]
        %v4486 = vld [vmem:[#allocation5 + $0x258] sm:$0xff]
        %v4487 = vld [vmem:[#allocation5 + $0x260] sm:$0xff]
        %v4488 = vld [vmem:[#allocation5 + $0x268] sm:$0xff]
        %v4489 = vld [vmem:[#allocation5 + $0x270] sm:$0xff]
        %v4490 = vld [vmem:[#allocation5 + $0x278] sm:$0xff]
        %v4491 = vld [vmem:[#allocation5 + $0x280] sm:$0xff]
        %v4492 = vld [vmem:[#allocation5 + $0x288] sm:$0xff]
        %v4493 = vld [vmem:[#allocation5 + $0x290] sm:$0xff]
        %v4494 = vld [vmem:[#allocation5 + $0x298] sm:$0xff]
        %v4495 = vld [vmem:[#allocation5 + $0x2a0] sm:$0xff]
        %v4496 = vld [vmem:[#allocation5 + $0x2a8] sm:$0xff]
        %v4497 = vld [vmem:[#allocation5 + $0x2b0] sm:$0xff]
        %v4498 = vld [vmem:[#allocation5 + $0x2b8] sm:$0xff]
        %v4499 = vld [vmem:[#allocation5 + $0x2c0] sm:$0xff]
        %v4500 = vld [vmem:[#allocation5 + $0x2c8] sm:$0xff]
        %v4501 = vld [vmem:[#allocation5 + $0x2d0] sm:$0xff]
        %v4502 = vld [vmem:[#allocation5 + $0x2d8] sm:$0xff]
        %v4503 = vld [vmem:[#allocation5 + $0x2e0] sm:$0xff]
        %v4504 = vld [vmem:[#allocation5 + $0x2e8] sm:$0xff]
        %v4505 = vld [vmem:[#allocation5 + $0x2f0] sm:$0xff]
        %v4506 = vld [vmem:[#allocation5 + $0x2f8] sm:$0xff]
        %v4507 = vld [vmem:[#allocation5 + $0x300] sm:$0xff]
        %v4508 = vld [vmem:[#allocation5 + $0x308] sm:$0xff]
        %v4509 = vld [vmem:[#allocation5 + $0x310] sm:$0xff]
        %v4510 = vld [vmem:[#allocation5 + $0x318] sm:$0xff]
        %v4511 = vld [vmem:[#allocation5 + $0x320] sm:$0xff]
        %v4512 = vld [vmem:[#allocation5 + $0x328] sm:$0xff]
        %v4513 = vld [vmem:[#allocation5 + $0x330] sm:$0xff]
        %v4514 = vld [vmem:[#allocation5 + $0x338] sm:$0xff]
        %v4515 = vld [vmem:[#allocation5 + $0x340] sm:$0xff]
        %v4516 = vld [vmem:[#allocation5 + $0x348] sm:$0xff]
        %v4517 = vld [vmem:[#allocation5 + $0x350] sm:$0xff]
        %v4518 = vld [vmem:[#allocation5 + $0x358] sm:$0xff]
        %v4519 = vld [vmem:[#allocation5 + $0x360] sm:$0xff]
        %v4520 = vld [vmem:[#allocation5 + $0x368] sm:$0xff]
        %v4521 = vld [vmem:[#allocation5 + $0x370] sm:$0xff]
        %v4522 = vld [vmem:[#allocation5 + $0x378] sm:$0xff]
        %v4523 = vld [vmem:[#allocation5 + $0x380] sm:$0xff]
        %v4524 = vld [vmem:[#allocation5 + $0x388] sm:$0xff]
        %v4525 = vld [vmem:[#allocation5 + $0x390] sm:$0xff]
        %v4526 = vld [vmem:[#allocation5 + $0x398] sm:$0xff]
        %v4527 = vld [vmem:[#allocation5 + $0x3a0] sm:$0xff]
        %v4528 = vld [vmem:[#allocation5 + $0x3a8] sm:$0xff]
        %v4529 = vld [vmem:[#allocation5 + $0x3b0] sm:$0xff]
        %v4530 = vld [vmem:[#allocation5 + $0x3b8] sm:$0xff]
        %v4531 = vld [vmem:[#allocation5 + $0x3c0] sm:$0xff]
        %v4532 = vld [vmem:[#allocation5 + $0x3c8] sm:$0xff]
        %v4533 = vld [vmem:[#allocation5 + $0x3d0] sm:$0xff]
        %v4534 = vld [vmem:[#allocation5 + $0x3d8] sm:$0xff]
        %v4535 = vld [vmem:[#allocation5 + $0x3e0] sm:$0xff]
        %v4536 = vld [vmem:[#allocation5 + $0x3e8] sm:$0xff]
        %v4537 = vld [vmem:[#allocation5 + $0x3f0] sm:$0xff]
        %v4538 = vld [vmem:[#allocation5 + $0x3f8] sm:$0xff]
        %v4539 = vld [vmem:[%s7] sm:$0xf]
        %v4541 = vlaneseq
        %v4542 = vshrl.u32 %v4541, 7
        %v4543 = vsub.s32 0, %v4542
        %v4544 = vrot.slane %v4539, %v4543
        %v4545 = vlaneseq
        %v4546 = vshrl.u32 %v4545, 7
        %v4547 = vsub.s32 1, %v4546
        %v4548 = vrot.slane %v4539, %v4547
        %v4549 = vlaneseq
        %v4550 = vshrl.u32 %v4549, 7
        %v4551 = vsub.s32 2, %v4550
        %v4552 = vrot.slane %v4539, %v4551
        %v4553 = vlaneseq
        %v4554 = vshrl.u32 %v4553, 7
        %v4555 = vsub.s32 3, %v4554
        %v4556 = vrot.slane %v4539, %v4555
        %4561 = vmatprep.subr.mxu0 %v4412
        %4562 = vmatpush1.msra.mxu0 %v4411
        %4563 = vmatprep.subr.mxu0 %v4416
        %4564 = vmatpush1.msra.mxu0 %v4415
        %4565 = vmatprep.subr.mxu0 %v4420
        %4566 = vmatpush1.msra.mxu0 %v4419
        %4567 = vmatprep.subr.mxu0 %v4424
        %4568 = vmatpush1.msra.mxu0 %v4423
        %4569 = vmatprep.subr.mxu0 %v4428
        %4570 = vmatpush1.msra.mxu0 %v4427
        %4571 = vmatprep.subr.mxu0 %v4432
        %4572 = vmatpush1.msra.mxu0 %v4431
        %4573 = vmatprep.subr.mxu0 %v4436
        %4574 = vmatpush1.msra.mxu0 %v4435
        %4575 = vmatprep.subr.mxu0 %v4440
        %4576 = vmatpush1.msra.mxu0 %v4439
        %4577 = vmatprep.subr.mxu0 %v4444
        %4578 = vmatpush1.msra.mxu0 %v4443
        %4579 = vmatprep.subr.mxu0 %v4448
        %4580 = vmatpush1.msra.mxu0 %v4447
        %4581 = vmatprep.subr.mxu0 %v4452
        %4582 = vmatpush1.msra.mxu0 %v4451
        %4583 = vmatprep.subr.mxu0 %v4456
        %4584 = vmatpush1.msra.mxu0 %v4455
        %4585 = vmatprep.subr.mxu0 %v4460
        %4586 = vmatpush1.msra.mxu0 %v4459
        %4587 = vmatprep.subr.mxu0 %v4464
        %4588 = vmatpush1.msra.mxu0 %v4463
        %4589 = vmatprep.subr.mxu0 %v4468
        %4590 = vmatpush1.msra.mxu0 %v4467
        %4591 = vmatprep.subr.mxu0 %v4472
        %4592 = vmatpush1.msra.mxu0 %v4471
        %4593 = vmatprep.subr.mxu0 %v4476
        %4594 = vmatpush1.msra.mxu0 %v4475
        %4595 = vmatprep.subr.mxu0 %v4480
        %4596 = vmatpush1.msra.mxu0 %v4479
        %4597 = vmatprep.subr.mxu0 %v4484
        %4598 = vmatpush1.msra.mxu0 %v4483
        %4599 = vmatprep.subr.mxu0 %v4488
        %4600 = vmatpush1.msra.mxu0 %v4487
        %4601 = vmatprep.subr.mxu0 %v4492
        %4602 = vmatpush1.msra.mxu0 %v4491
        %4603 = vmatprep.subr.mxu0 %v4496
        %4604 = vmatpush1.msra.mxu0 %v4495
        %4605 = vmatprep.subr.mxu0 %v4500
        %4606 = vmatpush1.msra.mxu0 %v4499
        %4607 = vmatprep.subr.mxu0 %v4504
        %4608 = vmatpush1.msra.mxu0 %v4503
        %4609 = vmatprep.subr.mxu0 %v4508
        %4610 = vmatpush1.msra.mxu0 %v4507
        %4611 = vmatprep.subr.mxu0 %v4512
        %4612 = vmatpush1.msra.mxu0 %v4511
        %4613 = vmatprep.subr.mxu0 %v4516
        %4614 = vmatpush1.msra.mxu0 %v4515
        %4615 = vmatprep.subr.mxu0 %v4520
        %4616 = vmatpush1.msra.mxu0 %v4519
        %4617 = vmatprep.subr.mxu0 %v4524
        %4618 = vmatpush1.msra.mxu0 %v4523
        %4619 = vmatprep.subr.mxu0 %v4528
        %4620 = vmatpush1.msra.mxu0 %v4527
        %4621 = vmatprep.subr.mxu0 %v4532
        %4622 = vmatpush1.msra.mxu0 %v4531
        %4623 = vmatprep.subr.mxu0 %v4536
        %4624 = vmatpush1.msra.mxu0 %v4535
        %4625 = vmatprep.mubr.f32.mxu0 %v4291
        %4626 = vmatmul.mubr.f32.gmra.mrb[0].mxu0 %v4410
        %v4627 = vpop.f32.mrb[0].mxu0
        %v4628 = vadd.f32 %v4544, %v4627
        %v4629 = vpop.f32.mrb[0].mxu0
        %v4630 = vadd.f32 %v4548, %v4629
        %4631 = vdwg.mxu0
        %4632 = vmatprep.subr.mxu0 %v4414
        %4633 = vmatpush1.msra.mxu0 %v4413
        %4634 = vmatprep.subr.mxu0 %v4418
        %4635 = vmatpush1.msra.mxu0 %v4417
        %4636 = vmatprep.subr.mxu0 %v4422
        %4637 = vmatpush1.msra.mxu0 %v4421
        %4638 = vmatprep.subr.mxu0 %v4426
        %4639 = vmatpush1.msra.mxu0 %v4425
        %4640 = vmatprep.subr.mxu0 %v4430
        %4641 = vmatpush1.msra.mxu0 %v4429
        %4642 = vmatprep.subr.mxu0 %v4434
        %4643 = vmatpush1.msra.mxu0 %v4433
        %4644 = vmatprep.subr.mxu0 %v4438
        %4645 = vmatpush1.msra.mxu0 %v4437
        %4646 = vmatprep.subr.mxu0 %v4442
        %4647 = vmatpush1.msra.mxu0 %v4441
        %4648 = vmatprep.subr.mxu0 %v4446
        %4649 = vmatpush1.msra.mxu0 %v4445
        %4650 = vmatprep.subr.mxu0 %v4450
        %4651 = vmatpush1.msra.mxu0 %v4449
        %4652 = vmatprep.subr.mxu0 %v4454
        %4653 = vmatpush1.msra.mxu0 %v4453
        %4654 = vmatprep.subr.mxu0 %v4458
        %4655 = vmatpush1.msra.mxu0 %v4457
        %4656 = vmatprep.subr.mxu0 %v4462
        %4657 = vmatpush1.msra.mxu0 %v4461
        %4658 = vmatprep.subr.mxu0 %v4466
        %4659 = vmatpush1.msra.mxu0 %v4465
        %4660 = vmatprep.subr.mxu0 %v4470
        %4661 = vmatpush1.msra.mxu0 %v4469
        %4662 = vmatprep.subr.mxu0 %v4474
        %4663 = vmatpush1.msra.mxu0 %v4473
        %4664 = vmatprep.subr.mxu0 %v4478
        %4665 = vmatpush1.msra.mxu0 %v4477
        %4666 = vmatprep.subr.mxu0 %v4482
        %4667 = vmatpush1.msra.mxu0 %v4481
        %4668 = vmatprep.subr.mxu0 %v4486
        %4669 = vmatpush1.msra.mxu0 %v4485
        %4670 = vmatprep.subr.mxu0 %v4490
        %4671 = vmatpush1.msra.mxu0 %v4489
        %4672 = vmatprep.subr.mxu0 %v4494
        %4673 = vmatpush1.msra.mxu0 %v4493
        %4674 = vmatprep.subr.mxu0 %v4498
        %4675 = vmatpush1.msra.mxu0 %v4497
        %4676 = vmatprep.subr.mxu0 %v4502
        %4677 = vmatpush1.msra.mxu0 %v4501
        %4678 = vmatprep.subr.mxu0 %v4506
        %4679 = vmatpush1.msra.mxu0 %v4505
        %4680 = vmatprep.subr.mxu0 %v4510
        %4681 = vmatpush1.msra.mxu0 %v4509
        %4682 = vmatprep.subr.mxu0 %v4514
        %4683 = vmatpush1.msra.mxu0 %v4513
        %4684 = vmatprep.subr.mxu0 %v4518
        %4685 = vmatpush1.msra.mxu0 %v4517
        %4686 = vmatprep.subr.mxu0 %v4522
        %4687 = vmatpush1.msra.mxu0 %v4521
        %4688 = vmatprep.subr.mxu0 %v4526
        %4689 = vmatpush1.msra.mxu0 %v4525
        %4690 = vmatprep.subr.mxu0 %v4530
        %4691 = vmatpush1.msra.mxu0 %v4529
        %4692 = vmatprep.subr.mxu0 %v4534
        %4693 = vmatpush1.msra.mxu0 %v4533
        %4694 = vmatprep.subr.mxu0 %v4538
        %4695 = vmatpush1.msra.mxu0 %v4537
        %4696 = vmatprep.mubr.f32.mxu0 %v4291
        %4697 = vmatmul.mubr.f32.gmra.mrb[0].mxu0 %v4410
        %v4698 = vpop.f32.mrb[0].mxu0
        %v4699 = vadd.f32 %v4552, %v4698
        %v4700 = vpop.f32.mrb[0].mxu0
        %v4701 = vadd.f32 %v4556, %v4700
        %4702 = vdwg.mxu0
        %v4703 = vxor.u32 %v4628, 2147483648
        %v4704 = vxor.u32 %v4630, 2147483648
        %v4705 = vxor.u32 %v4699, 2147483648
        %v4706 = vmul.f32 %v4703, 1.442695
        %v4707 = vpow.pop %v4706
        %v4708 = vmul.f32 %v4704, 1.442695
        %v4709 = vpow.pop %v4708
        %v4710 = vmul.f32 %v4705, 1.442695
        %v4711 = vpow.pop %v4710
        %v4712 = vadd.f32 %v4707, 1.0
        %v4713 = vadd.f32 %v4709, 1.0
        %v4714 = vadd.f32 %v4711, 1.0
        %v4715 = vrcp.pop %v4712
        %v4716 = vmul.f32 1.0, %v4715
        %v4717 = vrcp.pop %v4713
        %v4718 = vmul.f32 1.0, %v4717
        %v4719 = vrcp.pop %v4714
        %v4720 = vmul.f32 1.0, %v4719
        %v4721 = vtanh.pop %v4701
        %v4722 = vmul.f32 %v4718, %v4289
        %v4723 = vmul.f32 %v4716, %v4721
        %v4724 = vadd.f32 %v4722, %v4723
        %v4725 = vtanh.pop %v4724
        %v4726 = vmul.f32 %v4720, %v4725
        %v4727 = vld [vmem:[%s8] sm:$0xff]
        %v4728 = vld [vmem:[%s8 + $0x8] sm:$0xff]
        %v4729 = vld [vmem:[%s8 + $0x10] sm:$0xff]
        %v4730 = vld [vmem:[%s8 + $0x18] sm:$0xff]
        %v4731 = vld [vmem:[%s8 + $0x20] sm:$0xff]
        %v4732 = vld [vmem:[%s8 + $0x28] sm:$0xff]
        %v4733 = vld [vmem:[%s8 + $0x30] sm:$0xff]
        %v4734 = vld [vmem:[%s8 + $0x38] sm:$0xff]
        %v4735 = vld [vmem:[%s8 + $0x40] sm:$0xff]
        %v4736 = vld [vmem:[%s8 + $0x48] sm:$0xff]
        %v4737 = vld [vmem:[%s8 + $0x50] sm:$0xff]
        %v4738 = vld [vmem:[%s8 + $0x58] sm:$0xff]
        %v4739 = vld [vmem:[%s8 + $0x60] sm:$0xff]
        %v4740 = vld [vmem:[%s8 + $0x68] sm:$0xff]
        %v4741 = vld [vmem:[%s8 + $0x70] sm:$0xff]
        %v4742 = vld [vmem:[%s8 + $0x78] sm:$0xff]
        %v4743 = vld [vmem:[%s9] sm:$0x1]
        %v4745 = vlaneseq
        %v4746 = vshrl.u32 %v4745, 7
        %v4747 = vsub.s32 0, %v4746
        %v4748 = vrot.slane %v4743, %v4747
        %4750 = vmatprep.subr.mxu0 0.0
        %4751 = vmatpush1.msra.mxu0 %v4727
        %4752 = vmatprep.subr.mxu0 0.0
        %4753 = vmatpush1.msra.mxu0 %v4728
        %4754 = vmatprep.subr.mxu0 0.0
        %4755 = vmatpush1.msra.mxu0 %v4729
        %4756 = vmatprep.subr.mxu0 0.0
        %4757 = vmatpush1.msra.mxu0 %v4730
        %4758 = vmatprep.subr.mxu0 0.0
        %4759 = vmatpush1.msra.mxu0 %v4731
        %4760 = vmatprep.subr.mxu0 0.0
        %4761 = vmatpush1.msra.mxu0 %v4732
        %4762 = vmatprep.subr.mxu0 0.0
        %4763 = vmatpush1.msra.mxu0 %v4733
        %4764 = vmatprep.subr.mxu0 0.0
        %4765 = vmatpush1.msra.mxu0 %v4734
        %4766 = vmatprep.subr.mxu0 0.0
        %4767 = vmatpush1.msra.mxu0 %v4735
        %4768 = vmatprep.subr.mxu0 0.0
        %4769 = vmatpush1.msra.mxu0 %v4736
        %4770 = vmatprep.subr.mxu0 0.0
        %4771 = vmatpush1.msra.mxu0 %v4737
        %4772 = vmatprep.subr.mxu0 0.0
        %4773 = vmatpush1.msra.mxu0 %v4738
        %4774 = vmatprep.subr.mxu0 0.0
        %4775 = vmatpush1.msra.mxu0 %v4739
        %4776 = vmatprep.subr.mxu0 0.0
        %4777 = vmatpush1.msra.mxu0 %v4740
        %4778 = vmatprep.subr.mxu0 0.0
        %4779 = vmatpush1.msra.mxu0 %v4741
        %4780 = vmatprep.subr.mxu0 0.0
        %4781 = vmatpush1.msra.mxu0 %v4742
        %4782 = vmatprep.subr.mxu0 0.0
        %4783 = vmatpush1.msra.mxu0 0.0
        %4784 = vmatprep.subr.mxu0 0.0
        %4785 = vmatpush1.msra.mxu0 0.0
        %4786 = vmatprep.subr.mxu0 0.0
        %4787 = vmatpush1.msra.mxu0 0.0
        %4788 = vmatprep.subr.mxu0 0.0
        %4789 = vmatpush1.msra.mxu0 0.0
        %4790 = vmatprep.subr.mxu0 0.0
        %4791 = vmatpush1.msra.mxu0 0.0
        %4792 = vmatprep.subr.mxu0 0.0
        %4793 = vmatpush1.msra.mxu0 0.0
        %4794 = vmatprep.subr.mxu0 0.0
        %4795 = vmatpush1.msra.mxu0 0.0
        %4796 = vmatprep.subr.mxu0 0.0
        %4797 = vmatpush1.msra.mxu0 0.0
        %4798 = vmatprep.subr.mxu0 0.0
        %4799 = vmatpush1.msra.mxu0 0.0
        %4800 = vmatprep.subr.mxu0 0.0
        %4801 = vmatpush1.msra.mxu0 0.0
        %4802 = vmatprep.subr.mxu0 0.0
        %4803 = vmatpush1.msra.mxu0 0.0
        %4804 = vmatprep.subr.mxu0 0.0
        %4805 = vmatpush1.msra.mxu0 0.0
        %4806 = vmatprep.subr.mxu0 0.0
        %4807 = vmatpush1.msra.mxu0 0.0
        %4808 = vmatprep.subr.mxu0 0.0
        %4809 = vmatpush1.msra.mxu0 0.0
        %4810 = vmatprep.subr.mxu0 0.0
        %4811 = vmatpush1.msra.mxu0 0.0
        %4812 = vmatprep.subr.mxu0 0.0
        %4813 = vmatpush1.msra.mxu0 0.0
        %4814 = vmatprep.mubr.f32.mxu0 0.0
        %4815 = vmatmul.mubr.f32.gmra.mrb[0].mxu0 %v4726
        %v4816 = vpop.f32.mrb[0].mxu0
        %v4817 = vadd.f32 %v4748, %v4816
        %v4818 = vpop.f32.mrb[0].mxu0
        %4819 = vdwg.mxu0
        %4820 = vst [vmem:[%s435 + $0x28] sm:$0xff] %v4817
        %4821 = vmax.xlane.f32.xlu0 %v4817
        %v4822 = vpop.xlane.xlu0 %4821
        %vm4823 = vcmp.eq.f32.partialorder %v4817, %v4822
        %v4824 = vsel %vm4823, %v438, 128
        %v4825 = vand.u32 %v4824, 65535
        %v4826 = vshra.s32 %v4824, 16
        %v4827 = vcvt.s32.f32 %v4825
        %v4828 = vcvt.s32.f32 %v4826
        %4829 = vmin.xlane.f32.xlu0 %v4828
        %v4830 = vpop.xlane.xlu0 %4829
        %vm4831 = vcmp.eq.f32.partialorder %v4828, %v4830
        %v4832 = vsel %vm4831, %v4827, inf
        %4833 = vmin.xlane.f32.xlu0 %v4832
        %v4834 = vpop.xlane.xlu0 %4833
        %v4835 = vcvt.f32.s32 %v4834
        %v4836 = vcvt.f32.s32 %v4830
        %v4837 = vshll.u32 %v4836, 16
        %v4838 = vadd.s32 %v4837, %v4835
        %vm4839 = vcmp.eq.s32.totalorder %v438, %v4838
        %v4840 = vsel %vm4839, 1, 0
        %v4841 = vcvt.s32.f32 %v4840
        %v4842 = vld [vmem:[%s423 + $0x28] sm:$0xff]
        %v4843 = vld [vmem:[%s429 + $0x28] sm:$0xff]
        %vm4844 = vcmp.gt.f32.partialorder %v4843, 0.5
        %v4845 = vsel %vm4844, %v4842, %v4841
        %v4846 = vld [vmem:[#allocation5] sm:$0xff]
        %v4847 = vld [vmem:[#allocation5 + $0x8] sm:$0xff]
        %v4848 = vld [vmem:[#allocation5 + $0x10] sm:$0xff]
        %v4849 = vld [vmem:[#allocation5 + $0x18] sm:$0xff]
        %v4850 = vld [vmem:[#allocation5 + $0x20] sm:$0xff]
        %v4851 = vld [vmem:[#allocation5 + $0x28] sm:$0xff]
        %v4852 = vld [vmem:[#allocation5 + $0x30] sm:$0xff]
        %v4853 = vld [vmem:[#allocation5 + $0x38] sm:$0xff]
        %v4854 = vld [vmem:[#allocation5 + $0x40] sm:$0xff]
        %v4855 = vld [vmem:[#allocation5 + $0x48] sm:$0xff]
        %v4856 = vld [vmem:[#allocation5 + $0x50] sm:$0xff]
        %v4857 = vld [vmem:[#allocation5 + $0x58] sm:$0xff]
        %v4858 = vld [vmem:[#allocation5 + $0x60] sm:$0xff]
        %v4859 = vld [vmem:[#allocation5 + $0x68] sm:$0xff]
        %v4860 = vld [vmem:[#allocation5 + $0x70] sm:$0xff]
        %v4861 = vld [vmem:[#allocation5 + $0x78] sm:$0xff]
        %v4862 = vld [vmem:[#allocation5 + $0x80] sm:$0xff]
        %v4863 = vld [vmem:[#allocation5 + $0x88] sm:$0xff]
        %v4864 = vld [vmem:[#allocation5 + $0x90] sm:$0xff]
        %v4865 = vld [vmem:[#allocation5 + $0x98] sm:$0xff]
        %v4866 = vld [vmem:[#allocation5 + $0xa0] sm:$0xff]
        %v4867 = vld [vmem:[#allocation5 + $0xa8] sm:$0xff]
        %v4868 = vld [vmem:[#allocation5 + $0xb0] sm:$0xff]
        %v4869 = vld [vmem:[#allocation5 + $0xb8] sm:$0xff]
        %v4870 = vld [vmem:[#allocation5 + $0xc0] sm:$0xff]
        %v4871 = vld [vmem:[#allocation5 + $0xc8] sm:$0xff]
        %v4872 = vld [vmem:[#allocation5 + $0xd0] sm:$0xff]
        %v4873 = vld [vmem:[#allocation5 + $0xd8] sm:$0xff]
        %v4874 = vld [vmem:[#allocation5 + $0xe0] sm:$0xff]
        %v4875 = vld [vmem:[#allocation5 + $0xe8] sm:$0xff]
        %v4876 = vld [vmem:[#allocation5 + $0xf0] sm:$0xff]
        %v4877 = vld [vmem:[#allocation5 + $0xf8] sm:$0xff]
        %v4878 = vld [vmem:[#allocation5 + $0x100] sm:$0xff]
        %v4879 = vld [vmem:[#allocation5 + $0x108] sm:$0xff]
        %v4880 = vld [vmem:[#allocation5 + $0x110] sm:$0xff]
        %v4881 = vld [vmem:[#allocation5 + $0x118] sm:$0xff]
        %v4882 = vld [vmem:[#allocation5 + $0x120] sm:$0xff]
        %v4883 = vld [vmem:[#allocation5 + $0x128] sm:$0xff]
        %v4884 = vld [vmem:[#allocation5 + $0x130] sm:$0xff]
        %v4885 = vld [vmem:[#allocation5 + $0x138] sm:$0xff]
        %v4886 = vld [vmem:[#allocation5 + $0x140] sm:$0xff]
        %v4887 = vld [vmem:[#allocation5 + $0x148] sm:$0xff]
        %v4888 = vld [vmem:[#allocation5 + $0x150] sm:$0xff]
        %v4889 = vld [vmem:[#allocation5 + $0x158] sm:$0xff]
        %v4890 = vld [vmem:[#allocation5 + $0x160] sm:$0xff]
        %v4891 = vld [vmem:[#allocation5 + $0x168] sm:$0xff]
        %v4892 = vld [vmem:[#allocation5 + $0x170] sm:$0xff]
        %v4893 = vld [vmem:[#allocation5 + $0x178] sm:$0xff]
        %v4894 = vld [vmem:[#allocation5 + $0x180] sm:$0xff]
        %v4895 = vld [vmem:[#allocation5 + $0x188] sm:$0xff]
        %v4896 = vld [vmem:[#allocation5 + $0x190] sm:$0xff]
        %v4897 = vld [vmem:[#allocation5 + $0x198] sm:$0xff]
        %v4898 = vld [vmem:[#allocation5 + $0x1a0] sm:$0xff]
        %v4899 = vld [vmem:[#allocation5 + $0x1a8] sm:$0xff]
        %v4900 = vld [vmem:[#allocation5 + $0x1b0] sm:$0xff]
        %v4901 = vld [vmem:[#allocation5 + $0x1b8] sm:$0xff]
        %v4902 = vld [vmem:[#allocation5 + $0x1c0] sm:$0xff]
        %v4903 = vld [vmem:[#allocation5 + $0x1c8] sm:$0xff]
        %v4904 = vld [vmem:[#allocation5 + $0x1d0] sm:$0xff]
        %v4905 = vld [vmem:[#allocation5 + $0x1d8] sm:$0xff]
        %v4906 = vld [vmem:[#allocation5 + $0x1e0] sm:$0xff]
        %v4907 = vld [vmem:[#allocation5 + $0x1e8] sm:$0xff]
        %v4908 = vld [vmem:[#allocation5 + $0x1f0] sm:$0xff]
        %v4909 = vld [vmem:[#allocation5 + $0x1f8] sm:$0xff]
        %v4910 = vld [vmem:[#allocation5 + $0x200] sm:$0xff]
        %v4911 = vld [vmem:[#allocation5 + $0x208] sm:$0xff]
        %v4912 = vld [vmem:[#allocation5 + $0x210] sm:$0xff]
        %v4913 = vld [vmem:[#allocation5 + $0x218] sm:$0xff]
        %v4914 = vld [vmem:[#allocation5 + $0x220] sm:$0xff]
        %v4915 = vld [vmem:[#allocation5 + $0x228] sm:$0xff]
        %v4916 = vld [vmem:[#allocation5 + $0x230] sm:$0xff]
        %v4917 = vld [vmem:[#allocation5 + $0x238] sm:$0xff]
        %v4918 = vld [vmem:[#allocation5 + $0x240] sm:$0xff]
        %v4919 = vld [vmem:[#allocation5 + $0x248] sm:$0xff]
        %v4920 = vld [vmem:[#allocation5 + $0x250] sm:$0xff]
        %v4921 = vld [vmem:[#allocation5 + $0x258] sm:$0xff]
        %v4922 = vld [vmem:[#allocation5 + $0x260] sm:$0xff]
        %v4923 = vld [vmem:[#allocation5 + $0x268] sm:$0xff]
        %v4924 = vld [vmem:[#allocation5 + $0x270] sm:$0xff]
        %v4925 = vld [vmem:[#allocation5 + $0x278] sm:$0xff]
        %v4926 = vld [vmem:[#allocation5 + $0x280] sm:$0xff]
        %v4927 = vld [vmem:[#allocation5 + $0x288] sm:$0xff]
        %v4928 = vld [vmem:[#allocation5 + $0x290] sm:$0xff]
        %v4929 = vld [vmem:[#allocation5 + $0x298] sm:$0xff]
        %v4930 = vld [vmem:[#allocation5 + $0x2a0] sm:$0xff]
        %v4931 = vld [vmem:[#allocation5 + $0x2a8] sm:$0xff]
        %v4932 = vld [vmem:[#allocation5 + $0x2b0] sm:$0xff]
        %v4933 = vld [vmem:[#allocation5 + $0x2b8] sm:$0xff]
        %v4934 = vld [vmem:[#allocation5 + $0x2c0] sm:$0xff]
        %v4935 = vld [vmem:[#allocation5 + $0x2c8] sm:$0xff]
        %v4936 = vld [vmem:[#allocation5 + $0x2d0] sm:$0xff]
        %v4937 = vld [vmem:[#allocation5 + $0x2d8] sm:$0xff]
        %v4938 = vld [vmem:[#allocation5 + $0x2e0] sm:$0xff]
        %v4939 = vld [vmem:[#allocation5 + $0x2e8] sm:$0xff]
        %v4940 = vld [vmem:[#allocation5 + $0x2f0] sm:$0xff]
        %v4941 = vld [vmem:[#allocation5 + $0x2f8] sm:$0xff]
        %v4942 = vld [vmem:[#allocation5 + $0x300] sm:$0xff]
        %v4943 = vld [vmem:[#allocation5 + $0x308] sm:$0xff]
        %v4944 = vld [vmem:[#allocation5 + $0x310] sm:$0xff]
        %v4945 = vld [vmem:[#allocation5 + $0x318] sm:$0xff]
        %v4946 = vld [vmem:[#allocation5 + $0x320] sm:$0xff]
        %v4947 = vld [vmem:[#allocation5 + $0x328] sm:$0xff]
        %v4948 = vld [vmem:[#allocation5 + $0x330] sm:$0xff]
        %v4949 = vld [vmem:[#allocation5 + $0x338] sm:$0xff]
        %v4950 = vld [vmem:[#allocation5 + $0x340] sm:$0xff]
        %v4951 = vld [vmem:[#allocation5 + $0x348] sm:$0xff]
        %v4952 = vld [vmem:[#allocation5 + $0x350] sm:$0xff]
        %v4953 = vld [vmem:[#allocation5 + $0x358] sm:$0xff]
        %v4954 = vld [vmem:[#allocation5 + $0x360] sm:$0xff]
        %v4955 = vld [vmem:[#allocation5 + $0x368] sm:$0xff]
        %v4956 = vld [vmem:[#allocation5 + $0x370] sm:$0xff]
        %v4957 = vld [vmem:[#allocation5 + $0x378] sm:$0xff]
        %v4958 = vld [vmem:[#allocation5 + $0x380] sm:$0xff]
        %v4959 = vld [vmem:[#allocation5 + $0x388] sm:$0xff]
        %v4960 = vld [vmem:[#allocation5 + $0x390] sm:$0xff]
        %v4961 = vld [vmem:[#allocation5 + $0x398] sm:$0xff]
        %v4962 = vld [vmem:[#allocation5 + $0x3a0] sm:$0xff]
        %v4963 = vld [vmem:[#allocation5 + $0x3a8] sm:$0xff]
        %v4964 = vld [vmem:[#allocation5 + $0x3b0] sm:$0xff]
        %v4965 = vld [vmem:[#allocation5 + $0x3b8] sm:$0xff]
        %v4966 = vld [vmem:[#allocation5 + $0x3c0] sm:$0xff]
        %v4967 = vld [vmem:[#allocation5 + $0x3c8] sm:$0xff]
        %v4968 = vld [vmem:[#allocation5 + $0x3d0] sm:$0xff]
        %v4969 = vld [vmem:[#allocation5 + $0x3d8] sm:$0xff]
        %v4970 = vld [vmem:[#allocation5 + $0x3e0] sm:$0xff]
        %v4971 = vld [vmem:[#allocation5 + $0x3e8] sm:$0xff]
        %v4972 = vld [vmem:[#allocation5 + $0x3f0] sm:$0xff]
        %v4973 = vld [vmem:[#allocation5 + $0x3f8] sm:$0xff]
        %v4974 = vld [vmem:[%s7] sm:$0xf]
        %v4976 = vlaneseq
        %v4977 = vshrl.u32 %v4976, 7
        %v4978 = vsub.s32 0, %v4977
        %v4979 = vrot.slane %v4974, %v4978
        %v4980 = vlaneseq
        %v4981 = vshrl.u32 %v4980, 7
        %v4982 = vsub.s32 1, %v4981
        %v4983 = vrot.slane %v4974, %v4982
        %v4984 = vlaneseq
        %v4985 = vshrl.u32 %v4984, 7
        %v4986 = vsub.s32 2, %v4985
        %v4987 = vrot.slane %v4974, %v4986
        %v4988 = vlaneseq
        %v4989 = vshrl.u32 %v4988, 7
        %v4990 = vsub.s32 3, %v4989
        %v4991 = vrot.slane %v4974, %v4990
        %4996 = vmatprep.subr.mxu0 %v4847
        %4997 = vmatpush1.msra.mxu0 %v4846
        %4998 = vmatprep.subr.mxu0 %v4851
        %4999 = vmatpush1.msra.mxu0 %v4850
        %5000 = vmatprep.subr.mxu0 %v4855
        %5001 = vmatpush1.msra.mxu0 %v4854
        %5002 = vmatprep.subr.mxu0 %v4859
        %5003 = vmatpush1.msra.mxu0 %v4858
        %5004 = vmatprep.subr.mxu0 %v4863
        %5005 = vmatpush1.msra.mxu0 %v4862
        %5006 = vmatprep.subr.mxu0 %v4867
        %5007 = vmatpush1.msra.mxu0 %v4866
        %5008 = vmatprep.subr.mxu0 %v4871
        %5009 = vmatpush1.msra.mxu0 %v4870
        %5010 = vmatprep.subr.mxu0 %v4875
        %5011 = vmatpush1.msra.mxu0 %v4874
        %5012 = vmatprep.subr.mxu0 %v4879
        %5013 = vmatpush1.msra.mxu0 %v4878
        %5014 = vmatprep.subr.mxu0 %v4883
        %5015 = vmatpush1.msra.mxu0 %v4882
        %5016 = vmatprep.subr.mxu0 %v4887
        %5017 = vmatpush1.msra.mxu0 %v4886
        %5018 = vmatprep.subr.mxu0 %v4891
        %5019 = vmatpush1.msra.mxu0 %v4890
        %5020 = vmatprep.subr.mxu0 %v4895
        %5021 = vmatpush1.msra.mxu0 %v4894
        %5022 = vmatprep.subr.mxu0 %v4899
        %5023 = vmatpush1.msra.mxu0 %v4898
        %5024 = vmatprep.subr.mxu0 %v4903
        %5025 = vmatpush1.msra.mxu0 %v4902
        %5026 = vmatprep.subr.mxu0 %v4907
        %5027 = vmatpush1.msra.mxu0 %v4906
        %5028 = vmatprep.subr.mxu0 %v4911
        %5029 = vmatpush1.msra.mxu0 %v4910
        %5030 = vmatprep.subr.mxu0 %v4915
        %5031 = vmatpush1.msra.mxu0 %v4914
        %5032 = vmatprep.subr.mxu0 %v4919
        %5033 = vmatpush1.msra.mxu0 %v4918
        %5034 = vmatprep.subr.mxu0 %v4923
        %5035 = vmatpush1.msra.mxu0 %v4922
        %5036 = vmatprep.subr.mxu0 %v4927
        %5037 = vmatpush1.msra.mxu0 %v4926
        %5038 = vmatprep.subr.mxu0 %v4931
        %5039 = vmatpush1.msra.mxu0 %v4930
        %5040 = vmatprep.subr.mxu0 %v4935
        %5041 = vmatpush1.msra.mxu0 %v4934
        %5042 = vmatprep.subr.mxu0 %v4939
        %5043 = vmatpush1.msra.mxu0 %v4938
        %5044 = vmatprep.subr.mxu0 %v4943
        %5045 = vmatpush1.msra.mxu0 %v4942
        %5046 = vmatprep.subr.mxu0 %v4947
        %5047 = vmatpush1.msra.mxu0 %v4946
        %5048 = vmatprep.subr.mxu0 %v4951
        %5049 = vmatpush1.msra.mxu0 %v4950
        %5050 = vmatprep.subr.mxu0 %v4955
        %5051 = vmatpush1.msra.mxu0 %v4954
        %5052 = vmatprep.subr.mxu0 %v4959
        %5053 = vmatpush1.msra.mxu0 %v4958
        %5054 = vmatprep.subr.mxu0 %v4963
        %5055 = vmatpush1.msra.mxu0 %v4962
        %5056 = vmatprep.subr.mxu0 %v4967
        %5057 = vmatpush1.msra.mxu0 %v4966
        %5058 = vmatprep.subr.mxu0 %v4971
        %5059 = vmatpush1.msra.mxu0 %v4970
        %5060 = vmatprep.mubr.f32.mxu0 %v4726
        %5061 = vmatmul.mubr.f32.gmra.mrb[0].mxu0 %v4845
        %v5062 = vpop.f32.mrb[0].mxu0
        %v5063 = vadd.f32 %v4979, %v5062
        %v5064 = vpop.f32.mrb[0].mxu0
        %v5065 = vadd.f32 %v4983, %v5064
        %5066 = vdwg.mxu0
        %5067 = vmatprep.subr.mxu0 %v4849
        %5068 = vmatpush1.msra.mxu0 %v4848
        %5069 = vmatprep.subr.mxu0 %v4853
        %5070 = vmatpush1.msra.mxu0 %v4852
        %5071 = vmatprep.subr.mxu0 %v4857
        %5072 = vmatpush1.msra.mxu0 %v4856
        %5073 = vmatprep.subr.mxu0 %v4861
        %5074 = vmatpush1.msra.mxu0 %v4860
        %5075 = vmatprep.subr.mxu0 %v4865
        %5076 = vmatpush1.msra.mxu0 %v4864
        %5077 = vmatprep.subr.mxu0 %v4869
        %5078 = vmatpush1.msra.mxu0 %v4868
        %5079 = vmatprep.subr.mxu0 %v4873
        %5080 = vmatpush1.msra.mxu0 %v4872
        %5081 = vmatprep.subr.mxu0 %v4877
        %5082 = vmatpush1.msra.mxu0 %v4876
        %5083 = vmatprep.subr.mxu0 %v4881
        %5084 = vmatpush1.msra.mxu0 %v4880
        %5085 = vmatprep.subr.mxu0 %v4885
        %5086 = vmatpush1.msra.mxu0 %v4884
        %5087 = vmatprep.subr.mxu0 %v4889
        %5088 = vmatpush1.msra.mxu0 %v4888
        %5089 = vmatprep.subr.mxu0 %v4893
        %5090 = vmatpush1.msra.mxu0 %v4892
        %5091 = vmatprep.subr.mxu0 %v4897
        %5092 = vmatpush1.msra.mxu0 %v4896
        %5093 = vmatprep.subr.mxu0 %v4901
        %5094 = vmatpush1.msra.mxu0 %v4900
        %5095 = vmatprep.subr.mxu0 %v4905
        %5096 = vmatpush1.msra.mxu0 %v4904
        %5097 = vmatprep.subr.mxu0 %v4909
        %5098 = vmatpush1.msra.mxu0 %v4908
        %5099 = vmatprep.subr.mxu0 %v4913
        %5100 = vmatpush1.msra.mxu0 %v4912
        %5101 = vmatprep.subr.mxu0 %v4917
        %5102 = vmatpush1.msra.mxu0 %v4916
        %5103 = vmatprep.subr.mxu0 %v4921
        %5104 = vmatpush1.msra.mxu0 %v4920
        %5105 = vmatprep.subr.mxu0 %v4925
        %5106 = vmatpush1.msra.mxu0 %v4924
        %5107 = vmatprep.subr.mxu0 %v4929
        %5108 = vmatpush1.msra.mxu0 %v4928
        %5109 = vmatprep.subr.mxu0 %v4933
        %5110 = vmatpush1.msra.mxu0 %v4932
        %5111 = vmatprep.subr.mxu0 %v4937
        %5112 = vmatpush1.msra.mxu0 %v4936
        %5113 = vmatprep.subr.mxu0 %v4941
        %5114 = vmatpush1.msra.mxu0 %v4940
        %5115 = vmatprep.subr.mxu0 %v4945
        %5116 = vmatpush1.msra.mxu0 %v4944
        %5117 = vmatprep.subr.mxu0 %v4949
        %5118 = vmatpush1.msra.mxu0 %v4948
        %5119 = vmatprep.subr.mxu0 %v4953
        %5120 = vmatpush1.msra.mxu0 %v4952
        %5121 = vmatprep.subr.mxu0 %v4957
        %5122 = vmatpush1.msra.mxu0 %v4956
        %5123 = vmatprep.subr.mxu0 %v4961
        %5124 = vmatpush1.msra.mxu0 %v4960
        %5125 = vmatprep.subr.mxu0 %v4965
        %5126 = vmatpush1.msra.mxu0 %v4964
        %5127 = vmatprep.subr.mxu0 %v4969
        %5128 = vmatpush1.msra.mxu0 %v4968
        %5129 = vmatprep.subr.mxu0 %v4973
        %5130 = vmatpush1.msra.mxu0 %v4972
        %5131 = vmatprep.mubr.f32.mxu0 %v4726
        %5132 = vmatmul.mubr.f32.gmra.mrb[0].mxu0 %v4845
        %v5133 = vpop.f32.mrb[0].mxu0
        %v5134 = vadd.f32 %v4987, %v5133
        %v5135 = vpop.f32.mrb[0].mxu0
        %v5136 = vadd.f32 %v4991, %v5135
        %5137 = vdwg.mxu0
        %v5138 = vxor.u32 %v5063, 2147483648
        %v5139 = vxor.u32 %v5065, 2147483648
        %v5140 = vxor.u32 %v5134, 2147483648
        %v5141 = vmul.f32 %v5138, 1.442695
        %v5142 = vpow.pop %v5141
        %v5143 = vmul.f32 %v5139, 1.442695
        %v5144 = vpow.pop %v5143
        %v5145 = vmul.f32 %v5140, 1.442695
        %v5146 = vpow.pop %v5145
        %v5147 = vadd.f32 %v5142, 1.0
        %v5148 = vadd.f32 %v5144, 1.0
        %v5149 = vadd.f32 %v5146, 1.0
        %v5150 = vrcp.pop %v5147
        %v5151 = vmul.f32 1.0, %v5150
        %v5152 = vrcp.pop %v5148
        %v5153 = vmul.f32 1.0, %v5152
        %v5154 = vrcp.pop %v5149
        %v5155 = vmul.f32 1.0, %v5154
        %v5156 = vtanh.pop %v5136
        %v5157 = vmul.f32 %v5153, %v4724
        %v5158 = vmul.f32 %v5151, %v5156
        %v5159 = vadd.f32 %v5157, %v5158
        %v5160 = vtanh.pop %v5159
        %v5161 = vmul.f32 %v5155, %v5160
        %v5162 = vld [vmem:[%s8] sm:$0xff]
        %v5163 = vld [vmem:[%s8 + $0x8] sm:$0xff]
        %v5164 = vld [vmem:[%s8 + $0x10] sm:$0xff]
        %v5165 = vld [vmem:[%s8 + $0x18] sm:$0xff]
        %v5166 = vld [vmem:[%s8 + $0x20] sm:$0xff]
        %v5167 = vld [vmem:[%s8 + $0x28] sm:$0xff]
        %v5168 = vld [vmem:[%s8 + $0x30] sm:$0xff]
        %v5169 = vld [vmem:[%s8 + $0x38] sm:$0xff]
        %v5170 = vld [vmem:[%s8 + $0x40] sm:$0xff]
        %v5171 = vld [vmem:[%s8 + $0x48] sm:$0xff]
        %v5172 = vld [vmem:[%s8 + $0x50] sm:$0xff]
        %v5173 = vld [vmem:[%s8 + $0x58] sm:$0xff]
        %v5174 = vld [vmem:[%s8 + $0x60] sm:$0xff]
        %v5175 = vld [vmem:[%s8 + $0x68] sm:$0xff]
        %v5176 = vld [vmem:[%s8 + $0x70] sm:$0xff]
        %v5177 = vld [vmem:[%s8 + $0x78] sm:$0xff]
        %v5178 = vld [vmem:[%s9] sm:$0x1]
        %v5180 = vlaneseq
        %v5181 = vshrl.u32 %v5180, 7
        %v5182 = vsub.s32 0, %v5181
        %v5183 = vrot.slane %v5178, %v5182
        %5185 = vmatprep.subr.mxu0 0.0
        %5186 = vmatpush1.msra.mxu0 %v5162
        %5187 = vmatprep.subr.mxu0 0.0
        %5188 = vmatpush1.msra.mxu0 %v5163
        %5189 = vmatprep.subr.mxu0 0.0
        %5190 = vmatpush1.msra.mxu0 %v5164
        %5191 = vmatprep.subr.mxu0 0.0
        %5192 = vmatpush1.msra.mxu0 %v5165
        %5193 = vmatprep.subr.mxu0 0.0
        %5194 = vmatpush1.msra.mxu0 %v5166
        %5195 = vmatprep.subr.mxu0 0.0
        %5196 = vmatpush1.msra.mxu0 %v5167
        %5197 = vmatprep.subr.mxu0 0.0
        %5198 = vmatpush1.msra.mxu0 %v5168
        %5199 = vmatprep.subr.mxu0 0.0
        %5200 = vmatpush1.msra.mxu0 %v5169
        %5201 = vmatprep.subr.mxu0 0.0
        %5202 = vmatpush1.msra.mxu0 %v5170
        %5203 = vmatprep.subr.mxu0 0.0
        %5204 = vmatpush1.msra.mxu0 %v5171
        %5205 = vmatprep.subr.mxu0 0.0
        %5206 = vmatpush1.msra.mxu0 %v5172
        %5207 = vmatprep.subr.mxu0 0.0
        %5208 = vmatpush1.msra.mxu0 %v5173
        %5209 = vmatprep.subr.mxu0 0.0
        %5210 = vmatpush1.msra.mxu0 %v5174
        %5211 = vmatprep.subr.mxu0 0.0
        %5212 = vmatpush1.msra.mxu0 %v5175
        %5213 = vmatprep.subr.mxu0 0.0
        %5214 = vmatpush1.msra.mxu0 %v5176
        %5215 = vmatprep.subr.mxu0 0.0
        %5216 = vmatpush1.msra.mxu0 %v5177
        %5217 = vmatprep.subr.mxu0 0.0
        %5218 = vmatpush1.msra.mxu0 0.0
        %5219 = vmatprep.subr.mxu0 0.0
        %5220 = vmatpush1.msra.mxu0 0.0
        %5221 = vmatprep.subr.mxu0 0.0
        %5222 = vmatpush1.msra.mxu0 0.0
        %5223 = vmatprep.subr.mxu0 0.0
        %5224 = vmatpush1.msra.mxu0 0.0
        %5225 = vmatprep.subr.mxu0 0.0
        %5226 = vmatpush1.msra.mxu0 0.0
        %5227 = vmatprep.subr.mxu0 0.0
        %5228 = vmatpush1.msra.mxu0 0.0
        %5229 = vmatprep.subr.mxu0 0.0
        %5230 = vmatpush1.msra.mxu0 0.0
        %5231 = vmatprep.subr.mxu0 0.0
        %5232 = vmatpush1.msra.mxu0 0.0
        %5233 = vmatprep.subr.mxu0 0.0
        %5234 = vmatpush1.msra.mxu0 0.0
        %5235 = vmatprep.subr.mxu0 0.0
        %5236 = vmatpush1.msra.mxu0 0.0
        %5237 = vmatprep.subr.mxu0 0.0
        %5238 = vmatpush1.msra.mxu0 0.0
        %5239 = vmatprep.subr.mxu0 0.0
        %5240 = vmatpush1.msra.mxu0 0.0
        %5241 = vmatprep.subr.mxu0 0.0
        %5242 = vmatpush1.msra.mxu0 0.0
        %5243 = vmatprep.subr.mxu0 0.0
        %5244 = vmatpush1.msra.mxu0 0.0
        %5245 = vmatprep.subr.mxu0 0.0
        %5246 = vmatpush1.msra.mxu0 0.0
        %5247 = vmatprep.subr.mxu0 0.0
        %5248 = vmatpush1.msra.mxu0 0.0
        %5249 = vmatprep.mubr.f32.mxu0 0.0
        %5250 = vmatmul.mubr.f32.gmra.mrb[0].mxu0 %v5161
        %v5251 = vpop.f32.mrb[0].mxu0
        %v5252 = vadd.f32 %v5183, %v5251
        %v5253 = vpop.f32.mrb[0].mxu0
        %5254 = vdwg.mxu0
        %5255 = vst [vmem:[%s435 + $0x30] sm:$0xff] %v5252
        %5256 = vmax.xlane.f32.xlu0 %v5252
        %v5257 = vpop.xlane.xlu0 %5256
        %vm5258 = vcmp.eq.f32.partialorder %v5252, %v5257
        %v5259 = vsel %vm5258, %v438, 128
        %v5260 = vand.u32 %v5259, 65535
        %v5261 = vshra.s32 %v5259, 16
        %v5262 = vcvt.s32.f32 %v5260
        %v5263 = vcvt.s32.f32 %v5261
        %5264 = vmin.xlane.f32.xlu0 %v5263
        %v5265 = vpop.xlane.xlu0 %5264
        %vm5266 = vcmp.eq.f32.partialorder %v5263, %v5265
        %v5267 = vsel %vm5266, %v5262, inf
        %5268 = vmin.xlane.f32.xlu0 %v5267
        %v5269 = vpop.xlane.xlu0 %5268
        %v5270 = vcvt.f32.s32 %v5269
        %v5271 = vcvt.f32.s32 %v5265
        %v5272 = vshll.u32 %v5271, 16
        %v5273 = vadd.s32 %v5272, %v5270
        %vm5274 = vcmp.eq.s32.totalorder %v438, %v5273
        %v5275 = vsel %vm5274, 1, 0
        %v5276 = vcvt.s32.f32 %v5275
        %v5277 = vld [vmem:[%s423 + $0x30] sm:$0xff]
        %v5278 = vld [vmem:[%s429 + $0x30] sm:$0xff]
        %vm5279 = vcmp.gt.f32.partialorder %v5278, 0.5
        %v5280 = vsel %vm5279, %v5277, %v5276
        %v5281 = vld [vmem:[#allocation5] sm:$0xff]
        %v5282 = vld [vmem:[#allocation5 + $0x8] sm:$0xff]
        %v5283 = vld [vmem:[#allocation5 + $0x10] sm:$0xff]
        %v5284 = vld [vmem:[#allocation5 + $0x18] sm:$0xff]
        %v5285 = vld [vmem:[#allocation5 + $0x20] sm:$0xff]
        %v5286 = vld [vmem:[#allocation5 + $0x28] sm:$0xff]
        %v5287 = vld [vmem:[#allocation5 + $0x30] sm:$0xff]
        %v5288 = vld [vmem:[#allocation5 + $0x38] sm:$0xff]
        %v5289 = vld [vmem:[#allocation5 + $0x40] sm:$0xff]
        %v5290 = vld [vmem:[#allocation5 + $0x48] sm:$0xff]
        %v5291 = vld [vmem:[#allocation5 + $0x50] sm:$0xff]
        %v5292 = vld [vmem:[#allocation5 + $0x58] sm:$0xff]
        %v5293 = vld [vmem:[#allocation5 + $0x60] sm:$0xff]
        %v5294 = vld [vmem:[#allocation5 + $0x68] sm:$0xff]
        %v5295 = vld [vmem:[#allocation5 + $0x70] sm:$0xff]
        %v5296 = vld [vmem:[#allocation5 + $0x78] sm:$0xff]
        %v5297 = vld [vmem:[#allocation5 + $0x80] sm:$0xff]
        %v5298 = vld [vmem:[#allocation5 + $0x88] sm:$0xff]
        %v5299 = vld [vmem:[#allocation5 + $0x90] sm:$0xff]
        %v5300 = vld [vmem:[#allocation5 + $0x98] sm:$0xff]
        %v5301 = vld [vmem:[#allocation5 + $0xa0] sm:$0xff]
        %v5302 = vld [vmem:[#allocation5 + $0xa8] sm:$0xff]
        %v5303 = vld [vmem:[#allocation5 + $0xb0] sm:$0xff]
        %v5304 = vld [vmem:[#allocation5 + $0xb8] sm:$0xff]
        %v5305 = vld [vmem:[#allocation5 + $0xc0] sm:$0xff]
        %v5306 = vld [vmem:[#allocation5 + $0xc8] sm:$0xff]
        %v5307 = vld [vmem:[#allocation5 + $0xd0] sm:$0xff]
        %v5308 = vld [vmem:[#allocation5 + $0xd8] sm:$0xff]
        %v5309 = vld [vmem:[#allocation5 + $0xe0] sm:$0xff]
        %v5310 = vld [vmem:[#allocation5 + $0xe8] sm:$0xff]
        %v5311 = vld [vmem:[#allocation5 + $0xf0] sm:$0xff]
        %v5312 = vld [vmem:[#allocation5 + $0xf8] sm:$0xff]
        %v5313 = vld [vmem:[#allocation5 + $0x100] sm:$0xff]
        %v5314 = vld [vmem:[#allocation5 + $0x108] sm:$0xff]
        %v5315 = vld [vmem:[#allocation5 + $0x110] sm:$0xff]
        %v5316 = vld [vmem:[#allocation5 + $0x118] sm:$0xff]
        %v5317 = vld [vmem:[#allocation5 + $0x120] sm:$0xff]
        %v5318 = vld [vmem:[#allocation5 + $0x128] sm:$0xff]
        %v5319 = vld [vmem:[#allocation5 + $0x130] sm:$0xff]
        %v5320 = vld [vmem:[#allocation5 + $0x138] sm:$0xff]
        %v5321 = vld [vmem:[#allocation5 + $0x140] sm:$0xff]
        %v5322 = vld [vmem:[#allocation5 + $0x148] sm:$0xff]
        %v5323 = vld [vmem:[#allocation5 + $0x150] sm:$0xff]
        %v5324 = vld [vmem:[#allocation5 + $0x158] sm:$0xff]
        %v5325 = vld [vmem:[#allocation5 + $0x160] sm:$0xff]
        %v5326 = vld [vmem:[#allocation5 + $0x168] sm:$0xff]
        %v5327 = vld [vmem:[#allocation5 + $0x170] sm:$0xff]
        %v5328 = vld [vmem:[#allocation5 + $0x178] sm:$0xff]
        %v5329 = vld [vmem:[#allocation5 + $0x180] sm:$0xff]
        %v5330 = vld [vmem:[#allocation5 + $0x188] sm:$0xff]
        %v5331 = vld [vmem:[#allocation5 + $0x190] sm:$0xff]
        %v5332 = vld [vmem:[#allocation5 + $0x198] sm:$0xff]
        %v5333 = vld [vmem:[#allocation5 + $0x1a0] sm:$0xff]
        %v5334 = vld [vmem:[#allocation5 + $0x1a8] sm:$0xff]
        %v5335 = vld [vmem:[#allocation5 + $0x1b0] sm:$0xff]
        %v5336 = vld [vmem:[#allocation5 + $0x1b8] sm:$0xff]
        %v5337 = vld [vmem:[#allocation5 + $0x1c0] sm:$0xff]
        %v5338 = vld [vmem:[#allocation5 + $0x1c8] sm:$0xff]
        %v5339 = vld [vmem:[#allocation5 + $0x1d0] sm:$0xff]
        %v5340 = vld [vmem:[#allocation5 + $0x1d8] sm:$0xff]
        %v5341 = vld [vmem:[#allocation5 + $0x1e0] sm:$0xff]
        %v5342 = vld [vmem:[#allocation5 + $0x1e8] sm:$0xff]
        %v5343 = vld [vmem:[#allocation5 + $0x1f0] sm:$0xff]
        %v5344 = vld [vmem:[#allocation5 + $0x1f8] sm:$0xff]
        %v5345 = vld [vmem:[#allocation5 + $0x200] sm:$0xff]
        %v5346 = vld [vmem:[#allocation5 + $0x208] sm:$0xff]
        %v5347 = vld [vmem:[#allocation5 + $0x210] sm:$0xff]
        %v5348 = vld [vmem:[#allocation5 + $0x218] sm:$0xff]
        %v5349 = vld [vmem:[#allocation5 + $0x220] sm:$0xff]
        %v5350 = vld [vmem:[#allocation5 + $0x228] sm:$0xff]
        %v5351 = vld [vmem:[#allocation5 + $0x230] sm:$0xff]
        %v5352 = vld [vmem:[#allocation5 + $0x238] sm:$0xff]
        %v5353 = vld [vmem:[#allocation5 + $0x240] sm:$0xff]
        %v5354 = vld [vmem:[#allocation5 + $0x248] sm:$0xff]
        %v5355 = vld [vmem:[#allocation5 + $0x250] sm:$0xff]
        %v5356 = vld [vmem:[#allocation5 + $0x258] sm:$0xff]
        %v5357 = vld [vmem:[#allocation5 + $0x260] sm:$0xff]
        %v5358 = vld [vmem:[#allocation5 + $0x268] sm:$0xff]
        %v5359 = vld [vmem:[#allocation5 + $0x270] sm:$0xff]
        %v5360 = vld [vmem:[#allocation5 + $0x278] sm:$0xff]
        %v5361 = vld [vmem:[#allocation5 + $0x280] sm:$0xff]
        %v5362 = vld [vmem:[#allocation5 + $0x288] sm:$0xff]
        %v5363 = vld [vmem:[#allocation5 + $0x290] sm:$0xff]
        %v5364 = vld [vmem:[#allocation5 + $0x298] sm:$0xff]
        %v5365 = vld [vmem:[#allocation5 + $0x2a0] sm:$0xff]
        %v5366 = vld [vmem:[#allocation5 + $0x2a8] sm:$0xff]
        %v5367 = vld [vmem:[#allocation5 + $0x2b0] sm:$0xff]
        %v5368 = vld [vmem:[#allocation5 + $0x2b8] sm:$0xff]
        %v5369 = vld [vmem:[#allocation5 + $0x2c0] sm:$0xff]
        %v5370 = vld [vmem:[#allocation5 + $0x2c8] sm:$0xff]
        %v5371 = vld [vmem:[#allocation5 + $0x2d0] sm:$0xff]
        %v5372 = vld [vmem:[#allocation5 + $0x2d8] sm:$0xff]
        %v5373 = vld [vmem:[#allocation5 + $0x2e0] sm:$0xff]
        %v5374 = vld [vmem:[#allocation5 + $0x2e8] sm:$0xff]
        %v5375 = vld [vmem:[#allocation5 + $0x2f0] sm:$0xff]
        %v5376 = vld [vmem:[#allocation5 + $0x2f8] sm:$0xff]
        %v5377 = vld [vmem:[#allocation5 + $0x300] sm:$0xff]
        %v5378 = vld [vmem:[#allocation5 + $0x308] sm:$0xff]
        %v5379 = vld [vmem:[#allocation5 + $0x310] sm:$0xff]
        %v5380 = vld [vmem:[#allocation5 + $0x318] sm:$0xff]
        %v5381 = vld [vmem:[#allocation5 + $0x320] sm:$0xff]
        %v5382 = vld [vmem:[#allocation5 + $0x328] sm:$0xff]
        %v5383 = vld [vmem:[#allocation5 + $0x330] sm:$0xff]
        %v5384 = vld [vmem:[#allocation5 + $0x338] sm:$0xff]
        %v5385 = vld [vmem:[#allocation5 + $0x340] sm:$0xff]
        %v5386 = vld [vmem:[#allocation5 + $0x348] sm:$0xff]
        %v5387 = vld [vmem:[#allocation5 + $0x350] sm:$0xff]
        %v5388 = vld [vmem:[#allocation5 + $0x358] sm:$0xff]
        %v5389 = vld [vmem:[#allocation5 + $0x360] sm:$0xff]
        %v5390 = vld [vmem:[#allocation5 + $0x368] sm:$0xff]
        %v5391 = vld [vmem:[#allocation5 + $0x370] sm:$0xff]
        %v5392 = vld [vmem:[#allocation5 + $0x378] sm:$0xff]
        %v5393 = vld [vmem:[#allocation5 + $0x380] sm:$0xff]
        %v5394 = vld [vmem:[#allocation5 + $0x388] sm:$0xff]
        %v5395 = vld [vmem:[#allocation5 + $0x390] sm:$0xff]
        %v5396 = vld [vmem:[#allocation5 + $0x398] sm:$0xff]
        %v5397 = vld [vmem:[#allocation5 + $0x3a0] sm:$0xff]
        %v5398 = vld [vmem:[#allocation5 + $0x3a8] sm:$0xff]
        %v5399 = vld [vmem:[#allocation5 + $0x3b0] sm:$0xff]
        %v5400 = vld [vmem:[#allocation5 + $0x3b8] sm:$0xff]
        %v5401 = vld [vmem:[#allocation5 + $0x3c0] sm:$0xff]
        %v5402 = vld [vmem:[#allocation5 + $0x3c8] sm:$0xff]
        %v5403 = vld [vmem:[#allocation5 + $0x3d0] sm:$0xff]
        %v5404 = vld [vmem:[#allocation5 + $0x3d8] sm:$0xff]
        %v5405 = vld [vmem:[#allocation5 + $0x3e0] sm:$0xff]
        %v5406 = vld [vmem:[#allocation5 + $0x3e8] sm:$0xff]
        %v5407 = vld [vmem:[#allocation5 + $0x3f0] sm:$0xff]
        %v5408 = vld [vmem:[#allocation5 + $0x3f8] sm:$0xff]
        %v5409 = vld [vmem:[%s7] sm:$0xf]
        %v5411 = vlaneseq
        %v5412 = vshrl.u32 %v5411, 7
        %v5413 = vsub.s32 0, %v5412
        %v5414 = vrot.slane %v5409, %v5413
        %v5415 = vlaneseq
        %v5416 = vshrl.u32 %v5415, 7
        %v5417 = vsub.s32 1, %v5416
        %v5418 = vrot.slane %v5409, %v5417
        %v5419 = vlaneseq
        %v5420 = vshrl.u32 %v5419, 7
        %v5421 = vsub.s32 2, %v5420
        %v5422 = vrot.slane %v5409, %v5421
        %v5423 = vlaneseq
        %v5424 = vshrl.u32 %v5423, 7
        %v5425 = vsub.s32 3, %v5424
        %v5426 = vrot.slane %v5409, %v5425
        %5431 = vmatprep.subr.mxu0 %v5282
        %5432 = vmatpush1.msra.mxu0 %v5281
        %5433 = vmatprep.subr.mxu0 %v5286
        %5434 = vmatpush1.msra.mxu0 %v5285
        %5435 = vmatprep.subr.mxu0 %v5290
        %5436 = vmatpush1.msra.mxu0 %v5289
        %5437 = vmatprep.subr.mxu0 %v5294
        %5438 = vmatpush1.msra.mxu0 %v5293
        %5439 = vmatprep.subr.mxu0 %v5298
        %5440 = vmatpush1.msra.mxu0 %v5297
        %5441 = vmatprep.subr.mxu0 %v5302
        %5442 = vmatpush1.msra.mxu0 %v5301
        %5443 = vmatprep.subr.mxu0 %v5306
        %5444 = vmatpush1.msra.mxu0 %v5305
        %5445 = vmatprep.subr.mxu0 %v5310
        %5446 = vmatpush1.msra.mxu0 %v5309
        %5447 = vmatprep.subr.mxu0 %v5314
        %5448 = vmatpush1.msra.mxu0 %v5313
        %5449 = vmatprep.subr.mxu0 %v5318
        %5450 = vmatpush1.msra.mxu0 %v5317
        %5451 = vmatprep.subr.mxu0 %v5322
        %5452 = vmatpush1.msra.mxu0 %v5321
        %5453 = vmatprep.subr.mxu0 %v5326
        %5454 = vmatpush1.msra.mxu0 %v5325
        %5455 = vmatprep.subr.mxu0 %v5330
        %5456 = vmatpush1.msra.mxu0 %v5329
        %5457 = vmatprep.subr.mxu0 %v5334
        %5458 = vmatpush1.msra.mxu0 %v5333
        %5459 = vmatprep.subr.mxu0 %v5338
        %5460 = vmatpush1.msra.mxu0 %v5337
        %5461 = vmatprep.subr.mxu0 %v5342
        %5462 = vmatpush1.msra.mxu0 %v5341
        %5463 = vmatprep.subr.mxu0 %v5346
        %5464 = vmatpush1.msra.mxu0 %v5345
        %5465 = vmatprep.subr.mxu0 %v5350
        %5466 = vmatpush1.msra.mxu0 %v5349
        %5467 = vmatprep.subr.mxu0 %v5354
        %5468 = vmatpush1.msra.mxu0 %v5353
        %5469 = vmatprep.subr.mxu0 %v5358
        %5470 = vmatpush1.msra.mxu0 %v5357
        %5471 = vmatprep.subr.mxu0 %v5362
        %5472 = vmatpush1.msra.mxu0 %v5361
        %5473 = vmatprep.subr.mxu0 %v5366
        %5474 = vmatpush1.msra.mxu0 %v5365
        %5475 = vmatprep.subr.mxu0 %v5370
        %5476 = vmatpush1.msra.mxu0 %v5369
        %5477 = vmatprep.subr.mxu0 %v5374
        %5478 = vmatpush1.msra.mxu0 %v5373
        %5479 = vmatprep.subr.mxu0 %v5378
        %5480 = vmatpush1.msra.mxu0 %v5377
        %5481 = vmatprep.subr.mxu0 %v5382
        %5482 = vmatpush1.msra.mxu0 %v5381
        %5483 = vmatprep.subr.mxu0 %v5386
        %5484 = vmatpush1.msra.mxu0 %v5385
        %5485 = vmatprep.subr.mxu0 %v5390
        %5486 = vmatpush1.msra.mxu0 %v5389
        %5487 = vmatprep.subr.mxu0 %v5394
        %5488 = vmatpush1.msra.mxu0 %v5393
        %5489 = vmatprep.subr.mxu0 %v5398
        %5490 = vmatpush1.msra.mxu0 %v5397
        %5491 = vmatprep.subr.mxu0 %v5402
        %5492 = vmatpush1.msra.mxu0 %v5401
        %5493 = vmatprep.subr.mxu0 %v5406
        %5494 = vmatpush1.msra.mxu0 %v5405
        %5495 = vmatprep.mubr.f32.mxu0 %v5161
        %5496 = vmatmul.mubr.f32.gmra.mrb[0].mxu0 %v5280
        %v5497 = vpop.f32.mrb[0].mxu0
        %v5498 = vadd.f32 %v5414, %v5497
        %v5499 = vpop.f32.mrb[0].mxu0
        %v5500 = vadd.f32 %v5418, %v5499
        %5501 = vdwg.mxu0
        %5502 = vmatprep.subr.mxu0 %v5284
        %5503 = vmatpush1.msra.mxu0 %v5283
        %5504 = vmatprep.subr.mxu0 %v5288
        %5505 = vmatpush1.msra.mxu0 %v5287
        %5506 = vmatprep.subr.mxu0 %v5292
        %5507 = vmatpush1.msra.mxu0 %v5291
        %5508 = vmatprep.subr.mxu0 %v5296
        %5509 = vmatpush1.msra.mxu0 %v5295
        %5510 = vmatprep.subr.mxu0 %v5300
        %5511 = vmatpush1.msra.mxu0 %v5299
        %5512 = vmatprep.subr.mxu0 %v5304
        %5513 = vmatpush1.msra.mxu0 %v5303
        %5514 = vmatprep.subr.mxu0 %v5308
        %5515 = vmatpush1.msra.mxu0 %v5307
        %5516 = vmatprep.subr.mxu0 %v5312
        %5517 = vmatpush1.msra.mxu0 %v5311
        %5518 = vmatprep.subr.mxu0 %v5316
        %5519 = vmatpush1.msra.mxu0 %v5315
        %5520 = vmatprep.subr.mxu0 %v5320
        %5521 = vmatpush1.msra.mxu0 %v5319
        %5522 = vmatprep.subr.mxu0 %v5324
        %5523 = vmatpush1.msra.mxu0 %v5323
        %5524 = vmatprep.subr.mxu0 %v5328
        %5525 = vmatpush1.msra.mxu0 %v5327
        %5526 = vmatprep.subr.mxu0 %v5332
        %5527 = vmatpush1.msra.mxu0 %v5331
        %5528 = vmatprep.subr.mxu0 %v5336
        %5529 = vmatpush1.msra.mxu0 %v5335
        %5530 = vmatprep.subr.mxu0 %v5340
        %5531 = vmatpush1.msra.mxu0 %v5339
        %5532 = vmatprep.subr.mxu0 %v5344
        %5533 = vmatpush1.msra.mxu0 %v5343
        %5534 = vmatprep.subr.mxu0 %v5348
        %5535 = vmatpush1.msra.mxu0 %v5347
        %5536 = vmatprep.subr.mxu0 %v5352
        %5537 = vmatpush1.msra.mxu0 %v5351
        %5538 = vmatprep.subr.mxu0 %v5356
        %5539 = vmatpush1.msra.mxu0 %v5355
        %5540 = vmatprep.subr.mxu0 %v5360
        %5541 = vmatpush1.msra.mxu0 %v5359
        %5542 = vmatprep.subr.mxu0 %v5364
        %5543 = vmatpush1.msra.mxu0 %v5363
        %5544 = vmatprep.subr.mxu0 %v5368
        %5545 = vmatpush1.msra.mxu0 %v5367
        %5546 = vmatprep.subr.mxu0 %v5372
        %5547 = vmatpush1.msra.mxu0 %v5371
        %5548 = vmatprep.subr.mxu0 %v5376
        %5549 = vmatpush1.msra.mxu0 %v5375
        %5550 = vmatprep.subr.mxu0 %v5380
        %5551 = vmatpush1.msra.mxu0 %v5379
        %5552 = vmatprep.subr.mxu0 %v5384
        %5553 = vmatpush1.msra.mxu0 %v5383
        %5554 = vmatprep.subr.mxu0 %v5388
        %5555 = vmatpush1.msra.mxu0 %v5387
        %5556 = vmatprep.subr.mxu0 %v5392
        %5557 = vmatpush1.msra.mxu0 %v5391
        %5558 = vmatprep.subr.mxu0 %v5396
        %5559 = vmatpush1.msra.mxu0 %v5395
        %5560 = vmatprep.subr.mxu0 %v5400
        %5561 = vmatpush1.msra.mxu0 %v5399
        %5562 = vmatprep.subr.mxu0 %v5404
        %5563 = vmatpush1.msra.mxu0 %v5403
        %5564 = vmatprep.subr.mxu0 %v5408
        %5565 = vmatpush1.msra.mxu0 %v5407
        %5566 = vmatprep.mubr.f32.mxu0 %v5161
        %5567 = vmatmul.mubr.f32.gmra.mrb[0].mxu0 %v5280
        %v5568 = vpop.f32.mrb[0].mxu0
        %v5569 = vadd.f32 %v5422, %v5568
        %v5570 = vpop.f32.mrb[0].mxu0
        %v5571 = vadd.f32 %v5426, %v5570
        %5572 = vdwg.mxu0
        %v5573 = vxor.u32 %v5498, 2147483648
        %v5574 = vxor.u32 %v5500, 2147483648
        %v5575 = vxor.u32 %v5569, 2147483648
        %v5576 = vmul.f32 %v5573, 1.442695
        %v5577 = vpow.pop %v5576
        %v5578 = vmul.f32 %v5574, 1.442695
        %v5579 = vpow.pop %v5578
        %v5580 = vmul.f32 %v5575, 1.442695
        %v5581 = vpow.pop %v5580
        %v5582 = vadd.f32 %v5577, 1.0
        %v5583 = vadd.f32 %v5579, 1.0
        %v5584 = vadd.f32 %v5581, 1.0
        %v5585 = vrcp.pop %v5582
        %v5586 = vmul.f32 1.0, %v5585
        %v5587 = vrcp.pop %v5583
        %v5588 = vmul.f32 1.0, %v5587
        %v5589 = vrcp.pop %v5584
        %v5590 = vmul.f32 1.0, %v5589
        %v5591 = vtanh.pop %v5571
        %v5592 = vmul.f32 %v5588, %v5159
        %v5593 = vmul.f32 %v5586, %v5591
        %v5594 = vadd.f32 %v5592, %v5593
        %v5595 = vtanh.pop %v5594
        %v5596 = vmul.f32 %v5590, %v5595
        %v5597 = vld [vmem:[%s8] sm:$0xff]
        %v5598 = vld [vmem:[%s8 + $0x8] sm:$0xff]
        %v5599 = vld [vmem:[%s8 + $0x10] sm:$0xff]
        %v5600 = vld [vmem:[%s8 + $0x18] sm:$0xff]
        %v5601 = vld [vmem:[%s8 + $0x20] sm:$0xff]
        %v5602 = vld [vmem:[%s8 + $0x28] sm:$0xff]
        %v5603 = vld [vmem:[%s8 + $0x30] sm:$0xff]
        %v5604 = vld [vmem:[%s8 + $0x38] sm:$0xff]
        %v5605 = vld [vmem:[%s8 + $0x40] sm:$0xff]
        %v5606 = vld [vmem:[%s8 + $0x48] sm:$0xff]
        %v5607 = vld [vmem:[%s8 + $0x50] sm:$0xff]
        %v5608 = vld [vmem:[%s8 + $0x58] sm:$0xff]
        %v5609 = vld [vmem:[%s8 + $0x60] sm:$0xff]
        %v5610 = vld [vmem:[%s8 + $0x68] sm:$0xff]
        %v5611 = vld [vmem:[%s8 + $0x70] sm:$0xff]
        %v5612 = vld [vmem:[%s8 + $0x78] sm:$0xff]
        %v5613 = vld [vmem:[%s9] sm:$0x1]
        %v5615 = vlaneseq
        %v5616 = vshrl.u32 %v5615, 7
        %v5617 = vsub.s32 0, %v5616
        %v5618 = vrot.slane %v5613, %v5617
        %5620 = vmatprep.subr.mxu0 0.0
        %5621 = vmatpush1.msra.mxu0 %v5597
        %5622 = vmatprep.subr.mxu0 0.0
        %5623 = vmatpush1.msra.mxu0 %v5598
        %5624 = vmatprep.subr.mxu0 0.0
        %5625 = vmatpush1.msra.mxu0 %v5599
        %5626 = vmatprep.subr.mxu0 0.0
        %5627 = vmatpush1.msra.mxu0 %v5600
        %5628 = vmatprep.subr.mxu0 0.0
        %5629 = vmatpush1.msra.mxu0 %v5601
        %5630 = vmatprep.subr.mxu0 0.0
        %5631 = vmatpush1.msra.mxu0 %v5602
        %5632 = vmatprep.subr.mxu0 0.0
        %5633 = vmatpush1.msra.mxu0 %v5603
        %5634 = vmatprep.subr.mxu0 0.0
        %5635 = vmatpush1.msra.mxu0 %v5604
        %5636 = vmatprep.subr.mxu0 0.0
        %5637 = vmatpush1.msra.mxu0 %v5605
        %5638 = vmatprep.subr.mxu0 0.0
        %5639 = vmatpush1.msra.mxu0 %v5606
        %5640 = vmatprep.subr.mxu0 0.0
        %5641 = vmatpush1.msra.mxu0 %v5607
        %5642 = vmatprep.subr.mxu0 0.0
        %5643 = vmatpush1.msra.mxu0 %v5608
        %5644 = vmatprep.subr.mxu0 0.0
        %5645 = vmatpush1.msra.mxu0 %v5609
        %5646 = vmatprep.subr.mxu0 0.0
        %5647 = vmatpush1.msra.mxu0 %v5610
        %5648 = vmatprep.subr.mxu0 0.0
        %5649 = vmatpush1.msra.mxu0 %v5611
        %5650 = vmatprep.subr.mxu0 0.0
        %5651 = vmatpush1.msra.mxu0 %v5612
        %5652 = vmatprep.subr.mxu0 0.0
        %5653 = vmatpush1.msra.mxu0 0.0
        %5654 = vmatprep.subr.mxu0 0.0
        %5655 = vmatpush1.msra.mxu0 0.0
        %5656 = vmatprep.subr.mxu0 0.0
        %5657 = vmatpush1.msra.mxu0 0.0
        %5658 = vmatprep.subr.mxu0 0.0
        %5659 = vmatpush1.msra.mxu0 0.0
        %5660 = vmatprep.subr.mxu0 0.0
        %5661 = vmatpush1.msra.mxu0 0.0
        %5662 = vmatprep.subr.mxu0 0.0
        %5663 = vmatpush1.msra.mxu0 0.0
        %5664 = vmatprep.subr.mxu0 0.0
        %5665 = vmatpush1.msra.mxu0 0.0
        %5666 = vmatprep.subr.mxu0 0.0
        %5667 = vmatpush1.msra.mxu0 0.0
        %5668 = vmatprep.subr.mxu0 0.0
        %5669 = vmatpush1.msra.mxu0 0.0
        %5670 = vmatprep.subr.mxu0 0.0
        %5671 = vmatpush1.msra.mxu0 0.0
        %5672 = vmatprep.subr.mxu0 0.0
        %5673 = vmatpush1.msra.mxu0 0.0
        %5674 = vmatprep.subr.mxu0 0.0
        %5675 = vmatpush1.msra.mxu0 0.0
        %5676 = vmatprep.subr.mxu0 0.0
        %5677 = vmatpush1.msra.mxu0 0.0
        %5678 = vmatprep.subr.mxu0 0.0
        %5679 = vmatpush1.msra.mxu0 0.0
        %5680 = vmatprep.subr.mxu0 0.0
        %5681 = vmatpush1.msra.mxu0 0.0
        %5682 = vmatprep.subr.mxu0 0.0
        %5683 = vmatpush1.msra.mxu0 0.0
        %5684 = vmatprep.mubr.f32.mxu0 0.0
        %5685 = vmatmul.mubr.f32.gmra.mrb[0].mxu0 %v5596
        %v5686 = vpop.f32.mrb[0].mxu0
        %v5687 = vadd.f32 %v5618, %v5686
        %v5688 = vpop.f32.mrb[0].mxu0
        %5689 = vdwg.mxu0
        %5690 = vst [vmem:[%s435 + $0x38] sm:$0xff] %v5687
        %s5691 = smul.u32 8, %s23
        %p5692 = scmp.lt.s32.totalorder %s5691, 15
        %s5693 = scalar_select %p5692, %s5691, 15
        %s5694 = smul.addr %s5693, 8
        %s5695 = scalar_lea.vmem %s10, %s5694
        // Predicated region
        $region69: #{seq2seq_forward.1} parent=59 // pred_check
          %p5696 = pneg %p266
        $region70: #{seq2seq_forward.1} parent=59 // pred_check_branch
          %5698 = sbr.rel (%p5696) target = $region72
        $region71: #{seq2seq_forward.1} parent=59 // pred_region
          %s5699 = smul.u32 8, %s23
        $region72: #{seq2seq_forward.1} parent=59 // pred_fallthru
          _
      $region60: #{seq2seq_forward.1} parent=5 // pred_fallthru
        _
      %p5700 = scmp.le.s32.totalorder 2, %s18
      // Predicated region
      $region73: #{seq2seq_forward.1} parent=5 // pred_check
        %p5701 = pneg %p5700
      $region74: #{seq2seq_forward.1} parent=5 // pred_check_branch
        %5703 = sbr.rel (%p5701) target = $region76
      $region75: #{seq2seq_forward.1} parent=5 // pred_region
        %s5704 = ssub.s32 %s18, 2
        // Predicated region
        $region77: #{seq2seq_forward.1} parent=75 // pred_check
          %p5705 = pneg %p272
        $region78: #{seq2seq_forward.1} parent=75 // pred_check_branch
          %5707 = sbr.rel (%p5705) target = $region80
        $region79: #{seq2seq_forward.1} parent=75 // pred_region
          %s5708 = smul.u32 8, %s24
          %p5709 = scmp.lt.s32.totalorder %s5708, 15
          %s5710 = scalar_select %p5709, %s5708, 15
          %s5711 = smul.addr %s5710, 8
          %s5712 = scalar_lea.vmem %s10, %s5711
        $region80: #{seq2seq_forward.1} parent=75 // pred_fallthru
          _
      $region76: #{seq2seq_forward.1} parent=5 // pred_fallthru
        _
    $region6: #{seq2seq_forward.1} parent=1 // loop_footer
      %s22 = sadd.s32 1, %s18
    $region7: #{seq2seq_forward.1} parent=1 // loop_footer_branch
      %17 = sbr.rel target = $region3
    $region8: #{seq2seq_forward.1} parent=1 // loop_exit
      _
    %5713 = vsyncpa [#allocation4], 1
    %s5714 = scalar_lea.sflag [#allocation4], 1
    %5715 = vsyncpa %s5714, 1
    %5716 = vsyncpa [#allocation6], 1

</llo_original>
